<compile_context>
chip_gen: v7x
topology: tpu7x:2x2x1
jax: 0.10.0
libtpu: 0.0.40
codegen_flags: <defaults>
</compile_context>

<pallas_src>
import math

import numpy as np
import jax
import jax.numpy as jnp
from jax import lax
from jax.experimental import pallas as pl
from jax.experimental.pallas import tpu as pltpu


# --------------------------------------------------------------------------
# Fused Pallas kernel: conv(3x3, s=2, p=1) + bias + ReLU  +  sine pos-embedding
# --------------------------------------------------------------------------
def _make_fused_kernel(*, TH, WT, Cin, Cout, Wo, D, inv_t):
    """Build the fused kernel.  All sizes / coefficients are compile-time."""
    WTK = WT * Cin            # dot K per W-chunk
    WTC = WT * Cout           # dot N per W-chunk (128-lane aligned when possible)
    n_wc = Wo // WT
    half_pi = math.pi / 2.0

    def kernel(xph_ref, wbd_ref, bias_ref, yemb_ref, xemb_ref, feat_ref, pos_ref):
        r = pl.program_id(1)
        hr0 = pl.multiple_of(r * TH, TH)       # first output row of this tile
        bias = bias_ref[...]                   # [1, WTC]

        # ---- 3x3 stride-2 conv: 9 accumulated MXU dots per 128-lane W-chunk ----
        # xph_ref[0, ph, pw, hh, ww*Cin + c] == x_padded[c, 2*hh + ph, 2*ww + pw]
        for wc in range(n_wc):                 # static W-chunk loop
            acc = jnp.zeros((TH, WTC), jnp.float32)
            for i in range(3):                 # static tap loops (unrolled)
                ph, dh = i % 2, i // 2
                for j in range(3):
                    pw, dw = j % 2, j // 2
                    t = i * 3 + j
                    lane0 = (wc * WT + dw) * Cin
                    a = xph_ref[0, ph, pw, pl.ds(hr0 + dh, TH), pl.ds(lane0, WTK)]
                    acc += jnp.dot(a, wbd_ref[t],
                                   preferred_element_type=jnp.float32)
            res = jnp.maximum(acc + bias, 0.0)
            feat_ref[0, :, wc * WTC:(wc + 1) * WTC] = res.astype(feat_ref.dtype)

        # ---- fused DETR sine position-embedding epilogue (direct NCHW) ----
        # inv_t[2i] == inv_t[2i+1] (dim_t uses floor(d/2)), so each (sin, cos)
        # channel pair shares one angle; cos(x) == sin(x + pi/2).
        ye = yemb_ref[0]                       # [TH, Wo], already normalized * 2*pi
        xe = xemb_ref[0]
        dt = pos_ref.dtype
        for d0 in range(0, D, 2):
            ang_y = ye * inv_t[d0]
            ang_x = xe * inv_t[d0]
            pos_ref[0, d0, :, :] = jnp.sin(ang_y).astype(dt)
            pos_ref[0, D + d0, :, :] = jnp.sin(ang_x).astype(dt)
            if d0 + 1 < D:
                pos_ref[0, d0 + 1, :, :] = jnp.sin(ang_y + half_pi).astype(dt)
                pos_ref[0, D + d0 + 1, :, :] = jnp.sin(ang_x + half_pi).astype(dt)

    return kernel


def _pick_row_tile(Ho):
    """Row-tile height: >=8 (sublane rule), dividing Ho, >=2 tiles if possible."""
    for cand in (32, 16, 8):
        if Ho % cand == 0 and Ho // cand >= 2:
            return cand
    return Ho


def _pick_w_chunk(Wo, Cout):
    """Smallest W-chunk whose lane width WT*Cout is a multiple of 128."""
    for cand in (1, 2, 4, 8, 16):
        if Wo % cand == 0 and (cand * Cout) % 128 == 0:
            return cand
    for cand in (8, 4, 2, 1):
        if Wo % cand == 0:
            return cand
    return Wo


def fused_conv_pos_pallas(x_nchw, weight_oihw, bias, pixel_mask, d_model,
                          *, temperature=10000.0, compute_dtype=None):
    """Conv(3x3, stride 2, pad 1) + bias + ReLU and DETR sine position embedding.

    Returns (features [B, Cout, Ho, Wo], mask_ds [B, Ho, Wo] bool,
             object_queries [B, d_model, Ho, Wo]).
    """
    assert d_model % 2 == 0, "d_model must be even"
    B, Cin, H, W = x_nchw.shape
    Cout, cin_w, KH, KW = weight_oihw.shape
    assert (cin_w, KH, KW) == (Cin, 3, 3)
    stride, pad = 2, 1
    Ho = (H + 2 * pad - KH) // stride + 1
    Wo = (W + 2 * pad - KW) // stride + 1
    Hh, Wh = Ho + 1, Wo + 1
    D = d_model // 2

    TH = _pick_row_tile(Ho)
    WT = _pick_w_chunk(Wo, Cout)
    assert Ho % TH == 0 and Wo % WT == 0
    n_r = Ho // TH
    WTK, WTC = WT * Cin, WT * Cout

    # ---- phase-split padded input (one cheap XLA pass, ~1x input bytes):
    #      xph[b, ph, pw, hh, ww*Cin + c] = x_padded[b, c, 2*hh + ph, 2*ww + pw]
    xpad = jnp.pad(x_nchw, ((0, 0), (0, 0),
                            (pad, 2 * Hh - pad - H),
                            (pad, 2 * Wh - pad - W)))
    xph = xpad.reshape(B, Cin, Hh, 2, Wh, 2)
    xph = jnp.transpose(xph, (0, 3, 5, 2, 4, 1)).reshape(B, 2, 2, Hh, Wh * Cin)

    # ---- block-diagonal "W-interleaved" tap weights:
    #      wbd[t, wt*Cin + c, wt'*Cout + co] = delta(wt, wt') * w[co, c, i, j]
    w_taps = jnp.transpose(weight_oihw, (2, 3, 1, 0)).reshape(9, Cin, Cout)
    eye = jnp.eye(WT, dtype=w_taps.dtype)
    wbd = jnp.einsum('ab,tcd->tacbd', eye, w_taps).reshape(9, WTK, WTC)
    b_tile = jnp.tile(bias, WT).reshape(1, WTC).astype(jnp.float32)

    if compute_dtype is not None:
        # bf16 inputs halve HBM->VMEM DMA bytes (v6e/v7x); accumulation stays f32.
        xph = xph.astype(compute_dtype)
        wbd = wbd.astype(compute_dtype)

    # ---- downsampled mask + normalized cumsum embeddings (tiny, plain XLA) ----
    # F.interpolate(mode="nearest"): src = floor(dst * H / Hf)  (works for any H)
    ry = (jnp.arange(Ho) * H) // Ho
    rx = (jnp.arange(Wo) * W) // Wo
    mask_ds = pixel_mask[:, ry][:, :, rx]
    m = mask_ds.astype(jnp.float32)
    scale = 2.0 * math.pi
    y_embed = jnp.cumsum(m, axis=1)
    x_embed = jnp.cumsum(m, axis=2)
    y_embed = y_embed / (y_embed[:, -1:, :] + 1e-6) * scale
    x_embed = x_embed / (x_embed[:, :, -1:] + 1e-6) * scale

    # dim_t[d] = temperature ** (2*floor(d/2)/D); dim_t[2i] == dim_t[2i+1]
    inv_t = [1.0 / (temperature ** (2.0 * (d // 2) / D)) for d in range(D)]

    kernel = _make_fused_kernel(TH=TH, WT=WT, Cin=Cin, Cout=Cout, Wo=Wo,
                                D=D, inv_t=inv_t)

    feat_flat, pos = pl.pallas_call(
        kernel,
        out_shape=(
            jax.ShapeDtypeStruct((B, Ho, Wo * Cout), x_nchw.dtype),
            jax.ShapeDtypeStruct((B, d_model, Ho, Wo), x_nchw.dtype),
        ),
        grid=(B, n_r),
        in_specs=[
            # full phase-split image, resident across the row-tile axis
            pl.BlockSpec((1, 2, 2, Hh, Wh * Cin), lambda b, r: (b, 0, 0, 0, 0)),
            pl.BlockSpec((9, WTK, WTC), lambda b, r: (0, 0, 0)),
            pl.BlockSpec((1, WTC), lambda b, r: (0, 0)),
            pl.BlockSpec((1, TH, Wo), lambda b, r: (b, r, 0)),
            pl.BlockSpec((1, TH, Wo), lambda b, r: (b, r, 0)),
        ],
        out_specs=(
            pl.BlockSpec((1, TH, Wo * Cout), lambda b, r: (b, r, 0)),
            pl.BlockSpec((1, d_model, TH, Wo), lambda b, r: (b, 0, r, 0)),
        ),
        compiler_params=pltpu.CompilerParams(
            dimension_semantics=("parallel", "parallel")),
    )(xph, wbd, b_tile, y_embed, x_embed)

    # single boundary transpose to the public NCHW layout
    features = jnp.transpose(feat_flat.reshape(B, Ho, Wo, Cout), (0, 3, 1, 2))
    return features, mask_ds.astype(bool), pos


# --------------------------------------------------------------------------
# FusionBackbone
# --------------------------------------------------------------------------
class FusionBackbonePallas:
    def __init__(self, d_model=32, backbone_channels=32, key=jax.random.PRNGKey(42)):
        # TODO(synk): the real DetrConvEncoder is a timm ResNet; it is replaced here
        # by a single 3x3 stride-2 conv + ReLU stage per modality (same
        # (features, mask, object_queries) API as DetrConvModel).
        k1, k2, k3, k4 = jax.random.split(key, 4)
        self.d_model = d_model
        self.rgb_w = jax.random.normal(k1, (backbone_channels, 3, 3, 3), jnp.float32) * 0.1
        self.rgb_b = jax.random.normal(k2, (backbone_channels,), jnp.float32) * 0.01
        self.ir_w = jax.random.normal(k3, (backbone_channels, 1, 3, 3), jnp.float32) * 0.1
        self.ir_b = jax.random.normal(k4, (backbone_channels,), jnp.float32) * 0.01

    def _conv_model(self, pixel_values, pixel_mask, w, b):
        """DetrConvModel: conv encoder + mask downsample + sine position encoding."""
        feat, mask_ds, pos = fused_conv_pos_pallas(
            pixel_values, w, b, pixel_mask, self.d_model)
        return [(feat, mask_ds)], [pos]

    def __call__(self, pixel_values, pixel_mask):
        num_chans = pixel_values.shape[1]
        rgb_features = ir_features = None
        rgb_object_queries = ir_object_queries = None
        if num_chans == 1:
            ir_features, ir_object_queries = self._conv_model(
                pixel_values, pixel_mask, self.ir_w, self.ir_b)
        elif num_chans == 3:
            rgb_features, rgb_object_queries = self._conv_model(
                pixel_values, pixel_mask, self.rgb_w, self.rgb_b)
        elif num_chans == 4:
            rgb_features, rgb_object_queries = self._conv_model(
                pixel_values[:, :3], pixel_mask, self.rgb_w, self.rgb_b)
            ir_features, ir_object_queries = self._conv_model(
                pixel_values[:, 3:], pixel_mask, self.ir_w, self.ir_b)
        else:
            raise ValueError("Unsupported number of channels")
        return rgb_features, ir_features, rgb_object_queries, ir_object_queries


# --------------------------------------------------------------------------
# Demo / self-check
# --------------------------------------------------------------------------
if __name__ == "__main__":
    key = jax.random.PRNGKey(0)
    kx, _ = jax.random.split(key)
    # H=32 -> 2 row tiles; W=16, Cout=32 -> 2 lane chunks (exercises all loops)
    B, C, H, W = 2, 4, 32, 16
    pixel_values = jax.random.normal(kx, (B, C, H, W), jnp.float32)
    pixel_mask = jnp.ones((B, H, W), jnp.int32)
    pixel_mask = pixel_mask.at[1, 24:, :].set(0)   # padded region in batch element 1
    pixel_mask = pixel_mask.at[1, :, 12:].set(0)

    model = FusionBackbonePallas(d_model=32, backbone_channels=32)
    rgb_feats, ir_feats, rgb_q, ir_q = model(pixel_values, pixel_mask)
    jax.block_until_ready((rgb_feats, ir_feats, rgb_q, ir_q))

    # --- conv path vs lax.conv reference (both modalities) ---
    def conv_ref(x, w, b):
        r = lax.conv_general_dilated(
            x, jnp.transpose(w, (2, 3, 1, 0)), (2, 2), ((1, 1), (1, 1)),
            dimension_numbers=("NCHW", "HWIO", "NCHW"),
            precision=lax.Precision.HIGHEST)
        return jnp.maximum(r + b[None, :, None, None], 0.0)

    np.testing.assert_allclose(
        np.asarray(rgb_feats[0][0]),
        np.asarray(conv_ref(pixel_values[:, :3], model.rgb_w, model.rgb_b)),
        rtol=1e-4, atol=1e-4)
    np.testing.assert_allclose(
        np.asarray(ir_feats[0][0]),
        np.asarray(conv_ref(pixel_values[:, 3:], model.ir_w, model.ir_b)),
        rtol=1e-4, atol=1e-4)

    # --- sine position embedding vs a NumPy port of DetrSinePositionEmbedding ---
    def pos_ref(mask_ds, d_model, temperature=10000.0):
        Bm, Hf, Wf = mask_ds.shape
        Dh = d_model // 2
        m = np.asarray(mask_ds, np.float32)
        y = np.cumsum(m, 1)
        x = np.cumsum(m, 2)
        y = y / (y[:, -1:, :] + 1e-6) * (2 * np.pi)
        x = x / (x[:, :, -1:] + 1e-6) * (2 * np.pi)
        dim_t = temperature ** (2.0 * (np.arange(Dh) // 2) / Dh)
        py = y[..., None] / dim_t
        px = x[..., None] / dim_t
        py = np.stack([np.sin(py[..., 0::2]), np.cos(py[..., 1::2])], -1).reshape(Bm, Hf, Wf, Dh)
        px = np.stack([np.sin(px[..., 0::2]), np.cos(px[..., 1::2])], -1).reshape(Bm, Hf, Wf, Dh)
        return np.concatenate([py, px], -1).transpose(0, 3, 1, 2)

    mask_ds_np = np.asarray(rgb_feats[0][1])
    ref_pos = pos_ref(mask_ds_np, model.d_model)
    np.testing.assert_allclose(np.asarray(rgb_q[0]), ref_pos, rtol=1e-4, atol=1e-4)
    np.testing.assert_allclose(np.asarray(ir_q[0]), ref_pos, rtol=1e-4, atol=1e-4)

    Ho, Wo = H // 2, W // 2
    assert rgb_feats[0][0].shape == (B, 32, Ho, Wo)
    assert rgb_feats[0][1].shape == (B, Ho, Wo)
    assert ir_feats[0][0].shape == (B, 32, Ho, Wo)
    assert rgb_q[0].shape == (B, 32, Ho, Wo)
    assert ir_q[0].shape == (B, 32, Ho, Wo)

    print("KERNEL_OK")
</pallas_src>

<mosaic_0001>
module attributes {stable_mosaic.version = 11 : i64} {
  func.func @kernel(%arg0: i32, %arg1: i32, %arg2: memref<1x2x2x17x27xf32, #tpu.memory_space<vmem>>, %arg3: memref<9x12x128xf32, #tpu.memory_space<vmem>>, %arg4: memref<1x128xf32, #tpu.memory_space<vmem>>, %arg5: memref<1x8x8xf32, #tpu.memory_space<vmem>>, %arg6: memref<1x8x8xf32, #tpu.memory_space<vmem>>, %arg7: memref<1x8x256xf32, #tpu.memory_space<vmem>>, %arg8: memref<1x32x8x8xf32, #tpu.memory_space<vmem>>) attributes {dimension_semantics = [#tpu.dimension_semantics<parallel>, #tpu.dimension_semantics<parallel>], iteration_bounds = array<i64: 2, 2>, scalar_prefetch = 0 : i64, scratch_operands = 0 : i64, tpu.core_type = #tpu.core_type<tc>, window_params = [{transform_indices = @transform_0, window_bounds = array<i64: 1, 2, 2, 17, 27>}, {pipeline_mode = #tpu.pipeline_mode<synchronous>, transform_indices = @transform_1, window_bounds = array<i64: 9, 12, 128>}, {pipeline_mode = #tpu.pipeline_mode<synchronous>, transform_indices = @transform_2, window_bounds = array<i64: 1, 128>}, {transform_indices = @transform_3, window_bounds = array<i64: 1, 8, 8>}, {transform_indices = @transform_4, window_bounds = array<i64: 1, 8, 8>}, {transform_indices = @transform_5, window_bounds = array<i64: 1, 8, 256>}, {transform_indices = @transform_6, window_bounds = array<i64: 1, 32, 8, 8>}]} {
    %c8_i32 = arith.constant 8 : i32
    %0 = arith.muli %arg1, %c8_i32 : i32
    %1 = tpu.assume_multiple %0, 8 : i32
    %c0 = arith.constant 0 : index
    %c0_0 = arith.constant 0 : index
    %2 = vector.load %arg4[%c0, %c0_0] : memref<1x128xf32, #tpu.memory_space<vmem>>, vector<1x128xf32>
    %cst = arith.constant 0.000000e+00 : f32
    %3 = vector.broadcast %cst : f32 to vector<8x128xf32>
    %c0_i32 = arith.constant 0 : i32
    %4 = arith.addi %1, %c0_i32 : i32
    %c0_1 = arith.constant 0 : index
    %c0_2 = arith.constant 0 : index
    %c0_3 = arith.constant 0 : index
    %5 = arith.index_cast %4 : i32 to index
    %c0_4 = arith.constant 0 : index
    %6 = vector.load %arg2[%c0_1, %c0_2, %c0_3, %5, %c0_4] : memref<1x2x2x17x27xf32, #tpu.memory_space<vmem>>, vector<1x1x1x8x12xf32>
    %7 = vector.shape_cast %6 : vector<1x1x1x8x12xf32> to vector<8x12xf32>
    %c0_5 = arith.constant 0 : index
    %c0_6 = arith.constant 0 : index
    %c0_7 = arith.constant 0 : index
    %8 = vector.load %arg3[%c0_5, %c0_6, %c0_7] : memref<9x12x128xf32, #tpu.memory_space<vmem>>, vector<1x12x128xf32>
    %9 = vector.shape_cast %8 : vector<1x12x128xf32> to vector<12x128xf32>
    %cst_8 = arith.constant dense<0.000000e+00> : vector<8x128xf32>
    %10 = tpu.matmul %7, %9, %cst_8 {dimension_numbers = #tpu.dot_dimension_numbers<[1], [0], [0], [1], [0, 0, 1, 1], [], []>} : vector<8x12xf32>, vector<12x128xf32>, vector<8x128xf32> -> vector<8x128xf32>
    %11 = arith.addf %3, %10 : vector<8x128xf32>
    %c0_i32_9 = arith.constant 0 : i32
    %12 = arith.addi %1, %c0_i32_9 : i32
    %c0_10 = arith.constant 0 : index
    %c0_11 = arith.constant 0 : index
    %c1 = arith.constant 1 : index
    %13 = arith.index_cast %12 : i32 to index
    %c0_12 = arith.constant 0 : index
    %14 = vector.load %arg2[%c0_10, %c0_11, %c1, %13, %c0_12] : memref<1x2x2x17x27xf32, #tpu.memory_space<vmem>>, vector<1x1x1x8x12xf32>
    %15 = vector.shape_cast %14 : vector<1x1x1x8x12xf32> to vector<8x12xf32>
    %c1_13 = arith.constant 1 : index
    %c0_14 = arith.constant 0 : index
    %c0_15 = arith.constant 0 : index
    %16 = vector.load %arg3[%c1_13, %c0_14, %c0_15] : memref<9x12x128xf32, #tpu.memory_space<vmem>>, vector<1x12x128xf32>
    %17 = vector.shape_cast %16 : vector<1x12x128xf32> to vector<12x128xf32>
    %cst_16 = arith.constant dense<0.000000e+00> : vector<8x128xf32>
    %18 = tpu.matmul %15, %17, %cst_16 {dimension_numbers = #tpu.dot_dimension_numbers<[1], [0], [0], [1], [0, 0, 1, 1], [], []>} : vector<8x12xf32>, vector<12x128xf32>, vector<8x128xf32> -> vector<8x128xf32>
    %19 = arith.addf %11, %18 : vector<8x128xf32>
    %c0_i32_17 = arith.constant 0 : i32
    %20 = arith.addi %1, %c0_i32_17 : i32
    %c0_18 = arith.constant 0 : index
    %c0_19 = arith.constant 0 : index
    %c0_20 = arith.constant 0 : index
    %21 = arith.index_cast %20 : i32 to index
    %c3 = arith.constant 3 : index
    %22 = vector.load %arg2[%c0_18, %c0_19, %c0_20, %21, %c3] : memref<1x2x2x17x27xf32, #tpu.memory_space<vmem>>, vector<1x1x1x8x12xf32>
    %23 = vector.shape_cast %22 : vector<1x1x1x8x12xf32> to vector<8x12xf32>
    %c2 = arith.constant 2 : index
    %c0_21 = arith.constant 0 : index
    %c0_22 = arith.constant 0 : index
    %24 = vector.load %arg3[%c2, %c0_21, %c0_22] : memref<9x12x128xf32, #tpu.memory_space<vmem>>, vector<1x12x128xf32>
    %25 = vector.shape_cast %24 : vector<1x12x128xf32> to vector<12x128xf32>
    %cst_23 = arith.constant dense<0.000000e+00> : vector<8x128xf32>
    %26 = tpu.matmul %23, %25, %cst_23 {dimension_numbers = #tpu.dot_dimension_numbers<[1], [0], [0], [1], [0, 0, 1, 1], [], []>} : vector<8x12xf32>, vector<12x128xf32>, vector<8x128xf32> -> vector<8x128xf32>
    %27 = arith.addf %19, %26 : vector<8x128xf32>
    %c0_i32_24 = arith.constant 0 : i32
    %28 = arith.addi %1, %c0_i32_24 : i32
    %c0_25 = arith.constant 0 : index
    %c1_26 = arith.constant 1 : index
    %c0_27 = arith.constant 0 : index
    %29 = arith.index_cast %28 : i32 to index
    %c0_28 = arith.constant 0 : index
    %30 = vector.load %arg2[%c0_25, %c1_26, %c0_27, %29, %c0_28] : memref<1x2x2x17x27xf32, #tpu.memory_space<vmem>>, vector<1x1x1x8x12xf32>
    %31 = vector.shape_cast %30 : vector<1x1x1x8x12xf32> to vector<8x12xf32>
    %c3_29 = arith.constant 3 : index
    %c0_30 = arith.constant 0 : index
    %c0_31 = arith.constant 0 : index
    %32 = vector.load %arg3[%c3_29, %c0_30, %c0_31] : memref<9x12x128xf32, #tpu.memory_space<vmem>>, vector<1x12x128xf32>
    %33 = vector.shape_cast %32 : vector<1x12x128xf32> to vector<12x128xf32>
    %cst_32 = arith.constant dense<0.000000e+00> : vector<8x128xf32>
    %34 = tpu.matmul %31, %33, %cst_32 {dimension_numbers = #tpu.dot_dimension_numbers<[1], [0], [0], [1], [0, 0, 1, 1], [], []>} : vector<8x12xf32>, vector<12x128xf32>, vector<8x128xf32> -> vector<8x128xf32>
    %35 = arith.addf %27, %34 : vector<8x128xf32>
    %c0_i32_33 = arith.constant 0 : i32
    %36 = arith.addi %1, %c0_i32_33 : i32
    %c0_34 = arith.constant 0 : index
    %c1_35 = arith.constant 1 : index
    %c1_36 = arith.constant 1 : index
    %37 = arith.index_cast %36 : i32 to index
    %c0_37 = arith.constant 0 : index
    %38 = vector.load %arg2[%c0_34, %c1_35, %c1_36, %37, %c0_37] : memref<1x2x2x17x27xf32, #tpu.memory_space<vmem>>, vector<1x1x1x8x12xf32>
    %39 = vector.shape_cast %38 : vector<1x1x1x8x12xf32> to vector<8x12xf32>
    %c4 = arith.constant 4 : index
    %c0_38 = arith.constant 0 : index
    %c0_39 = arith.constant 0 : index
    %40 = vector.load %arg3[%c4, %c0_38, %c0_39] : memref<9x12x128xf32, #tpu.memory_space<vmem>>, vector<1x12x128xf32>
    %41 = vector.shape_cast %40 : vector<1x12x128xf32> to vector<12x128xf32>
    %cst_40 = arith.constant dense<0.000000e+00> : vector<8x128xf32>
    %42 = tpu.matmul %39, %41, %cst_40 {dimension_numbers = #tpu.dot_dimension_numbers<[1], [0], [0], [1], [0, 0, 1, 1], [], []>} : vector<8x12xf32>, vector<12x128xf32>, vector<8x128xf32> -> vector<8x128xf32>
    %43 = arith.addf %35, %42 : vector<8x128xf32>
    %c0_i32_41 = arith.constant 0 : i32
    %44 = arith.addi %1, %c0_i32_41 : i32
    %c0_42 = arith.constant 0 : index
    %c1_43 = arith.constant 1 : index
    %c0_44 = arith.constant 0 : index
    %45 = arith.index_cast %44 : i32 to index
    %c3_45 = arith.constant 3 : index
    %46 = vector.load %arg2[%c0_42, %c1_43, %c0_44, %45, %c3_45] : memref<1x2x2x17x27xf32, #tpu.memory_space<vmem>>, vector<1x1x1x8x12xf32>
    %47 = vector.shape_cast %46 : vector<1x1x1x8x12xf32> to vector<8x12xf32>
    %c5 = arith.constant 5 : index
    %c0_46 = arith.constant 0 : index
    %c0_47 = arith.constant 0 : index
    %48 = vector.load %arg3[%c5, %c0_46, %c0_47] : memref<9x12x128xf32, #tpu.memory_space<vmem>>, vector<1x12x128xf32>
    %49 = vector.shape_cast %48 : vector<1x12x128xf32> to vector<12x128xf32>
    %cst_48 = arith.constant dense<0.000000e+00> : vector<8x128xf32>
    %50 = tpu.matmul %47, %49, %cst_48 {dimension_numbers = #tpu.dot_dimension_numbers<[1], [0], [0], [1], [0, 0, 1, 1], [], []>} : vector<8x12xf32>, vector<12x128xf32>, vector<8x128xf32> -> vector<8x128xf32>
    %51 = arith.addf %43, %50 : vector<8x128xf32>
    %c1_i32 = arith.constant 1 : i32
    %52 = arith.addi %1, %c1_i32 : i32
    %c0_49 = arith.constant 0 : index
    %c0_50 = arith.constant 0 : index
    %c0_51 = arith.constant 0 : index
    %53 = arith.index_cast %52 : i32 to index
    %c0_52 = arith.constant 0 : index
    %54 = vector.load %arg2[%c0_49, %c0_50, %c0_51, %53, %c0_52] : memref<1x2x2x17x27xf32, #tpu.memory_space<vmem>>, vector<1x1x1x8x12xf32>
    %55 = vector.shape_cast %54 : vector<1x1x1x8x12xf32> to vector<8x12xf32>
    %c6 = arith.constant 6 : index
    %c0_53 = arith.constant 0 : index
    %c0_54 = arith.constant 0 : index
    %56 = vector.load %arg3[%c6, %c0_53, %c0_54] : memref<9x12x128xf32, #tpu.memory_space<vmem>>, vector<1x12x128xf32>
    %57 = vector.shape_cast %56 : vector<1x12x128xf32> to vector<12x128xf32>
    %cst_55 = arith.constant dense<0.000000e+00> : vector<8x128xf32>
    %58 = tpu.matmul %55, %57, %cst_55 {dimension_numbers = #tpu.dot_dimension_numbers<[1], [0], [0], [1], [0, 0, 1, 1], [], []>} : vector<8x12xf32>, vector<12x128xf32>, vector<8x128xf32> -> vector<8x128xf32>
    %59 = arith.addf %51, %58 : vector<8x128xf32>
    %c1_i32_56 = arith.constant 1 : i32
    %60 = arith.addi %1, %c1_i32_56 : i32
    %c0_57 = arith.constant 0 : index
    %c0_58 = arith.constant 0 : index
    %c1_59 = arith.constant 1 : index
    %61 = arith.index_cast %60 : i32 to index
    %c0_60 = arith.constant 0 : index
    %62 = vector.load %arg2[%c0_57, %c0_58, %c1_59, %61, %c0_60] : memref<1x2x2x17x27xf32, #tpu.memory_space<vmem>>, vector<1x1x1x8x12xf32>
    %63 = vector.shape_cast %62 : vector<1x1x1x8x12xf32> to vector<8x12xf32>
    %c7 = arith.constant 7 : index
    %c0_61 = arith.constant 0 : index
    %c0_62 = arith.constant 0 : index
    %64 = vector.load %arg3[%c7, %c0_61, %c0_62] : memref<9x12x128xf32, #tpu.memory_space<vmem>>, vector<1x12x128xf32>
    %65 = vector.shape_cast %64 : vector<1x12x128xf32> to vector<12x128xf32>
    %cst_63 = arith.constant dense<0.000000e+00> : vector<8x128xf32>
    %66 = tpu.matmul %63, %65, %cst_63 {dimension_numbers = #tpu.dot_dimension_numbers<[1], [0], [0], [1], [0, 0, 1, 1], [], []>} : vector<8x12xf32>, vector<12x128xf32>, vector<8x128xf32> -> vector<8x128xf32>
    %67 = arith.addf %59, %66 : vector<8x128xf32>
    %c1_i32_64 = arith.constant 1 : i32
    %68 = arith.addi %1, %c1_i32_64 : i32
    %c0_65 = arith.constant 0 : index
    %c0_66 = arith.constant 0 : index
    %c0_67 = arith.constant 0 : index
    %69 = arith.index_cast %68 : i32 to index
    %c3_68 = arith.constant 3 : index
    %70 = vector.load %arg2[%c0_65, %c0_66, %c0_67, %69, %c3_68] : memref<1x2x2x17x27xf32, #tpu.memory_space<vmem>>, vector<1x1x1x8x12xf32>
    %71 = vector.shape_cast %70 : vector<1x1x1x8x12xf32> to vector<8x12xf32>
    %c8 = arith.constant 8 : index
    %c0_69 = arith.constant 0 : index
    %c0_70 = arith.constant 0 : index
    %72 = vector.load %arg3[%c8, %c0_69, %c0_70] : memref<9x12x128xf32, #tpu.memory_space<vmem>>, vector<1x12x128xf32>
    %73 = vector.shape_cast %72 : vector<1x12x128xf32> to vector<12x128xf32>
    %cst_71 = arith.constant dense<0.000000e+00> : vector<8x128xf32>
    %74 = tpu.matmul %71, %73, %cst_71 {dimension_numbers = #tpu.dot_dimension_numbers<[1], [0], [0], [1], [0, 0, 1, 1], [], []>} : vector<8x12xf32>, vector<12x128xf32>, vector<8x128xf32> -> vector<8x128xf32>
    %75 = arith.addf %67, %74 : vector<8x128xf32>
    %76 = vector.broadcast %2 : vector<1x128xf32> to vector<8x128xf32>
    %77 = arith.addf %75, %76 : vector<8x128xf32>
    %cst_72 = arith.constant 0.000000e+00 : f32
    %78 = vector.broadcast %cst_72 : f32 to vector<8x128xf32>
    %79 = arith.maximumf %77, %78 : vector<8x128xf32>
    %c0_73 = arith.constant 0 : index
    %c0_74 = arith.constant 0 : index
    %c0_75 = arith.constant 0 : index
    %80 = vector.load %arg7[%c0_73, %c0_74, %c0_75] : memref<1x8x256xf32, #tpu.memory_space<vmem>>, vector<1x8x128xf32>
    %81 = vector.shape_cast %80 : vector<1x8x128xf32> to vector<8x128xf32>
    %82 = vector.shape_cast %79 : vector<8x128xf32> to vector<1x8x128xf32>
    tpu.vector_store %arg7[%c0_73, %c0_74, %c0_75], %82 {strides = array<i32>} : memref<1x8x256xf32, #tpu.memory_space<vmem>>, vector<1x8x128xf32>,
    %cst_76 = arith.constant 0.000000e+00 : f32
    %83 = vector.broadcast %cst_76 : f32 to vector<8x128xf32>
    %c0_i32_77 = arith.constant 0 : i32
    %84 = arith.addi %1, %c0_i32_77 : i32
    %c0_78 = arith.constant 0 : index
    %c0_79 = arith.constant 0 : index
    %c0_80 = arith.constant 0 : index
    %85 = arith.index_cast %84 : i32 to index
    %c12 = arith.constant 12 : index
    %86 = vector.load %arg2[%c0_78, %c0_79, %c0_80, %85, %c12] : memref<1x2x2x17x27xf32, #tpu.memory_space<vmem>>, vector<1x1x1x8x12xf32>
    %87 = vector.shape_cast %86 : vector<1x1x1x8x12xf32> to vector<8x12xf32>
    %c0_81 = arith.constant 0 : index
    %c0_82 = arith.constant 0 : index
    %c0_83 = arith.constant 0 : index
    %88 = vector.load %arg3[%c0_81, %c0_82, %c0_83] : memref<9x12x128xf32, #tpu.memory_space<vmem>>, vector<1x12x128xf32>
    %89 = vector.shape_cast %88 : vector<1x12x128xf32> to vector<12x128xf32>
    %cst_84 = arith.constant dense<0.000000e+00> : vector<8x128xf32>
    %90 = tpu.matmul %87, %89, %cst_84 {dimension_numbers = #tpu.dot_dimension_numbers<[1], [0], [0], [1], [0, 0, 1, 1], [], []>} : vector<8x12xf32>, vector<12x128xf32>, vector<8x128xf32> -> vector<8x128xf32>
    %91 = arith.addf %83, %90 : vector<8x128xf32>
    %c0_i32_85 = arith.constant 0 : i32
    %92 = arith.addi %1, %c0_i32_85 : i32
    %c0_86 = arith.constant 0 : index
    %c0_87 = arith.constant 0 : index
    %c1_88 = arith.constant 1 : index
    %93 = arith.index_cast %92 : i32 to index
    %c12_89 = arith.constant 12 : index
    %94 = vector.load %arg2[%c0_86, %c0_87, %c1_88, %93, %c12_89] : memref<1x2x2x17x27xf32, #tpu.memory_space<vmem>>, vector<1x1x1x8x12xf32>
    %95 = vector.shape_cast %94 : vector<1x1x1x8x12xf32> to vector<8x12xf32>
    %c1_90 = arith.constant 1 : index
    %c0_91 = arith.constant 0 : index
    %c0_92 = arith.constant 0 : index
    %96 = vector.load %arg3[%c1_90, %c0_91, %c0_92] : memref<9x12x128xf32, #tpu.memory_space<vmem>>, vector<1x12x128xf32>
    %97 = vector.shape_cast %96 : vector<1x12x128xf32> to vector<12x128xf32>
    %cst_93 = arith.constant dense<0.000000e+00> : vector<8x128xf32>
    %98 = tpu.matmul %95, %97, %cst_93 {dimension_numbers = #tpu.dot_dimension_numbers<[1], [0], [0], [1], [0, 0, 1, 1], [], []>} : vector<8x12xf32>, vector<12x128xf32>, vector<8x128xf32> -> vector<8x128xf32>
    %99 = arith.addf %91, %98 : vector<8x128xf32>
    %c0_i32_94 = arith.constant 0 : i32
    %100 = arith.addi %1, %c0_i32_94 : i32
    %c0_95 = arith.constant 0 : index
    %c0_96 = arith.constant 0 : index
    %c0_97 = arith.constant 0 : index
    %101 = arith.index_cast %100 : i32 to index
    %c15 = arith.constant 15 : index
    %102 = vector.load %arg2[%c0_95, %c0_96, %c0_97, %101, %c15] : memref<1x2x2x17x27xf32, #tpu.memory_space<vmem>>, vector<1x1x1x8x12xf32>
    %103 = vector.shape_cast %102 : vector<1x1x1x8x12xf32> to vector<8x12xf32>
    %c2_98 = arith.constant 2 : index
    %c0_99 = arith.constant 0 : index
    %c0_100 = arith.constant 0 : index
    %104 = vector.load %arg3[%c2_98, %c0_99, %c0_100] : memref<9x12x128xf32, #tpu.memory_space<vmem>>, vector<1x12x128xf32>
    %105 = vector.shape_cast %104 : vector<1x12x128xf32> to vector<12x128xf32>
    %cst_101 = arith.constant dense<0.000000e+00> : vector<8x128xf32>
    %106 = tpu.matmul %103, %105, %cst_101 {dimension_numbers = #tpu.dot_dimension_numbers<[1], [0], [0], [1], [0, 0, 1, 1], [], []>} : vector<8x12xf32>, vector<12x128xf32>, vector<8x128xf32> -> vector<8x128xf32>
    %107 = arith.addf %99, %106 : vector<8x128xf32>
    %c0_i32_102 = arith.constant 0 : i32
    %108 = arith.addi %1, %c0_i32_102 : i32
    %c0_103 = arith.constant 0 : index
    %c1_104 = arith.constant 1 : index
    %c0_105 = arith.constant 0 : index
    %109 = arith.index_cast %108 : i32 to index
    %c12_106 = arith.constant 12 : index
    %110 = vector.load %arg2[%c0_103, %c1_104, %c0_105, %109, %c12_106] : memref<1x2x2x17x27xf32, #tpu.memory_space<vmem>>, vector<1x1x1x8x12xf32>
    %111 = vector.shape_cast %110 : vector<1x1x1x8x12xf32> to vector<8x12xf32>
    %c3_107 = arith.constant 3 : index
    %c0_108 = arith.constant 0 : index
    %c0_109 = arith.constant 0 : index
    %112 = vector.load %arg3[%c3_107, %c0_108, %c0_109] : memref<9x12x128xf32, #tpu.memory_space<vmem>>, vector<1x12x128xf32>
    %113 = vector.shape_cast %112 : vector<1x12x128xf32> to vector<12x128xf32>
    %cst_110 = arith.constant dense<0.000000e+00> : vector<8x128xf32>
    %114 = tpu.matmul %111, %113, %cst_110 {dimension_numbers = #tpu.dot_dimension_numbers<[1], [0], [0], [1], [0, 0, 1, 1], [], []>} : vector<8x12xf32>, vector<12x128xf32>, vector<8x128xf32> -> vector<8x128xf32>
    %115 = arith.addf %107, %114 : vector<8x128xf32>
    %c0_i32_111 = arith.constant 0 : i32
    %116 = arith.addi %1, %c0_i32_111 : i32
    %c0_112 = arith.constant 0 : index
    %c1_113 = arith.constant 1 : index
    %c1_114 = arith.constant 1 : index
    %117 = arith.index_cast %116 : i32 to index
    %c12_115 = arith.constant 12 : index
    %118 = vector.load %arg2[%c0_112, %c1_113, %c1_114, %117, %c12_115] : memref<1x2x2x17x27xf32, #tpu.memory_space<vmem>>, vector<1x1x1x8x12xf32>
    %119 = vector.shape_cast %118 : vector<1x1x1x8x12xf32> to vector<8x12xf32>
    %c4_116 = arith.constant 4 : index
    %c0_117 = arith.constant 0 : index
    %c0_118 = arith.constant 0 : index
    %120 = vector.load %arg3[%c4_116, %c0_117, %c0_118] : memref<9x12x128xf32, #tpu.memory_space<vmem>>, vector<1x12x128xf32>
    %121 = vector.shape_cast %120 : vector<1x12x128xf32> to vector<12x128xf32>
    %cst_119 = arith.constant dense<0.000000e+00> : vector<8x128xf32>
    %122 = tpu.matmul %119, %121, %cst_119 {dimension_numbers = #tpu.dot_dimension_numbers<[1], [0], [0], [1], [0, 0, 1, 1], [], []>} : vector<8x12xf32>, vector<12x128xf32>, vector<8x128xf32> -> vector<8x128xf32>
    %123 = arith.addf %115, %122 : vector<8x128xf32>
    %c0_i32_120 = arith.constant 0 : i32
    %124 = arith.addi %1, %c0_i32_120 : i32
    %c0_121 = arith.constant 0 : index
    %c1_122 = arith.constant 1 : index
    %c0_123 = arith.constant 0 : index
    %125 = arith.index_cast %124 : i32 to index
    %c15_124 = arith.constant 15 : index
    %126 = vector.load %arg2[%c0_121, %c1_122, %c0_123, %125, %c15_124] : memref<1x2x2x17x27xf32, #tpu.memory_space<vmem>>, vector<1x1x1x8x12xf32>
    %127 = vector.shape_cast %126 : vector<1x1x1x8x12xf32> to vector<8x12xf32>
    %c5_125 = arith.constant 5 : index
    %c0_126 = arith.constant 0 : index
    %c0_127 = arith.constant 0 : index
    %128 = vector.load %arg3[%c5_125, %c0_126, %c0_127] : memref<9x12x128xf32, #tpu.memory_space<vmem>>, vector<1x12x128xf32>
    %129 = vector.shape_cast %128 : vector<1x12x128xf32> to vector<12x128xf32>
    %cst_128 = arith.constant dense<0.000000e+00> : vector<8x128xf32>
    %130 = tpu.matmul %127, %129, %cst_128 {dimension_numbers = #tpu.dot_dimension_numbers<[1], [0], [0], [1], [0, 0, 1, 1], [], []>} : vector<8x12xf32>, vector<12x128xf32>, vector<8x128xf32> -> vector<8x128xf32>
    %131 = arith.addf %123, %130 : vector<8x128xf32>
    %c1_i32_129 = arith.constant 1 : i32
    %132 = arith.addi %1, %c1_i32_129 : i32
    %c0_130 = arith.constant 0 : index
    %c0_131 = arith.constant 0 : index
    %c0_132 = arith.constant 0 : index
    %133 = arith.index_cast %132 : i32 to index
    %c12_133 = arith.constant 12 : index
    %134 = vector.load %arg2[%c0_130, %c0_131, %c0_132, %133, %c12_133] : memref<1x2x2x17x27xf32, #tpu.memory_space<vmem>>, vector<1x1x1x8x12xf32>
    %135 = vector.shape_cast %134 : vector<1x1x1x8x12xf32> to vector<8x12xf32>
    %c6_134 = arith.constant 6 : index
    %c0_135 = arith.constant 0 : index
    %c0_136 = arith.constant 0 : index
    %136 = vector.load %arg3[%c6_134, %c0_135, %c0_136] : memref<9x12x128xf32, #tpu.memory_space<vmem>>, vector<1x12x128xf32>
    %137 = vector.shape_cast %136 : vector<1x12x128xf32> to vector<12x128xf32>
    %cst_137 = arith.constant dense<0.000000e+00> : vector<8x128xf32>
    %138 = tpu.matmul %135, %137, %cst_137 {dimension_numbers = #tpu.dot_dimension_numbers<[1], [0], [0], [1], [0, 0, 1, 1], [], []>} : vector<8x12xf32>, vector<12x128xf32>, vector<8x128xf32> -> vector<8x128xf32>
    %139 = arith.addf %131, %138 : vector<8x128xf32>
    %c1_i32_138 = arith.constant 1 : i32
    %140 = arith.addi %1, %c1_i32_138 : i32
    %c0_139 = arith.constant 0 : index
    %c0_140 = arith.constant 0 : index
    %c1_141 = arith.constant 1 : index
    %141 = arith.index_cast %140 : i32 to index
    %c12_142 = arith.constant 12 : index
    %142 = vector.load %arg2[%c0_139, %c0_140, %c1_141, %141, %c12_142] : memref<1x2x2x17x27xf32, #tpu.memory_space<vmem>>, vector<1x1x1x8x12xf32>
    %143 = vector.shape_cast %142 : vector<1x1x1x8x12xf32> to vector<8x12xf32>
    %c7_143 = arith.constant 7 : index
    %c0_144 = arith.constant 0 : index
    %c0_145 = arith.constant 0 : index
    %144 = vector.load %arg3[%c7_143, %c0_144, %c0_145] : memref<9x12x128xf32, #tpu.memory_space<vmem>>, vector<1x12x128xf32>
    %145 = vector.shape_cast %144 : vector<1x12x128xf32> to vector<12x128xf32>
    %cst_146 = arith.constant dense<0.000000e+00> : vector<8x128xf32>
    %146 = tpu.matmul %143, %145, %cst_146 {dimension_numbers = #tpu.dot_dimension_numbers<[1], [0], [0], [1], [0, 0, 1, 1], [], []>} : vector<8x12xf32>, vector<12x128xf32>, vector<8x128xf32> -> vector<8x128xf32>
    %147 = arith.addf %139, %146 : vector<8x128xf32>
    %c1_i32_147 = arith.constant 1 : i32
    %148 = arith.addi %1, %c1_i32_147 : i32
    %c0_148 = arith.constant 0 : index
    %c0_149 = arith.constant 0 : index
    %c0_150 = arith.constant 0 : index
    %149 = arith.index_cast %148 : i32 to index
    %c15_151 = arith.constant 15 : index
    %150 = vector.load %arg2[%c0_148, %c0_149, %c0_150, %149, %c15_151] : memref<1x2x2x17x27xf32, #tpu.memory_space<vmem>>, vector<1x1x1x8x12xf32>
    %151 = vector.shape_cast %150 : vector<1x1x1x8x12xf32> to vector<8x12xf32>
    %c8_152 = arith.constant 8 : index
    %c0_153 = arith.constant 0 : index
    %c0_154 = arith.constant 0 : index
    %152 = vector.load %arg3[%c8_152, %c0_153, %c0_154] : memref<9x12x128xf32, #tpu.memory_space<vmem>>, vector<1x12x128xf32>
    %153 = vector.shape_cast %152 : vector<1x12x128xf32> to vector<12x128xf32>
    %cst_155 = arith.constant dense<0.000000e+00> : vector<8x128xf32>
    %154 = tpu.matmul %151, %153, %cst_155 {dimension_numbers = #tpu.dot_dimension_numbers<[1], [0], [0], [1], [0, 0, 1, 1], [], []>} : vector<8x12xf32>, vector<12x128xf32>, vector<8x128xf32> -> vector<8x128xf32>
    %155 = arith.addf %147, %154 : vector<8x128xf32>
    %156 = vector.broadcast %2 : vector<1x128xf32> to vector<8x128xf32>
    %157 = arith.addf %155, %156 : vector<8x128xf32>
    %cst_156 = arith.constant 0.000000e+00 : f32
    %158 = vector.broadcast %cst_156 : f32 to vector<8x128xf32>
    %159 = arith.maximumf %157, %158 : vector<8x128xf32>
    %c0_157 = arith.constant 0 : index
    %c0_158 = arith.constant 0 : index
    %c128 = arith.constant 128 : index
    %160 = vector.load %arg7[%c0_157, %c0_158, %c128] : memref<1x8x256xf32, #tpu.memory_space<vmem>>, vector<1x8x128xf32>
    %161 = vector.shape_cast %160 : vector<1x8x128xf32> to vector<8x128xf32>
    %162 = vector.shape_cast %159 : vector<8x128xf32> to vector<1x8x128xf32>
    tpu.vector_store %arg7[%c0_157, %c0_158, %c128], %162 {strides = array<i32>} : memref<1x8x256xf32, #tpu.memory_space<vmem>>, vector<1x8x128xf32>,
    %c0_159 = arith.constant 0 : index
    %c0_160 = arith.constant 0 : index
    %c0_161 = arith.constant 0 : index
    %163 = vector.load %arg5[%c0_159, %c0_160, %c0_161] : memref<1x8x8xf32, #tpu.memory_space<vmem>>, vector<1x8x8xf32>
    %164 = vector.shape_cast %163 : vector<1x8x8xf32> to vector<8x8xf32>
    %c0_162 = arith.constant 0 : index
    %c0_163 = arith.constant 0 : index
    %c0_164 = arith.constant 0 : index
    %165 = vector.load %arg6[%c0_162, %c0_163, %c0_164] : memref<1x8x8xf32, #tpu.memory_space<vmem>>, vector<1x8x8xf32>
    %166 = vector.shape_cast %165 : vector<1x8x8xf32> to vector<8x8xf32>
    %cst_165 = arith.constant 1.000000e+00 : f32
    %167 = vector.broadcast %cst_165 : f32 to vector<8x8xf32>
    %168 = arith.mulf %164, %167 : vector<8x8xf32>
    %cst_166 = arith.constant 1.000000e+00 : f32
    %169 = vector.broadcast %cst_166 : f32 to vector<8x8xf32>
    %170 = arith.mulf %166, %169 : vector<8x8xf32>
    %171 = math.sin %168 : vector<8x8xf32>
    %c0_167 = arith.constant 0 : index
    %c0_168 = arith.constant 0 : index
    %c0_169 = arith.constant 0 : index
    %c0_170 = arith.constant 0 : index
    %172 = vector.load %arg8[%c0_167, %c0_168, %c0_169, %c0_170] : memref<1x32x8x8xf32, #tpu.memory_space<vmem>>, vector<1x1x8x8xf32>
    %173 = vector.shape_cast %172 : vector<1x1x8x8xf32> to vector<8x8xf32>
    %174 = vector.shape_cast %171 : vector<8x8xf32> to vector<1x1x8x8xf32>
    tpu.vector_store %arg8[%c0_167, %c0_168, %c0_169, %c0_170], %174 {strides = array<i32>} : memref<1x32x8x8xf32, #tpu.memory_space<vmem>>, vector<1x1x8x8xf32>,
    %175 = math.sin %170 : vector<8x8xf32>
    %c0_171 = arith.constant 0 : index
    %c16 = arith.constant 16 : index
    %c0_172 = arith.constant 0 : index
    %c0_173 = arith.constant 0 : index
    %176 = vector.load %arg8[%c0_171, %c16, %c0_172, %c0_173] : memref<1x32x8x8xf32, #tpu.memory_space<vmem>>, vector<1x1x8x8xf32>
    %177 = vector.shape_cast %176 : vector<1x1x8x8xf32> to vector<8x8xf32>
    %178 = vector.shape_cast %175 : vector<8x8xf32> to vector<1x1x8x8xf32>
    tpu.vector_store %arg8[%c0_171, %c16, %c0_172, %c0_173], %178 {strides = array<i32>} : memref<1x32x8x8xf32, #tpu.memory_space<vmem>>, vector<1x1x8x8xf32>,
    %cst_174 = arith.constant 1.57079637 : f32
    %179 = vector.broadcast %cst_174 : f32 to vector<8x8xf32>
    %180 = arith.addf %168, %179 : vector<8x8xf32>
    %181 = math.sin %180 : vector<8x8xf32>
    %c0_175 = arith.constant 0 : index
    %c1_176 = arith.constant 1 : index
    %c0_177 = arith.constant 0 : index
    %c0_178 = arith.constant 0 : index
    %182 = vector.load %arg8[%c0_175, %c1_176, %c0_177, %c0_178] : memref<1x32x8x8xf32, #tpu.memory_space<vmem>>, vector<1x1x8x8xf32>
    %183 = vector.shape_cast %182 : vector<1x1x8x8xf32> to vector<8x8xf32>
    %184 = vector.shape_cast %181 : vector<8x8xf32> to vector<1x1x8x8xf32>
    tpu.vector_store %arg8[%c0_175, %c1_176, %c0_177, %c0_178], %184 {strides = array<i32>} : memref<1x32x8x8xf32, #tpu.memory_space<vmem>>, vector<1x1x8x8xf32>,
    %cst_179 = arith.constant 1.57079637 : f32
    %185 = vector.broadcast %cst_179 : f32 to vector<8x8xf32>
    %186 = arith.addf %170, %185 : vector<8x8xf32>
    %187 = math.sin %186 : vector<8x8xf32>
    %c0_180 = arith.constant 0 : index
    %c17 = arith.constant 17 : index
    %c0_181 = arith.constant 0 : index
    %c0_182 = arith.constant 0 : index
    %188 = vector.load %arg8[%c0_180, %c17, %c0_181, %c0_182] : memref<1x32x8x8xf32, #tpu.memory_space<vmem>>, vector<1x1x8x8xf32>
    %189 = vector.shape_cast %188 : vector<1x1x8x8xf32> to vector<8x8xf32>
    %190 = vector.shape_cast %187 : vector<8x8xf32> to vector<1x1x8x8xf32>
    tpu.vector_store %arg8[%c0_180, %c17, %c0_181, %c0_182], %190 {strides = array<i32>} : memref<1x32x8x8xf32, #tpu.memory_space<vmem>>, vector<1x1x8x8xf32>,
    %cst_183 = arith.constant 0.316227764 : f32
    %191 = vector.broadcast %cst_183 : f32 to vector<8x8xf32>
    %192 = arith.mulf %164, %191 : vector<8x8xf32>
    %cst_184 = arith.constant 0.316227764 : f32
    %193 = vector.broadcast %cst_184 : f32 to vector<8x8xf32>
    %194 = arith.mulf %166, %193 : vector<8x8xf32>
    %195 = math.sin %192 : vector<8x8xf32>
    %c0_185 = arith.constant 0 : index
    %c2_186 = arith.constant 2 : index
    %c0_187 = arith.constant 0 : index
    %c0_188 = arith.constant 0 : index
    %196 = vector.load %arg8[%c0_185, %c2_186, %c0_187, %c0_188] : memref<1x32x8x8xf32, #tpu.memory_space<vmem>>, vector<1x1x8x8xf32>
    %197 = vector.shape_cast %196 : vector<1x1x8x8xf32> to vector<8x8xf32>
    %198 = vector.shape_cast %195 : vector<8x8xf32> to vector<1x1x8x8xf32>
    tpu.vector_store %arg8[%c0_185, %c2_186, %c0_187, %c0_188], %198 {strides = array<i32>} : memref<1x32x8x8xf32, #tpu.memory_space<vmem>>, vector<1x1x8x8xf32>,
    %199 = math.sin %194 : vector<8x8xf32>
    %c0_189 = arith.constant 0 : index
    %c18 = arith.constant 18 : index
    %c0_190 = arith.constant 0 : index
    %c0_191 = arith.constant 0 : index
    %200 = vector.load %arg8[%c0_189, %c18, %c0_190, %c0_191] : memref<1x32x8x8xf32, #tpu.memory_space<vmem>>, vector<1x1x8x8xf32>
    %201 = vector.shape_cast %200 : vector<1x1x8x8xf32> to vector<8x8xf32>
    %202 = vector.shape_cast %199 : vector<8x8xf32> to vector<1x1x8x8xf32>
    tpu.vector_store %arg8[%c0_189, %c18, %c0_190, %c0_191], %202 {strides = array<i32>} : memref<1x32x8x8xf32, #tpu.memory_space<vmem>>, vector<1x1x8x8xf32>,
    %cst_192 = arith.constant 1.57079637 : f32
    %203 = vector.broadcast %cst_192 : f32 to vector<8x8xf32>
    %204 = arith.addf %192, %203 : vector<8x8xf32>
    %205 = math.sin %204 : vector<8x8xf32>
    %c0_193 = arith.constant 0 : index
    %c3_194 = arith.constant 3 : index
    %c0_195 = arith.constant 0 : index
    %c0_196 = arith.constant 0 : index
    %206 = vector.load %arg8[%c0_193, %c3_194, %c0_195, %c0_196] : memref<1x32x8x8xf32, #tpu.memory_space<vmem>>, vector<1x1x8x8xf32>
    %207 = vector.shape_cast %206 : vector<1x1x8x8xf32> to vector<8x8xf32>
    %208 = vector.shape_cast %205 : vector<8x8xf32> to vector<1x1x8x8xf32>
    tpu.vector_store %arg8[%c0_193, %c3_194, %c0_195, %c0_196], %208 {strides = array<i32>} : memref<1x32x8x8xf32, #tpu.memory_space<vmem>>, vector<1x1x8x8xf32>,
    %cst_197 = arith.constant 1.57079637 : f32
    %209 = vector.broadcast %cst_197 : f32 to vector<8x8xf32>
    %210 = arith.addf %194, %209 : vector<8x8xf32>
    %211 = math.sin %210 : vector<8x8xf32>
    %c0_198 = arith.constant 0 : index
    %c19 = arith.constant 19 : index
    %c0_199 = arith.constant 0 : index
    %c0_200 = arith.constant 0 : index
    %212 = vector.load %arg8[%c0_198, %c19, %c0_199, %c0_200] : memref<1x32x8x8xf32, #tpu.memory_space<vmem>>, vector<1x1x8x8xf32>
    %213 = vector.shape_cast %212 : vector<1x1x8x8xf32> to vector<8x8xf32>
    %214 = vector.shape_cast %211 : vector<8x8xf32> to vector<1x1x8x8xf32>
    tpu.vector_store %arg8[%c0_198, %c19, %c0_199, %c0_200], %214 {strides = array<i32>} : memref<1x32x8x8xf32, #tpu.memory_space<vmem>>, vector<1x1x8x8xf32>,
    %cst_201 = arith.constant 1.000000e-01 : f32
    %215 = vector.broadcast %cst_201 : f32 to vector<8x8xf32>
    %216 = arith.mulf %164, %215 : vector<8x8xf32>
    %cst_202 = arith.constant 1.000000e-01 : f32
    %217 = vector.broadcast %cst_202 : f32 to vector<8x8xf32>
    %218 = arith.mulf %166, %217 : vector<8x8xf32>
    %219 = math.sin %216 : vector<8x8xf32>
    %c0_203 = arith.constant 0 : index
    %c4_204 = arith.constant 4 : index
    %c0_205 = arith.constant 0 : index
    %c0_206 = arith.constant 0 : index
    %220 = vector.load %arg8[%c0_203, %c4_204, %c0_205, %c0_206] : memref<1x32x8x8xf32, #tpu.memory_space<vmem>>, vector<1x1x8x8xf32>
    %221 = vector.shape_cast %220 : vector<1x1x8x8xf32> to vector<8x8xf32>
    %222 = vector.shape_cast %219 : vector<8x8xf32> to vector<1x1x8x8xf32>
    tpu.vector_store %arg8[%c0_203, %c4_204, %c0_205, %c0_206], %222 {strides = array<i32>} : memref<1x32x8x8xf32, #tpu.memory_space<vmem>>, vector<1x1x8x8xf32>,
    %223 = math.sin %218 : vector<8x8xf32>
    %c0_207 = arith.constant 0 : index
    %c20 = arith.constant 20 : index
    %c0_208 = arith.constant 0 : index
    %c0_209 = arith.constant 0 : index
    %224 = vector.load %arg8[%c0_207, %c20, %c0_208, %c0_209] : memref<1x32x8x8xf32, #tpu.memory_space<vmem>>, vector<1x1x8x8xf32>
    %225 = vector.shape_cast %224 : vector<1x1x8x8xf32> to vector<8x8xf32>
    %226 = vector.shape_cast %223 : vector<8x8xf32> to vector<1x1x8x8xf32>
    tpu.vector_store %arg8[%c0_207, %c20, %c0_208, %c0_209], %226 {strides = array<i32>} : memref<1x32x8x8xf32, #tpu.memory_space<vmem>>, vector<1x1x8x8xf32>,
    %cst_210 = arith.constant 1.57079637 : f32
    %227 = vector.broadcast %cst_210 : f32 to vector<8x8xf32>
    %228 = arith.addf %216, %227 : vector<8x8xf32>
    %229 = math.sin %228 : vector<8x8xf32>
    %c0_211 = arith.constant 0 : index
    %c5_212 = arith.constant 5 : index
    %c0_213 = arith.constant 0 : index
    %c0_214 = arith.constant 0 : index
    %230 = vector.load %arg8[%c0_211, %c5_212, %c0_213, %c0_214] : memref<1x32x8x8xf32, #tpu.memory_space<vmem>>, vector<1x1x8x8xf32>
    %231 = vector.shape_cast %230 : vector<1x1x8x8xf32> to vector<8x8xf32>
    %232 = vector.shape_cast %229 : vector<8x8xf32> to vector<1x1x8x8xf32>
    tpu.vector_store %arg8[%c0_211, %c5_212, %c0_213, %c0_214], %232 {strides = array<i32>} : memref<1x32x8x8xf32, #tpu.memory_space<vmem>>, vector<1x1x8x8xf32>,
    %cst_215 = arith.constant 1.57079637 : f32
    %233 = vector.broadcast %cst_215 : f32 to vector<8x8xf32>
    %234 = arith.addf %218, %233 : vector<8x8xf32>
    %235 = math.sin %234 : vector<8x8xf32>
    %c0_216 = arith.constant 0 : index
    %c21 = arith.constant 21 : index
    %c0_217 = arith.constant 0 : index
    %c0_218 = arith.constant 0 : index
    %236 = vector.load %arg8[%c0_216, %c21, %c0_217, %c0_218] : memref<1x32x8x8xf32, #tpu.memory_space<vmem>>, vector<1x1x8x8xf32>
    %237 = vector.shape_cast %236 : vector<1x1x8x8xf32> to vector<8x8xf32>
    %238 = vector.shape_cast %235 : vector<8x8xf32> to vector<1x1x8x8xf32>
    tpu.vector_store %arg8[%c0_216, %c21, %c0_217, %c0_218], %238 {strides = array<i32>} : memref<1x32x8x8xf32, #tpu.memory_space<vmem>>, vector<1x1x8x8xf32>,
    %cst_219 = arith.constant 0.0316227749 : f32
    %239 = vector.broadcast %cst_219 : f32 to vector<8x8xf32>
    %240 = arith.mulf %164, %239 : vector<8x8xf32>
    %cst_220 = arith.constant 0.0316227749 : f32
    %241 = vector.broadcast %cst_220 : f32 to vector<8x8xf32>
    %242 = arith.mulf %166, %241 : vector<8x8xf32>
    %243 = math.sin %240 : vector<8x8xf32>
    %c0_221 = arith.constant 0 : index
    %c6_222 = arith.constant 6 : index
    %c0_223 = arith.constant 0 : index
    %c0_224 = arith.constant 0 : index
    %244 = vector.load %arg8[%c0_221, %c6_222, %c0_223, %c0_224] : memref<1x32x8x8xf32, #tpu.memory_space<vmem>>, vector<1x1x8x8xf32>
    %245 = vector.shape_cast %244 : vector<1x1x8x8xf32> to vector<8x8xf32>
    %246 = vector.shape_cast %243 : vector<8x8xf32> to vector<1x1x8x8xf32>
    tpu.vector_store %arg8[%c0_221, %c6_222, %c0_223, %c0_224], %246 {strides = array<i32>} : memref<1x32x8x8xf32, #tpu.memory_space<vmem>>, vector<1x1x8x8xf32>,
    %247 = math.sin %242 : vector<8x8xf32>
    %c0_225 = arith.constant 0 : index
    %c22 = arith.constant 22 : index
    %c0_226 = arith.constant 0 : index
    %c0_227 = arith.constant 0 : index
    %248 = vector.load %arg8[%c0_225, %c22, %c0_226, %c0_227] : memref<1x32x8x8xf32, #tpu.memory_space<vmem>>, vector<1x1x8x8xf32>
    %249 = vector.shape_cast %248 : vector<1x1x8x8xf32> to vector<8x8xf32>
    %250 = vector.shape_cast %247 : vector<8x8xf32> to vector<1x1x8x8xf32>
    tpu.vector_store %arg8[%c0_225, %c22, %c0_226, %c0_227], %250 {strides = array<i32>} : memref<1x32x8x8xf32, #tpu.memory_space<vmem>>, vector<1x1x8x8xf32>,
    %cst_228 = arith.constant 1.57079637 : f32
    %251 = vector.broadcast %cst_228 : f32 to vector<8x8xf32>
    %252 = arith.addf %240, %251 : vector<8x8xf32>
    %253 = math.sin %252 : vector<8x8xf32>
    %c0_229 = arith.constant 0 : index
    %c7_230 = arith.constant 7 : index
    %c0_231 = arith.constant 0 : index
    %c0_232 = arith.constant 0 : index
    %254 = vector.load %arg8[%c0_229, %c7_230, %c0_231, %c0_232] : memref<1x32x8x8xf32, #tpu.memory_space<vmem>>, vector<1x1x8x8xf32>
    %255 = vector.shape_cast %254 : vector<1x1x8x8xf32> to vector<8x8xf32>
    %256 = vector.shape_cast %253 : vector<8x8xf32> to vector<1x1x8x8xf32>
    tpu.vector_store %arg8[%c0_229, %c7_230, %c0_231, %c0_232], %256 {strides = array<i32>} : memref<1x32x8x8xf32, #tpu.memory_space<vmem>>, vector<1x1x8x8xf32>,
    %cst_233 = arith.constant 1.57079637 : f32
    %257 = vector.broadcast %cst_233 : f32 to vector<8x8xf32>
    %258 = arith.addf %242, %257 : vector<8x8xf32>
    %259 = math.sin %258 : vector<8x8xf32>
    %c0_234 = arith.constant 0 : index
    %c23 = arith.constant 23 : index
    %c0_235 = arith.constant 0 : index
    %c0_236 = arith.constant 0 : index
    %260 = vector.load %arg8[%c0_234, %c23, %c0_235, %c0_236] : memref<1x32x8x8xf32, #tpu.memory_space<vmem>>, vector<1x1x8x8xf32>
    %261 = vector.shape_cast %260 : vector<1x1x8x8xf32> to vector<8x8xf32>
    %262 = vector.shape_cast %259 : vector<8x8xf32> to vector<1x1x8x8xf32>
    tpu.vector_store %arg8[%c0_234, %c23, %c0_235, %c0_236], %262 {strides = array<i32>} : memref<1x32x8x8xf32, #tpu.memory_space<vmem>>, vector<1x1x8x8xf32>,
    %cst_237 = arith.constant 0.00999999977 : f32
    %263 = vector.broadcast %cst_237 : f32 to vector<8x8xf32>
    %264 = arith.mulf %164, %263 : vector<8x8xf32>
    %cst_238 = arith.constant 0.00999999977 : f32
    %265 = vector.broadcast %cst_238 : f32 to vector<8x8xf32>
    %266 = arith.mulf %166, %265 : vector<8x8xf32>
    %267 = math.sin %264 : vector<8x8xf32>
    %c0_239 = arith.constant 0 : index
    %c8_240 = arith.constant 8 : index
    %c0_241 = arith.constant 0 : index
    %c0_242 = arith.constant 0 : index
    %268 = vector.load %arg8[%c0_239, %c8_240, %c0_241, %c0_242] : memref<1x32x8x8xf32, #tpu.memory_space<vmem>>, vector<1x1x8x8xf32>
    %269 = vector.shape_cast %268 : vector<1x1x8x8xf32> to vector<8x8xf32>
    %270 = vector.shape_cast %267 : vector<8x8xf32> to vector<1x1x8x8xf32>
    tpu.vector_store %arg8[%c0_239, %c8_240, %c0_241, %c0_242], %270 {strides = array<i32>} : memref<1x32x8x8xf32, #tpu.memory_space<vmem>>, vector<1x1x8x8xf32>,
    %271 = math.sin %266 : vector<8x8xf32>
    %c0_243 = arith.constant 0 : index
    %c24 = arith.constant 24 : index
    %c0_244 = arith.constant 0 : index
    %c0_245 = arith.constant 0 : index
    %272 = vector.load %arg8[%c0_243, %c24, %c0_244, %c0_245] : memref<1x32x8x8xf32, #tpu.memory_space<vmem>>, vector<1x1x8x8xf32>
    %273 = vector.shape_cast %272 : vector<1x1x8x8xf32> to vector<8x8xf32>
    %274 = vector.shape_cast %271 : vector<8x8xf32> to vector<1x1x8x8xf32>
    tpu.vector_store %arg8[%c0_243, %c24, %c0_244, %c0_245], %274 {strides = array<i32>} : memref<1x32x8x8xf32, #tpu.memory_space<vmem>>, vector<1x1x8x8xf32>,
    %cst_246 = arith.constant 1.57079637 : f32
    %275 = vector.broadcast %cst_246 : f32 to vector<8x8xf32>
    %276 = arith.addf %264, %275 : vector<8x8xf32>
    %277 = math.sin %276 : vector<8x8xf32>
    %c0_247 = arith.constant 0 : index
    %c9 = arith.constant 9 : index
    %c0_248 = arith.constant 0 : index
    %c0_249 = arith.constant 0 : index
    %278 = vector.load %arg8[%c0_247, %c9, %c0_248, %c0_249] : memref<1x32x8x8xf32, #tpu.memory_space<vmem>>, vector<1x1x8x8xf32>
    %279 = vector.shape_cast %278 : vector<1x1x8x8xf32> to vector<8x8xf32>
    %280 = vector.shape_cast %277 : vector<8x8xf32> to vector<1x1x8x8xf32>
    tpu.vector_store %arg8[%c0_247, %c9, %c0_248, %c0_249], %280 {strides = array<i32>} : memref<1x32x8x8xf32, #tpu.memory_space<vmem>>, vector<1x1x8x8xf32>,
    %cst_250 = arith.constant 1.57079637 : f32
    %281 = vector.broadcast %cst_250 : f32 to vector<8x8xf32>
    %282 = arith.addf %266, %281 : vector<8x8xf32>
    %283 = math.sin %282 : vector<8x8xf32>
    %c0_251 = arith.constant 0 : index
    %c25 = arith.constant 25 : index
    %c0_252 = arith.constant 0 : index
    %c0_253 = arith.constant 0 : index
    %284 = vector.load %arg8[%c0_251, %c25, %c0_252, %c0_253] : memref<1x32x8x8xf32, #tpu.memory_space<vmem>>, vector<1x1x8x8xf32>
    %285 = vector.shape_cast %284 : vector<1x1x8x8xf32> to vector<8x8xf32>
    %286 = vector.shape_cast %283 : vector<8x8xf32> to vector<1x1x8x8xf32>
    tpu.vector_store %arg8[%c0_251, %c25, %c0_252, %c0_253], %286 {strides = array<i32>} : memref<1x32x8x8xf32, #tpu.memory_space<vmem>>, vector<1x1x8x8xf32>,
    %cst_254 = arith.constant 0.00316227763 : f32
    %287 = vector.broadcast %cst_254 : f32 to vector<8x8xf32>
    %288 = arith.mulf %164, %287 : vector<8x8xf32>
    %cst_255 = arith.constant 0.00316227763 : f32
    %289 = vector.broadcast %cst_255 : f32 to vector<8x8xf32>
    %290 = arith.mulf %166, %289 : vector<8x8xf32>
    %291 = math.sin %288 : vector<8x8xf32>
    %c0_256 = arith.constant 0 : index
    %c10 = arith.constant 10 : index
    %c0_257 = arith.constant 0 : index
    %c0_258 = arith.constant 0 : index
    %292 = vector.load %arg8[%c0_256, %c10, %c0_257, %c0_258] : memref<1x32x8x8xf32, #tpu.memory_space<vmem>>, vector<1x1x8x8xf32>
    %293 = vector.shape_cast %292 : vector<1x1x8x8xf32> to vector<8x8xf32>
    %294 = vector.shape_cast %291 : vector<8x8xf32> to vector<1x1x8x8xf32>
    tpu.vector_store %arg8[%c0_256, %c10, %c0_257, %c0_258], %294 {strides = array<i32>} : memref<1x32x8x8xf32, #tpu.memory_space<vmem>>, vector<1x1x8x8xf32>,
    %295 = math.sin %290 : vector<8x8xf32>
    %c0_259 = arith.constant 0 : index
    %c26 = arith.constant 26 : index
    %c0_260 = arith.constant 0 : index
    %c0_261 = arith.constant 0 : index
    %296 = vector.load %arg8[%c0_259, %c26, %c0_260, %c0_261] : memref<1x32x8x8xf32, #tpu.memory_space<vmem>>, vector<1x1x8x8xf32>
    %297 = vector.shape_cast %296 : vector<1x1x8x8xf32> to vector<8x8xf32>
    %298 = vector.shape_cast %295 : vector<8x8xf32> to vector<1x1x8x8xf32>
    tpu.vector_store %arg8[%c0_259, %c26, %c0_260, %c0_261], %298 {strides = array<i32>} : memref<1x32x8x8xf32, #tpu.memory_space<vmem>>, vector<1x1x8x8xf32>,
    %cst_262 = arith.constant 1.57079637 : f32
    %299 = vector.broadcast %cst_262 : f32 to vector<8x8xf32>
    %300 = arith.addf %288, %299 : vector<8x8xf32>
    %301 = math.sin %300 : vector<8x8xf32>
    %c0_263 = arith.constant 0 : index
    %c11 = arith.constant 11 : index
    %c0_264 = arith.constant 0 : index
    %c0_265 = arith.constant 0 : index
    %302 = vector.load %arg8[%c0_263, %c11, %c0_264, %c0_265] : memref<1x32x8x8xf32, #tpu.memory_space<vmem>>, vector<1x1x8x8xf32>
    %303 = vector.shape_cast %302 : vector<1x1x8x8xf32> to vector<8x8xf32>
    %304 = vector.shape_cast %301 : vector<8x8xf32> to vector<1x1x8x8xf32>
    tpu.vector_store %arg8[%c0_263, %c11, %c0_264, %c0_265], %304 {strides = array<i32>} : memref<1x32x8x8xf32, #tpu.memory_space<vmem>>, vector<1x1x8x8xf32>,
    %cst_266 = arith.constant 1.57079637 : f32
    %305 = vector.broadcast %cst_266 : f32 to vector<8x8xf32>
    %306 = arith.addf %290, %305 : vector<8x8xf32>
    %307 = math.sin %306 : vector<8x8xf32>
    %c0_267 = arith.constant 0 : index
    %c27 = arith.constant 27 : index
    %c0_268 = arith.constant 0 : index
    %c0_269 = arith.constant 0 : index
    %308 = vector.load %arg8[%c0_267, %c27, %c0_268, %c0_269] : memref<1x32x8x8xf32, #tpu.memory_space<vmem>>, vector<1x1x8x8xf32>
    %309 = vector.shape_cast %308 : vector<1x1x8x8xf32> to vector<8x8xf32>
    %310 = vector.shape_cast %307 : vector<8x8xf32> to vector<1x1x8x8xf32>
    tpu.vector_store %arg8[%c0_267, %c27, %c0_268, %c0_269], %310 {strides = array<i32>} : memref<1x32x8x8xf32, #tpu.memory_space<vmem>>, vector<1x1x8x8xf32>,
    %cst_270 = arith.constant 1.000000e-03 : f32
    %311 = vector.broadcast %cst_270 : f32 to vector<8x8xf32>
    %312 = arith.mulf %164, %311 : vector<8x8xf32>
    %cst_271 = arith.constant 1.000000e-03 : f32
    %313 = vector.broadcast %cst_271 : f32 to vector<8x8xf32>
    %314 = arith.mulf %166, %313 : vector<8x8xf32>
    %315 = math.sin %312 : vector<8x8xf32>
    %c0_272 = arith.constant 0 : index
    %c12_273 = arith.constant 12 : index
    %c0_274 = arith.constant 0 : index
    %c0_275 = arith.constant 0 : index
    %316 = vector.load %arg8[%c0_272, %c12_273, %c0_274, %c0_275] : memref<1x32x8x8xf32, #tpu.memory_space<vmem>>, vector<1x1x8x8xf32>
    %317 = vector.shape_cast %316 : vector<1x1x8x8xf32> to vector<8x8xf32>
    %318 = vector.shape_cast %315 : vector<8x8xf32> to vector<1x1x8x8xf32>
    tpu.vector_store %arg8[%c0_272, %c12_273, %c0_274, %c0_275], %318 {strides = array<i32>} : memref<1x32x8x8xf32, #tpu.memory_space<vmem>>, vector<1x1x8x8xf32>,
    %319 = math.sin %314 : vector<8x8xf32>
    %c0_276 = arith.constant 0 : index
    %c28 = arith.constant 28 : index
    %c0_277 = arith.constant 0 : index
    %c0_278 = arith.constant 0 : index
    %320 = vector.load %arg8[%c0_276, %c28, %c0_277, %c0_278] : memref<1x32x8x8xf32, #tpu.memory_space<vmem>>, vector<1x1x8x8xf32>
    %321 = vector.shape_cast %320 : vector<1x1x8x8xf32> to vector<8x8xf32>
    %322 = vector.shape_cast %319 : vector<8x8xf32> to vector<1x1x8x8xf32>
    tpu.vector_store %arg8[%c0_276, %c28, %c0_277, %c0_278], %322 {strides = array<i32>} : memref<1x32x8x8xf32, #tpu.memory_space<vmem>>, vector<1x1x8x8xf32>,
    %cst_279 = arith.constant 1.57079637 : f32
    %323 = vector.broadcast %cst_279 : f32 to vector<8x8xf32>
    %324 = arith.addf %312, %323 : vector<8x8xf32>
    %325 = math.sin %324 : vector<8x8xf32>
    %c0_280 = arith.constant 0 : index
    %c13 = arith.constant 13 : index
    %c0_281 = arith.constant 0 : index
    %c0_282 = arith.constant 0 : index
    %326 = vector.load %arg8[%c0_280, %c13, %c0_281, %c0_282] : memref<1x32x8x8xf32, #tpu.memory_space<vmem>>, vector<1x1x8x8xf32>
    %327 = vector.shape_cast %326 : vector<1x1x8x8xf32> to vector<8x8xf32>
    %328 = vector.shape_cast %325 : vector<8x8xf32> to vector<1x1x8x8xf32>
    tpu.vector_store %arg8[%c0_280, %c13, %c0_281, %c0_282], %328 {strides = array<i32>} : memref<1x32x8x8xf32, #tpu.memory_space<vmem>>, vector<1x1x8x8xf32>,
    %cst_283 = arith.constant 1.57079637 : f32
    %329 = vector.broadcast %cst_283 : f32 to vector<8x8xf32>
    %330 = arith.addf %314, %329 : vector<8x8xf32>
    %331 = math.sin %330 : vector<8x8xf32>
    %c0_284 = arith.constant 0 : index
    %c29 = arith.constant 29 : index
    %c0_285 = arith.constant 0 : index
    %c0_286 = arith.constant 0 : index
    %332 = vector.load %arg8[%c0_284, %c29, %c0_285, %c0_286] : memref<1x32x8x8xf32, #tpu.memory_space<vmem>>, vector<1x1x8x8xf32>
    %333 = vector.shape_cast %332 : vector<1x1x8x8xf32> to vector<8x8xf32>
    %334 = vector.shape_cast %331 : vector<8x8xf32> to vector<1x1x8x8xf32>
    tpu.vector_store %arg8[%c0_284, %c29, %c0_285, %c0_286], %334 {strides = array<i32>} : memref<1x32x8x8xf32, #tpu.memory_space<vmem>>, vector<1x1x8x8xf32>,
    %cst_287 = arith.constant 3.16227757E-4 : f32
    %335 = vector.broadcast %cst_287 : f32 to vector<8x8xf32>
    %336 = arith.mulf %164, %335 : vector<8x8xf32>
    %cst_288 = arith.constant 3.16227757E-4 : f32
    %337 = vector.broadcast %cst_288 : f32 to vector<8x8xf32>
    %338 = arith.mulf %166, %337 : vector<8x8xf32>
    %339 = math.sin %336 : vector<8x8xf32>
    %c0_289 = arith.constant 0 : index
    %c14 = arith.constant 14 : index
    %c0_290 = arith.constant 0 : index
    %c0_291 = arith.constant 0 : index
    %340 = vector.load %arg8[%c0_289, %c14, %c0_290, %c0_291] : memref<1x32x8x8xf32, #tpu.memory_space<vmem>>, vector<1x1x8x8xf32>
    %341 = vector.shape_cast %340 : vector<1x1x8x8xf32> to vector<8x8xf32>
    %342 = vector.shape_cast %339 : vector<8x8xf32> to vector<1x1x8x8xf32>
    tpu.vector_store %arg8[%c0_289, %c14, %c0_290, %c0_291], %342 {strides = array<i32>} : memref<1x32x8x8xf32, #tpu.memory_space<vmem>>, vector<1x1x8x8xf32>,
    %343 = math.sin %338 : vector<8x8xf32>
    %c0_292 = arith.constant 0 : index
    %c30 = arith.constant 30 : index
    %c0_293 = arith.constant 0 : index
    %c0_294 = arith.constant 0 : index
    %344 = vector.load %arg8[%c0_292, %c30, %c0_293, %c0_294] : memref<1x32x8x8xf32, #tpu.memory_space<vmem>>, vector<1x1x8x8xf32>
    %345 = vector.shape_cast %344 : vector<1x1x8x8xf32> to vector<8x8xf32>
    %346 = vector.shape_cast %343 : vector<8x8xf32> to vector<1x1x8x8xf32>
    tpu.vector_store %arg8[%c0_292, %c30, %c0_293, %c0_294], %346 {strides = array<i32>} : memref<1x32x8x8xf32, #tpu.memory_space<vmem>>, vector<1x1x8x8xf32>,
    %cst_295 = arith.constant 1.57079637 : f32
    %347 = vector.broadcast %cst_295 : f32 to vector<8x8xf32>
    %348 = arith.addf %336, %347 : vector<8x8xf32>
    %349 = math.sin %348 : vector<8x8xf32>
    %c0_296 = arith.constant 0 : index
    %c15_297 = arith.constant 15 : index
    %c0_298 = arith.constant 0 : index
    %c0_299 = arith.constant 0 : index
    %350 = vector.load %arg8[%c0_296, %c15_297, %c0_298, %c0_299] : memref<1x32x8x8xf32, #tpu.memory_space<vmem>>, vector<1x1x8x8xf32>
    %351 = vector.shape_cast %350 : vector<1x1x8x8xf32> to vector<8x8xf32>
    %352 = vector.shape_cast %349 : vector<8x8xf32> to vector<1x1x8x8xf32>
    tpu.vector_store %arg8[%c0_296, %c15_297, %c0_298, %c0_299], %352 {strides = array<i32>} : memref<1x32x8x8xf32, #tpu.memory_space<vmem>>, vector<1x1x8x8xf32>,
    %cst_300 = arith.constant 1.57079637 : f32
    %353 = vector.broadcast %cst_300 : f32 to vector<8x8xf32>
    %354 = arith.addf %338, %353 : vector<8x8xf32>
    %355 = math.sin %354 : vector<8x8xf32>
    %c0_301 = arith.constant 0 : index
    %c31 = arith.constant 31 : index
    %c0_302 = arith.constant 0 : index
    %c0_303 = arith.constant 0 : index
    %356 = vector.load %arg8[%c0_301, %c31, %c0_302, %c0_303] : memref<1x32x8x8xf32, #tpu.memory_space<vmem>>, vector<1x1x8x8xf32>
    %357 = vector.shape_cast %356 : vector<1x1x8x8xf32> to vector<8x8xf32>
    %358 = vector.shape_cast %355 : vector<8x8xf32> to vector<1x1x8x8xf32>
    tpu.vector_store %arg8[%c0_301, %c31, %c0_302, %c0_303], %358 {strides = array<i32>} : memref<1x32x8x8xf32, #tpu.memory_space<vmem>>, vector<1x1x8x8xf32>,
    return
  }
  func.func @transform_0(%arg0: i32, %arg1: i32) -> (i32, i32, i32, i32, i32) {
    %c0_i32 = arith.constant 0 : i32
    %c0_i32_0 = arith.constant 0 : i32
    %c0_i32_1 = arith.constant 0 : i32
    %c0_i32_2 = arith.constant 0 : i32
    %c0_i32_3 = arith.constant 0 : i32
    return %arg0, %c0_i32, %c0_i32_0, %c0_i32_1, %c0_i32_2 : i32, i32, i32, i32, i32
  }
  func.func @transform_1(%arg0: i32, %arg1: i32) -> (i32, i32, i32) {
    %c0_i32 = arith.constant 0 : i32
    %c0_i32_0 = arith.constant 0 : i32
    %c0_i32_1 = arith.constant 0 : i32
    %c0_i32_2 = arith.constant 0 : i32
    return %c0_i32, %c0_i32_0, %c0_i32_1 : i32, i32, i32
  }
  func.func @transform_2(%arg0: i32, %arg1: i32) -> (i32, i32) {
    %c0_i32 = arith.constant 0 : i32
    %c0_i32_0 = arith.constant 0 : i32
    %c0_i32_1 = arith.constant 0 : i32
    return %c0_i32, %c0_i32_0 : i32, i32
  }
  func.func @transform_3(%arg0: i32, %arg1: i32) -> (i32, i32, i32) {
    %c0_i32 = arith.constant 0 : i32
    %c0_i32_0 = arith.constant 0 : i32
    return %arg0, %arg1, %c0_i32 : i32, i32, i32
  }
  func.func @transform_4(%arg0: i32, %arg1: i32) -> (i32, i32, i32) {
    %c0_i32 = arith.constant 0 : i32
    %c0_i32_0 = arith.constant 0 : i32
    return %arg0, %arg1, %c0_i32 : i32, i32, i32
  }
  func.func @transform_5(%arg0: i32, %arg1: i32) -> (i32, i32, i32) {
    %c0_i32 = arith.constant 0 : i32
    %c0_i32_0 = arith.constant 0 : i32
    return %arg0, %arg1, %c0_i32 : i32, i32, i32
  }
  func.func @transform_6(%arg0: i32, %arg1: i32) -> (i32, i32, i32, i32) {
    %c0_i32 = arith.constant 0 : i32
    %c0_i32_0 = arith.constant 0 : i32
    %c0_i32_1 = arith.constant 0 : i32
    return %arg0, %c0_i32, %arg1, %c0_i32_0 : i32, i32, i32, i32
  }
}

</mosaic_0001>

<llo_original>
// kernel: tpu_custom_call.1
$region0: #{tpu_custom_call.1}
  #allocation0 [shape = 'u32[]', space=smem, size = 0x4, offset = 0x4, fixed_abs, tag = 'smem constant byte address 0x4 - core index']
  #allocation1 [shape = 'u32[144,128]{1,0:T(1,128)}', space=vmem, size = 0x12000, scoped, tag = 'internal scratch']
  %s0 = inlined_call_operand.vmem [shape: f32[2,2,2,17,27], index: 0, kind: input, shape index: {}]
  %s1 = inlined_call_operand.vmem [shape: f32[9,12,128], index: 1, kind: input, shape index: {}]
  %s2 = inlined_call_operand.vmem [shape: f32[1,128], index: 2, kind: input, shape index: {}]
  %s3 = inlined_call_operand.vmem [shape: f32[2,16,8], index: 3, kind: input, shape index: {}]
  %s4 = inlined_call_operand.vmem [shape: f32[2,16,8], index: 4, kind: input, shape index: {}]
  %s5 = inlined_call_operand.hbm [shape: f32[2,16,256], index: 5, kind: output, shape index: {0}]
  %s6 = inlined_call_operand.vmem [shape: f32[2,32,16,8], index: 6, kind: output, shape index: {1}]
  %7 = xla_tuple %s5, %s6
  %s8 = sld [smem:[#allocation0]]
  $region95: #{tpu_custom_call.1} parent=0
    _
  %s10 = ssub.s32 1, %s8
  %s11 = scalar_select 0, %s10, %s8
  $region1: #{tpu_custom_call.1} parent=0
    #allocation2 [shape = 'u8[16384]{0}', space=vmem, size = 0x4000, scoped, tag = 'output window, operand 0']
    #allocation3 [shape = 's32[2]{0}', space=sflag, size = 0x8, scoped, tag = 'scoped memory for tpu_custom_call.1']
    #allocation4 [shape = 'u8[262144]{0}', space=vmem, size = 0x40000, scoped, tag = 'output window, operand 1']
    %12 = vsyncpa [#allocation3], 0
    %s13 = scalar_lea.sflag [#allocation3], 1
    %14 = vsyncpa %s13, 0
    loop: start=0, step=1, limit=6
    $region2: #{tpu_custom_call.1} parent=1 // loop_pre_header
      _
    $region3: #{tpu_custom_call.1} parent=1 // loop_header
      %s16 = sphi 0, %s20
      %p17 = scmp.ge.s32.totalorder %s16, 6
      %s23 = sphi 0, %s35
      %s24 = sphi 0, %s31
      %s25 = sphi 0, %s23
      %s26 = sphi 0, %s24
      %s27 = sphi 0, %s25
      %s28 = sphi 0, %s26
      %s38 = sphi 0, %s40
      %s41 = sphi 0, %s38
      %s42 = sphi 0, %s41
      %s58 = sphi 0, %s42
      %s62 = sphi 0, %s62
      %s64 = sphi 0, %s62
      %s65 = sphi 0, %s64
      %s79 = sphi 0, %s65
      %s83 = sphi 0, %s83
      %s85 = sphi 0, %s83
      %s86 = sphi 0, %s85
      %s100 = sphi 0, %s86
      %s108 = sphi 0, %s110
      %s111 = sphi 0, %s108
      %s112 = sphi 0, %s111
      %s128 = sphi 0, %s112
      %s136 = sphi 0, %s138
      %s139 = sphi 0, %s136
      %s140 = sphi 0, %s139
      %s156 = sphi 0, %s140
      %s164 = sphi 0, %s166
      %s167 = sphi 0, %s164
      %s168 = sphi 0, %s167
      %s184 = sphi 0, %s168
      %s192 = sphi 0, %s194
      %s195 = sphi 0, %s192
      %s196 = sphi 0, %s195
      %s212 = sphi 0, %s196
    $region4: #{tpu_custom_call.1} parent=1 // loop_header_branch
      %19 = sbr.rel (%p17) target = $region8
    $region5: #{tpu_custom_call.1} parent=1 // loop_body
      %s21 = ssub.s32 %s16, 1
      %s22 = ssub.s32 %s16, 2
      %s29 = sadd.s32 1, %s24
      %p30 = scmp.ge.s32.totalorder %s29, 2
      %s31 = scalar_select %p30, 0, %s29
      %s32 = sadd.s32 1, %s23
      %s33 = scalar_select %p30, %s32, %s23
      %p34 = scmp.ge.s32.totalorder %s33, 2
      %s35 = scalar_select %p34, 0, %s33
      %s36 = ssub.s32 %s23, %s35
      %p37 = scmp.eq.s32.totalorder %s36, 0
      %s39 = sadd.s32 %s38, 1
      %s40 = scalar_select %p37, %s38, %s39
      %p43 = pneg %p37
      %p44 = scmp.eq.s32.totalorder %s16, 3
      %p45 = por %p43, %p44
      %p46 = scmp.ne.s32.totalorder %s38, %s41
      %p47 = scmp.eq.s32.totalorder %s16, 0
      %p48 = por %p46, %p47
      %p49 = scmp.ne.s32.totalorder %s38, %s41
      %p50 = scmp.eq.s32.totalorder %s21, 3
      %p51 = por %p49, %p50
      %p52 = scmp.ne.s32.totalorder %s41, %s42
      %p53 = scmp.eq.s32.totalorder %s21, 0
      %p54 = por %p52, %p53
      %p55 = scmp.ne.s32.totalorder %s41, %s42
      %p56 = scmp.eq.s32.totalorder %s22, 3
      %p57 = por %p55, %p56
      %p59 = scmp.ne.s32.totalorder %s42, %s58
      %p60 = scmp.eq.s32.totalorder %s22, 0
      %p61 = por %p59, %p60
      %s63 = sadd.s32 %s62, 1
      %p66 = scmp.eq.s32.totalorder %s16, 3
      %p67 = scmp.ne.s32.totalorder %s62, %s64
      %p68 = scmp.eq.s32.totalorder %s16, 0
      %p69 = por %p67, %p68
      %p70 = scmp.ne.s32.totalorder %s62, %s64
      %p71 = scmp.eq.s32.totalorder %s21, 3
      %p72 = por %p70, %p71
      %p73 = scmp.ne.s32.totalorder %s64, %s65
      %p74 = scmp.eq.s32.totalorder %s21, 0
      %p75 = por %p73, %p74
      %p76 = scmp.ne.s32.totalorder %s64, %s65
      %p77 = scmp.eq.s32.totalorder %s22, 3
      %p78 = por %p76, %p77
      %p80 = scmp.ne.s32.totalorder %s65, %s79
      %p81 = scmp.eq.s32.totalorder %s22, 0
      %p82 = por %p80, %p81
      %s84 = sadd.s32 %s83, 1
      %p87 = scmp.eq.s32.totalorder %s16, 3
      %p88 = scmp.ne.s32.totalorder %s83, %s85
      %p89 = scmp.eq.s32.totalorder %s16, 0
      %p90 = por %p88, %p89
      %p91 = scmp.ne.s32.totalorder %s83, %s85
      %p92 = scmp.eq.s32.totalorder %s21, 3
      %p93 = por %p91, %p92
      %p94 = scmp.ne.s32.totalorder %s85, %s86
      %p95 = scmp.eq.s32.totalorder %s21, 0
      %p96 = por %p94, %p95
      %p97 = scmp.ne.s32.totalorder %s85, %s86
      %p98 = scmp.eq.s32.totalorder %s22, 3
      %p99 = por %p97, %p98
      %p101 = scmp.ne.s32.totalorder %s86, %s100
      %p102 = scmp.eq.s32.totalorder %s22, 0
      %p103 = por %p101, %p102
      %s104 = ssub.s32 %s23, %s35
      %s105 = ssub.s32 %s24, %s31
      %s106 = sor.u32 %s104, %s105
      %p107 = scmp.eq.s32.totalorder %s106, 0
      %s109 = sadd.s32 %s108, 1
      %s110 = scalar_select %p107, %s108, %s109
      %p113 = pneg %p107
      %p114 = scmp.eq.s32.totalorder %s16, 3
      %p115 = por %p113, %p114
      %p116 = scmp.ne.s32.totalorder %s108, %s111
      %p117 = scmp.eq.s32.totalorder %s16, 0
      %p118 = por %p116, %p117
      %p119 = scmp.ne.s32.totalorder %s108, %s111
      %p120 = scmp.eq.s32.totalorder %s21, 3
      %p121 = por %p119, %p120
      %p122 = scmp.ne.s32.totalorder %s111, %s112
      %p123 = scmp.eq.s32.totalorder %s21, 0
      %p124 = por %p122, %p123
      %p125 = scmp.ne.s32.totalorder %s111, %s112
      %p126 = scmp.eq.s32.totalorder %s22, 3
      %p127 = por %p125, %p126
      %p129 = scmp.ne.s32.totalorder %s112, %s128
      %p130 = scmp.eq.s32.totalorder %s22, 0
      %p131 = por %p129, %p130
      %s132 = ssub.s32 %s23, %s35
      %s133 = ssub.s32 %s24, %s31
      %s134 = sor.u32 %s132, %s133
      %p135 = scmp.eq.s32.totalorder %s134, 0
      %s137 = sadd.s32 %s136, 1
      %s138 = scalar_select %p135, %s136, %s137
      %p141 = pneg %p135
      %p142 = scmp.eq.s32.totalorder %s16, 3
      %p143 = por %p141, %p142
      %p144 = scmp.ne.s32.totalorder %s136, %s139
      %p145 = scmp.eq.s32.totalorder %s16, 0
      %p146 = por %p144, %p145
      %p147 = scmp.ne.s32.totalorder %s136, %s139
      %p148 = scmp.eq.s32.totalorder %s21, 3
      %p149 = por %p147, %p148
      %p150 = scmp.ne.s32.totalorder %s139, %s140
      %p151 = scmp.eq.s32.totalorder %s21, 0
      %p152 = por %p150, %p151
      %p153 = scmp.ne.s32.totalorder %s139, %s140
      %p154 = scmp.eq.s32.totalorder %s22, 3
      %p155 = por %p153, %p154
      %p157 = scmp.ne.s32.totalorder %s140, %s156
      %p158 = scmp.eq.s32.totalorder %s22, 0
      %p159 = por %p157, %p158
      %s160 = ssub.s32 %s23, %s35
      %s161 = ssub.s32 %s24, %s31
      %s162 = sor.u32 %s160, %s161
      %p163 = scmp.eq.s32.totalorder %s162, 0
      %s165 = sadd.s32 %s164, 1
      %s166 = scalar_select %p163, %s164, %s165
      %p169 = pneg %p163
      %p170 = scmp.eq.s32.totalorder %s16, 3
      %p171 = por %p169, %p170
      %p172 = scmp.ne.s32.totalorder %s164, %s167
      %p173 = scmp.eq.s32.totalorder %s16, 0
      %p174 = por %p172, %p173
      %p175 = scmp.ne.s32.totalorder %s164, %s167
      %p176 = scmp.eq.s32.totalorder %s21, 3
      %p177 = por %p175, %p176
      %p178 = scmp.ne.s32.totalorder %s167, %s168
      %p179 = scmp.eq.s32.totalorder %s21, 0
      %p180 = por %p178, %p179
      %p181 = scmp.ne.s32.totalorder %s167, %s168
      %p182 = scmp.eq.s32.totalorder %s22, 3
      %p183 = por %p181, %p182
      %p185 = scmp.ne.s32.totalorder %s168, %s184
      %p186 = scmp.eq.s32.totalorder %s22, 0
      %p187 = por %p185, %p186
      %s188 = ssub.s32 %s23, %s35
      %s189 = ssub.s32 %s24, %s31
      %s190 = sor.u32 %s188, %s189
      %p191 = scmp.eq.s32.totalorder %s190, 0
      %s193 = sadd.s32 %s192, 1
      %s194 = scalar_select %p191, %s192, %s193
      %p197 = pneg %p191
      %p198 = scmp.eq.s32.totalorder %s16, 3
      %p199 = por %p197, %p198
      %p200 = scmp.ne.s32.totalorder %s192, %s195
      %p201 = scmp.eq.s32.totalorder %s16, 0
      %p202 = por %p200, %p201
      %p203 = scmp.ne.s32.totalorder %s192, %s195
      %p204 = scmp.eq.s32.totalorder %s21, 3
      %p205 = por %p203, %p204
      %p206 = scmp.ne.s32.totalorder %s195, %s196
      %p207 = scmp.eq.s32.totalorder %s21, 0
      %p208 = por %p206, %p207
      %p209 = scmp.ne.s32.totalorder %s195, %s196
      %p210 = scmp.eq.s32.totalorder %s22, 3
      %p211 = por %p209, %p210
      %p213 = scmp.ne.s32.totalorder %s196, %s212
      %p214 = scmp.eq.s32.totalorder %s22, 0
      %p215 = por %p213, %p214
      %p216 = scmp.le.s32.totalorder 1, %s16
      %p217 = scmp.lt.s32.totalorder %s16, 5
      %p218 = pnand %p216, %p217
      %p219 = pneg %p218
      // Predicated region
      $region9: #{tpu_custom_call.1} parent=5 // pred_check
        _
      $region10: #{tpu_custom_call.1} parent=5 // pred_check_branch
        %221 = sbr.rel (%p218) target = $region12
      $region11: #{tpu_custom_call.1} parent=5 // pred_region
        %s222 = ssub.s32 %s16, 1
        // Predicated region
        $region13: #{tpu_custom_call.1} parent=11 // pred_check
          %p223 = pneg %p75
        $region14: #{tpu_custom_call.1} parent=11 // pred_check_branch
          %225 = sbr.rel (%p223) target = $region16
        $region15: #{tpu_custom_call.1} parent=11 // pred_region
          _
        $region16: #{tpu_custom_call.1} parent=11 // pred_fallthru
          _
        // Predicated region
        $region17: #{tpu_custom_call.1} parent=11 // pred_check
          %p226 = pneg %p96
        $region18: #{tpu_custom_call.1} parent=11 // pred_check_branch
          %228 = sbr.rel (%p226) target = $region20
        $region19: #{tpu_custom_call.1} parent=11 // pred_region
          _
        $region20: #{tpu_custom_call.1} parent=11 // pred_fallthru
          _
      $region12: #{tpu_custom_call.1} parent=5 // pred_fallthru
        _
      %p229 = scmp.lt.s32.totalorder %s16, 4
      // Predicated region
      $region21: #{tpu_custom_call.1} parent=5 // pred_check
        %p230 = pneg %p229
      $region22: #{tpu_custom_call.1} parent=5 // pred_check_branch
        %232 = sbr.rel (%p230) target = $region24
      $region23: #{tpu_custom_call.1} parent=5 // pred_region
        // Predicated region
        $region25: #{tpu_custom_call.1} parent=23 // pred_check
          %p233 = pneg %p48
        $region26: #{tpu_custom_call.1} parent=23 // pred_check_branch
          %235 = sbr.rel (%p233) target = $region28
        $region27: #{tpu_custom_call.1} parent=23 // pred_region
          %p236 = scmp.lt.s32.totalorder %s23, 1
          %s237 = scalar_select %p236, %s23, 1
          %s238 = smul.addr %s237, 12
          %s239 = smul.addr %s238, 8
          %s240 = scalar_lea.vmem %s0, %s239
        $region28: #{tpu_custom_call.1} parent=23 // pred_fallthru
          _
        // Predicated region
        $region29: #{tpu_custom_call.1} parent=23 // pred_check
          %p241 = pneg %p118
        $region30: #{tpu_custom_call.1} parent=23 // pred_check_branch
          %243 = sbr.rel (%p241) target = $region32
        $region31: #{tpu_custom_call.1} parent=23 // pred_region
          %p244 = scmp.lt.s32.totalorder %s23, 1
          %s245 = scalar_select %p244, %s23, 1
          %p246 = scmp.lt.s32.totalorder %s24, 1
          %s247 = scalar_select %p246, %s24, 1
          %s248 = smul.addr %s245, 2
          %s249 = sadd.s32 %s247, %s248
          %s250 = smul.addr %s249, 8
          %s251 = scalar_lea.vmem %s3, %s250
        $region32: #{tpu_custom_call.1} parent=23 // pred_fallthru
          _
        // Predicated region
        $region33: #{tpu_custom_call.1} parent=23 // pred_check
          %p252 = pneg %p146
        $region34: #{tpu_custom_call.1} parent=23 // pred_check_branch
          %254 = sbr.rel (%p252) target = $region36
        $region35: #{tpu_custom_call.1} parent=23 // pred_region
          %p255 = scmp.lt.s32.totalorder %s23, 1
          %s256 = scalar_select %p255, %s23, 1
          %p257 = scmp.lt.s32.totalorder %s24, 1
          %s258 = scalar_select %p257, %s24, 1
          %s259 = smul.addr %s256, 2
          %s260 = sadd.s32 %s258, %s259
          %s261 = smul.addr %s260, 8
          %s262 = scalar_lea.vmem %s4, %s261
        $region36: #{tpu_custom_call.1} parent=23 // pred_fallthru
          _
      $region24: #{tpu_custom_call.1} parent=5 // pred_fallthru
        _
      %p263 = scmp.le.s32.totalorder 1, %s16
      %p264 = scmp.lt.s32.totalorder %s16, 5
      %p265 = pnand %p263, %p264
      %p266 = pneg %p265
      // Predicated region
      $region37: #{tpu_custom_call.1} parent=5 // pred_check
        _
      $region38: #{tpu_custom_call.1} parent=5 // pred_check_branch
        %268 = sbr.rel (%p265) target = $region40
      $region39: #{tpu_custom_call.1} parent=5 // pred_region
        %s269 = ssub.s32 %s16, 1
        %p270 = scmp.lt.s32.totalorder %s25, 1
        %s271 = scalar_select %p270, %s25, 1
        %s272 = smul.addr %s271, 12
        %s273 = smul.addr %s272, 8
        %s274 = scalar_lea.vmem %s0, %s273
        %p275 = pneg %p54
        %p276 = pneg %p51
        %p277 = pneg %p75
        %p278 = pneg %p72
        %p279 = pneg %p96
        %p280 = pneg %p93
        %p281 = scmp.lt.s32.totalorder %s25, 1
        %s282 = scalar_select %p281, %s25, 1
        %p283 = scmp.lt.s32.totalorder %s26, 1
        %s284 = scalar_select %p283, %s26, 1
        %s285 = smul.addr %s282, 2
        %s286 = sadd.s32 %s284, %s285
        %s287 = smul.addr %s286, 8
        %s288 = scalar_lea.vmem %s3, %s287
        %p289 = pneg %p124
        %p290 = pneg %p121
        %p291 = scmp.lt.s32.totalorder %s25, 1
        %s292 = scalar_select %p291, %s25, 1
        %p293 = scmp.lt.s32.totalorder %s26, 1
        %s294 = scalar_select %p293, %s26, 1
        %s295 = smul.addr %s292, 2
        %s296 = sadd.s32 %s294, %s295
        %s297 = smul.addr %s296, 8
        %s298 = scalar_lea.vmem %s4, %s297
        %p299 = pneg %p152
        %p300 = pneg %p149
        %p301 = pneg %p180
        %p302 = pneg %p177
        %s303 = sand.u32 %s167, 1
        %s304 = scalar_lea.sflag [#allocation3], %s303
        %s305 = sand.u32 %s167, 1
        %s306 = smul.addr %s305, 16
        %s307 = scalar_lea.vmem [#allocation2], %s306
        %p308 = pneg %p208
        %p309 = pneg %p205
        %s310 = sand.u32 %s195, 1
        %s311 = sand.u32 %s195, 1
        %s312 = smul.addr %s311, 256
        %s313 = scalar_lea.vmem [#allocation4], %s312
        %p314 = scmp.lt.s32.totalorder %s25, 1
        %s315 = scalar_select %p314, %s25, 1
        %s316 = smul.addr %s315, 12
        %s317 = smul.addr %s316, 8
        %s318 = scalar_lea.vmem %s0, %s317
        %p319 = scmp.lt.s32.totalorder %s25, 1
        %s320 = scalar_select %p319, %s25, 1
        %p321 = scmp.lt.s32.totalorder %s26, 1
        %s322 = scalar_select %p321, %s26, 1
        %s323 = smul.addr %s320, 2
        %s324 = sadd.s32 %s322, %s323
        %s325 = smul.addr %s324, 8
        %s326 = scalar_lea.vmem %s3, %s325
        %p327 = scmp.lt.s32.totalorder %s25, 1
        %s328 = scalar_select %p327, %s25, 1
        %p329 = scmp.lt.s32.totalorder %s26, 1
        %s330 = scalar_select %p329, %s26, 1
        %s331 = smul.addr %s328, 2
        %s332 = sadd.s32 %s330, %s331
        %s333 = smul.addr %s332, 8
        %s334 = scalar_lea.vmem %s4, %s333
        %s335 = smul.u32 %s26, 8
        %v336 = vld [vmem:[%s2] sm:$0x1]
        %s337 = scalar_lea.vmem %s318, %s335
        %v338 = vld [vmem:[%s337] sm:$0xff]
        %v339 = vld [vmem:[%s1] sm:$0xff]
        %v340 = vld [vmem:[%s1 + $0x8] sm:$0xf]
        %s341 = sadd.s32 %s335, 24
        %s342 = scalar_lea.vmem %s318, %s341
        %v343 = vld [vmem:[%s342] sm:$0xff]
        %s344 = scalar_lea.vmem %s1, 16
        %v345 = vld [vmem:[%s344] sm:$0xff]
        %v346 = vld [vmem:[%s344 + $0x8] sm:$0xf]
        %vm347 = vcmask 97280
        %v349 = vsel %vm347, %v343, 0
        %vm351 = vcmask 1043456
        %v353 = vsel %vm351, %v346, 0
        %355 = vmatprep.subr.mxu0 0.0
        %356 = vmatpush1.msra.mxu0 %v345
        %357 = vmatprep.subr.mxu0 0.0
        %358 = vmatpush1.msra.mxu0 %v353
        %359 = vmatprep.subr.mxu0 0.0
        %360 = vmatpush1.msra.mxu0 0.0
        %361 = vmatprep.subr.mxu0 0.0
        %362 = vmatpush1.msra.mxu0 0.0
        %363 = vmatprep.subr.mxu0 0.0
        %364 = vmatpush1.msra.mxu0 0.0
        %365 = vmatprep.subr.mxu0 0.0
        %366 = vmatpush1.msra.mxu0 0.0
        %367 = vmatprep.subr.mxu0 0.0
        %368 = vmatpush1.msra.mxu0 0.0
        %369 = vmatprep.subr.mxu0 0.0
        %370 = vmatpush1.msra.mxu0 0.0
        %371 = vmatprep.subr.mxu0 0.0
        %372 = vmatpush1.msra.mxu0 0.0
        %373 = vmatprep.subr.mxu0 0.0
        %374 = vmatpush1.msra.mxu0 0.0
        %375 = vmatprep.subr.mxu0 0.0
        %376 = vmatpush1.msra.mxu0 0.0
        %377 = vmatprep.subr.mxu0 0.0
        %378 = vmatpush1.msra.mxu0 0.0
        %379 = vmatprep.subr.mxu0 0.0
        %380 = vmatpush1.msra.mxu0 0.0
        %381 = vmatprep.subr.mxu0 0.0
        %382 = vmatpush1.msra.mxu0 0.0
        %383 = vmatprep.subr.mxu0 0.0
        %384 = vmatpush1.msra.mxu0 0.0
        %385 = vmatprep.subr.mxu0 0.0
        %386 = vmatpush1.msra.mxu0 0.0
        %387 = vmatprep.subr.mxu0 0.0
        %388 = vmatpush1.msra.mxu0 0.0
        %389 = vmatprep.subr.mxu0 0.0
        %390 = vmatpush1.msra.mxu0 0.0
        %391 = vmatprep.subr.mxu0 0.0
        %392 = vmatpush1.msra.mxu0 0.0
        %393 = vmatprep.subr.mxu0 0.0
        %394 = vmatpush1.msra.mxu0 0.0
        %395 = vmatprep.subr.mxu0 0.0
        %396 = vmatpush1.msra.mxu0 0.0
        %397 = vmatprep.subr.mxu0 0.0
        %398 = vmatpush1.msra.mxu0 0.0
        %399 = vmatprep.subr.mxu0 0.0
        %400 = vmatpush1.msra.mxu0 0.0
        %401 = vmatprep.subr.mxu0 0.0
        %402 = vmatpush1.msra.mxu0 0.0
        %403 = vmatprep.subr.mxu0 0.0
        %404 = vmatpush1.msra.mxu0 0.0
        %405 = vmatprep.subr.mxu0 0.0
        %406 = vmatpush1.msra.mxu0 0.0
        %407 = vmatprep.subr.mxu0 0.0
        %408 = vmatpush1.msra.mxu0 0.0
        %409 = vmatprep.subr.mxu0 0.0
        %410 = vmatpush1.msra.mxu0 0.0
        %411 = vmatprep.subr.mxu0 0.0
        %412 = vmatpush1.msra.mxu0 0.0
        %413 = vmatprep.subr.mxu0 0.0
        %414 = vmatpush1.msra.mxu0 0.0
        %415 = vmatprep.subr.mxu0 0.0
        %416 = vmatpush1.msra.mxu0 0.0
        %417 = vmatprep.subr.mxu0 0.0
        %418 = vmatpush1.msra.mxu0 0.0
        %419 = vmatprep.mubr.f32.mxu0 0.0
        %420 = vmatmul.mubr.f32.gmra.mrb[0].mxu0 %v349
        %v421 = vpop.f32.mrb[0].mxu0
        %v422 = vadd.f32 0.0, %v421
        %v423 = vpop.f32.mrb[0].mxu0
        %424 = vdwg.mxu0
        %v426 = vsel %vm347, %v338, 0
        %v429 = vsel %vm351, %v340, 0
        %431 = vmatprep.subr.mxu0 0.0
        %432 = vmatpush1.msra.mxu0 %v339
        %433 = vmatprep.subr.mxu0 0.0
        %434 = vmatpush1.msra.mxu0 %v429
        %435 = vmatprep.subr.mxu0 0.0
        %436 = vmatpush1.msra.mxu0 0.0
        %437 = vmatprep.subr.mxu0 0.0
        %438 = vmatpush1.msra.mxu0 0.0
        %439 = vmatprep.subr.mxu0 0.0
        %440 = vmatpush1.msra.mxu0 0.0
        %441 = vmatprep.subr.mxu0 0.0
        %442 = vmatpush1.msra.mxu0 0.0
        %443 = vmatprep.subr.mxu0 0.0
        %444 = vmatpush1.msra.mxu0 0.0
        %445 = vmatprep.subr.mxu0 0.0
        %446 = vmatpush1.msra.mxu0 0.0
        %447 = vmatprep.subr.mxu0 0.0
        %448 = vmatpush1.msra.mxu0 0.0
        %449 = vmatprep.subr.mxu0 0.0
        %450 = vmatpush1.msra.mxu0 0.0
        %451 = vmatprep.subr.mxu0 0.0
        %452 = vmatpush1.msra.mxu0 0.0
        %453 = vmatprep.subr.mxu0 0.0
        %454 = vmatpush1.msra.mxu0 0.0
        %455 = vmatprep.subr.mxu0 0.0
        %456 = vmatpush1.msra.mxu0 0.0
        %457 = vmatprep.subr.mxu0 0.0
        %458 = vmatpush1.msra.mxu0 0.0
        %459 = vmatprep.subr.mxu0 0.0
        %460 = vmatpush1.msra.mxu0 0.0
        %461 = vmatprep.subr.mxu0 0.0
        %462 = vmatpush1.msra.mxu0 0.0
        %463 = vmatprep.subr.mxu0 0.0
        %464 = vmatpush1.msra.mxu0 0.0
        %465 = vmatprep.subr.mxu0 0.0
        %466 = vmatpush1.msra.mxu0 0.0
        %467 = vmatprep.subr.mxu0 0.0
        %468 = vmatpush1.msra.mxu0 0.0
        %469 = vmatprep.subr.mxu0 0.0
        %470 = vmatpush1.msra.mxu0 0.0
        %471 = vmatprep.subr.mxu0 0.0
        %472 = vmatpush1.msra.mxu0 0.0
        %473 = vmatprep.subr.mxu0 0.0
        %474 = vmatpush1.msra.mxu0 0.0
        %475 = vmatprep.subr.mxu0 0.0
        %476 = vmatpush1.msra.mxu0 0.0
        %477 = vmatprep.subr.mxu0 0.0
        %478 = vmatpush1.msra.mxu0 0.0
        %479 = vmatprep.subr.mxu0 0.0
        %480 = vmatpush1.msra.mxu0 0.0
        %481 = vmatprep.subr.mxu0 0.0
        %482 = vmatpush1.msra.mxu0 0.0
        %483 = vmatprep.subr.mxu0 0.0
        %484 = vmatpush1.msra.mxu0 0.0
        %485 = vmatprep.subr.mxu0 0.0
        %486 = vmatpush1.msra.mxu0 0.0
        %487 = vmatprep.subr.mxu0 0.0
        %488 = vmatpush1.msra.mxu0 0.0
        %489 = vmatprep.subr.mxu0 0.0
        %490 = vmatpush1.msra.mxu0 0.0
        %491 = vmatprep.subr.mxu0 0.0
        %492 = vmatpush1.msra.mxu0 0.0
        %493 = vmatprep.subr.mxu0 0.0
        %494 = vmatpush1.msra.mxu0 0.0
        %495 = vmatprep.mubr.f32.mxu0 0.0
        %496 = vmatmul.mubr.f32.gmra.mrb[0].mxu0 %v426
        %v497 = vpop.f32.mrb[0].mxu0
        %v498 = vadd.f32 %v422, %v497
        %v499 = vpop.f32.mrb[0].mxu0
        %500 = vdwg.mxu0
        %s501 = scalar_lea.vmem %s1, 32
        %v502 = vld [vmem:[%s501] sm:$0xff]
        %v503 = vld [vmem:[%s501 + $0x8] sm:$0xf]
        %504 = vrot.lane.b32.xlu0 %v338, 125
        %v505 = vpop.permute.xlu0 %504
        %v506 = vsel %vm347, %v505, 0
        %v509 = vsel %vm351, %v503, 0
        %511 = vmatprep.subr.mxu0 0.0
        %512 = vmatpush1.msra.mxu0 %v502
        %513 = vmatprep.subr.mxu0 0.0
        %514 = vmatpush1.msra.mxu0 %v509
        %515 = vmatprep.subr.mxu0 0.0
        %516 = vmatpush1.msra.mxu0 0.0
        %517 = vmatprep.subr.mxu0 0.0
        %518 = vmatpush1.msra.mxu0 0.0
        %519 = vmatprep.subr.mxu0 0.0
        %520 = vmatpush1.msra.mxu0 0.0
        %521 = vmatprep.subr.mxu0 0.0
        %522 = vmatpush1.msra.mxu0 0.0
        %523 = vmatprep.subr.mxu0 0.0
        %524 = vmatpush1.msra.mxu0 0.0
        %525 = vmatprep.subr.mxu0 0.0
        %526 = vmatpush1.msra.mxu0 0.0
        %527 = vmatprep.subr.mxu0 0.0
        %528 = vmatpush1.msra.mxu0 0.0
        %529 = vmatprep.subr.mxu0 0.0
        %530 = vmatpush1.msra.mxu0 0.0
        %531 = vmatprep.subr.mxu0 0.0
        %532 = vmatpush1.msra.mxu0 0.0
        %533 = vmatprep.subr.mxu0 0.0
        %534 = vmatpush1.msra.mxu0 0.0
        %535 = vmatprep.subr.mxu0 0.0
        %536 = vmatpush1.msra.mxu0 0.0
        %537 = vmatprep.subr.mxu0 0.0
        %538 = vmatpush1.msra.mxu0 0.0
        %539 = vmatprep.subr.mxu0 0.0
        %540 = vmatpush1.msra.mxu0 0.0
        %541 = vmatprep.subr.mxu0 0.0
        %542 = vmatpush1.msra.mxu0 0.0
        %543 = vmatprep.subr.mxu0 0.0
        %544 = vmatpush1.msra.mxu0 0.0
        %545 = vmatprep.subr.mxu0 0.0
        %546 = vmatpush1.msra.mxu0 0.0
        %547 = vmatprep.subr.mxu0 0.0
        %548 = vmatpush1.msra.mxu0 0.0
        %549 = vmatprep.subr.mxu0 0.0
        %550 = vmatpush1.msra.mxu0 0.0
        %551 = vmatprep.subr.mxu0 0.0
        %552 = vmatpush1.msra.mxu0 0.0
        %553 = vmatprep.subr.mxu0 0.0
        %554 = vmatpush1.msra.mxu0 0.0
        %555 = vmatprep.subr.mxu0 0.0
        %556 = vmatpush1.msra.mxu0 0.0
        %557 = vmatprep.subr.mxu0 0.0
        %558 = vmatpush1.msra.mxu0 0.0
        %559 = vmatprep.subr.mxu0 0.0
        %560 = vmatpush1.msra.mxu0 0.0
        %561 = vmatprep.subr.mxu0 0.0
        %562 = vmatpush1.msra.mxu0 0.0
        %563 = vmatprep.subr.mxu0 0.0
        %564 = vmatpush1.msra.mxu0 0.0
        %565 = vmatprep.subr.mxu0 0.0
        %566 = vmatpush1.msra.mxu0 0.0
        %567 = vmatprep.subr.mxu0 0.0
        %568 = vmatpush1.msra.mxu0 0.0
        %569 = vmatprep.subr.mxu0 0.0
        %570 = vmatpush1.msra.mxu0 0.0
        %571 = vmatprep.subr.mxu0 0.0
        %572 = vmatpush1.msra.mxu0 0.0
        %573 = vmatprep.subr.mxu0 0.0
        %574 = vmatpush1.msra.mxu0 0.0
        %575 = vmatprep.mubr.f32.mxu0 0.0
        %576 = vmatmul.mubr.f32.gmra.mrb[0].mxu0 %v506
        %v577 = vpop.f32.mrb[0].mxu0
        %v578 = vadd.f32 0.0, %v577
        %v579 = vpop.f32.mrb[0].mxu0
        %580 = vdwg.mxu0
        %v581 = vadd.f32 %v498, %v578
        %s582 = sadd.s32 %s335, 48
        %s583 = scalar_lea.vmem %s318, %s582
        %v584 = vld [vmem:[%s583] sm:$0xff]
        %s585 = scalar_lea.vmem %s1, 48
        %v586 = vld [vmem:[%s585] sm:$0xff]
        %v587 = vld [vmem:[%s585 + $0x8] sm:$0xf]
        %v589 = vsel %vm347, %v584, 0
        %v592 = vsel %vm351, %v587, 0
        %594 = vmatprep.subr.mxu0 0.0
        %595 = vmatpush1.msra.mxu0 %v586
        %596 = vmatprep.subr.mxu0 0.0
        %597 = vmatpush1.msra.mxu0 %v592
        %598 = vmatprep.subr.mxu0 0.0
        %599 = vmatpush1.msra.mxu0 0.0
        %600 = vmatprep.subr.mxu0 0.0
        %601 = vmatpush1.msra.mxu0 0.0
        %602 = vmatprep.subr.mxu0 0.0
        %603 = vmatpush1.msra.mxu0 0.0
        %604 = vmatprep.subr.mxu0 0.0
        %605 = vmatpush1.msra.mxu0 0.0
        %606 = vmatprep.subr.mxu0 0.0
        %607 = vmatpush1.msra.mxu0 0.0
        %608 = vmatprep.subr.mxu0 0.0
        %609 = vmatpush1.msra.mxu0 0.0
        %610 = vmatprep.subr.mxu0 0.0
        %611 = vmatpush1.msra.mxu0 0.0
        %612 = vmatprep.subr.mxu0 0.0
        %613 = vmatpush1.msra.mxu0 0.0
        %614 = vmatprep.subr.mxu0 0.0
        %615 = vmatpush1.msra.mxu0 0.0
        %616 = vmatprep.subr.mxu0 0.0
        %617 = vmatpush1.msra.mxu0 0.0
        %618 = vmatprep.subr.mxu0 0.0
        %619 = vmatpush1.msra.mxu0 0.0
        %620 = vmatprep.subr.mxu0 0.0
        %621 = vmatpush1.msra.mxu0 0.0
        %622 = vmatprep.subr.mxu0 0.0
        %623 = vmatpush1.msra.mxu0 0.0
        %624 = vmatprep.subr.mxu0 0.0
        %625 = vmatpush1.msra.mxu0 0.0
        %626 = vmatprep.subr.mxu0 0.0
        %627 = vmatpush1.msra.mxu0 0.0
        %628 = vmatprep.subr.mxu0 0.0
        %629 = vmatpush1.msra.mxu0 0.0
        %630 = vmatprep.subr.mxu0 0.0
        %631 = vmatpush1.msra.mxu0 0.0
        %632 = vmatprep.subr.mxu0 0.0
        %633 = vmatpush1.msra.mxu0 0.0
        %634 = vmatprep.subr.mxu0 0.0
        %635 = vmatpush1.msra.mxu0 0.0
        %636 = vmatprep.subr.mxu0 0.0
        %637 = vmatpush1.msra.mxu0 0.0
        %638 = vmatprep.subr.mxu0 0.0
        %639 = vmatpush1.msra.mxu0 0.0
        %640 = vmatprep.subr.mxu0 0.0
        %641 = vmatpush1.msra.mxu0 0.0
        %642 = vmatprep.subr.mxu0 0.0
        %643 = vmatpush1.msra.mxu0 0.0
        %644 = vmatprep.subr.mxu0 0.0
        %645 = vmatpush1.msra.mxu0 0.0
        %646 = vmatprep.subr.mxu0 0.0
        %647 = vmatpush1.msra.mxu0 0.0
        %648 = vmatprep.subr.mxu0 0.0
        %649 = vmatpush1.msra.mxu0 0.0
        %650 = vmatprep.subr.mxu0 0.0
        %651 = vmatpush1.msra.mxu0 0.0
        %652 = vmatprep.subr.mxu0 0.0
        %653 = vmatpush1.msra.mxu0 0.0
        %654 = vmatprep.subr.mxu0 0.0
        %655 = vmatpush1.msra.mxu0 0.0
        %656 = vmatprep.subr.mxu0 0.0
        %657 = vmatpush1.msra.mxu0 0.0
        %658 = vmatprep.mubr.f32.mxu0 0.0
        %659 = vmatmul.mubr.f32.gmra.mrb[0].mxu0 %v589
        %v660 = vpop.f32.mrb[0].mxu0
        %v661 = vadd.f32 0.0, %v660
        %v662 = vpop.f32.mrb[0].mxu0
        %663 = vdwg.mxu0
        %v664 = vadd.f32 %v581, %v661
        %s665 = sadd.s32 %s341, 48
        %s666 = scalar_lea.vmem %s318, %s665
        %v667 = vld [vmem:[%s666] sm:$0xff]
        %s668 = scalar_lea.vmem %s1, 64
        %v669 = vld [vmem:[%s668] sm:$0xff]
        %v670 = vld [vmem:[%s668 + $0x8] sm:$0xf]
        %v672 = vsel %vm347, %v667, 0
        %v675 = vsel %vm351, %v670, 0
        %677 = vmatprep.subr.mxu0 0.0
        %678 = vmatpush1.msra.mxu0 %v669
        %679 = vmatprep.subr.mxu0 0.0
        %680 = vmatpush1.msra.mxu0 %v675
        %681 = vmatprep.subr.mxu0 0.0
        %682 = vmatpush1.msra.mxu0 0.0
        %683 = vmatprep.subr.mxu0 0.0
        %684 = vmatpush1.msra.mxu0 0.0
        %685 = vmatprep.subr.mxu0 0.0
        %686 = vmatpush1.msra.mxu0 0.0
        %687 = vmatprep.subr.mxu0 0.0
        %688 = vmatpush1.msra.mxu0 0.0
        %689 = vmatprep.subr.mxu0 0.0
        %690 = vmatpush1.msra.mxu0 0.0
        %691 = vmatprep.subr.mxu0 0.0
        %692 = vmatpush1.msra.mxu0 0.0
        %693 = vmatprep.subr.mxu0 0.0
        %694 = vmatpush1.msra.mxu0 0.0
        %695 = vmatprep.subr.mxu0 0.0
        %696 = vmatpush1.msra.mxu0 0.0
        %697 = vmatprep.subr.mxu0 0.0
        %698 = vmatpush1.msra.mxu0 0.0
        %699 = vmatprep.subr.mxu0 0.0
        %700 = vmatpush1.msra.mxu0 0.0
        %701 = vmatprep.subr.mxu0 0.0
        %702 = vmatpush1.msra.mxu0 0.0
        %703 = vmatprep.subr.mxu0 0.0
        %704 = vmatpush1.msra.mxu0 0.0
        %705 = vmatprep.subr.mxu0 0.0
        %706 = vmatpush1.msra.mxu0 0.0
        %707 = vmatprep.subr.mxu0 0.0
        %708 = vmatpush1.msra.mxu0 0.0
        %709 = vmatprep.subr.mxu0 0.0
        %710 = vmatpush1.msra.mxu0 0.0
        %711 = vmatprep.subr.mxu0 0.0
        %712 = vmatpush1.msra.mxu0 0.0
        %713 = vmatprep.subr.mxu0 0.0
        %714 = vmatpush1.msra.mxu0 0.0
        %715 = vmatprep.subr.mxu0 0.0
        %716 = vmatpush1.msra.mxu0 0.0
        %717 = vmatprep.subr.mxu0 0.0
        %718 = vmatpush1.msra.mxu0 0.0
        %719 = vmatprep.subr.mxu0 0.0
        %720 = vmatpush1.msra.mxu0 0.0
        %721 = vmatprep.subr.mxu0 0.0
        %722 = vmatpush1.msra.mxu0 0.0
        %723 = vmatprep.subr.mxu0 0.0
        %724 = vmatpush1.msra.mxu0 0.0
        %725 = vmatprep.subr.mxu0 0.0
        %726 = vmatpush1.msra.mxu0 0.0
        %727 = vmatprep.subr.mxu0 0.0
        %728 = vmatpush1.msra.mxu0 0.0
        %729 = vmatprep.subr.mxu0 0.0
        %730 = vmatpush1.msra.mxu0 0.0
        %731 = vmatprep.subr.mxu0 0.0
        %732 = vmatpush1.msra.mxu0 0.0
        %733 = vmatprep.subr.mxu0 0.0
        %734 = vmatpush1.msra.mxu0 0.0
        %735 = vmatprep.subr.mxu0 0.0
        %736 = vmatpush1.msra.mxu0 0.0
        %737 = vmatprep.subr.mxu0 0.0
        %738 = vmatpush1.msra.mxu0 0.0
        %739 = vmatprep.subr.mxu0 0.0
        %740 = vmatpush1.msra.mxu0 0.0
        %741 = vmatprep.mubr.f32.mxu0 0.0
        %742 = vmatmul.mubr.f32.gmra.mrb[0].mxu0 %v672
        %v743 = vpop.f32.mrb[0].mxu0
        %v744 = vadd.f32 0.0, %v743
        %v745 = vpop.f32.mrb[0].mxu0
        %746 = vdwg.mxu0
        %v747 = vadd.f32 %v664, %v744
        %s748 = scalar_lea.vmem %s1, 80
        %v749 = vld [vmem:[%s748] sm:$0xff]
        %v750 = vld [vmem:[%s748 + $0x8] sm:$0xf]
        %751 = vrot.lane.b32.xlu0 %v584, 125
        %v752 = vpop.permute.xlu0 %751
        %v753 = vsel %vm347, %v752, 0
        %v756 = vsel %vm351, %v750, 0
        %758 = vmatprep.subr.mxu0 0.0
        %759 = vmatpush1.msra.mxu0 %v749
        %760 = vmatprep.subr.mxu0 0.0
        %761 = vmatpush1.msra.mxu0 %v756
        %762 = vmatprep.subr.mxu0 0.0
        %763 = vmatpush1.msra.mxu0 0.0
        %764 = vmatprep.subr.mxu0 0.0
        %765 = vmatpush1.msra.mxu0 0.0
        %766 = vmatprep.subr.mxu0 0.0
        %767 = vmatpush1.msra.mxu0 0.0
        %768 = vmatprep.subr.mxu0 0.0
        %769 = vmatpush1.msra.mxu0 0.0
        %770 = vmatprep.subr.mxu0 0.0
        %771 = vmatpush1.msra.mxu0 0.0
        %772 = vmatprep.subr.mxu0 0.0
        %773 = vmatpush1.msra.mxu0 0.0
        %774 = vmatprep.subr.mxu0 0.0
        %775 = vmatpush1.msra.mxu0 0.0
        %776 = vmatprep.subr.mxu0 0.0
        %777 = vmatpush1.msra.mxu0 0.0
        %778 = vmatprep.subr.mxu0 0.0
        %779 = vmatpush1.msra.mxu0 0.0
        %780 = vmatprep.subr.mxu0 0.0
        %781 = vmatpush1.msra.mxu0 0.0
        %782 = vmatprep.subr.mxu0 0.0
        %783 = vmatpush1.msra.mxu0 0.0
        %784 = vmatprep.subr.mxu0 0.0
        %785 = vmatpush1.msra.mxu0 0.0
        %786 = vmatprep.subr.mxu0 0.0
        %787 = vmatpush1.msra.mxu0 0.0
        %788 = vmatprep.subr.mxu0 0.0
        %789 = vmatpush1.msra.mxu0 0.0
        %790 = vmatprep.subr.mxu0 0.0
        %791 = vmatpush1.msra.mxu0 0.0
        %792 = vmatprep.subr.mxu0 0.0
        %793 = vmatpush1.msra.mxu0 0.0
        %794 = vmatprep.subr.mxu0 0.0
        %795 = vmatpush1.msra.mxu0 0.0
        %796 = vmatprep.subr.mxu0 0.0
        %797 = vmatpush1.msra.mxu0 0.0
        %798 = vmatprep.subr.mxu0 0.0
        %799 = vmatpush1.msra.mxu0 0.0
        %800 = vmatprep.subr.mxu0 0.0
        %801 = vmatpush1.msra.mxu0 0.0
        %802 = vmatprep.subr.mxu0 0.0
        %803 = vmatpush1.msra.mxu0 0.0
        %804 = vmatprep.subr.mxu0 0.0
        %805 = vmatpush1.msra.mxu0 0.0
        %806 = vmatprep.subr.mxu0 0.0
        %807 = vmatpush1.msra.mxu0 0.0
        %808 = vmatprep.subr.mxu0 0.0
        %809 = vmatpush1.msra.mxu0 0.0
        %810 = vmatprep.subr.mxu0 0.0
        %811 = vmatpush1.msra.mxu0 0.0
        %812 = vmatprep.subr.mxu0 0.0
        %813 = vmatpush1.msra.mxu0 0.0
        %814 = vmatprep.subr.mxu0 0.0
        %815 = vmatpush1.msra.mxu0 0.0
        %816 = vmatprep.subr.mxu0 0.0
        %817 = vmatpush1.msra.mxu0 0.0
        %818 = vmatprep.subr.mxu0 0.0
        %819 = vmatpush1.msra.mxu0 0.0
        %820 = vmatprep.subr.mxu0 0.0
        %821 = vmatpush1.msra.mxu0 0.0
        %822 = vmatprep.mubr.f32.mxu0 0.0
        %823 = vmatmul.mubr.f32.gmra.mrb[0].mxu0 %v753
        %v824 = vpop.f32.mrb[0].mxu0
        %v825 = vadd.f32 0.0, %v824
        %v826 = vpop.f32.mrb[0].mxu0
        %827 = vdwg.mxu0
        %v828 = vadd.f32 %v747, %v825
        %s829 = sadd.s32 %s335, 1
        %s830 = scalar_lea.vmem %s318, %s829
        %v831 = vld [vmem:[%s830] sm:$0xff]
        %s832 = scalar_lea.vmem %s1, 96
        %v833 = vld [vmem:[%s832] sm:$0xff]
        %v834 = vld [vmem:[%s832 + $0x8] sm:$0xf]
        %v836 = vsel %vm347, %v831, 0
        %v839 = vsel %vm351, %v834, 0
        %841 = vmatprep.subr.mxu0 0.0
        %842 = vmatpush1.msra.mxu0 %v833
        %843 = vmatprep.subr.mxu0 0.0
        %844 = vmatpush1.msra.mxu0 %v839
        %845 = vmatprep.subr.mxu0 0.0
        %846 = vmatpush1.msra.mxu0 0.0
        %847 = vmatprep.subr.mxu0 0.0
        %848 = vmatpush1.msra.mxu0 0.0
        %849 = vmatprep.subr.mxu0 0.0
        %850 = vmatpush1.msra.mxu0 0.0
        %851 = vmatprep.subr.mxu0 0.0
        %852 = vmatpush1.msra.mxu0 0.0
        %853 = vmatprep.subr.mxu0 0.0
        %854 = vmatpush1.msra.mxu0 0.0
        %855 = vmatprep.subr.mxu0 0.0
        %856 = vmatpush1.msra.mxu0 0.0
        %857 = vmatprep.subr.mxu0 0.0
        %858 = vmatpush1.msra.mxu0 0.0
        %859 = vmatprep.subr.mxu0 0.0
        %860 = vmatpush1.msra.mxu0 0.0
        %861 = vmatprep.subr.mxu0 0.0
        %862 = vmatpush1.msra.mxu0 0.0
        %863 = vmatprep.subr.mxu0 0.0
        %864 = vmatpush1.msra.mxu0 0.0
        %865 = vmatprep.subr.mxu0 0.0
        %866 = vmatpush1.msra.mxu0 0.0
        %867 = vmatprep.subr.mxu0 0.0
        %868 = vmatpush1.msra.mxu0 0.0
        %869 = vmatprep.subr.mxu0 0.0
        %870 = vmatpush1.msra.mxu0 0.0
        %871 = vmatprep.subr.mxu0 0.0
        %872 = vmatpush1.msra.mxu0 0.0
        %873 = vmatprep.subr.mxu0 0.0
        %874 = vmatpush1.msra.mxu0 0.0
        %875 = vmatprep.subr.mxu0 0.0
        %876 = vmatpush1.msra.mxu0 0.0
        %877 = vmatprep.subr.mxu0 0.0
        %878 = vmatpush1.msra.mxu0 0.0
        %879 = vmatprep.subr.mxu0 0.0
        %880 = vmatpush1.msra.mxu0 0.0
        %881 = vmatprep.subr.mxu0 0.0
        %882 = vmatpush1.msra.mxu0 0.0
        %883 = vmatprep.subr.mxu0 0.0
        %884 = vmatpush1.msra.mxu0 0.0
        %885 = vmatprep.subr.mxu0 0.0
        %886 = vmatpush1.msra.mxu0 0.0
        %887 = vmatprep.subr.mxu0 0.0
        %888 = vmatpush1.msra.mxu0 0.0
        %889 = vmatprep.subr.mxu0 0.0
        %890 = vmatpush1.msra.mxu0 0.0
        %891 = vmatprep.subr.mxu0 0.0
        %892 = vmatpush1.msra.mxu0 0.0
        %893 = vmatprep.subr.mxu0 0.0
        %894 = vmatpush1.msra.mxu0 0.0
        %895 = vmatprep.subr.mxu0 0.0
        %896 = vmatpush1.msra.mxu0 0.0
        %897 = vmatprep.subr.mxu0 0.0
        %898 = vmatpush1.msra.mxu0 0.0
        %899 = vmatprep.subr.mxu0 0.0
        %900 = vmatpush1.msra.mxu0 0.0
        %901 = vmatprep.subr.mxu0 0.0
        %902 = vmatpush1.msra.mxu0 0.0
        %903 = vmatprep.subr.mxu0 0.0
        %904 = vmatpush1.msra.mxu0 0.0
        %905 = vmatprep.mubr.f32.mxu0 0.0
        %906 = vmatmul.mubr.f32.gmra.mrb[0].mxu0 %v836
        %v907 = vpop.f32.mrb[0].mxu0
        %v908 = vadd.f32 0.0, %v907
        %v909 = vpop.f32.mrb[0].mxu0
        %910 = vdwg.mxu0
        %v911 = vadd.f32 %v828, %v908
        %s912 = sadd.s32 %s829, 24
        %s913 = scalar_lea.vmem %s318, %s912
        %v914 = vld [vmem:[%s913] sm:$0xff]
        %s915 = scalar_lea.vmem %s1, 112
        %v916 = vld [vmem:[%s915] sm:$0xff]
        %v917 = vld [vmem:[%s915 + $0x8] sm:$0xf]
        %v919 = vsel %vm347, %v914, 0
        %v922 = vsel %vm351, %v917, 0
        %924 = vmatprep.subr.mxu0 0.0
        %925 = vmatpush1.msra.mxu0 %v916
        %926 = vmatprep.subr.mxu0 0.0
        %927 = vmatpush1.msra.mxu0 %v922
        %928 = vmatprep.subr.mxu0 0.0
        %929 = vmatpush1.msra.mxu0 0.0
        %930 = vmatprep.subr.mxu0 0.0
        %931 = vmatpush1.msra.mxu0 0.0
        %932 = vmatprep.subr.mxu0 0.0
        %933 = vmatpush1.msra.mxu0 0.0
        %934 = vmatprep.subr.mxu0 0.0
        %935 = vmatpush1.msra.mxu0 0.0
        %936 = vmatprep.subr.mxu0 0.0
        %937 = vmatpush1.msra.mxu0 0.0
        %938 = vmatprep.subr.mxu0 0.0
        %939 = vmatpush1.msra.mxu0 0.0
        %940 = vmatprep.subr.mxu0 0.0
        %941 = vmatpush1.msra.mxu0 0.0
        %942 = vmatprep.subr.mxu0 0.0
        %943 = vmatpush1.msra.mxu0 0.0
        %944 = vmatprep.subr.mxu0 0.0
        %945 = vmatpush1.msra.mxu0 0.0
        %946 = vmatprep.subr.mxu0 0.0
        %947 = vmatpush1.msra.mxu0 0.0
        %948 = vmatprep.subr.mxu0 0.0
        %949 = vmatpush1.msra.mxu0 0.0
        %950 = vmatprep.subr.mxu0 0.0
        %951 = vmatpush1.msra.mxu0 0.0
        %952 = vmatprep.subr.mxu0 0.0
        %953 = vmatpush1.msra.mxu0 0.0
        %954 = vmatprep.subr.mxu0 0.0
        %955 = vmatpush1.msra.mxu0 0.0
        %956 = vmatprep.subr.mxu0 0.0
        %957 = vmatpush1.msra.mxu0 0.0
        %958 = vmatprep.subr.mxu0 0.0
        %959 = vmatpush1.msra.mxu0 0.0
        %960 = vmatprep.subr.mxu0 0.0
        %961 = vmatpush1.msra.mxu0 0.0
        %962 = vmatprep.subr.mxu0 0.0
        %963 = vmatpush1.msra.mxu0 0.0
        %964 = vmatprep.subr.mxu0 0.0
        %965 = vmatpush1.msra.mxu0 0.0
        %966 = vmatprep.subr.mxu0 0.0
        %967 = vmatpush1.msra.mxu0 0.0
        %968 = vmatprep.subr.mxu0 0.0
        %969 = vmatpush1.msra.mxu0 0.0
        %970 = vmatprep.subr.mxu0 0.0
        %971 = vmatpush1.msra.mxu0 0.0
        %972 = vmatprep.subr.mxu0 0.0
        %973 = vmatpush1.msra.mxu0 0.0
        %974 = vmatprep.subr.mxu0 0.0
        %975 = vmatpush1.msra.mxu0 0.0
        %976 = vmatprep.subr.mxu0 0.0
        %977 = vmatpush1.msra.mxu0 0.0
        %978 = vmatprep.subr.mxu0 0.0
        %979 = vmatpush1.msra.mxu0 0.0
        %980 = vmatprep.subr.mxu0 0.0
        %981 = vmatpush1.msra.mxu0 0.0
        %982 = vmatprep.subr.mxu0 0.0
        %983 = vmatpush1.msra.mxu0 0.0
        %984 = vmatprep.subr.mxu0 0.0
        %985 = vmatpush1.msra.mxu0 0.0
        %986 = vmatprep.subr.mxu0 0.0
        %987 = vmatpush1.msra.mxu0 0.0
        %988 = vmatprep.mubr.f32.mxu0 0.0
        %989 = vmatmul.mubr.f32.gmra.mrb[0].mxu0 %v919
        %v990 = vpop.f32.mrb[0].mxu0
        %v991 = vadd.f32 0.0, %v990
        %v992 = vpop.f32.mrb[0].mxu0
        %993 = vdwg.mxu0
        %v994 = vadd.f32 %v911, %v991
        %s995 = scalar_lea.vmem %s1, 128
        %v996 = vld [vmem:[%s995] sm:$0xff]
        %v997 = vld [vmem:[%s995 + $0x8] sm:$0xf]
        %998 = vrot.lane.b32.xlu0 %v831, 125
        %v999 = vpop.permute.xlu0 %998
        %v1000 = vsel %vm347, %v999, 0
        %v1003 = vsel %vm351, %v997, 0
        %1005 = vmatprep.subr.mxu0 0.0
        %1006 = vmatpush1.msra.mxu0 %v996
        %1007 = vmatprep.subr.mxu0 0.0
        %1008 = vmatpush1.msra.mxu0 %v1003
        %1009 = vmatprep.subr.mxu0 0.0
        %1010 = vmatpush1.msra.mxu0 0.0
        %1011 = vmatprep.subr.mxu0 0.0
        %1012 = vmatpush1.msra.mxu0 0.0
        %1013 = vmatprep.subr.mxu0 0.0
        %1014 = vmatpush1.msra.mxu0 0.0
        %1015 = vmatprep.subr.mxu0 0.0
        %1016 = vmatpush1.msra.mxu0 0.0
        %1017 = vmatprep.subr.mxu0 0.0
        %1018 = vmatpush1.msra.mxu0 0.0
        %1019 = vmatprep.subr.mxu0 0.0
        %1020 = vmatpush1.msra.mxu0 0.0
        %1021 = vmatprep.subr.mxu0 0.0
        %1022 = vmatpush1.msra.mxu0 0.0
        %1023 = vmatprep.subr.mxu0 0.0
        %1024 = vmatpush1.msra.mxu0 0.0
        %1025 = vmatprep.subr.mxu0 0.0
        %1026 = vmatpush1.msra.mxu0 0.0
        %1027 = vmatprep.subr.mxu0 0.0
        %1028 = vmatpush1.msra.mxu0 0.0
        %1029 = vmatprep.subr.mxu0 0.0
        %1030 = vmatpush1.msra.mxu0 0.0
        %1031 = vmatprep.subr.mxu0 0.0
        %1032 = vmatpush1.msra.mxu0 0.0
        %1033 = vmatprep.subr.mxu0 0.0
        %1034 = vmatpush1.msra.mxu0 0.0
        %1035 = vmatprep.subr.mxu0 0.0
        %1036 = vmatpush1.msra.mxu0 0.0
        %1037 = vmatprep.subr.mxu0 0.0
        %1038 = vmatpush1.msra.mxu0 0.0
        %1039 = vmatprep.subr.mxu0 0.0
        %1040 = vmatpush1.msra.mxu0 0.0
        %1041 = vmatprep.subr.mxu0 0.0
        %1042 = vmatpush1.msra.mxu0 0.0
        %1043 = vmatprep.subr.mxu0 0.0
        %1044 = vmatpush1.msra.mxu0 0.0
        %1045 = vmatprep.subr.mxu0 0.0
        %1046 = vmatpush1.msra.mxu0 0.0
        %1047 = vmatprep.subr.mxu0 0.0
        %1048 = vmatpush1.msra.mxu0 0.0
        %1049 = vmatprep.subr.mxu0 0.0
        %1050 = vmatpush1.msra.mxu0 0.0
        %1051 = vmatprep.subr.mxu0 0.0
        %1052 = vmatpush1.msra.mxu0 0.0
        %1053 = vmatprep.subr.mxu0 0.0
        %1054 = vmatpush1.msra.mxu0 0.0
        %1055 = vmatprep.subr.mxu0 0.0
        %1056 = vmatpush1.msra.mxu0 0.0
        %1057 = vmatprep.subr.mxu0 0.0
        %1058 = vmatpush1.msra.mxu0 0.0
        %1059 = vmatprep.subr.mxu0 0.0
        %1060 = vmatpush1.msra.mxu0 0.0
        %1061 = vmatprep.subr.mxu0 0.0
        %1062 = vmatpush1.msra.mxu0 0.0
        %1063 = vmatprep.subr.mxu0 0.0
        %1064 = vmatpush1.msra.mxu0 0.0
        %1065 = vmatprep.subr.mxu0 0.0
        %1066 = vmatpush1.msra.mxu0 0.0
        %1067 = vmatprep.subr.mxu0 0.0
        %1068 = vmatpush1.msra.mxu0 0.0
        %1069 = vmatprep.mubr.f32.mxu0 0.0
        %1070 = vmatmul.mubr.f32.gmra.mrb[0].mxu0 %v1000
        %v1071 = vpop.f32.mrb[0].mxu0
        %v1072 = vadd.f32 0.0, %v1071
        %v1073 = vpop.f32.mrb[0].mxu0
        %1074 = vdwg.mxu0
        %v1075 = vadd.f32 %v994, %v1072
        %v1077 = vlaneseq
        %v1078 = vshrl.u32 %v1077, 7
        %v1079 = vsub.s32 0, %v1078
        %v1080 = vrot.slane %v336, %v1079
        %v1082 = vadd.f32 %v1075, %v1080
        %v1083 = vmax.f32 %v1082, 0.0
        %1084 = vst [vmem:[%s307] sm:$0xff] %v1083
        %v1085 = vld [vmem:[%s337] sm:$0xff]
        %v1086 = vld [vmem:[%s1] sm:$0xff]
        %v1087 = vld [vmem:[%s1 + $0x8] sm:$0xf]
        %v1088 = vld [vmem:[%s342] sm:$0xff]
        %v1089 = vld [vmem:[%s344] sm:$0xff]
        %v1090 = vld [vmem:[%s344 + $0x8] sm:$0xf]
        %1092 = vrot.lane.b32.xlu0 %v1088, 116
        %v1093 = vpop.permute.xlu0 %1092
        %v1094 = vsel %vm347, %v1093, 0
        %v1097 = vsel %vm351, %v1090, 0
        %1099 = vmatprep.subr.mxu0 0.0
        %1100 = vmatpush1.msra.mxu0 %v1089
        %1101 = vmatprep.subr.mxu0 0.0
        %1102 = vmatpush1.msra.mxu0 %v1097
        %1103 = vmatprep.subr.mxu0 0.0
        %1104 = vmatpush1.msra.mxu0 0.0
        %1105 = vmatprep.subr.mxu0 0.0
        %1106 = vmatpush1.msra.mxu0 0.0
        %1107 = vmatprep.subr.mxu0 0.0
        %1108 = vmatpush1.msra.mxu0 0.0
        %1109 = vmatprep.subr.mxu0 0.0
        %1110 = vmatpush1.msra.mxu0 0.0
        %1111 = vmatprep.subr.mxu0 0.0
        %1112 = vmatpush1.msra.mxu0 0.0
        %1113 = vmatprep.subr.mxu0 0.0
        %1114 = vmatpush1.msra.mxu0 0.0
        %1115 = vmatprep.subr.mxu0 0.0
        %1116 = vmatpush1.msra.mxu0 0.0
        %1117 = vmatprep.subr.mxu0 0.0
        %1118 = vmatpush1.msra.mxu0 0.0
        %1119 = vmatprep.subr.mxu0 0.0
        %1120 = vmatpush1.msra.mxu0 0.0
        %1121 = vmatprep.subr.mxu0 0.0
        %1122 = vmatpush1.msra.mxu0 0.0
        %1123 = vmatprep.subr.mxu0 0.0
        %1124 = vmatpush1.msra.mxu0 0.0
        %1125 = vmatprep.subr.mxu0 0.0
        %1126 = vmatpush1.msra.mxu0 0.0
        %1127 = vmatprep.subr.mxu0 0.0
        %1128 = vmatpush1.msra.mxu0 0.0
        %1129 = vmatprep.subr.mxu0 0.0
        %1130 = vmatpush1.msra.mxu0 0.0
        %1131 = vmatprep.subr.mxu0 0.0
        %1132 = vmatpush1.msra.mxu0 0.0
        %1133 = vmatprep.subr.mxu0 0.0
        %1134 = vmatpush1.msra.mxu0 0.0
        %1135 = vmatprep.subr.mxu0 0.0
        %1136 = vmatpush1.msra.mxu0 0.0
        %1137 = vmatprep.subr.mxu0 0.0
        %1138 = vmatpush1.msra.mxu0 0.0
        %1139 = vmatprep.subr.mxu0 0.0
        %1140 = vmatpush1.msra.mxu0 0.0
        %1141 = vmatprep.subr.mxu0 0.0
        %1142 = vmatpush1.msra.mxu0 0.0
        %1143 = vmatprep.subr.mxu0 0.0
        %1144 = vmatpush1.msra.mxu0 0.0
        %1145 = vmatprep.subr.mxu0 0.0
        %1146 = vmatpush1.msra.mxu0 0.0
        %1147 = vmatprep.subr.mxu0 0.0
        %1148 = vmatpush1.msra.mxu0 0.0
        %1149 = vmatprep.subr.mxu0 0.0
        %1150 = vmatpush1.msra.mxu0 0.0
        %1151 = vmatprep.subr.mxu0 0.0
        %1152 = vmatpush1.msra.mxu0 0.0
        %1153 = vmatprep.subr.mxu0 0.0
        %1154 = vmatpush1.msra.mxu0 0.0
        %1155 = vmatprep.subr.mxu0 0.0
        %1156 = vmatpush1.msra.mxu0 0.0
        %1157 = vmatprep.subr.mxu0 0.0
        %1158 = vmatpush1.msra.mxu0 0.0
        %1159 = vmatprep.subr.mxu0 0.0
        %1160 = vmatpush1.msra.mxu0 0.0
        %1161 = vmatprep.subr.mxu0 0.0
        %1162 = vmatpush1.msra.mxu0 0.0
        %1163 = vmatprep.mubr.f32.mxu0 0.0
        %1164 = vmatmul.mubr.f32.gmra.mrb[0].mxu0 %v1094
        %v1165 = vpop.f32.mrb[0].mxu0
        %v1166 = vadd.f32 0.0, %v1165
        %v1167 = vpop.f32.mrb[0].mxu0
        %1168 = vdwg.mxu0
        %1170 = vrot.lane.b32.xlu0 %v1085, 116
        %v1171 = vpop.permute.xlu0 %1170
        %v1172 = vsel %vm347, %v1171, 0
        %v1175 = vsel %vm351, %v1087, 0
        %1177 = vmatprep.subr.mxu0 0.0
        %1178 = vmatpush1.msra.mxu0 %v1086
        %1179 = vmatprep.subr.mxu0 0.0
        %1180 = vmatpush1.msra.mxu0 %v1175
        %1181 = vmatprep.subr.mxu0 0.0
        %1182 = vmatpush1.msra.mxu0 0.0
        %1183 = vmatprep.subr.mxu0 0.0
        %1184 = vmatpush1.msra.mxu0 0.0
        %1185 = vmatprep.subr.mxu0 0.0
        %1186 = vmatpush1.msra.mxu0 0.0
        %1187 = vmatprep.subr.mxu0 0.0
        %1188 = vmatpush1.msra.mxu0 0.0
        %1189 = vmatprep.subr.mxu0 0.0
        %1190 = vmatpush1.msra.mxu0 0.0
        %1191 = vmatprep.subr.mxu0 0.0
        %1192 = vmatpush1.msra.mxu0 0.0
        %1193 = vmatprep.subr.mxu0 0.0
        %1194 = vmatpush1.msra.mxu0 0.0
        %1195 = vmatprep.subr.mxu0 0.0
        %1196 = vmatpush1.msra.mxu0 0.0
        %1197 = vmatprep.subr.mxu0 0.0
        %1198 = vmatpush1.msra.mxu0 0.0
        %1199 = vmatprep.subr.mxu0 0.0
        %1200 = vmatpush1.msra.mxu0 0.0
        %1201 = vmatprep.subr.mxu0 0.0
        %1202 = vmatpush1.msra.mxu0 0.0
        %1203 = vmatprep.subr.mxu0 0.0
        %1204 = vmatpush1.msra.mxu0 0.0
        %1205 = vmatprep.subr.mxu0 0.0
        %1206 = vmatpush1.msra.mxu0 0.0
        %1207 = vmatprep.subr.mxu0 0.0
        %1208 = vmatpush1.msra.mxu0 0.0
        %1209 = vmatprep.subr.mxu0 0.0
        %1210 = vmatpush1.msra.mxu0 0.0
        %1211 = vmatprep.subr.mxu0 0.0
        %1212 = vmatpush1.msra.mxu0 0.0
        %1213 = vmatprep.subr.mxu0 0.0
        %1214 = vmatpush1.msra.mxu0 0.0
        %1215 = vmatprep.subr.mxu0 0.0
        %1216 = vmatpush1.msra.mxu0 0.0
        %1217 = vmatprep.subr.mxu0 0.0
        %1218 = vmatpush1.msra.mxu0 0.0
        %1219 = vmatprep.subr.mxu0 0.0
        %1220 = vmatpush1.msra.mxu0 0.0
        %1221 = vmatprep.subr.mxu0 0.0
        %1222 = vmatpush1.msra.mxu0 0.0
        %1223 = vmatprep.subr.mxu0 0.0
        %1224 = vmatpush1.msra.mxu0 0.0
        %1225 = vmatprep.subr.mxu0 0.0
        %1226 = vmatpush1.msra.mxu0 0.0
        %1227 = vmatprep.subr.mxu0 0.0
        %1228 = vmatpush1.msra.mxu0 0.0
        %1229 = vmatprep.subr.mxu0 0.0
        %1230 = vmatpush1.msra.mxu0 0.0
        %1231 = vmatprep.subr.mxu0 0.0
        %1232 = vmatpush1.msra.mxu0 0.0
        %1233 = vmatprep.subr.mxu0 0.0
        %1234 = vmatpush1.msra.mxu0 0.0
        %1235 = vmatprep.subr.mxu0 0.0
        %1236 = vmatpush1.msra.mxu0 0.0
        %1237 = vmatprep.subr.mxu0 0.0
        %1238 = vmatpush1.msra.mxu0 0.0
        %1239 = vmatprep.subr.mxu0 0.0
        %1240 = vmatpush1.msra.mxu0 0.0
        %1241 = vmatprep.mubr.f32.mxu0 0.0
        %1242 = vmatmul.mubr.f32.gmra.mrb[0].mxu0 %v1172
        %v1243 = vpop.f32.mrb[0].mxu0
        %v1244 = vadd.f32 %v1166, %v1243
        %v1245 = vpop.f32.mrb[0].mxu0
        %1246 = vdwg.mxu0
        %v1247 = vld [vmem:[%s501] sm:$0xff]
        %v1248 = vld [vmem:[%s501 + $0x8] sm:$0xf]
        %1249 = vrot.lane.b32.xlu0 %v1085, 113
        %v1250 = vpop.permute.xlu0 %1249
        %v1251 = vsel %vm347, %v1250, 0
        %v1254 = vsel %vm351, %v1248, 0
        %1256 = vmatprep.subr.mxu0 0.0
        %1257 = vmatpush1.msra.mxu0 %v1247
        %1258 = vmatprep.subr.mxu0 0.0
        %1259 = vmatpush1.msra.mxu0 %v1254
        %1260 = vmatprep.subr.mxu0 0.0
        %1261 = vmatpush1.msra.mxu0 0.0
        %1262 = vmatprep.subr.mxu0 0.0
        %1263 = vmatpush1.msra.mxu0 0.0
        %1264 = vmatprep.subr.mxu0 0.0
        %1265 = vmatpush1.msra.mxu0 0.0
        %1266 = vmatprep.subr.mxu0 0.0
        %1267 = vmatpush1.msra.mxu0 0.0
        %1268 = vmatprep.subr.mxu0 0.0
        %1269 = vmatpush1.msra.mxu0 0.0
        %1270 = vmatprep.subr.mxu0 0.0
        %1271 = vmatpush1.msra.mxu0 0.0
        %1272 = vmatprep.subr.mxu0 0.0
        %1273 = vmatpush1.msra.mxu0 0.0
        %1274 = vmatprep.subr.mxu0 0.0
        %1275 = vmatpush1.msra.mxu0 0.0
        %1276 = vmatprep.subr.mxu0 0.0
        %1277 = vmatpush1.msra.mxu0 0.0
        %1278 = vmatprep.subr.mxu0 0.0
        %1279 = vmatpush1.msra.mxu0 0.0
        %1280 = vmatprep.subr.mxu0 0.0
        %1281 = vmatpush1.msra.mxu0 0.0
        %1282 = vmatprep.subr.mxu0 0.0
        %1283 = vmatpush1.msra.mxu0 0.0
        %1284 = vmatprep.subr.mxu0 0.0
        %1285 = vmatpush1.msra.mxu0 0.0
        %1286 = vmatprep.subr.mxu0 0.0
        %1287 = vmatpush1.msra.mxu0 0.0
        %1288 = vmatprep.subr.mxu0 0.0
        %1289 = vmatpush1.msra.mxu0 0.0
        %1290 = vmatprep.subr.mxu0 0.0
        %1291 = vmatpush1.msra.mxu0 0.0
        %1292 = vmatprep.subr.mxu0 0.0
        %1293 = vmatpush1.msra.mxu0 0.0
        %1294 = vmatprep.subr.mxu0 0.0
        %1295 = vmatpush1.msra.mxu0 0.0
        %1296 = vmatprep.subr.mxu0 0.0
        %1297 = vmatpush1.msra.mxu0 0.0
        %1298 = vmatprep.subr.mxu0 0.0
        %1299 = vmatpush1.msra.mxu0 0.0
        %1300 = vmatprep.subr.mxu0 0.0
        %1301 = vmatpush1.msra.mxu0 0.0
        %1302 = vmatprep.subr.mxu0 0.0
        %1303 = vmatpush1.msra.mxu0 0.0
        %1304 = vmatprep.subr.mxu0 0.0
        %1305 = vmatpush1.msra.mxu0 0.0
        %1306 = vmatprep.subr.mxu0 0.0
        %1307 = vmatpush1.msra.mxu0 0.0
        %1308 = vmatprep.subr.mxu0 0.0
        %1309 = vmatpush1.msra.mxu0 0.0
        %1310 = vmatprep.subr.mxu0 0.0
        %1311 = vmatpush1.msra.mxu0 0.0
        %1312 = vmatprep.subr.mxu0 0.0
        %1313 = vmatpush1.msra.mxu0 0.0
        %1314 = vmatprep.subr.mxu0 0.0
        %1315 = vmatpush1.msra.mxu0 0.0
        %1316 = vmatprep.subr.mxu0 0.0
        %1317 = vmatpush1.msra.mxu0 0.0
        %1318 = vmatprep.subr.mxu0 0.0
        %1319 = vmatpush1.msra.mxu0 0.0
        %1320 = vmatprep.mubr.f32.mxu0 0.0
        %1321 = vmatmul.mubr.f32.gmra.mrb[0].mxu0 %v1251
        %v1322 = vpop.f32.mrb[0].mxu0
        %v1323 = vadd.f32 0.0, %v1322
        %v1324 = vpop.f32.mrb[0].mxu0
        %1325 = vdwg.mxu0
        %v1326 = vadd.f32 %v1244, %v1323
        %v1327 = vld [vmem:[%s583] sm:$0xff]
        %v1328 = vld [vmem:[%s585] sm:$0xff]
        %v1329 = vld [vmem:[%s585 + $0x8] sm:$0xf]
        %1331 = vrot.lane.b32.xlu0 %v1327, 116
        %v1332 = vpop.permute.xlu0 %1331
        %v1333 = vsel %vm347, %v1332, 0
        %v1336 = vsel %vm351, %v1329, 0
        %1338 = vmatprep.subr.mxu0 0.0
        %1339 = vmatpush1.msra.mxu0 %v1328
        %1340 = vmatprep.subr.mxu0 0.0
        %1341 = vmatpush1.msra.mxu0 %v1336
        %1342 = vmatprep.subr.mxu0 0.0
        %1343 = vmatpush1.msra.mxu0 0.0
        %1344 = vmatprep.subr.mxu0 0.0
        %1345 = vmatpush1.msra.mxu0 0.0
        %1346 = vmatprep.subr.mxu0 0.0
        %1347 = vmatpush1.msra.mxu0 0.0
        %1348 = vmatprep.subr.mxu0 0.0
        %1349 = vmatpush1.msra.mxu0 0.0
        %1350 = vmatprep.subr.mxu0 0.0
        %1351 = vmatpush1.msra.mxu0 0.0
        %1352 = vmatprep.subr.mxu0 0.0
        %1353 = vmatpush1.msra.mxu0 0.0
        %1354 = vmatprep.subr.mxu0 0.0
        %1355 = vmatpush1.msra.mxu0 0.0
        %1356 = vmatprep.subr.mxu0 0.0
        %1357 = vmatpush1.msra.mxu0 0.0
        %1358 = vmatprep.subr.mxu0 0.0
        %1359 = vmatpush1.msra.mxu0 0.0
        %1360 = vmatprep.subr.mxu0 0.0
        %1361 = vmatpush1.msra.mxu0 0.0
        %1362 = vmatprep.subr.mxu0 0.0
        %1363 = vmatpush1.msra.mxu0 0.0
        %1364 = vmatprep.subr.mxu0 0.0
        %1365 = vmatpush1.msra.mxu0 0.0
        %1366 = vmatprep.subr.mxu0 0.0
        %1367 = vmatpush1.msra.mxu0 0.0
        %1368 = vmatprep.subr.mxu0 0.0
        %1369 = vmatpush1.msra.mxu0 0.0
        %1370 = vmatprep.subr.mxu0 0.0
        %1371 = vmatpush1.msra.mxu0 0.0
        %1372 = vmatprep.subr.mxu0 0.0
        %1373 = vmatpush1.msra.mxu0 0.0
        %1374 = vmatprep.subr.mxu0 0.0
        %1375 = vmatpush1.msra.mxu0 0.0
        %1376 = vmatprep.subr.mxu0 0.0
        %1377 = vmatpush1.msra.mxu0 0.0
        %1378 = vmatprep.subr.mxu0 0.0
        %1379 = vmatpush1.msra.mxu0 0.0
        %1380 = vmatprep.subr.mxu0 0.0
        %1381 = vmatpush1.msra.mxu0 0.0
        %1382 = vmatprep.subr.mxu0 0.0
        %1383 = vmatpush1.msra.mxu0 0.0
        %1384 = vmatprep.subr.mxu0 0.0
        %1385 = vmatpush1.msra.mxu0 0.0
        %1386 = vmatprep.subr.mxu0 0.0
        %1387 = vmatpush1.msra.mxu0 0.0
        %1388 = vmatprep.subr.mxu0 0.0
        %1389 = vmatpush1.msra.mxu0 0.0
        %1390 = vmatprep.subr.mxu0 0.0
        %1391 = vmatpush1.msra.mxu0 0.0
        %1392 = vmatprep.subr.mxu0 0.0
        %1393 = vmatpush1.msra.mxu0 0.0
        %1394 = vmatprep.subr.mxu0 0.0
        %1395 = vmatpush1.msra.mxu0 0.0
        %1396 = vmatprep.subr.mxu0 0.0
        %1397 = vmatpush1.msra.mxu0 0.0
        %1398 = vmatprep.subr.mxu0 0.0
        %1399 = vmatpush1.msra.mxu0 0.0
        %1400 = vmatprep.subr.mxu0 0.0
        %1401 = vmatpush1.msra.mxu0 0.0
        %1402 = vmatprep.mubr.f32.mxu0 0.0
        %1403 = vmatmul.mubr.f32.gmra.mrb[0].mxu0 %v1333
        %v1404 = vpop.f32.mrb[0].mxu0
        %v1405 = vadd.f32 0.0, %v1404
        %v1406 = vpop.f32.mrb[0].mxu0
        %1407 = vdwg.mxu0
        %v1408 = vadd.f32 %v1326, %v1405
        %v1409 = vld [vmem:[%s666] sm:$0xff]
        %v1410 = vld [vmem:[%s668] sm:$0xff]
        %v1411 = vld [vmem:[%s668 + $0x8] sm:$0xf]
        %1413 = vrot.lane.b32.xlu0 %v1409, 116
        %v1414 = vpop.permute.xlu0 %1413
        %v1415 = vsel %vm347, %v1414, 0
        %v1418 = vsel %vm351, %v1411, 0
        %1420 = vmatprep.subr.mxu0 0.0
        %1421 = vmatpush1.msra.mxu0 %v1410
        %1422 = vmatprep.subr.mxu0 0.0
        %1423 = vmatpush1.msra.mxu0 %v1418
        %1424 = vmatprep.subr.mxu0 0.0
        %1425 = vmatpush1.msra.mxu0 0.0
        %1426 = vmatprep.subr.mxu0 0.0
        %1427 = vmatpush1.msra.mxu0 0.0
        %1428 = vmatprep.subr.mxu0 0.0
        %1429 = vmatpush1.msra.mxu0 0.0
        %1430 = vmatprep.subr.mxu0 0.0
        %1431 = vmatpush1.msra.mxu0 0.0
        %1432 = vmatprep.subr.mxu0 0.0
        %1433 = vmatpush1.msra.mxu0 0.0
        %1434 = vmatprep.subr.mxu0 0.0
        %1435 = vmatpush1.msra.mxu0 0.0
        %1436 = vmatprep.subr.mxu0 0.0
        %1437 = vmatpush1.msra.mxu0 0.0
        %1438 = vmatprep.subr.mxu0 0.0
        %1439 = vmatpush1.msra.mxu0 0.0
        %1440 = vmatprep.subr.mxu0 0.0
        %1441 = vmatpush1.msra.mxu0 0.0
        %1442 = vmatprep.subr.mxu0 0.0
        %1443 = vmatpush1.msra.mxu0 0.0
        %1444 = vmatprep.subr.mxu0 0.0
        %1445 = vmatpush1.msra.mxu0 0.0
        %1446 = vmatprep.subr.mxu0 0.0
        %1447 = vmatpush1.msra.mxu0 0.0
        %1448 = vmatprep.subr.mxu0 0.0
        %1449 = vmatpush1.msra.mxu0 0.0
        %1450 = vmatprep.subr.mxu0 0.0
        %1451 = vmatpush1.msra.mxu0 0.0
        %1452 = vmatprep.subr.mxu0 0.0
        %1453 = vmatpush1.msra.mxu0 0.0
        %1454 = vmatprep.subr.mxu0 0.0
        %1455 = vmatpush1.msra.mxu0 0.0
        %1456 = vmatprep.subr.mxu0 0.0
        %1457 = vmatpush1.msra.mxu0 0.0
        %1458 = vmatprep.subr.mxu0 0.0
        %1459 = vmatpush1.msra.mxu0 0.0
        %1460 = vmatprep.subr.mxu0 0.0
        %1461 = vmatpush1.msra.mxu0 0.0
        %1462 = vmatprep.subr.mxu0 0.0
        %1463 = vmatpush1.msra.mxu0 0.0
        %1464 = vmatprep.subr.mxu0 0.0
        %1465 = vmatpush1.msra.mxu0 0.0
        %1466 = vmatprep.subr.mxu0 0.0
        %1467 = vmatpush1.msra.mxu0 0.0
        %1468 = vmatprep.subr.mxu0 0.0
        %1469 = vmatpush1.msra.mxu0 0.0
        %1470 = vmatprep.subr.mxu0 0.0
        %1471 = vmatpush1.msra.mxu0 0.0
        %1472 = vmatprep.subr.mxu0 0.0
        %1473 = vmatpush1.msra.mxu0 0.0
        %1474 = vmatprep.subr.mxu0 0.0
        %1475 = vmatpush1.msra.mxu0 0.0
        %1476 = vmatprep.subr.mxu0 0.0
        %1477 = vmatpush1.msra.mxu0 0.0
        %1478 = vmatprep.subr.mxu0 0.0
        %1479 = vmatpush1.msra.mxu0 0.0
        %1480 = vmatprep.subr.mxu0 0.0
        %1481 = vmatpush1.msra.mxu0 0.0
        %1482 = vmatprep.subr.mxu0 0.0
        %1483 = vmatpush1.msra.mxu0 0.0
        %1484 = vmatprep.mubr.f32.mxu0 0.0
        %1485 = vmatmul.mubr.f32.gmra.mrb[0].mxu0 %v1415
        %v1486 = vpop.f32.mrb[0].mxu0
        %v1487 = vadd.f32 0.0, %v1486
        %v1488 = vpop.f32.mrb[0].mxu0
        %1489 = vdwg.mxu0
        %v1490 = vadd.f32 %v1408, %v1487
        %v1491 = vld [vmem:[%s748] sm:$0xff]
        %v1492 = vld [vmem:[%s748 + $0x8] sm:$0xf]
        %1493 = vrot.lane.b32.xlu0 %v1327, 113
        %v1494 = vpop.permute.xlu0 %1493
        %v1495 = vsel %vm347, %v1494, 0
        %v1498 = vsel %vm351, %v1492, 0
        %1500 = vmatprep.subr.mxu0 0.0
        %1501 = vmatpush1.msra.mxu0 %v1491
        %1502 = vmatprep.subr.mxu0 0.0
        %1503 = vmatpush1.msra.mxu0 %v1498
        %1504 = vmatprep.subr.mxu0 0.0
        %1505 = vmatpush1.msra.mxu0 0.0
        %1506 = vmatprep.subr.mxu0 0.0
        %1507 = vmatpush1.msra.mxu0 0.0
        %1508 = vmatprep.subr.mxu0 0.0
        %1509 = vmatpush1.msra.mxu0 0.0
        %1510 = vmatprep.subr.mxu0 0.0
        %1511 = vmatpush1.msra.mxu0 0.0
        %1512 = vmatprep.subr.mxu0 0.0
        %1513 = vmatpush1.msra.mxu0 0.0
        %1514 = vmatprep.subr.mxu0 0.0
        %1515 = vmatpush1.msra.mxu0 0.0
        %1516 = vmatprep.subr.mxu0 0.0
        %1517 = vmatpush1.msra.mxu0 0.0
        %1518 = vmatprep.subr.mxu0 0.0
        %1519 = vmatpush1.msra.mxu0 0.0
        %1520 = vmatprep.subr.mxu0 0.0
        %1521 = vmatpush1.msra.mxu0 0.0
        %1522 = vmatprep.subr.mxu0 0.0
        %1523 = vmatpush1.msra.mxu0 0.0
        %1524 = vmatprep.subr.mxu0 0.0
        %1525 = vmatpush1.msra.mxu0 0.0
        %1526 = vmatprep.subr.mxu0 0.0
        %1527 = vmatpush1.msra.mxu0 0.0
        %1528 = vmatprep.subr.mxu0 0.0
        %1529 = vmatpush1.msra.mxu0 0.0
        %1530 = vmatprep.subr.mxu0 0.0
        %1531 = vmatpush1.msra.mxu0 0.0
        %1532 = vmatprep.subr.mxu0 0.0
        %1533 = vmatpush1.msra.mxu0 0.0
        %1534 = vmatprep.subr.mxu0 0.0
        %1535 = vmatpush1.msra.mxu0 0.0
        %1536 = vmatprep.subr.mxu0 0.0
        %1537 = vmatpush1.msra.mxu0 0.0
        %1538 = vmatprep.subr.mxu0 0.0
        %1539 = vmatpush1.msra.mxu0 0.0
        %1540 = vmatprep.subr.mxu0 0.0
        %1541 = vmatpush1.msra.mxu0 0.0
        %1542 = vmatprep.subr.mxu0 0.0
        %1543 = vmatpush1.msra.mxu0 0.0
        %1544 = vmatprep.subr.mxu0 0.0
        %1545 = vmatpush1.msra.mxu0 0.0
        %1546 = vmatprep.subr.mxu0 0.0
        %1547 = vmatpush1.msra.mxu0 0.0
        %1548 = vmatprep.subr.mxu0 0.0
        %1549 = vmatpush1.msra.mxu0 0.0
        %1550 = vmatprep.subr.mxu0 0.0
        %1551 = vmatpush1.msra.mxu0 0.0
        %1552 = vmatprep.subr.mxu0 0.0
        %1553 = vmatpush1.msra.mxu0 0.0
        %1554 = vmatprep.subr.mxu0 0.0
        %1555 = vmatpush1.msra.mxu0 0.0
        %1556 = vmatprep.subr.mxu0 0.0
        %1557 = vmatpush1.msra.mxu0 0.0
        %1558 = vmatprep.subr.mxu0 0.0
        %1559 = vmatpush1.msra.mxu0 0.0
        %1560 = vmatprep.subr.mxu0 0.0
        %1561 = vmatpush1.msra.mxu0 0.0
        %1562 = vmatprep.subr.mxu0 0.0
        %1563 = vmatpush1.msra.mxu0 0.0
        %1564 = vmatprep.mubr.f32.mxu0 0.0
        %1565 = vmatmul.mubr.f32.gmra.mrb[0].mxu0 %v1495
        %v1566 = vpop.f32.mrb[0].mxu0
        %v1567 = vadd.f32 0.0, %v1566
        %v1568 = vpop.f32.mrb[0].mxu0
        %1569 = vdwg.mxu0
        %v1570 = vadd.f32 %v1490, %v1567
        %v1571 = vld [vmem:[%s830] sm:$0xff]
        %v1572 = vld [vmem:[%s832] sm:$0xff]
        %v1573 = vld [vmem:[%s832 + $0x8] sm:$0xf]
        %1575 = vrot.lane.b32.xlu0 %v1571, 116
        %v1576 = vpop.permute.xlu0 %1575
        %v1577 = vsel %vm347, %v1576, 0
        %v1580 = vsel %vm351, %v1573, 0
        %1582 = vmatprep.subr.mxu0 0.0
        %1583 = vmatpush1.msra.mxu0 %v1572
        %1584 = vmatprep.subr.mxu0 0.0
        %1585 = vmatpush1.msra.mxu0 %v1580
        %1586 = vmatprep.subr.mxu0 0.0
        %1587 = vmatpush1.msra.mxu0 0.0
        %1588 = vmatprep.subr.mxu0 0.0
        %1589 = vmatpush1.msra.mxu0 0.0
        %1590 = vmatprep.subr.mxu0 0.0
        %1591 = vmatpush1.msra.mxu0 0.0
        %1592 = vmatprep.subr.mxu0 0.0
        %1593 = vmatpush1.msra.mxu0 0.0
        %1594 = vmatprep.subr.mxu0 0.0
        %1595 = vmatpush1.msra.mxu0 0.0
        %1596 = vmatprep.subr.mxu0 0.0
        %1597 = vmatpush1.msra.mxu0 0.0
        %1598 = vmatprep.subr.mxu0 0.0
        %1599 = vmatpush1.msra.mxu0 0.0
        %1600 = vmatprep.subr.mxu0 0.0
        %1601 = vmatpush1.msra.mxu0 0.0
        %1602 = vmatprep.subr.mxu0 0.0
        %1603 = vmatpush1.msra.mxu0 0.0
        %1604 = vmatprep.subr.mxu0 0.0
        %1605 = vmatpush1.msra.mxu0 0.0
        %1606 = vmatprep.subr.mxu0 0.0
        %1607 = vmatpush1.msra.mxu0 0.0
        %1608 = vmatprep.subr.mxu0 0.0
        %1609 = vmatpush1.msra.mxu0 0.0
        %1610 = vmatprep.subr.mxu0 0.0
        %1611 = vmatpush1.msra.mxu0 0.0
        %1612 = vmatprep.subr.mxu0 0.0
        %1613 = vmatpush1.msra.mxu0 0.0
        %1614 = vmatprep.subr.mxu0 0.0
        %1615 = vmatpush1.msra.mxu0 0.0
        %1616 = vmatprep.subr.mxu0 0.0
        %1617 = vmatpush1.msra.mxu0 0.0
        %1618 = vmatprep.subr.mxu0 0.0
        %1619 = vmatpush1.msra.mxu0 0.0
        %1620 = vmatprep.subr.mxu0 0.0
        %1621 = vmatpush1.msra.mxu0 0.0
        %1622 = vmatprep.subr.mxu0 0.0
        %1623 = vmatpush1.msra.mxu0 0.0
        %1624 = vmatprep.subr.mxu0 0.0
        %1625 = vmatpush1.msra.mxu0 0.0
        %1626 = vmatprep.subr.mxu0 0.0
        %1627 = vmatpush1.msra.mxu0 0.0
        %1628 = vmatprep.subr.mxu0 0.0
        %1629 = vmatpush1.msra.mxu0 0.0
        %1630 = vmatprep.subr.mxu0 0.0
        %1631 = vmatpush1.msra.mxu0 0.0
        %1632 = vmatprep.subr.mxu0 0.0
        %1633 = vmatpush1.msra.mxu0 0.0
        %1634 = vmatprep.subr.mxu0 0.0
        %1635 = vmatpush1.msra.mxu0 0.0
        %1636 = vmatprep.subr.mxu0 0.0
        %1637 = vmatpush1.msra.mxu0 0.0
        %1638 = vmatprep.subr.mxu0 0.0
        %1639 = vmatpush1.msra.mxu0 0.0
        %1640 = vmatprep.subr.mxu0 0.0
        %1641 = vmatpush1.msra.mxu0 0.0
        %1642 = vmatprep.subr.mxu0 0.0
        %1643 = vmatpush1.msra.mxu0 0.0
        %1644 = vmatprep.subr.mxu0 0.0
        %1645 = vmatpush1.msra.mxu0 0.0
        %1646 = vmatprep.mubr.f32.mxu0 0.0
        %1647 = vmatmul.mubr.f32.gmra.mrb[0].mxu0 %v1577
        %v1648 = vpop.f32.mrb[0].mxu0
        %v1649 = vadd.f32 0.0, %v1648
        %v1650 = vpop.f32.mrb[0].mxu0
        %1651 = vdwg.mxu0
        %v1652 = vadd.f32 %v1570, %v1649
        %v1653 = vld [vmem:[%s913] sm:$0xff]
        %v1654 = vld [vmem:[%s915] sm:$0xff]
        %v1655 = vld [vmem:[%s915 + $0x8] sm:$0xf]
        %1657 = vrot.lane.b32.xlu0 %v1653, 116
        %v1658 = vpop.permute.xlu0 %1657
        %v1659 = vsel %vm347, %v1658, 0
        %v1662 = vsel %vm351, %v1655, 0
        %1664 = vmatprep.subr.mxu0 0.0
        %1665 = vmatpush1.msra.mxu0 %v1654
        %1666 = vmatprep.subr.mxu0 0.0
        %1667 = vmatpush1.msra.mxu0 %v1662
        %1668 = vmatprep.subr.mxu0 0.0
        %1669 = vmatpush1.msra.mxu0 0.0
        %1670 = vmatprep.subr.mxu0 0.0
        %1671 = vmatpush1.msra.mxu0 0.0
        %1672 = vmatprep.subr.mxu0 0.0
        %1673 = vmatpush1.msra.mxu0 0.0
        %1674 = vmatprep.subr.mxu0 0.0
        %1675 = vmatpush1.msra.mxu0 0.0
        %1676 = vmatprep.subr.mxu0 0.0
        %1677 = vmatpush1.msra.mxu0 0.0
        %1678 = vmatprep.subr.mxu0 0.0
        %1679 = vmatpush1.msra.mxu0 0.0
        %1680 = vmatprep.subr.mxu0 0.0
        %1681 = vmatpush1.msra.mxu0 0.0
        %1682 = vmatprep.subr.mxu0 0.0
        %1683 = vmatpush1.msra.mxu0 0.0
        %1684 = vmatprep.subr.mxu0 0.0
        %1685 = vmatpush1.msra.mxu0 0.0
        %1686 = vmatprep.subr.mxu0 0.0
        %1687 = vmatpush1.msra.mxu0 0.0
        %1688 = vmatprep.subr.mxu0 0.0
        %1689 = vmatpush1.msra.mxu0 0.0
        %1690 = vmatprep.subr.mxu0 0.0
        %1691 = vmatpush1.msra.mxu0 0.0
        %1692 = vmatprep.subr.mxu0 0.0
        %1693 = vmatpush1.msra.mxu0 0.0
        %1694 = vmatprep.subr.mxu0 0.0
        %1695 = vmatpush1.msra.mxu0 0.0
        %1696 = vmatprep.subr.mxu0 0.0
        %1697 = vmatpush1.msra.mxu0 0.0
        %1698 = vmatprep.subr.mxu0 0.0
        %1699 = vmatpush1.msra.mxu0 0.0
        %1700 = vmatprep.subr.mxu0 0.0
        %1701 = vmatpush1.msra.mxu0 0.0
        %1702 = vmatprep.subr.mxu0 0.0
        %1703 = vmatpush1.msra.mxu0 0.0
        %1704 = vmatprep.subr.mxu0 0.0
        %1705 = vmatpush1.msra.mxu0 0.0
        %1706 = vmatprep.subr.mxu0 0.0
        %1707 = vmatpush1.msra.mxu0 0.0
        %1708 = vmatprep.subr.mxu0 0.0
        %1709 = vmatpush1.msra.mxu0 0.0
        %1710 = vmatprep.subr.mxu0 0.0
        %1711 = vmatpush1.msra.mxu0 0.0
        %1712 = vmatprep.subr.mxu0 0.0
        %1713 = vmatpush1.msra.mxu0 0.0
        %1714 = vmatprep.subr.mxu0 0.0
        %1715 = vmatpush1.msra.mxu0 0.0
        %1716 = vmatprep.subr.mxu0 0.0
        %1717 = vmatpush1.msra.mxu0 0.0
        %1718 = vmatprep.subr.mxu0 0.0
        %1719 = vmatpush1.msra.mxu0 0.0
        %1720 = vmatprep.subr.mxu0 0.0
        %1721 = vmatpush1.msra.mxu0 0.0
        %1722 = vmatprep.subr.mxu0 0.0
        %1723 = vmatpush1.msra.mxu0 0.0
        %1724 = vmatprep.subr.mxu0 0.0
        %1725 = vmatpush1.msra.mxu0 0.0
        %1726 = vmatprep.subr.mxu0 0.0
        %1727 = vmatpush1.msra.mxu0 0.0
        %1728 = vmatprep.mubr.f32.mxu0 0.0
        %1729 = vmatmul.mubr.f32.gmra.mrb[0].mxu0 %v1659
        %v1730 = vpop.f32.mrb[0].mxu0
        %v1731 = vadd.f32 0.0, %v1730
        %v1732 = vpop.f32.mrb[0].mxu0
        %1733 = vdwg.mxu0
        %v1734 = vadd.f32 %v1652, %v1731
        %v1735 = vld [vmem:[%s995] sm:$0xff]
        %v1736 = vld [vmem:[%s995 + $0x8] sm:$0xf]
        %1737 = vrot.lane.b32.xlu0 %v1571, 113
        %v1738 = vpop.permute.xlu0 %1737
        %v1739 = vsel %vm347, %v1738, 0
        %v1742 = vsel %vm351, %v1736, 0
        %1744 = vmatprep.subr.mxu0 0.0
        %1745 = vmatpush1.msra.mxu0 %v1735
        %1746 = vmatprep.subr.mxu0 0.0
        %1747 = vmatpush1.msra.mxu0 %v1742
        %1748 = vmatprep.subr.mxu0 0.0
        %1749 = vmatpush1.msra.mxu0 0.0
        %1750 = vmatprep.subr.mxu0 0.0
        %1751 = vmatpush1.msra.mxu0 0.0
        %1752 = vmatprep.subr.mxu0 0.0
        %1753 = vmatpush1.msra.mxu0 0.0
        %1754 = vmatprep.subr.mxu0 0.0
        %1755 = vmatpush1.msra.mxu0 0.0
        %1756 = vmatprep.subr.mxu0 0.0
        %1757 = vmatpush1.msra.mxu0 0.0
        %1758 = vmatprep.subr.mxu0 0.0
        %1759 = vmatpush1.msra.mxu0 0.0
        %1760 = vmatprep.subr.mxu0 0.0
        %1761 = vmatpush1.msra.mxu0 0.0
        %1762 = vmatprep.subr.mxu0 0.0
        %1763 = vmatpush1.msra.mxu0 0.0
        %1764 = vmatprep.subr.mxu0 0.0
        %1765 = vmatpush1.msra.mxu0 0.0
        %1766 = vmatprep.subr.mxu0 0.0
        %1767 = vmatpush1.msra.mxu0 0.0
        %1768 = vmatprep.subr.mxu0 0.0
        %1769 = vmatpush1.msra.mxu0 0.0
        %1770 = vmatprep.subr.mxu0 0.0
        %1771 = vmatpush1.msra.mxu0 0.0
        %1772 = vmatprep.subr.mxu0 0.0
        %1773 = vmatpush1.msra.mxu0 0.0
        %1774 = vmatprep.subr.mxu0 0.0
        %1775 = vmatpush1.msra.mxu0 0.0
        %1776 = vmatprep.subr.mxu0 0.0
        %1777 = vmatpush1.msra.mxu0 0.0
        %1778 = vmatprep.subr.mxu0 0.0
        %1779 = vmatpush1.msra.mxu0 0.0
        %1780 = vmatprep.subr.mxu0 0.0
        %1781 = vmatpush1.msra.mxu0 0.0
        %1782 = vmatprep.subr.mxu0 0.0
        %1783 = vmatpush1.msra.mxu0 0.0
        %1784 = vmatprep.subr.mxu0 0.0
        %1785 = vmatpush1.msra.mxu0 0.0
        %1786 = vmatprep.subr.mxu0 0.0
        %1787 = vmatpush1.msra.mxu0 0.0
        %1788 = vmatprep.subr.mxu0 0.0
        %1789 = vmatpush1.msra.mxu0 0.0
        %1790 = vmatprep.subr.mxu0 0.0
        %1791 = vmatpush1.msra.mxu0 0.0
        %1792 = vmatprep.subr.mxu0 0.0
        %1793 = vmatpush1.msra.mxu0 0.0
        %1794 = vmatprep.subr.mxu0 0.0
        %1795 = vmatpush1.msra.mxu0 0.0
        %1796 = vmatprep.subr.mxu0 0.0
        %1797 = vmatpush1.msra.mxu0 0.0
        %1798 = vmatprep.subr.mxu0 0.0
        %1799 = vmatpush1.msra.mxu0 0.0
        %1800 = vmatprep.subr.mxu0 0.0
        %1801 = vmatpush1.msra.mxu0 0.0
        %1802 = vmatprep.subr.mxu0 0.0
        %1803 = vmatpush1.msra.mxu0 0.0
        %1804 = vmatprep.subr.mxu0 0.0
        %1805 = vmatpush1.msra.mxu0 0.0
        %1806 = vmatprep.subr.mxu0 0.0
        %1807 = vmatpush1.msra.mxu0 0.0
        %1808 = vmatprep.mubr.f32.mxu0 0.0
        %1809 = vmatmul.mubr.f32.gmra.mrb[0].mxu0 %v1739
        %v1810 = vpop.f32.mrb[0].mxu0
        %v1811 = vadd.f32 0.0, %v1810
        %v1812 = vpop.f32.mrb[0].mxu0
        %1813 = vdwg.mxu0
        %v1814 = vadd.f32 %v1734, %v1811
        %v1815 = vadd.f32 %v1814, %v1080
        %v1816 = vmax.f32 %v1815, 0.0
        %1817 = vst [vmem:[%s307 + $0x8] sm:$0xff] %v1816
        %v1818 = vld [vmem:[%s326] sm:$0xff]
        %v1819 = vld [vmem:[%s334] sm:$0xff]
        %v1820 = vand.u32 2147483647, %v1818
        %vm1821 = vcmp.le.f32.partialorder %v1820, 0.7853982
        %vm1822 = vcmp.lt.s32.totalorder %v1818, 0
        %v1823 = vand.u32 %v1818, 2139095040
        %v1824 = vshrl.u32 %v1823, 23
        %v1825 = vsub.s32 %v1824, 127
        %v1826 = vand.u32 2147483647, %v1818
        %v1827 = vand.u32 %v1826, 8388607
        %v1828 = vor.u32 %v1827, 8388608
        %v1829 = vsub.s32 0, %v1828
        %v1830 = vadd.s32 %v1825, 1
        %vm1831 = vcmp.gt.s32.totalorder %v1830, 0
        %v1832 = vsel %vm1831, %v1830, 0
        %v1833 = vshrl.u32 %v1832, 5
        %v1834 = vand.u32 %v1832, 31
        %v1835 = vsub.s32 32, %v1834
        %v1836 = vshrl.u32 683565275, %v1835
        %v1837 = vshll.u32 683565275, %v1834
        %v1838 = vshrl.u32 2475754826, %v1835
        %v1839 = vor.u32 %v1837, %v1838
        %v1840 = vshll.u32 2475754826, %v1834
        %v1841 = vshrl.u32 2131351028, %v1835
        %v1842 = vor.u32 %v1840, %v1841
        %v1843 = vshll.u32 2131351028, %v1834
        %v1844 = vshrl.u32 2102212464, %v1835
        %v1845 = vor.u32 %v1843, %v1844
        %v1846 = vshll.u32 2102212464, %v1834
        %v1847 = vshrl.u32 920167782, %v1835
        %v1848 = vor.u32 %v1846, %v1847
        %v1849 = vshll.u32 920167782, %v1834
        %v1850 = vshrl.u32 1326507024, %v1835
        %v1851 = vor.u32 %v1849, %v1850
        %vm1852 = vcmp.lt.s32.totalorder %v1833, 1
        %vm1853 = vcmp.lt.s32.totalorder %v1833, 2
        %vm1854 = vcmp.lt.s32.totalorder %v1833, 3
        %vm1855 = vcmp.lt.s32.totalorder %v1833, 4
        %v1856 = vsel %vm1852, %v1836, %v1839
        %v1857 = vsel %vm1855, %v1845, 2102212464
        %v1858 = vsel %vm1854, %v1842, %v1857
        %v1859 = vsel %vm1853, %v1856, %v1858
        %v1860 = vsel %vm1852, %v1839, %v1842
        %v1861 = vsel %vm1855, %v1848, 920167782
        %v1862 = vsel %vm1854, %v1845, %v1861
        %v1863 = vsel %vm1853, %v1860, %v1862
        %v1864 = vsel %vm1852, %v1842, %v1845
        %v1865 = vsel %vm1855, %v1851, 1326507024
        %v1866 = vsel %vm1854, %v1848, %v1865
        %v1867 = vsel %vm1853, %v1864, %v1866
        %v1868 = vshll.u32 %v1828, 8
        %v1869 = vmul.u32.u64.compose %v1868, %v1867
        %v1870 = vextract.low.u32 %v1869
        %v1871 = vextract.high.u32 %v1869
        %v1872 = vmul.u32.u64.compose %v1868, %v1863
        %v1873 = vextract.low.u32 %v1872
        %v1874 = vextract.high.u32 %v1872
        %v1875 = vmul.u32 %v1868, %v1859
        %v1876 = vadd.s32 %v1871, %v1873
        %vm1877 = vc.u32 %v1871, %v1873
        %v1878 = vadd.s32 %v1874, 1
        %v1879 = vsel %vm1877, %v1878, %v1874
        %v1880 = vadd.s32 %v1875, %v1879
        %v1881 = vadd.s32 %v1880, 536870912
        %v1882 = vshrl.u32 %v1881, 30
        %v1883 = vshll.u32 %v1882, 30
        %v1884 = vsub.s32 %v1880, %v1883
        %vm1885 = vcmp.lt.s32.totalorder %v1884, 0
        %v1886 = vsub.s32 0, %v1884
        %v1887 = vsel %vm1885, %v1886, %v1884
        %v1888 = vclz %v1887
        %v1889 = vsub.s32 %v1888, 2
        %vm1890 = vcmp.gt.s32.totalorder 0, %v1889
        %v1891 = vsel %vm1890, 0, %v1889
        %v1892 = vsub.s32 32, %v1891
        %v1893 = vshll.u32 %v1884, %v1891
        %v1894 = vshrl.u32 %v1876, %v1892
        %v1895 = vor.u32 %v1893, %v1894
        %v1896 = vsub.s32 4294967266, %v1891
        %v1897 = vadd.s32 %v1896, 127
        %v1898 = vshll.u32 %v1897, 23
        %v1899 = vor.u32 4788187, %v1898
        %v1900 = vand.u32 2147483647, %v1899
        %v1902 = vcvt.s32.f32 %v1895
        %v1903 = vmul.f32 %v1902, %v1900
        %v1904 = vxor.u32 %v1903, 2147483648
        %v1905 = vsel %vm1822, %v1904, %v1903
        %v1906 = vsub.s32 4, %v1882
        %v1907 = vsel %vm1822, %v1906, %v1882
        %v1908 = vsel %vm1821, %v1818, %v1905
        %v1909 = vsel %vm1821, 0, %v1907
        %v1910 = vcosq.f32.pop %v1908
        %v1911 = vsinq.f32.pop %v1908
        %vm1912 = vweird.f32 %v1818
        %v1913 = vadd.s32 %v1909, 3
        %v1914 = vand.u32 %v1913, 3
        %vm1915 = vcmp.lt.s32.totalorder %v1914, 2
        %vm1916 = vcmp.eq.s32.totalorder %v1914, 0
        %v1917 = vxor.u32 %v1911, 2147483648
        %v1918 = vsel %vm1916, %v1910, %v1917
        %vm1919 = vcmp.eq.s32.totalorder %v1914, 2
        %v1920 = vxor.u32 %v1910, 2147483648
        %v1921 = vsel %vm1919, %v1920, %v1911
        %v1922 = vsel %vm1915, %v1918, %v1921
        %v1923 = vsel %vm1912, nan, %v1922
        %vm1924 = vcmask 64512
        %1925 = vst.msk [vmem:[%s313] sm:$0xff] %vm1924, %v1923
        %v1926 = vand.u32 2147483647, %v1819
        %vm1927 = vcmp.le.f32.partialorder %v1926, 0.7853982
        %vm1928 = vcmp.lt.s32.totalorder %v1819, 0
        %v1929 = vand.u32 %v1819, 2139095040
        %v1930 = vshrl.u32 %v1929, 23
        %v1931 = vsub.s32 %v1930, 127
        %v1932 = vand.u32 2147483647, %v1819
        %v1933 = vand.u32 %v1932, 8388607
        %v1934 = vor.u32 %v1933, 8388608
        %v1935 = vsub.s32 0, %v1934
        %v1936 = vadd.s32 %v1931, 1
        %vm1937 = vcmp.gt.s32.totalorder %v1936, 0
        %v1938 = vsel %vm1937, %v1936, 0
        %v1939 = vshrl.u32 %v1938, 5
        %v1940 = vand.u32 %v1938, 31
        %v1941 = vsub.s32 32, %v1940
        %v1942 = vshrl.u32 683565275, %v1941
        %v1943 = vshll.u32 683565275, %v1940
        %v1944 = vshrl.u32 2475754826, %v1941
        %v1945 = vor.u32 %v1943, %v1944
        %v1946 = vshll.u32 2475754826, %v1940
        %v1947 = vshrl.u32 2131351028, %v1941
        %v1948 = vor.u32 %v1946, %v1947
        %v1949 = vshll.u32 2131351028, %v1940
        %v1950 = vshrl.u32 2102212464, %v1941
        %v1951 = vor.u32 %v1949, %v1950
        %v1952 = vshll.u32 2102212464, %v1940
        %v1953 = vshrl.u32 920167782, %v1941
        %v1954 = vor.u32 %v1952, %v1953
        %v1955 = vshll.u32 920167782, %v1940
        %v1956 = vshrl.u32 1326507024, %v1941
        %v1957 = vor.u32 %v1955, %v1956
        %vm1958 = vcmp.lt.s32.totalorder %v1939, 1
        %vm1959 = vcmp.lt.s32.totalorder %v1939, 2
        %vm1960 = vcmp.lt.s32.totalorder %v1939, 3
        %vm1961 = vcmp.lt.s32.totalorder %v1939, 4
        %v1962 = vsel %vm1958, %v1942, %v1945
        %v1963 = vsel %vm1961, %v1951, 2102212464
        %v1964 = vsel %vm1960, %v1948, %v1963
        %v1965 = vsel %vm1959, %v1962, %v1964
        %v1966 = vsel %vm1958, %v1945, %v1948
        %v1967 = vsel %vm1961, %v1954, 920167782
        %v1968 = vsel %vm1960, %v1951, %v1967
        %v1969 = vsel %vm1959, %v1966, %v1968
        %v1970 = vsel %vm1958, %v1948, %v1951
        %v1971 = vsel %vm1961, %v1957, 1326507024
        %v1972 = vsel %vm1960, %v1954, %v1971
        %v1973 = vsel %vm1959, %v1970, %v1972
        %v1974 = vshll.u32 %v1934, 8
        %v1975 = vmul.u32.u64.compose %v1974, %v1973
        %v1976 = vextract.low.u32 %v1975
        %v1977 = vextract.high.u32 %v1975
        %v1978 = vmul.u32.u64.compose %v1974, %v1969
        %v1979 = vextract.low.u32 %v1978
        %v1980 = vextract.high.u32 %v1978
        %v1981 = vmul.u32 %v1974, %v1965
        %v1982 = vadd.s32 %v1977, %v1979
        %vm1983 = vc.u32 %v1977, %v1979
        %v1984 = vadd.s32 %v1980, 1
        %v1985 = vsel %vm1983, %v1984, %v1980
        %v1986 = vadd.s32 %v1981, %v1985
        %v1987 = vadd.s32 %v1986, 536870912
        %v1988 = vshrl.u32 %v1987, 30
        %v1989 = vshll.u32 %v1988, 30
        %v1990 = vsub.s32 %v1986, %v1989
        %vm1991 = vcmp.lt.s32.totalorder %v1990, 0
        %v1992 = vsub.s32 0, %v1990
        %v1993 = vsel %vm1991, %v1992, %v1990
        %v1994 = vclz %v1993
        %v1995 = vsub.s32 %v1994, 2
        %vm1996 = vcmp.gt.s32.totalorder 0, %v1995
        %v1997 = vsel %vm1996, 0, %v1995
        %v1998 = vsub.s32 32, %v1997
        %v1999 = vshll.u32 %v1990, %v1997
        %v2000 = vshrl.u32 %v1982, %v1998
        %v2001 = vor.u32 %v1999, %v2000
        %v2002 = vsub.s32 4294967266, %v1997
        %v2003 = vadd.s32 %v2002, 127
        %v2004 = vshll.u32 %v2003, 23
        %v2005 = vor.u32 4788187, %v2004
        %v2006 = vand.u32 2147483647, %v2005
        %v2008 = vcvt.s32.f32 %v2001
        %v2009 = vmul.f32 %v2008, %v2006
        %v2010 = vxor.u32 %v2009, 2147483648
        %v2011 = vsel %vm1928, %v2010, %v2009
        %v2012 = vsub.s32 4, %v1988
        %v2013 = vsel %vm1928, %v2012, %v1988
        %v2014 = vsel %vm1927, %v1819, %v2011
        %v2015 = vsel %vm1927, 0, %v2013
        %v2016 = vcosq.f32.pop %v2014
        %v2017 = vsinq.f32.pop %v2014
        %vm2018 = vweird.f32 %v1819
        %v2019 = vadd.s32 %v2015, 3
        %v2020 = vand.u32 %v2019, 3
        %vm2021 = vcmp.lt.s32.totalorder %v2020, 2
        %vm2022 = vcmp.eq.s32.totalorder %v2020, 0
        %v2023 = vxor.u32 %v2017, 2147483648
        %v2024 = vsel %vm2022, %v2016, %v2023
        %vm2025 = vcmp.eq.s32.totalorder %v2020, 2
        %v2026 = vxor.u32 %v2016, 2147483648
        %v2027 = vsel %vm2025, %v2026, %v2017
        %v2028 = vsel %vm2021, %v2024, %v2027
        %v2029 = vsel %vm2018, nan, %v2028
        %s2030 = scalar_lea.vmem %s313, 128 [#allocation4]
        %2031 = vst.msk [vmem:[%s2030] sm:$0xff] %vm1924, %v2029
        %v2032 = vadd.f32 %v1818, 1.5707964
        %v2033 = vand.u32 2147483647, %v2032
        %vm2034 = vcmp.le.f32.partialorder %v2033, 0.7853982
        %vm2035 = vcmp.lt.s32.totalorder %v2032, 0
        %v2036 = vand.u32 %v2032, 2139095040
        %v2037 = vshrl.u32 %v2036, 23
        %v2038 = vsub.s32 %v2037, 127
        %v2039 = vand.u32 2147483647, %v2032
        %v2040 = vand.u32 %v2039, 8388607
        %v2041 = vor.u32 %v2040, 8388608
        %v2042 = vsub.s32 0, %v2041
        %v2043 = vadd.s32 %v2038, 1
        %vm2044 = vcmp.gt.s32.totalorder %v2043, 0
        %v2045 = vsel %vm2044, %v2043, 0
        %v2046 = vshrl.u32 %v2045, 5
        %v2047 = vand.u32 %v2045, 31
        %v2048 = vsub.s32 32, %v2047
        %v2049 = vshrl.u32 683565275, %v2048
        %v2050 = vshll.u32 683565275, %v2047
        %v2051 = vshrl.u32 2475754826, %v2048
        %v2052 = vor.u32 %v2050, %v2051
        %v2053 = vshll.u32 2475754826, %v2047
        %v2054 = vshrl.u32 2131351028, %v2048
        %v2055 = vor.u32 %v2053, %v2054
        %v2056 = vshll.u32 2131351028, %v2047
        %v2057 = vshrl.u32 2102212464, %v2048
        %v2058 = vor.u32 %v2056, %v2057
        %v2059 = vshll.u32 2102212464, %v2047
        %v2060 = vshrl.u32 920167782, %v2048
        %v2061 = vor.u32 %v2059, %v2060
        %v2062 = vshll.u32 920167782, %v2047
        %v2063 = vshrl.u32 1326507024, %v2048
        %v2064 = vor.u32 %v2062, %v2063
        %vm2065 = vcmp.lt.s32.totalorder %v2046, 1
        %vm2066 = vcmp.lt.s32.totalorder %v2046, 2
        %vm2067 = vcmp.lt.s32.totalorder %v2046, 3
        %vm2068 = vcmp.lt.s32.totalorder %v2046, 4
        %v2069 = vsel %vm2065, %v2049, %v2052
        %v2070 = vsel %vm2068, %v2058, 2102212464
        %v2071 = vsel %vm2067, %v2055, %v2070
        %v2072 = vsel %vm2066, %v2069, %v2071
        %v2073 = vsel %vm2065, %v2052, %v2055
        %v2074 = vsel %vm2068, %v2061, 920167782
        %v2075 = vsel %vm2067, %v2058, %v2074
        %v2076 = vsel %vm2066, %v2073, %v2075
        %v2077 = vsel %vm2065, %v2055, %v2058
        %v2078 = vsel %vm2068, %v2064, 1326507024
        %v2079 = vsel %vm2067, %v2061, %v2078
        %v2080 = vsel %vm2066, %v2077, %v2079
        %v2081 = vshll.u32 %v2041, 8
        %v2082 = vmul.u32.u64.compose %v2081, %v2080
        %v2083 = vextract.low.u32 %v2082
        %v2084 = vextract.high.u32 %v2082
        %v2085 = vmul.u32.u64.compose %v2081, %v2076
        %v2086 = vextract.low.u32 %v2085
        %v2087 = vextract.high.u32 %v2085
        %v2088 = vmul.u32 %v2081, %v2072
        %v2089 = vadd.s32 %v2084, %v2086
        %vm2090 = vc.u32 %v2084, %v2086
        %v2091 = vadd.s32 %v2087, 1
        %v2092 = vsel %vm2090, %v2091, %v2087
        %v2093 = vadd.s32 %v2088, %v2092
        %v2094 = vadd.s32 %v2093, 536870912
        %v2095 = vshrl.u32 %v2094, 30
        %v2096 = vshll.u32 %v2095, 30
        %v2097 = vsub.s32 %v2093, %v2096
        %vm2098 = vcmp.lt.s32.totalorder %v2097, 0
        %v2099 = vsub.s32 0, %v2097
        %v2100 = vsel %vm2098, %v2099, %v2097
        %v2101 = vclz %v2100
        %v2102 = vsub.s32 %v2101, 2
        %vm2103 = vcmp.gt.s32.totalorder 0, %v2102
        %v2104 = vsel %vm2103, 0, %v2102
        %v2105 = vsub.s32 32, %v2104
        %v2106 = vshll.u32 %v2097, %v2104
        %v2107 = vshrl.u32 %v2089, %v2105
        %v2108 = vor.u32 %v2106, %v2107
        %v2109 = vsub.s32 4294967266, %v2104
        %v2110 = vadd.s32 %v2109, 127
        %v2111 = vshll.u32 %v2110, 23
        %v2112 = vor.u32 4788187, %v2111
        %v2113 = vand.u32 2147483647, %v2112
        %v2115 = vcvt.s32.f32 %v2108
        %v2116 = vmul.f32 %v2115, %v2113
        %v2117 = vxor.u32 %v2116, 2147483648
        %v2118 = vsel %vm2035, %v2117, %v2116
        %v2119 = vsub.s32 4, %v2095
        %v2120 = vsel %vm2035, %v2119, %v2095
        %v2121 = vsel %vm2034, %v2032, %v2118
        %v2122 = vsel %vm2034, 0, %v2120
        %v2123 = vcosq.f32.pop %v2121
        %v2124 = vsinq.f32.pop %v2121
        %vm2125 = vweird.f32 %v2032
        %v2126 = vadd.s32 %v2122, 3
        %v2127 = vand.u32 %v2126, 3
        %vm2128 = vcmp.lt.s32.totalorder %v2127, 2
        %vm2129 = vcmp.eq.s32.totalorder %v2127, 0
        %v2130 = vxor.u32 %v2124, 2147483648
        %v2131 = vsel %vm2129, %v2123, %v2130
        %vm2132 = vcmp.eq.s32.totalorder %v2127, 2
        %v2133 = vxor.u32 %v2123, 2147483648
        %v2134 = vsel %vm2132, %v2133, %v2124
        %v2135 = vsel %vm2128, %v2131, %v2134
        %v2136 = vsel %vm2125, nan, %v2135
        %s2137 = scalar_lea.vmem %s313, 8 [#allocation4]
        %2138 = vst.msk [vmem:[%s2137] sm:$0xff] %vm1924, %v2136
        %v2139 = vadd.f32 %v1819, 1.5707964
        %v2140 = vand.u32 2147483647, %v2139
        %vm2141 = vcmp.le.f32.partialorder %v2140, 0.7853982
        %vm2142 = vcmp.lt.s32.totalorder %v2139, 0
        %v2143 = vand.u32 %v2139, 2139095040
        %v2144 = vshrl.u32 %v2143, 23
        %v2145 = vsub.s32 %v2144, 127
        %v2146 = vand.u32 2147483647, %v2139
        %v2147 = vand.u32 %v2146, 8388607
        %v2148 = vor.u32 %v2147, 8388608
        %v2149 = vsub.s32 0, %v2148
        %v2150 = vadd.s32 %v2145, 1
        %vm2151 = vcmp.gt.s32.totalorder %v2150, 0
        %v2152 = vsel %vm2151, %v2150, 0
        %v2153 = vshrl.u32 %v2152, 5
        %v2154 = vand.u32 %v2152, 31
        %v2155 = vsub.s32 32, %v2154
        %v2156 = vshrl.u32 683565275, %v2155
        %v2157 = vshll.u32 683565275, %v2154
        %v2158 = vshrl.u32 2475754826, %v2155
        %v2159 = vor.u32 %v2157, %v2158
        %v2160 = vshll.u32 2475754826, %v2154
        %v2161 = vshrl.u32 2131351028, %v2155
        %v2162 = vor.u32 %v2160, %v2161
        %v2163 = vshll.u32 2131351028, %v2154
        %v2164 = vshrl.u32 2102212464, %v2155
        %v2165 = vor.u32 %v2163, %v2164
        %v2166 = vshll.u32 2102212464, %v2154
        %v2167 = vshrl.u32 920167782, %v2155
        %v2168 = vor.u32 %v2166, %v2167
        %v2169 = vshll.u32 920167782, %v2154
        %v2170 = vshrl.u32 1326507024, %v2155
        %v2171 = vor.u32 %v2169, %v2170
        %vm2172 = vcmp.lt.s32.totalorder %v2153, 1
        %vm2173 = vcmp.lt.s32.totalorder %v2153, 2
        %vm2174 = vcmp.lt.s32.totalorder %v2153, 3
        %vm2175 = vcmp.lt.s32.totalorder %v2153, 4
        %v2176 = vsel %vm2172, %v2156, %v2159
        %v2177 = vsel %vm2175, %v2165, 2102212464
        %v2178 = vsel %vm2174, %v2162, %v2177
        %v2179 = vsel %vm2173, %v2176, %v2178
        %v2180 = vsel %vm2172, %v2159, %v2162
        %v2181 = vsel %vm2175, %v2168, 920167782
        %v2182 = vsel %vm2174, %v2165, %v2181
        %v2183 = vsel %vm2173, %v2180, %v2182
        %v2184 = vsel %vm2172, %v2162, %v2165
        %v2185 = vsel %vm2175, %v2171, 1326507024
        %v2186 = vsel %vm2174, %v2168, %v2185
        %v2187 = vsel %vm2173, %v2184, %v2186
        %v2188 = vshll.u32 %v2148, 8
        %v2189 = vmul.u32.u64.compose %v2188, %v2187
        %v2190 = vextract.low.u32 %v2189
        %v2191 = vextract.high.u32 %v2189
        %v2192 = vmul.u32.u64.compose %v2188, %v2183
        %v2193 = vextract.low.u32 %v2192
        %v2194 = vextract.high.u32 %v2192
        %v2195 = vmul.u32 %v2188, %v2179
        %v2196 = vadd.s32 %v2191, %v2193
        %vm2197 = vc.u32 %v2191, %v2193
        %v2198 = vadd.s32 %v2194, 1
        %v2199 = vsel %vm2197, %v2198, %v2194
        %v2200 = vadd.s32 %v2195, %v2199
        %v2201 = vadd.s32 %v2200, 536870912
        %v2202 = vshrl.u32 %v2201, 30
        %v2203 = vshll.u32 %v2202, 30
        %v2204 = vsub.s32 %v2200, %v2203
        %vm2205 = vcmp.lt.s32.totalorder %v2204, 0
        %v2206 = vsub.s32 0, %v2204
        %v2207 = vsel %vm2205, %v2206, %v2204
        %v2208 = vclz %v2207
        %v2209 = vsub.s32 %v2208, 2
        %vm2210 = vcmp.gt.s32.totalorder 0, %v2209
        %v2211 = vsel %vm2210, 0, %v2209
        %v2212 = vsub.s32 32, %v2211
        %v2213 = vshll.u32 %v2204, %v2211
        %v2214 = vshrl.u32 %v2196, %v2212
        %v2215 = vor.u32 %v2213, %v2214
        %v2216 = vsub.s32 4294967266, %v2211
        %v2217 = vadd.s32 %v2216, 127
        %v2218 = vshll.u32 %v2217, 23
        %v2219 = vor.u32 4788187, %v2218
        %v2220 = vand.u32 2147483647, %v2219
        %v2222 = vcvt.s32.f32 %v2215
        %v2223 = vmul.f32 %v2222, %v2220
        %v2224 = vxor.u32 %v2223, 2147483648
        %v2225 = vsel %vm2142, %v2224, %v2223
        %v2226 = vsub.s32 4, %v2202
        %v2227 = vsel %vm2142, %v2226, %v2202
        %v2228 = vsel %vm2141, %v2139, %v2225
        %v2229 = vsel %vm2141, 0, %v2227
        %v2230 = vcosq.f32.pop %v2228
        %v2231 = vsinq.f32.pop %v2228
        %vm2232 = vweird.f32 %v2139
        %v2233 = vadd.s32 %v2229, 3
        %v2234 = vand.u32 %v2233, 3
        %vm2235 = vcmp.lt.s32.totalorder %v2234, 2
        %vm2236 = vcmp.eq.s32.totalorder %v2234, 0
        %v2237 = vxor.u32 %v2231, 2147483648
        %v2238 = vsel %vm2236, %v2230, %v2237
        %vm2239 = vcmp.eq.s32.totalorder %v2234, 2
        %v2240 = vxor.u32 %v2230, 2147483648
        %v2241 = vsel %vm2239, %v2240, %v2231
        %v2242 = vsel %vm2235, %v2238, %v2241
        %v2243 = vsel %vm2232, nan, %v2242
        %s2244 = scalar_lea.vmem %s313, 136 [#allocation4]
        %2245 = vst.msk [vmem:[%s2244] sm:$0xff] %vm1924, %v2243
        %v2246 = vmul.f32 %v1818, 0.31622776
        %v2247 = vmul.f32 %v1819, 0.31622776
        %v2248 = vand.u32 2147483647, %v2246
        %vm2249 = vcmp.le.f32.partialorder %v2248, 0.7853982
        %vm2250 = vcmp.lt.s32.totalorder %v2246, 0
        %v2251 = vand.u32 %v2246, 2139095040
        %v2252 = vshrl.u32 %v2251, 23
        %v2253 = vsub.s32 %v2252, 127
        %v2254 = vand.u32 2147483647, %v2246
        %v2255 = vand.u32 %v2254, 8388607
        %v2256 = vor.u32 %v2255, 8388608
        %v2257 = vsub.s32 0, %v2256
        %v2258 = vadd.s32 %v2253, 1
        %vm2259 = vcmp.gt.s32.totalorder %v2258, 0
        %v2260 = vsel %vm2259, %v2258, 0
        %v2261 = vshrl.u32 %v2260, 5
        %v2262 = vand.u32 %v2260, 31
        %v2263 = vsub.s32 32, %v2262
        %v2264 = vshrl.u32 683565275, %v2263
        %v2265 = vshll.u32 683565275, %v2262
        %v2266 = vshrl.u32 2475754826, %v2263
        %v2267 = vor.u32 %v2265, %v2266
        %v2268 = vshll.u32 2475754826, %v2262
        %v2269 = vshrl.u32 2131351028, %v2263
        %v2270 = vor.u32 %v2268, %v2269
        %v2271 = vshll.u32 2131351028, %v2262
        %v2272 = vshrl.u32 2102212464, %v2263
        %v2273 = vor.u32 %v2271, %v2272
        %v2274 = vshll.u32 2102212464, %v2262
        %v2275 = vshrl.u32 920167782, %v2263
        %v2276 = vor.u32 %v2274, %v2275
        %v2277 = vshll.u32 920167782, %v2262
        %v2278 = vshrl.u32 1326507024, %v2263
        %v2279 = vor.u32 %v2277, %v2278
        %vm2280 = vcmp.lt.s32.totalorder %v2261, 1
        %vm2281 = vcmp.lt.s32.totalorder %v2261, 2
        %vm2282 = vcmp.lt.s32.totalorder %v2261, 3
        %vm2283 = vcmp.lt.s32.totalorder %v2261, 4
        %v2284 = vsel %vm2280, %v2264, %v2267
        %v2285 = vsel %vm2283, %v2273, 2102212464
        %v2286 = vsel %vm2282, %v2270, %v2285
        %v2287 = vsel %vm2281, %v2284, %v2286
        %v2288 = vsel %vm2280, %v2267, %v2270
        %v2289 = vsel %vm2283, %v2276, 920167782
        %v2290 = vsel %vm2282, %v2273, %v2289
        %v2291 = vsel %vm2281, %v2288, %v2290
        %v2292 = vsel %vm2280, %v2270, %v2273
        %v2293 = vsel %vm2283, %v2279, 1326507024
        %v2294 = vsel %vm2282, %v2276, %v2293
        %v2295 = vsel %vm2281, %v2292, %v2294
        %v2296 = vshll.u32 %v2256, 8
        %v2297 = vmul.u32.u64.compose %v2296, %v2295
        %v2298 = vextract.low.u32 %v2297
        %v2299 = vextract.high.u32 %v2297
        %v2300 = vmul.u32.u64.compose %v2296, %v2291
        %v2301 = vextract.low.u32 %v2300
        %v2302 = vextract.high.u32 %v2300
        %v2303 = vmul.u32 %v2296, %v2287
        %v2304 = vadd.s32 %v2299, %v2301
        %vm2305 = vc.u32 %v2299, %v2301
        %v2306 = vadd.s32 %v2302, 1
        %v2307 = vsel %vm2305, %v2306, %v2302
        %v2308 = vadd.s32 %v2303, %v2307
        %v2309 = vadd.s32 %v2308, 536870912
        %v2310 = vshrl.u32 %v2309, 30
        %v2311 = vshll.u32 %v2310, 30
        %v2312 = vsub.s32 %v2308, %v2311
        %vm2313 = vcmp.lt.s32.totalorder %v2312, 0
        %v2314 = vsub.s32 0, %v2312
        %v2315 = vsel %vm2313, %v2314, %v2312
        %v2316 = vclz %v2315
        %v2317 = vsub.s32 %v2316, 2
        %vm2318 = vcmp.gt.s32.totalorder 0, %v2317
        %v2319 = vsel %vm2318, 0, %v2317
        %v2320 = vsub.s32 32, %v2319
        %v2321 = vshll.u32 %v2312, %v2319
        %v2322 = vshrl.u32 %v2304, %v2320
        %v2323 = vor.u32 %v2321, %v2322
        %v2324 = vsub.s32 4294967266, %v2319
        %v2325 = vadd.s32 %v2324, 127
        %v2326 = vshll.u32 %v2325, 23
        %v2327 = vor.u32 4788187, %v2326
        %v2328 = vand.u32 2147483647, %v2327
        %v2330 = vcvt.s32.f32 %v2323
        %v2331 = vmul.f32 %v2330, %v2328
        %v2332 = vxor.u32 %v2331, 2147483648
        %v2333 = vsel %vm2250, %v2332, %v2331
        %v2334 = vsub.s32 4, %v2310
        %v2335 = vsel %vm2250, %v2334, %v2310
        %v2336 = vsel %vm2249, %v2246, %v2333
        %v2337 = vsel %vm2249, 0, %v2335
        %v2338 = vcosq.f32.pop %v2336
        %v2339 = vsinq.f32.pop %v2336
        %vm2340 = vweird.f32 %v2246
        %v2341 = vadd.s32 %v2337, 3
        %v2342 = vand.u32 %v2341, 3
        %vm2343 = vcmp.lt.s32.totalorder %v2342, 2
        %vm2344 = vcmp.eq.s32.totalorder %v2342, 0
        %v2345 = vxor.u32 %v2339, 2147483648
        %v2346 = vsel %vm2344, %v2338, %v2345
        %vm2347 = vcmp.eq.s32.totalorder %v2342, 2
        %v2348 = vxor.u32 %v2338, 2147483648
        %v2349 = vsel %vm2347, %v2348, %v2339
        %v2350 = vsel %vm2343, %v2346, %v2349
        %v2351 = vsel %vm2340, nan, %v2350
        %s2352 = scalar_lea.vmem %s313, 16 [#allocation4]
        %2353 = vst.msk [vmem:[%s2352] sm:$0xff] %vm1924, %v2351
        %v2354 = vand.u32 2147483647, %v2247
        %vm2355 = vcmp.le.f32.partialorder %v2354, 0.7853982
        %vm2356 = vcmp.lt.s32.totalorder %v2247, 0
        %v2357 = vand.u32 %v2247, 2139095040
        %v2358 = vshrl.u32 %v2357, 23
        %v2359 = vsub.s32 %v2358, 127
        %v2360 = vand.u32 2147483647, %v2247
        %v2361 = vand.u32 %v2360, 8388607
        %v2362 = vor.u32 %v2361, 8388608
        %v2363 = vsub.s32 0, %v2362
        %v2364 = vadd.s32 %v2359, 1
        %vm2365 = vcmp.gt.s32.totalorder %v2364, 0
        %v2366 = vsel %vm2365, %v2364, 0
        %v2367 = vshrl.u32 %v2366, 5
        %v2368 = vand.u32 %v2366, 31
        %v2369 = vsub.s32 32, %v2368
        %v2370 = vshrl.u32 683565275, %v2369
        %v2371 = vshll.u32 683565275, %v2368
        %v2372 = vshrl.u32 2475754826, %v2369
        %v2373 = vor.u32 %v2371, %v2372
        %v2374 = vshll.u32 2475754826, %v2368
        %v2375 = vshrl.u32 2131351028, %v2369
        %v2376 = vor.u32 %v2374, %v2375
        %v2377 = vshll.u32 2131351028, %v2368
        %v2378 = vshrl.u32 2102212464, %v2369
        %v2379 = vor.u32 %v2377, %v2378
        %v2380 = vshll.u32 2102212464, %v2368
        %v2381 = vshrl.u32 920167782, %v2369
        %v2382 = vor.u32 %v2380, %v2381
        %v2383 = vshll.u32 920167782, %v2368
        %v2384 = vshrl.u32 1326507024, %v2369
        %v2385 = vor.u32 %v2383, %v2384
        %vm2386 = vcmp.lt.s32.totalorder %v2367, 1
        %vm2387 = vcmp.lt.s32.totalorder %v2367, 2
        %vm2388 = vcmp.lt.s32.totalorder %v2367, 3
        %vm2389 = vcmp.lt.s32.totalorder %v2367, 4
        %v2390 = vsel %vm2386, %v2370, %v2373
        %v2391 = vsel %vm2389, %v2379, 2102212464
        %v2392 = vsel %vm2388, %v2376, %v2391
        %v2393 = vsel %vm2387, %v2390, %v2392
        %v2394 = vsel %vm2386, %v2373, %v2376
        %v2395 = vsel %vm2389, %v2382, 920167782
        %v2396 = vsel %vm2388, %v2379, %v2395
        %v2397 = vsel %vm2387, %v2394, %v2396
        %v2398 = vsel %vm2386, %v2376, %v2379
        %v2399 = vsel %vm2389, %v2385, 1326507024
        %v2400 = vsel %vm2388, %v2382, %v2399
        %v2401 = vsel %vm2387, %v2398, %v2400
        %v2402 = vshll.u32 %v2362, 8
        %v2403 = vmul.u32.u64.compose %v2402, %v2401
        %v2404 = vextract.low.u32 %v2403
        %v2405 = vextract.high.u32 %v2403
        %v2406 = vmul.u32.u64.compose %v2402, %v2397
        %v2407 = vextract.low.u32 %v2406
        %v2408 = vextract.high.u32 %v2406
        %v2409 = vmul.u32 %v2402, %v2393
        %v2410 = vadd.s32 %v2405, %v2407
        %vm2411 = vc.u32 %v2405, %v2407
        %v2412 = vadd.s32 %v2408, 1
        %v2413 = vsel %vm2411, %v2412, %v2408
        %v2414 = vadd.s32 %v2409, %v2413
        %v2415 = vadd.s32 %v2414, 536870912
        %v2416 = vshrl.u32 %v2415, 30
        %v2417 = vshll.u32 %v2416, 30
        %v2418 = vsub.s32 %v2414, %v2417
        %vm2419 = vcmp.lt.s32.totalorder %v2418, 0
        %v2420 = vsub.s32 0, %v2418
        %v2421 = vsel %vm2419, %v2420, %v2418
        %v2422 = vclz %v2421
        %v2423 = vsub.s32 %v2422, 2
        %vm2424 = vcmp.gt.s32.totalorder 0, %v2423
        %v2425 = vsel %vm2424, 0, %v2423
        %v2426 = vsub.s32 32, %v2425
        %v2427 = vshll.u32 %v2418, %v2425
        %v2428 = vshrl.u32 %v2410, %v2426
        %v2429 = vor.u32 %v2427, %v2428
        %v2430 = vsub.s32 4294967266, %v2425
        %v2431 = vadd.s32 %v2430, 127
        %v2432 = vshll.u32 %v2431, 23
        %v2433 = vor.u32 4788187, %v2432
        %v2434 = vand.u32 2147483647, %v2433
        %v2436 = vcvt.s32.f32 %v2429
        %v2437 = vmul.f32 %v2436, %v2434
        %v2438 = vxor.u32 %v2437, 2147483648
        %v2439 = vsel %vm2356, %v2438, %v2437
        %v2440 = vsub.s32 4, %v2416
        %v2441 = vsel %vm2356, %v2440, %v2416
        %v2442 = vsel %vm2355, %v2247, %v2439
        %v2443 = vsel %vm2355, 0, %v2441
        %v2444 = vcosq.f32.pop %v2442
        %v2445 = vsinq.f32.pop %v2442
        %vm2446 = vweird.f32 %v2247
        %v2447 = vadd.s32 %v2443, 3
        %v2448 = vand.u32 %v2447, 3
        %vm2449 = vcmp.lt.s32.totalorder %v2448, 2
        %vm2450 = vcmp.eq.s32.totalorder %v2448, 0
        %v2451 = vxor.u32 %v2445, 2147483648
        %v2452 = vsel %vm2450, %v2444, %v2451
        %vm2453 = vcmp.eq.s32.totalorder %v2448, 2
        %v2454 = vxor.u32 %v2444, 2147483648
        %v2455 = vsel %vm2453, %v2454, %v2445
        %v2456 = vsel %vm2449, %v2452, %v2455
        %v2457 = vsel %vm2446, nan, %v2456
        %s2458 = scalar_lea.vmem %s313, 144 [#allocation4]
        %2459 = vst.msk [vmem:[%s2458] sm:$0xff] %vm1924, %v2457
        %v2460 = vadd.f32 %v2246, 1.5707964
        %v2461 = vand.u32 2147483647, %v2460
        %vm2462 = vcmp.le.f32.partialorder %v2461, 0.7853982
        %vm2463 = vcmp.lt.s32.totalorder %v2460, 0
        %v2464 = vand.u32 %v2460, 2139095040
        %v2465 = vshrl.u32 %v2464, 23
        %v2466 = vsub.s32 %v2465, 127
        %v2467 = vand.u32 2147483647, %v2460
        %v2468 = vand.u32 %v2467, 8388607
        %v2469 = vor.u32 %v2468, 8388608
        %v2470 = vsub.s32 0, %v2469
        %v2471 = vadd.s32 %v2466, 1
        %vm2472 = vcmp.gt.s32.totalorder %v2471, 0
        %v2473 = vsel %vm2472, %v2471, 0
        %v2474 = vshrl.u32 %v2473, 5
        %v2475 = vand.u32 %v2473, 31
        %v2476 = vsub.s32 32, %v2475
        %v2477 = vshrl.u32 683565275, %v2476
        %v2478 = vshll.u32 683565275, %v2475
        %v2479 = vshrl.u32 2475754826, %v2476
        %v2480 = vor.u32 %v2478, %v2479
        %v2481 = vshll.u32 2475754826, %v2475
        %v2482 = vshrl.u32 2131351028, %v2476
        %v2483 = vor.u32 %v2481, %v2482
        %v2484 = vshll.u32 2131351028, %v2475
        %v2485 = vshrl.u32 2102212464, %v2476
        %v2486 = vor.u32 %v2484, %v2485
        %v2487 = vshll.u32 2102212464, %v2475
        %v2488 = vshrl.u32 920167782, %v2476
        %v2489 = vor.u32 %v2487, %v2488
        %v2490 = vshll.u32 920167782, %v2475
        %v2491 = vshrl.u32 1326507024, %v2476
        %v2492 = vor.u32 %v2490, %v2491
        %vm2493 = vcmp.lt.s32.totalorder %v2474, 1
        %vm2494 = vcmp.lt.s32.totalorder %v2474, 2
        %vm2495 = vcmp.lt.s32.totalorder %v2474, 3
        %vm2496 = vcmp.lt.s32.totalorder %v2474, 4
        %v2497 = vsel %vm2493, %v2477, %v2480
        %v2498 = vsel %vm2496, %v2486, 2102212464
        %v2499 = vsel %vm2495, %v2483, %v2498
        %v2500 = vsel %vm2494, %v2497, %v2499
        %v2501 = vsel %vm2493, %v2480, %v2483
        %v2502 = vsel %vm2496, %v2489, 920167782
        %v2503 = vsel %vm2495, %v2486, %v2502
        %v2504 = vsel %vm2494, %v2501, %v2503
        %v2505 = vsel %vm2493, %v2483, %v2486
        %v2506 = vsel %vm2496, %v2492, 1326507024
        %v2507 = vsel %vm2495, %v2489, %v2506
        %v2508 = vsel %vm2494, %v2505, %v2507
        %v2509 = vshll.u32 %v2469, 8
        %v2510 = vmul.u32.u64.compose %v2509, %v2508
        %v2511 = vextract.low.u32 %v2510
        %v2512 = vextract.high.u32 %v2510
        %v2513 = vmul.u32.u64.compose %v2509, %v2504
        %v2514 = vextract.low.u32 %v2513
        %v2515 = vextract.high.u32 %v2513
        %v2516 = vmul.u32 %v2509, %v2500
        %v2517 = vadd.s32 %v2512, %v2514
        %vm2518 = vc.u32 %v2512, %v2514
        %v2519 = vadd.s32 %v2515, 1
        %v2520 = vsel %vm2518, %v2519, %v2515
        %v2521 = vadd.s32 %v2516, %v2520
        %v2522 = vadd.s32 %v2521, 536870912
        %v2523 = vshrl.u32 %v2522, 30
        %v2524 = vshll.u32 %v2523, 30
        %v2525 = vsub.s32 %v2521, %v2524
        %vm2526 = vcmp.lt.s32.totalorder %v2525, 0
        %v2527 = vsub.s32 0, %v2525
        %v2528 = vsel %vm2526, %v2527, %v2525
        %v2529 = vclz %v2528
        %v2530 = vsub.s32 %v2529, 2
        %vm2531 = vcmp.gt.s32.totalorder 0, %v2530
        %v2532 = vsel %vm2531, 0, %v2530
        %v2533 = vsub.s32 32, %v2532
        %v2534 = vshll.u32 %v2525, %v2532
        %v2535 = vshrl.u32 %v2517, %v2533
        %v2536 = vor.u32 %v2534, %v2535
        %v2537 = vsub.s32 4294967266, %v2532
        %v2538 = vadd.s32 %v2537, 127
        %v2539 = vshll.u32 %v2538, 23
        %v2540 = vor.u32 4788187, %v2539
        %v2541 = vand.u32 2147483647, %v2540
        %v2543 = vcvt.s32.f32 %v2536
        %v2544 = vmul.f32 %v2543, %v2541
        %v2545 = vxor.u32 %v2544, 2147483648
        %v2546 = vsel %vm2463, %v2545, %v2544
        %v2547 = vsub.s32 4, %v2523
        %v2548 = vsel %vm2463, %v2547, %v2523
        %v2549 = vsel %vm2462, %v2460, %v2546
        %v2550 = vsel %vm2462, 0, %v2548
        %v2551 = vcosq.f32.pop %v2549
        %v2552 = vsinq.f32.pop %v2549
        %vm2553 = vweird.f32 %v2460
        %v2554 = vadd.s32 %v2550, 3
        %v2555 = vand.u32 %v2554, 3
        %vm2556 = vcmp.lt.s32.totalorder %v2555, 2
        %vm2557 = vcmp.eq.s32.totalorder %v2555, 0
        %v2558 = vxor.u32 %v2552, 2147483648
        %v2559 = vsel %vm2557, %v2551, %v2558
        %vm2560 = vcmp.eq.s32.totalorder %v2555, 2
        %v2561 = vxor.u32 %v2551, 2147483648
        %v2562 = vsel %vm2560, %v2561, %v2552
        %v2563 = vsel %vm2556, %v2559, %v2562
        %v2564 = vsel %vm2553, nan, %v2563
        %s2565 = scalar_lea.vmem %s313, 24 [#allocation4]
        %2566 = vst.msk [vmem:[%s2565] sm:$0xff] %vm1924, %v2564
        %v2567 = vadd.f32 %v2247, 1.5707964
        %v2568 = vand.u32 2147483647, %v2567
        %vm2569 = vcmp.le.f32.partialorder %v2568, 0.7853982
        %vm2570 = vcmp.lt.s32.totalorder %v2567, 0
        %v2571 = vand.u32 %v2567, 2139095040
        %v2572 = vshrl.u32 %v2571, 23
        %v2573 = vsub.s32 %v2572, 127
        %v2574 = vand.u32 2147483647, %v2567
        %v2575 = vand.u32 %v2574, 8388607
        %v2576 = vor.u32 %v2575, 8388608
        %v2577 = vsub.s32 0, %v2576
        %v2578 = vadd.s32 %v2573, 1
        %vm2579 = vcmp.gt.s32.totalorder %v2578, 0
        %v2580 = vsel %vm2579, %v2578, 0
        %v2581 = vshrl.u32 %v2580, 5
        %v2582 = vand.u32 %v2580, 31
        %v2583 = vsub.s32 32, %v2582
        %v2584 = vshrl.u32 683565275, %v2583
        %v2585 = vshll.u32 683565275, %v2582
        %v2586 = vshrl.u32 2475754826, %v2583
        %v2587 = vor.u32 %v2585, %v2586
        %v2588 = vshll.u32 2475754826, %v2582
        %v2589 = vshrl.u32 2131351028, %v2583
        %v2590 = vor.u32 %v2588, %v2589
        %v2591 = vshll.u32 2131351028, %v2582
        %v2592 = vshrl.u32 2102212464, %v2583
        %v2593 = vor.u32 %v2591, %v2592
        %v2594 = vshll.u32 2102212464, %v2582
        %v2595 = vshrl.u32 920167782, %v2583
        %v2596 = vor.u32 %v2594, %v2595
        %v2597 = vshll.u32 920167782, %v2582
        %v2598 = vshrl.u32 1326507024, %v2583
        %v2599 = vor.u32 %v2597, %v2598
        %vm2600 = vcmp.lt.s32.totalorder %v2581, 1
        %vm2601 = vcmp.lt.s32.totalorder %v2581, 2
        %vm2602 = vcmp.lt.s32.totalorder %v2581, 3
        %vm2603 = vcmp.lt.s32.totalorder %v2581, 4
        %v2604 = vsel %vm2600, %v2584, %v2587
        %v2605 = vsel %vm2603, %v2593, 2102212464
        %v2606 = vsel %vm2602, %v2590, %v2605
        %v2607 = vsel %vm2601, %v2604, %v2606
        %v2608 = vsel %vm2600, %v2587, %v2590
        %v2609 = vsel %vm2603, %v2596, 920167782
        %v2610 = vsel %vm2602, %v2593, %v2609
        %v2611 = vsel %vm2601, %v2608, %v2610
        %v2612 = vsel %vm2600, %v2590, %v2593
        %v2613 = vsel %vm2603, %v2599, 1326507024
        %v2614 = vsel %vm2602, %v2596, %v2613
        %v2615 = vsel %vm2601, %v2612, %v2614
        %v2616 = vshll.u32 %v2576, 8
        %v2617 = vmul.u32.u64.compose %v2616, %v2615
        %v2618 = vextract.low.u32 %v2617
        %v2619 = vextract.high.u32 %v2617
        %v2620 = vmul.u32.u64.compose %v2616, %v2611
        %v2621 = vextract.low.u32 %v2620
        %v2622 = vextract.high.u32 %v2620
        %v2623 = vmul.u32 %v2616, %v2607
        %v2624 = vadd.s32 %v2619, %v2621
        %vm2625 = vc.u32 %v2619, %v2621
        %v2626 = vadd.s32 %v2622, 1
        %v2627 = vsel %vm2625, %v2626, %v2622
        %v2628 = vadd.s32 %v2623, %v2627
        %v2629 = vadd.s32 %v2628, 536870912
        %v2630 = vshrl.u32 %v2629, 30
        %v2631 = vshll.u32 %v2630, 30
        %v2632 = vsub.s32 %v2628, %v2631
        %vm2633 = vcmp.lt.s32.totalorder %v2632, 0
        %v2634 = vsub.s32 0, %v2632
        %v2635 = vsel %vm2633, %v2634, %v2632
        %v2636 = vclz %v2635
        %v2637 = vsub.s32 %v2636, 2
        %vm2638 = vcmp.gt.s32.totalorder 0, %v2637
        %v2639 = vsel %vm2638, 0, %v2637
        %v2640 = vsub.s32 32, %v2639
        %v2641 = vshll.u32 %v2632, %v2639
        %v2642 = vshrl.u32 %v2624, %v2640
        %v2643 = vor.u32 %v2641, %v2642
        %v2644 = vsub.s32 4294967266, %v2639
        %v2645 = vadd.s32 %v2644, 127
        %v2646 = vshll.u32 %v2645, 23
        %v2647 = vor.u32 4788187, %v2646
        %v2648 = vand.u32 2147483647, %v2647
        %v2650 = vcvt.s32.f32 %v2643
        %v2651 = vmul.f32 %v2650, %v2648
        %v2652 = vxor.u32 %v2651, 2147483648
        %v2653 = vsel %vm2570, %v2652, %v2651
        %v2654 = vsub.s32 4, %v2630
        %v2655 = vsel %vm2570, %v2654, %v2630
        %v2656 = vsel %vm2569, %v2567, %v2653
        %v2657 = vsel %vm2569, 0, %v2655
        %v2658 = vcosq.f32.pop %v2656
        %v2659 = vsinq.f32.pop %v2656
        %vm2660 = vweird.f32 %v2567
        %v2661 = vadd.s32 %v2657, 3
        %v2662 = vand.u32 %v2661, 3
        %vm2663 = vcmp.lt.s32.totalorder %v2662, 2
        %vm2664 = vcmp.eq.s32.totalorder %v2662, 0
        %v2665 = vxor.u32 %v2659, 2147483648
        %v2666 = vsel %vm2664, %v2658, %v2665
        %vm2667 = vcmp.eq.s32.totalorder %v2662, 2
        %v2668 = vxor.u32 %v2658, 2147483648
        %v2669 = vsel %vm2667, %v2668, %v2659
        %v2670 = vsel %vm2663, %v2666, %v2669
        %v2671 = vsel %vm2660, nan, %v2670
        %s2672 = scalar_lea.vmem %s313, 152 [#allocation4]
        %2673 = vst.msk [vmem:[%s2672] sm:$0xff] %vm1924, %v2671
        %v2674 = vmul.f32 %v1818, 0.1
        %v2675 = vmul.f32 %v1819, 0.1
        %v2676 = vand.u32 2147483647, %v2674
        %vm2677 = vcmp.le.f32.partialorder %v2676, 0.7853982
        %vm2678 = vcmp.lt.s32.totalorder %v2674, 0
        %v2679 = vand.u32 %v2674, 2139095040
        %v2680 = vshrl.u32 %v2679, 23
        %v2681 = vsub.s32 %v2680, 127
        %v2682 = vand.u32 2147483647, %v2674
        %v2683 = vand.u32 %v2682, 8388607
        %v2684 = vor.u32 %v2683, 8388608
        %v2685 = vsub.s32 0, %v2684
        %v2686 = vadd.s32 %v2681, 1
        %vm2687 = vcmp.gt.s32.totalorder %v2686, 0
        %v2688 = vsel %vm2687, %v2686, 0
        %v2689 = vshrl.u32 %v2688, 5
        %v2690 = vand.u32 %v2688, 31
        %v2691 = vsub.s32 32, %v2690
        %v2692 = vshrl.u32 683565275, %v2691
        %v2693 = vshll.u32 683565275, %v2690
        %v2694 = vshrl.u32 2475754826, %v2691
        %v2695 = vor.u32 %v2693, %v2694
        %v2696 = vshll.u32 2475754826, %v2690
        %v2697 = vshrl.u32 2131351028, %v2691
        %v2698 = vor.u32 %v2696, %v2697
        %v2699 = vshll.u32 2131351028, %v2690
        %v2700 = vshrl.u32 2102212464, %v2691
        %v2701 = vor.u32 %v2699, %v2700
        %v2702 = vshll.u32 2102212464, %v2690
        %v2703 = vshrl.u32 920167782, %v2691
        %v2704 = vor.u32 %v2702, %v2703
        %v2705 = vshll.u32 920167782, %v2690
        %v2706 = vshrl.u32 1326507024, %v2691
        %v2707 = vor.u32 %v2705, %v2706
        %vm2708 = vcmp.lt.s32.totalorder %v2689, 1
        %vm2709 = vcmp.lt.s32.totalorder %v2689, 2
        %vm2710 = vcmp.lt.s32.totalorder %v2689, 3
        %vm2711 = vcmp.lt.s32.totalorder %v2689, 4
        %v2712 = vsel %vm2708, %v2692, %v2695
        %v2713 = vsel %vm2711, %v2701, 2102212464
        %v2714 = vsel %vm2710, %v2698, %v2713
        %v2715 = vsel %vm2709, %v2712, %v2714
        %v2716 = vsel %vm2708, %v2695, %v2698
        %v2717 = vsel %vm2711, %v2704, 920167782
        %v2718 = vsel %vm2710, %v2701, %v2717
        %v2719 = vsel %vm2709, %v2716, %v2718
        %v2720 = vsel %vm2708, %v2698, %v2701
        %v2721 = vsel %vm2711, %v2707, 1326507024
        %v2722 = vsel %vm2710, %v2704, %v2721
        %v2723 = vsel %vm2709, %v2720, %v2722
        %v2724 = vshll.u32 %v2684, 8
        %v2725 = vmul.u32.u64.compose %v2724, %v2723
        %v2726 = vextract.low.u32 %v2725
        %v2727 = vextract.high.u32 %v2725
        %v2728 = vmul.u32.u64.compose %v2724, %v2719
        %v2729 = vextract.low.u32 %v2728
        %v2730 = vextract.high.u32 %v2728
        %v2731 = vmul.u32 %v2724, %v2715
        %v2732 = vadd.s32 %v2727, %v2729
        %vm2733 = vc.u32 %v2727, %v2729
        %v2734 = vadd.s32 %v2730, 1
        %v2735 = vsel %vm2733, %v2734, %v2730
        %v2736 = vadd.s32 %v2731, %v2735
        %v2737 = vadd.s32 %v2736, 536870912
        %v2738 = vshrl.u32 %v2737, 30
        %v2739 = vshll.u32 %v2738, 30
        %v2740 = vsub.s32 %v2736, %v2739
        %vm2741 = vcmp.lt.s32.totalorder %v2740, 0
        %v2742 = vsub.s32 0, %v2740
        %v2743 = vsel %vm2741, %v2742, %v2740
        %v2744 = vclz %v2743
        %v2745 = vsub.s32 %v2744, 2
        %vm2746 = vcmp.gt.s32.totalorder 0, %v2745
        %v2747 = vsel %vm2746, 0, %v2745
        %v2748 = vsub.s32 32, %v2747
        %v2749 = vshll.u32 %v2740, %v2747
        %v2750 = vshrl.u32 %v2732, %v2748
        %v2751 = vor.u32 %v2749, %v2750
        %v2752 = vsub.s32 4294967266, %v2747
        %v2753 = vadd.s32 %v2752, 127
        %v2754 = vshll.u32 %v2753, 23
        %v2755 = vor.u32 4788187, %v2754
        %v2756 = vand.u32 2147483647, %v2755
        %v2758 = vcvt.s32.f32 %v2751
        %v2759 = vmul.f32 %v2758, %v2756
        %v2760 = vxor.u32 %v2759, 2147483648
        %v2761 = vsel %vm2678, %v2760, %v2759
        %v2762 = vsub.s32 4, %v2738
        %v2763 = vsel %vm2678, %v2762, %v2738
        %v2764 = vsel %vm2677, %v2674, %v2761
        %v2765 = vsel %vm2677, 0, %v2763
        %v2766 = vcosq.f32.pop %v2764
        %v2767 = vsinq.f32.pop %v2764
        %vm2768 = vweird.f32 %v2674
        %v2769 = vadd.s32 %v2765, 3
        %v2770 = vand.u32 %v2769, 3
        %vm2771 = vcmp.lt.s32.totalorder %v2770, 2
        %vm2772 = vcmp.eq.s32.totalorder %v2770, 0
        %v2773 = vxor.u32 %v2767, 2147483648
        %v2774 = vsel %vm2772, %v2766, %v2773
        %vm2775 = vcmp.eq.s32.totalorder %v2770, 2
        %v2776 = vxor.u32 %v2766, 2147483648
        %v2777 = vsel %vm2775, %v2776, %v2767
        %v2778 = vsel %vm2771, %v2774, %v2777
        %v2779 = vsel %vm2768, nan, %v2778
        %s2780 = scalar_lea.vmem %s313, 32 [#allocation4]
        %2781 = vst.msk [vmem:[%s2780] sm:$0xff] %vm1924, %v2779
        %v2782 = vand.u32 2147483647, %v2675
        %vm2783 = vcmp.le.f32.partialorder %v2782, 0.7853982
        %vm2784 = vcmp.lt.s32.totalorder %v2675, 0
        %v2785 = vand.u32 %v2675, 2139095040
        %v2786 = vshrl.u32 %v2785, 23
        %v2787 = vsub.s32 %v2786, 127
        %v2788 = vand.u32 2147483647, %v2675
        %v2789 = vand.u32 %v2788, 8388607
        %v2790 = vor.u32 %v2789, 8388608
        %v2791 = vsub.s32 0, %v2790
        %v2792 = vadd.s32 %v2787, 1
        %vm2793 = vcmp.gt.s32.totalorder %v2792, 0
        %v2794 = vsel %vm2793, %v2792, 0
        %v2795 = vshrl.u32 %v2794, 5
        %v2796 = vand.u32 %v2794, 31
        %v2797 = vsub.s32 32, %v2796
        %v2798 = vshrl.u32 683565275, %v2797
        %v2799 = vshll.u32 683565275, %v2796
        %v2800 = vshrl.u32 2475754826, %v2797
        %v2801 = vor.u32 %v2799, %v2800
        %v2802 = vshll.u32 2475754826, %v2796
        %v2803 = vshrl.u32 2131351028, %v2797
        %v2804 = vor.u32 %v2802, %v2803
        %v2805 = vshll.u32 2131351028, %v2796
        %v2806 = vshrl.u32 2102212464, %v2797
        %v2807 = vor.u32 %v2805, %v2806
        %v2808 = vshll.u32 2102212464, %v2796
        %v2809 = vshrl.u32 920167782, %v2797
        %v2810 = vor.u32 %v2808, %v2809
        %v2811 = vshll.u32 920167782, %v2796
        %v2812 = vshrl.u32 1326507024, %v2797
        %v2813 = vor.u32 %v2811, %v2812
        %vm2814 = vcmp.lt.s32.totalorder %v2795, 1
        %vm2815 = vcmp.lt.s32.totalorder %v2795, 2
        %vm2816 = vcmp.lt.s32.totalorder %v2795, 3
        %vm2817 = vcmp.lt.s32.totalorder %v2795, 4
        %v2818 = vsel %vm2814, %v2798, %v2801
        %v2819 = vsel %vm2817, %v2807, 2102212464
        %v2820 = vsel %vm2816, %v2804, %v2819
        %v2821 = vsel %vm2815, %v2818, %v2820
        %v2822 = vsel %vm2814, %v2801, %v2804
        %v2823 = vsel %vm2817, %v2810, 920167782
        %v2824 = vsel %vm2816, %v2807, %v2823
        %v2825 = vsel %vm2815, %v2822, %v2824
        %v2826 = vsel %vm2814, %v2804, %v2807
        %v2827 = vsel %vm2817, %v2813, 1326507024
        %v2828 = vsel %vm2816, %v2810, %v2827
        %v2829 = vsel %vm2815, %v2826, %v2828
        %v2830 = vshll.u32 %v2790, 8
        %v2831 = vmul.u32.u64.compose %v2830, %v2829
        %v2832 = vextract.low.u32 %v2831
        %v2833 = vextract.high.u32 %v2831
        %v2834 = vmul.u32.u64.compose %v2830, %v2825
        %v2835 = vextract.low.u32 %v2834
        %v2836 = vextract.high.u32 %v2834
        %v2837 = vmul.u32 %v2830, %v2821
        %v2838 = vadd.s32 %v2833, %v2835
        %vm2839 = vc.u32 %v2833, %v2835
        %v2840 = vadd.s32 %v2836, 1
        %v2841 = vsel %vm2839, %v2840, %v2836
        %v2842 = vadd.s32 %v2837, %v2841
        %v2843 = vadd.s32 %v2842, 536870912
        %v2844 = vshrl.u32 %v2843, 30
        %v2845 = vshll.u32 %v2844, 30
        %v2846 = vsub.s32 %v2842, %v2845
        %vm2847 = vcmp.lt.s32.totalorder %v2846, 0
        %v2848 = vsub.s32 0, %v2846
        %v2849 = vsel %vm2847, %v2848, %v2846
        %v2850 = vclz %v2849
        %v2851 = vsub.s32 %v2850, 2
        %vm2852 = vcmp.gt.s32.totalorder 0, %v2851
        %v2853 = vsel %vm2852, 0, %v2851
        %v2854 = vsub.s32 32, %v2853
        %v2855 = vshll.u32 %v2846, %v2853
        %v2856 = vshrl.u32 %v2838, %v2854
        %v2857 = vor.u32 %v2855, %v2856
        %v2858 = vsub.s32 4294967266, %v2853
        %v2859 = vadd.s32 %v2858, 127
        %v2860 = vshll.u32 %v2859, 23
        %v2861 = vor.u32 4788187, %v2860
        %v2862 = vand.u32 2147483647, %v2861
        %v2864 = vcvt.s32.f32 %v2857
        %v2865 = vmul.f32 %v2864, %v2862
        %v2866 = vxor.u32 %v2865, 2147483648
        %v2867 = vsel %vm2784, %v2866, %v2865
        %v2868 = vsub.s32 4, %v2844
        %v2869 = vsel %vm2784, %v2868, %v2844
        %v2870 = vsel %vm2783, %v2675, %v2867
        %v2871 = vsel %vm2783, 0, %v2869
        %v2872 = vcosq.f32.pop %v2870
        %v2873 = vsinq.f32.pop %v2870
        %vm2874 = vweird.f32 %v2675
        %v2875 = vadd.s32 %v2871, 3
        %v2876 = vand.u32 %v2875, 3
        %vm2877 = vcmp.lt.s32.totalorder %v2876, 2
        %vm2878 = vcmp.eq.s32.totalorder %v2876, 0
        %v2879 = vxor.u32 %v2873, 2147483648
        %v2880 = vsel %vm2878, %v2872, %v2879
        %vm2881 = vcmp.eq.s32.totalorder %v2876, 2
        %v2882 = vxor.u32 %v2872, 2147483648
        %v2883 = vsel %vm2881, %v2882, %v2873
        %v2884 = vsel %vm2877, %v2880, %v2883
        %v2885 = vsel %vm2874, nan, %v2884
        %s2886 = scalar_lea.vmem %s313, 160 [#allocation4]
        %2887 = vst.msk [vmem:[%s2886] sm:$0xff] %vm1924, %v2885
        %v2888 = vadd.f32 %v2674, 1.5707964
        %v2889 = vand.u32 2147483647, %v2888
        %vm2890 = vcmp.le.f32.partialorder %v2889, 0.7853982
        %vm2891 = vcmp.lt.s32.totalorder %v2888, 0
        %v2892 = vand.u32 %v2888, 2139095040
        %v2893 = vshrl.u32 %v2892, 23
        %v2894 = vsub.s32 %v2893, 127
        %v2895 = vand.u32 2147483647, %v2888
        %v2896 = vand.u32 %v2895, 8388607
        %v2897 = vor.u32 %v2896, 8388608
        %v2898 = vsub.s32 0, %v2897
        %v2899 = vadd.s32 %v2894, 1
        %vm2900 = vcmp.gt.s32.totalorder %v2899, 0
        %v2901 = vsel %vm2900, %v2899, 0
        %v2902 = vshrl.u32 %v2901, 5
        %v2903 = vand.u32 %v2901, 31
        %v2904 = vsub.s32 32, %v2903
        %v2905 = vshrl.u32 683565275, %v2904
        %v2906 = vshll.u32 683565275, %v2903
        %v2907 = vshrl.u32 2475754826, %v2904
        %v2908 = vor.u32 %v2906, %v2907
        %v2909 = vshll.u32 2475754826, %v2903
        %v2910 = vshrl.u32 2131351028, %v2904
        %v2911 = vor.u32 %v2909, %v2910
        %v2912 = vshll.u32 2131351028, %v2903
        %v2913 = vshrl.u32 2102212464, %v2904
        %v2914 = vor.u32 %v2912, %v2913
        %v2915 = vshll.u32 2102212464, %v2903
        %v2916 = vshrl.u32 920167782, %v2904
        %v2917 = vor.u32 %v2915, %v2916
        %v2918 = vshll.u32 920167782, %v2903
        %v2919 = vshrl.u32 1326507024, %v2904
        %v2920 = vor.u32 %v2918, %v2919
        %vm2921 = vcmp.lt.s32.totalorder %v2902, 1
        %vm2922 = vcmp.lt.s32.totalorder %v2902, 2
        %vm2923 = vcmp.lt.s32.totalorder %v2902, 3
        %vm2924 = vcmp.lt.s32.totalorder %v2902, 4
        %v2925 = vsel %vm2921, %v2905, %v2908
        %v2926 = vsel %vm2924, %v2914, 2102212464
        %v2927 = vsel %vm2923, %v2911, %v2926
        %v2928 = vsel %vm2922, %v2925, %v2927
        %v2929 = vsel %vm2921, %v2908, %v2911
        %v2930 = vsel %vm2924, %v2917, 920167782
        %v2931 = vsel %vm2923, %v2914, %v2930
        %v2932 = vsel %vm2922, %v2929, %v2931
        %v2933 = vsel %vm2921, %v2911, %v2914
        %v2934 = vsel %vm2924, %v2920, 1326507024
        %v2935 = vsel %vm2923, %v2917, %v2934
        %v2936 = vsel %vm2922, %v2933, %v2935
        %v2937 = vshll.u32 %v2897, 8
        %v2938 = vmul.u32.u64.compose %v2937, %v2936
        %v2939 = vextract.low.u32 %v2938
        %v2940 = vextract.high.u32 %v2938
        %v2941 = vmul.u32.u64.compose %v2937, %v2932
        %v2942 = vextract.low.u32 %v2941
        %v2943 = vextract.high.u32 %v2941
        %v2944 = vmul.u32 %v2937, %v2928
        %v2945 = vadd.s32 %v2940, %v2942
        %vm2946 = vc.u32 %v2940, %v2942
        %v2947 = vadd.s32 %v2943, 1
        %v2948 = vsel %vm2946, %v2947, %v2943
        %v2949 = vadd.s32 %v2944, %v2948
        %v2950 = vadd.s32 %v2949, 536870912
        %v2951 = vshrl.u32 %v2950, 30
        %v2952 = vshll.u32 %v2951, 30
        %v2953 = vsub.s32 %v2949, %v2952
        %vm2954 = vcmp.lt.s32.totalorder %v2953, 0
        %v2955 = vsub.s32 0, %v2953
        %v2956 = vsel %vm2954, %v2955, %v2953
        %v2957 = vclz %v2956
        %v2958 = vsub.s32 %v2957, 2
        %vm2959 = vcmp.gt.s32.totalorder 0, %v2958
        %v2960 = vsel %vm2959, 0, %v2958
        %v2961 = vsub.s32 32, %v2960
        %v2962 = vshll.u32 %v2953, %v2960
        %v2963 = vshrl.u32 %v2945, %v2961
        %v2964 = vor.u32 %v2962, %v2963
        %v2965 = vsub.s32 4294967266, %v2960
        %v2966 = vadd.s32 %v2965, 127
        %v2967 = vshll.u32 %v2966, 23
        %v2968 = vor.u32 4788187, %v2967
        %v2969 = vand.u32 2147483647, %v2968
        %v2971 = vcvt.s32.f32 %v2964
        %v2972 = vmul.f32 %v2971, %v2969
        %v2973 = vxor.u32 %v2972, 2147483648
        %v2974 = vsel %vm2891, %v2973, %v2972
        %v2975 = vsub.s32 4, %v2951
        %v2976 = vsel %vm2891, %v2975, %v2951
        %v2977 = vsel %vm2890, %v2888, %v2974
        %v2978 = vsel %vm2890, 0, %v2976
        %v2979 = vcosq.f32.pop %v2977
        %v2980 = vsinq.f32.pop %v2977
        %vm2981 = vweird.f32 %v2888
        %v2982 = vadd.s32 %v2978, 3
        %v2983 = vand.u32 %v2982, 3
        %vm2984 = vcmp.lt.s32.totalorder %v2983, 2
        %vm2985 = vcmp.eq.s32.totalorder %v2983, 0
        %v2986 = vxor.u32 %v2980, 2147483648
        %v2987 = vsel %vm2985, %v2979, %v2986
        %vm2988 = vcmp.eq.s32.totalorder %v2983, 2
        %v2989 = vxor.u32 %v2979, 2147483648
        %v2990 = vsel %vm2988, %v2989, %v2980
        %v2991 = vsel %vm2984, %v2987, %v2990
        %v2992 = vsel %vm2981, nan, %v2991
        %s2993 = scalar_lea.vmem %s313, 40 [#allocation4]
        %2994 = vst.msk [vmem:[%s2993] sm:$0xff] %vm1924, %v2992
        %v2995 = vadd.f32 %v2675, 1.5707964
        %v2996 = vand.u32 2147483647, %v2995
        %vm2997 = vcmp.le.f32.partialorder %v2996, 0.7853982
        %vm2998 = vcmp.lt.s32.totalorder %v2995, 0
        %v2999 = vand.u32 %v2995, 2139095040
        %v3000 = vshrl.u32 %v2999, 23
        %v3001 = vsub.s32 %v3000, 127
        %v3002 = vand.u32 2147483647, %v2995
        %v3003 = vand.u32 %v3002, 8388607
        %v3004 = vor.u32 %v3003, 8388608
        %v3005 = vsub.s32 0, %v3004
        %v3006 = vadd.s32 %v3001, 1
        %vm3007 = vcmp.gt.s32.totalorder %v3006, 0
        %v3008 = vsel %vm3007, %v3006, 0
        %v3009 = vshrl.u32 %v3008, 5
        %v3010 = vand.u32 %v3008, 31
        %v3011 = vsub.s32 32, %v3010
        %v3012 = vshrl.u32 683565275, %v3011
        %v3013 = vshll.u32 683565275, %v3010
        %v3014 = vshrl.u32 2475754826, %v3011
        %v3015 = vor.u32 %v3013, %v3014
        %v3016 = vshll.u32 2475754826, %v3010
        %v3017 = vshrl.u32 2131351028, %v3011
        %v3018 = vor.u32 %v3016, %v3017
        %v3019 = vshll.u32 2131351028, %v3010
        %v3020 = vshrl.u32 2102212464, %v3011
        %v3021 = vor.u32 %v3019, %v3020
        %v3022 = vshll.u32 2102212464, %v3010
        %v3023 = vshrl.u32 920167782, %v3011
        %v3024 = vor.u32 %v3022, %v3023
        %v3025 = vshll.u32 920167782, %v3010
        %v3026 = vshrl.u32 1326507024, %v3011
        %v3027 = vor.u32 %v3025, %v3026
        %vm3028 = vcmp.lt.s32.totalorder %v3009, 1
        %vm3029 = vcmp.lt.s32.totalorder %v3009, 2
        %vm3030 = vcmp.lt.s32.totalorder %v3009, 3
        %vm3031 = vcmp.lt.s32.totalorder %v3009, 4
        %v3032 = vsel %vm3028, %v3012, %v3015
        %v3033 = vsel %vm3031, %v3021, 2102212464
        %v3034 = vsel %vm3030, %v3018, %v3033
        %v3035 = vsel %vm3029, %v3032, %v3034
        %v3036 = vsel %vm3028, %v3015, %v3018
        %v3037 = vsel %vm3031, %v3024, 920167782
        %v3038 = vsel %vm3030, %v3021, %v3037
        %v3039 = vsel %vm3029, %v3036, %v3038
        %v3040 = vsel %vm3028, %v3018, %v3021
        %v3041 = vsel %vm3031, %v3027, 1326507024
        %v3042 = vsel %vm3030, %v3024, %v3041
        %v3043 = vsel %vm3029, %v3040, %v3042
        %v3044 = vshll.u32 %v3004, 8
        %v3045 = vmul.u32.u64.compose %v3044, %v3043
        %v3046 = vextract.low.u32 %v3045
        %v3047 = vextract.high.u32 %v3045
        %v3048 = vmul.u32.u64.compose %v3044, %v3039
        %v3049 = vextract.low.u32 %v3048
        %v3050 = vextract.high.u32 %v3048
        %v3051 = vmul.u32 %v3044, %v3035
        %v3052 = vadd.s32 %v3047, %v3049
        %vm3053 = vc.u32 %v3047, %v3049
        %v3054 = vadd.s32 %v3050, 1
        %v3055 = vsel %vm3053, %v3054, %v3050
        %v3056 = vadd.s32 %v3051, %v3055
        %v3057 = vadd.s32 %v3056, 536870912
        %v3058 = vshrl.u32 %v3057, 30
        %v3059 = vshll.u32 %v3058, 30
        %v3060 = vsub.s32 %v3056, %v3059
        %vm3061 = vcmp.lt.s32.totalorder %v3060, 0
        %v3062 = vsub.s32 0, %v3060
        %v3063 = vsel %vm3061, %v3062, %v3060
        %v3064 = vclz %v3063
        %v3065 = vsub.s32 %v3064, 2
        %vm3066 = vcmp.gt.s32.totalorder 0, %v3065
        %v3067 = vsel %vm3066, 0, %v3065
        %v3068 = vsub.s32 32, %v3067
        %v3069 = vshll.u32 %v3060, %v3067
        %v3070 = vshrl.u32 %v3052, %v3068
        %v3071 = vor.u32 %v3069, %v3070
        %v3072 = vsub.s32 4294967266, %v3067
        %v3073 = vadd.s32 %v3072, 127
        %v3074 = vshll.u32 %v3073, 23
        %v3075 = vor.u32 4788187, %v3074
        %v3076 = vand.u32 2147483647, %v3075
        %v3078 = vcvt.s32.f32 %v3071
        %v3079 = vmul.f32 %v3078, %v3076
        %v3080 = vxor.u32 %v3079, 2147483648
        %v3081 = vsel %vm2998, %v3080, %v3079
        %v3082 = vsub.s32 4, %v3058
        %v3083 = vsel %vm2998, %v3082, %v3058
        %v3084 = vsel %vm2997, %v2995, %v3081
        %v3085 = vsel %vm2997, 0, %v3083
        %v3086 = vcosq.f32.pop %v3084
        %v3087 = vsinq.f32.pop %v3084
        %vm3088 = vweird.f32 %v2995
        %v3089 = vadd.s32 %v3085, 3
        %v3090 = vand.u32 %v3089, 3
        %vm3091 = vcmp.lt.s32.totalorder %v3090, 2
        %vm3092 = vcmp.eq.s32.totalorder %v3090, 0
        %v3093 = vxor.u32 %v3087, 2147483648
        %v3094 = vsel %vm3092, %v3086, %v3093
        %vm3095 = vcmp.eq.s32.totalorder %v3090, 2
        %v3096 = vxor.u32 %v3086, 2147483648
        %v3097 = vsel %vm3095, %v3096, %v3087
        %v3098 = vsel %vm3091, %v3094, %v3097
        %v3099 = vsel %vm3088, nan, %v3098
        %s3100 = scalar_lea.vmem %s313, 168 [#allocation4]
        %3101 = vst.msk [vmem:[%s3100] sm:$0xff] %vm1924, %v3099
        %v3102 = vmul.f32 %v1818, 0.031622775
        %v3103 = vmul.f32 %v1819, 0.031622775
        %v3104 = vand.u32 2147483647, %v3102
        %vm3105 = vcmp.le.f32.partialorder %v3104, 0.7853982
        %vm3106 = vcmp.lt.s32.totalorder %v3102, 0
        %v3107 = vand.u32 %v3102, 2139095040
        %v3108 = vshrl.u32 %v3107, 23
        %v3109 = vsub.s32 %v3108, 127
        %v3110 = vand.u32 2147483647, %v3102
        %v3111 = vand.u32 %v3110, 8388607
        %v3112 = vor.u32 %v3111, 8388608
        %v3113 = vsub.s32 0, %v3112
        %v3114 = vadd.s32 %v3109, 1
        %vm3115 = vcmp.gt.s32.totalorder %v3114, 0
        %v3116 = vsel %vm3115, %v3114, 0
        %v3117 = vshrl.u32 %v3116, 5
        %v3118 = vand.u32 %v3116, 31
        %v3119 = vsub.s32 32, %v3118
        %v3120 = vshrl.u32 683565275, %v3119
        %v3121 = vshll.u32 683565275, %v3118
        %v3122 = vshrl.u32 2475754826, %v3119
        %v3123 = vor.u32 %v3121, %v3122
        %v3124 = vshll.u32 2475754826, %v3118
        %v3125 = vshrl.u32 2131351028, %v3119
        %v3126 = vor.u32 %v3124, %v3125
        %v3127 = vshll.u32 2131351028, %v3118
        %v3128 = vshrl.u32 2102212464, %v3119
        %v3129 = vor.u32 %v3127, %v3128
        %v3130 = vshll.u32 2102212464, %v3118
        %v3131 = vshrl.u32 920167782, %v3119
        %v3132 = vor.u32 %v3130, %v3131
        %v3133 = vshll.u32 920167782, %v3118
        %v3134 = vshrl.u32 1326507024, %v3119
        %v3135 = vor.u32 %v3133, %v3134
        %vm3136 = vcmp.lt.s32.totalorder %v3117, 1
        %vm3137 = vcmp.lt.s32.totalorder %v3117, 2
        %vm3138 = vcmp.lt.s32.totalorder %v3117, 3
        %vm3139 = vcmp.lt.s32.totalorder %v3117, 4
        %v3140 = vsel %vm3136, %v3120, %v3123
        %v3141 = vsel %vm3139, %v3129, 2102212464
        %v3142 = vsel %vm3138, %v3126, %v3141
        %v3143 = vsel %vm3137, %v3140, %v3142
        %v3144 = vsel %vm3136, %v3123, %v3126
        %v3145 = vsel %vm3139, %v3132, 920167782
        %v3146 = vsel %vm3138, %v3129, %v3145
        %v3147 = vsel %vm3137, %v3144, %v3146
        %v3148 = vsel %vm3136, %v3126, %v3129
        %v3149 = vsel %vm3139, %v3135, 1326507024
        %v3150 = vsel %vm3138, %v3132, %v3149
        %v3151 = vsel %vm3137, %v3148, %v3150
        %v3152 = vshll.u32 %v3112, 8
        %v3153 = vmul.u32.u64.compose %v3152, %v3151
        %v3154 = vextract.low.u32 %v3153
        %v3155 = vextract.high.u32 %v3153
        %v3156 = vmul.u32.u64.compose %v3152, %v3147
        %v3157 = vextract.low.u32 %v3156
        %v3158 = vextract.high.u32 %v3156
        %v3159 = vmul.u32 %v3152, %v3143
        %v3160 = vadd.s32 %v3155, %v3157
        %vm3161 = vc.u32 %v3155, %v3157
        %v3162 = vadd.s32 %v3158, 1
        %v3163 = vsel %vm3161, %v3162, %v3158
        %v3164 = vadd.s32 %v3159, %v3163
        %v3165 = vadd.s32 %v3164, 536870912
        %v3166 = vshrl.u32 %v3165, 30
        %v3167 = vshll.u32 %v3166, 30
        %v3168 = vsub.s32 %v3164, %v3167
        %vm3169 = vcmp.lt.s32.totalorder %v3168, 0
        %v3170 = vsub.s32 0, %v3168
        %v3171 = vsel %vm3169, %v3170, %v3168
        %v3172 = vclz %v3171
        %v3173 = vsub.s32 %v3172, 2
        %vm3174 = vcmp.gt.s32.totalorder 0, %v3173
        %v3175 = vsel %vm3174, 0, %v3173
        %v3176 = vsub.s32 32, %v3175
        %v3177 = vshll.u32 %v3168, %v3175
        %v3178 = vshrl.u32 %v3160, %v3176
        %v3179 = vor.u32 %v3177, %v3178
        %v3180 = vsub.s32 4294967266, %v3175
        %v3181 = vadd.s32 %v3180, 127
        %v3182 = vshll.u32 %v3181, 23
        %v3183 = vor.u32 4788187, %v3182
        %v3184 = vand.u32 2147483647, %v3183
        %v3186 = vcvt.s32.f32 %v3179
        %v3187 = vmul.f32 %v3186, %v3184
        %v3188 = vxor.u32 %v3187, 2147483648
        %v3189 = vsel %vm3106, %v3188, %v3187
        %v3190 = vsub.s32 4, %v3166
        %v3191 = vsel %vm3106, %v3190, %v3166
        %v3192 = vsel %vm3105, %v3102, %v3189
        %v3193 = vsel %vm3105, 0, %v3191
        %v3194 = vcosq.f32.pop %v3192
        %v3195 = vsinq.f32.pop %v3192
        %vm3196 = vweird.f32 %v3102
        %v3197 = vadd.s32 %v3193, 3
        %v3198 = vand.u32 %v3197, 3
        %vm3199 = vcmp.lt.s32.totalorder %v3198, 2
        %vm3200 = vcmp.eq.s32.totalorder %v3198, 0
        %v3201 = vxor.u32 %v3195, 2147483648
        %v3202 = vsel %vm3200, %v3194, %v3201
        %vm3203 = vcmp.eq.s32.totalorder %v3198, 2
        %v3204 = vxor.u32 %v3194, 2147483648
        %v3205 = vsel %vm3203, %v3204, %v3195
        %v3206 = vsel %vm3199, %v3202, %v3205
        %v3207 = vsel %vm3196, nan, %v3206
        %s3208 = scalar_lea.vmem %s313, 48 [#allocation4]
        %3209 = vst.msk [vmem:[%s3208] sm:$0xff] %vm1924, %v3207
        %v3210 = vand.u32 2147483647, %v3103
        %vm3211 = vcmp.le.f32.partialorder %v3210, 0.7853982
        %vm3212 = vcmp.lt.s32.totalorder %v3103, 0
        %v3213 = vand.u32 %v3103, 2139095040
        %v3214 = vshrl.u32 %v3213, 23
        %v3215 = vsub.s32 %v3214, 127
        %v3216 = vand.u32 2147483647, %v3103
        %v3217 = vand.u32 %v3216, 8388607
        %v3218 = vor.u32 %v3217, 8388608
        %v3219 = vsub.s32 0, %v3218
        %v3220 = vadd.s32 %v3215, 1
        %vm3221 = vcmp.gt.s32.totalorder %v3220, 0
        %v3222 = vsel %vm3221, %v3220, 0
        %v3223 = vshrl.u32 %v3222, 5
        %v3224 = vand.u32 %v3222, 31
        %v3225 = vsub.s32 32, %v3224
        %v3226 = vshrl.u32 683565275, %v3225
        %v3227 = vshll.u32 683565275, %v3224
        %v3228 = vshrl.u32 2475754826, %v3225
        %v3229 = vor.u32 %v3227, %v3228
        %v3230 = vshll.u32 2475754826, %v3224
        %v3231 = vshrl.u32 2131351028, %v3225
        %v3232 = vor.u32 %v3230, %v3231
        %v3233 = vshll.u32 2131351028, %v3224
        %v3234 = vshrl.u32 2102212464, %v3225
        %v3235 = vor.u32 %v3233, %v3234
        %v3236 = vshll.u32 2102212464, %v3224
        %v3237 = vshrl.u32 920167782, %v3225
        %v3238 = vor.u32 %v3236, %v3237
        %v3239 = vshll.u32 920167782, %v3224
        %v3240 = vshrl.u32 1326507024, %v3225
        %v3241 = vor.u32 %v3239, %v3240
        %vm3242 = vcmp.lt.s32.totalorder %v3223, 1
        %vm3243 = vcmp.lt.s32.totalorder %v3223, 2
        %vm3244 = vcmp.lt.s32.totalorder %v3223, 3
        %vm3245 = vcmp.lt.s32.totalorder %v3223, 4
        %v3246 = vsel %vm3242, %v3226, %v3229
        %v3247 = vsel %vm3245, %v3235, 2102212464
        %v3248 = vsel %vm3244, %v3232, %v3247
        %v3249 = vsel %vm3243, %v3246, %v3248
        %v3250 = vsel %vm3242, %v3229, %v3232
        %v3251 = vsel %vm3245, %v3238, 920167782
        %v3252 = vsel %vm3244, %v3235, %v3251
        %v3253 = vsel %vm3243, %v3250, %v3252
        %v3254 = vsel %vm3242, %v3232, %v3235
        %v3255 = vsel %vm3245, %v3241, 1326507024
        %v3256 = vsel %vm3244, %v3238, %v3255
        %v3257 = vsel %vm3243, %v3254, %v3256
        %v3258 = vshll.u32 %v3218, 8
        %v3259 = vmul.u32.u64.compose %v3258, %v3257
        %v3260 = vextract.low.u32 %v3259
        %v3261 = vextract.high.u32 %v3259
        %v3262 = vmul.u32.u64.compose %v3258, %v3253
        %v3263 = vextract.low.u32 %v3262
        %v3264 = vextract.high.u32 %v3262
        %v3265 = vmul.u32 %v3258, %v3249
        %v3266 = vadd.s32 %v3261, %v3263
        %vm3267 = vc.u32 %v3261, %v3263
        %v3268 = vadd.s32 %v3264, 1
        %v3269 = vsel %vm3267, %v3268, %v3264
        %v3270 = vadd.s32 %v3265, %v3269
        %v3271 = vadd.s32 %v3270, 536870912
        %v3272 = vshrl.u32 %v3271, 30
        %v3273 = vshll.u32 %v3272, 30
        %v3274 = vsub.s32 %v3270, %v3273
        %vm3275 = vcmp.lt.s32.totalorder %v3274, 0
        %v3276 = vsub.s32 0, %v3274
        %v3277 = vsel %vm3275, %v3276, %v3274
        %v3278 = vclz %v3277
        %v3279 = vsub.s32 %v3278, 2
        %vm3280 = vcmp.gt.s32.totalorder 0, %v3279
        %v3281 = vsel %vm3280, 0, %v3279
        %v3282 = vsub.s32 32, %v3281
        %v3283 = vshll.u32 %v3274, %v3281
        %v3284 = vshrl.u32 %v3266, %v3282
        %v3285 = vor.u32 %v3283, %v3284
        %v3286 = vsub.s32 4294967266, %v3281
        %v3287 = vadd.s32 %v3286, 127
        %v3288 = vshll.u32 %v3287, 23
        %v3289 = vor.u32 4788187, %v3288
        %v3290 = vand.u32 2147483647, %v3289
        %v3292 = vcvt.s32.f32 %v3285
        %v3293 = vmul.f32 %v3292, %v3290
        %v3294 = vxor.u32 %v3293, 2147483648
        %v3295 = vsel %vm3212, %v3294, %v3293
        %v3296 = vsub.s32 4, %v3272
        %v3297 = vsel %vm3212, %v3296, %v3272
        %v3298 = vsel %vm3211, %v3103, %v3295
        %v3299 = vsel %vm3211, 0, %v3297
        %v3300 = vcosq.f32.pop %v3298
        %v3301 = vsinq.f32.pop %v3298
        %vm3302 = vweird.f32 %v3103
        %v3303 = vadd.s32 %v3299, 3
        %v3304 = vand.u32 %v3303, 3
        %vm3305 = vcmp.lt.s32.totalorder %v3304, 2
        %vm3306 = vcmp.eq.s32.totalorder %v3304, 0
        %v3307 = vxor.u32 %v3301, 2147483648
        %v3308 = vsel %vm3306, %v3300, %v3307
        %vm3309 = vcmp.eq.s32.totalorder %v3304, 2
        %v3310 = vxor.u32 %v3300, 2147483648
        %v3311 = vsel %vm3309, %v3310, %v3301
        %v3312 = vsel %vm3305, %v3308, %v3311
        %v3313 = vsel %vm3302, nan, %v3312
        %s3314 = scalar_lea.vmem %s313, 176 [#allocation4]
        %3315 = vst.msk [vmem:[%s3314] sm:$0xff] %vm1924, %v3313
        %v3316 = vadd.f32 %v3102, 1.5707964
        %v3317 = vand.u32 2147483647, %v3316
        %vm3318 = vcmp.le.f32.partialorder %v3317, 0.7853982
        %vm3319 = vcmp.lt.s32.totalorder %v3316, 0
        %v3320 = vand.u32 %v3316, 2139095040
        %v3321 = vshrl.u32 %v3320, 23
        %v3322 = vsub.s32 %v3321, 127
        %v3323 = vand.u32 2147483647, %v3316
        %v3324 = vand.u32 %v3323, 8388607
        %v3325 = vor.u32 %v3324, 8388608
        %v3326 = vsub.s32 0, %v3325
        %v3327 = vadd.s32 %v3322, 1
        %vm3328 = vcmp.gt.s32.totalorder %v3327, 0
        %v3329 = vsel %vm3328, %v3327, 0
        %v3330 = vshrl.u32 %v3329, 5
        %v3331 = vand.u32 %v3329, 31
        %v3332 = vsub.s32 32, %v3331
        %v3333 = vshrl.u32 683565275, %v3332
        %v3334 = vshll.u32 683565275, %v3331
        %v3335 = vshrl.u32 2475754826, %v3332
        %v3336 = vor.u32 %v3334, %v3335
        %v3337 = vshll.u32 2475754826, %v3331
        %v3338 = vshrl.u32 2131351028, %v3332
        %v3339 = vor.u32 %v3337, %v3338
        %v3340 = vshll.u32 2131351028, %v3331
        %v3341 = vshrl.u32 2102212464, %v3332
        %v3342 = vor.u32 %v3340, %v3341
        %v3343 = vshll.u32 2102212464, %v3331
        %v3344 = vshrl.u32 920167782, %v3332
        %v3345 = vor.u32 %v3343, %v3344
        %v3346 = vshll.u32 920167782, %v3331
        %v3347 = vshrl.u32 1326507024, %v3332
        %v3348 = vor.u32 %v3346, %v3347
        %vm3349 = vcmp.lt.s32.totalorder %v3330, 1
        %vm3350 = vcmp.lt.s32.totalorder %v3330, 2
        %vm3351 = vcmp.lt.s32.totalorder %v3330, 3
        %vm3352 = vcmp.lt.s32.totalorder %v3330, 4
        %v3353 = vsel %vm3349, %v3333, %v3336
        %v3354 = vsel %vm3352, %v3342, 2102212464
        %v3355 = vsel %vm3351, %v3339, %v3354
        %v3356 = vsel %vm3350, %v3353, %v3355
        %v3357 = vsel %vm3349, %v3336, %v3339
        %v3358 = vsel %vm3352, %v3345, 920167782
        %v3359 = vsel %vm3351, %v3342, %v3358
        %v3360 = vsel %vm3350, %v3357, %v3359
        %v3361 = vsel %vm3349, %v3339, %v3342
        %v3362 = vsel %vm3352, %v3348, 1326507024
        %v3363 = vsel %vm3351, %v3345, %v3362
        %v3364 = vsel %vm3350, %v3361, %v3363
        %v3365 = vshll.u32 %v3325, 8
        %v3366 = vmul.u32.u64.compose %v3365, %v3364
        %v3367 = vextract.low.u32 %v3366
        %v3368 = vextract.high.u32 %v3366
        %v3369 = vmul.u32.u64.compose %v3365, %v3360
        %v3370 = vextract.low.u32 %v3369
        %v3371 = vextract.high.u32 %v3369
        %v3372 = vmul.u32 %v3365, %v3356
        %v3373 = vadd.s32 %v3368, %v3370
        %vm3374 = vc.u32 %v3368, %v3370
        %v3375 = vadd.s32 %v3371, 1
        %v3376 = vsel %vm3374, %v3375, %v3371
        %v3377 = vadd.s32 %v3372, %v3376
        %v3378 = vadd.s32 %v3377, 536870912
        %v3379 = vshrl.u32 %v3378, 30
        %v3380 = vshll.u32 %v3379, 30
        %v3381 = vsub.s32 %v3377, %v3380
        %vm3382 = vcmp.lt.s32.totalorder %v3381, 0
        %v3383 = vsub.s32 0, %v3381
        %v3384 = vsel %vm3382, %v3383, %v3381
        %v3385 = vclz %v3384
        %v3386 = vsub.s32 %v3385, 2
        %vm3387 = vcmp.gt.s32.totalorder 0, %v3386
        %v3388 = vsel %vm3387, 0, %v3386
        %v3389 = vsub.s32 32, %v3388
        %v3390 = vshll.u32 %v3381, %v3388
        %v3391 = vshrl.u32 %v3373, %v3389
        %v3392 = vor.u32 %v3390, %v3391
        %v3393 = vsub.s32 4294967266, %v3388
        %v3394 = vadd.s32 %v3393, 127
        %v3395 = vshll.u32 %v3394, 23
        %v3396 = vor.u32 4788187, %v3395
        %v3397 = vand.u32 2147483647, %v3396
        %v3399 = vcvt.s32.f32 %v3392
        %v3400 = vmul.f32 %v3399, %v3397
        %v3401 = vxor.u32 %v3400, 2147483648
        %v3402 = vsel %vm3319, %v3401, %v3400
        %v3403 = vsub.s32 4, %v3379
        %v3404 = vsel %vm3319, %v3403, %v3379
        %v3405 = vsel %vm3318, %v3316, %v3402
        %v3406 = vsel %vm3318, 0, %v3404
        %v3407 = vcosq.f32.pop %v3405
        %v3408 = vsinq.f32.pop %v3405
        %vm3409 = vweird.f32 %v3316
        %v3410 = vadd.s32 %v3406, 3
        %v3411 = vand.u32 %v3410, 3
        %vm3412 = vcmp.lt.s32.totalorder %v3411, 2
        %vm3413 = vcmp.eq.s32.totalorder %v3411, 0
        %v3414 = vxor.u32 %v3408, 2147483648
        %v3415 = vsel %vm3413, %v3407, %v3414
        %vm3416 = vcmp.eq.s32.totalorder %v3411, 2
        %v3417 = vxor.u32 %v3407, 2147483648
        %v3418 = vsel %vm3416, %v3417, %v3408
        %v3419 = vsel %vm3412, %v3415, %v3418
        %v3420 = vsel %vm3409, nan, %v3419
        %s3421 = scalar_lea.vmem %s313, 56 [#allocation4]
        %3422 = vst.msk [vmem:[%s3421] sm:$0xff] %vm1924, %v3420
        %v3423 = vadd.f32 %v3103, 1.5707964
        %v3424 = vand.u32 2147483647, %v3423
        %vm3425 = vcmp.le.f32.partialorder %v3424, 0.7853982
        %vm3426 = vcmp.lt.s32.totalorder %v3423, 0
        %v3427 = vand.u32 %v3423, 2139095040
        %v3428 = vshrl.u32 %v3427, 23
        %v3429 = vsub.s32 %v3428, 127
        %v3430 = vand.u32 2147483647, %v3423
        %v3431 = vand.u32 %v3430, 8388607
        %v3432 = vor.u32 %v3431, 8388608
        %v3433 = vsub.s32 0, %v3432
        %v3434 = vadd.s32 %v3429, 1
        %vm3435 = vcmp.gt.s32.totalorder %v3434, 0
        %v3436 = vsel %vm3435, %v3434, 0
        %v3437 = vshrl.u32 %v3436, 5
        %v3438 = vand.u32 %v3436, 31
        %v3439 = vsub.s32 32, %v3438
        %v3440 = vshrl.u32 683565275, %v3439
        %v3441 = vshll.u32 683565275, %v3438
        %v3442 = vshrl.u32 2475754826, %v3439
        %v3443 = vor.u32 %v3441, %v3442
        %v3444 = vshll.u32 2475754826, %v3438
        %v3445 = vshrl.u32 2131351028, %v3439
        %v3446 = vor.u32 %v3444, %v3445
        %v3447 = vshll.u32 2131351028, %v3438
        %v3448 = vshrl.u32 2102212464, %v3439
        %v3449 = vor.u32 %v3447, %v3448
        %v3450 = vshll.u32 2102212464, %v3438
        %v3451 = vshrl.u32 920167782, %v3439
        %v3452 = vor.u32 %v3450, %v3451
        %v3453 = vshll.u32 920167782, %v3438
        %v3454 = vshrl.u32 1326507024, %v3439
        %v3455 = vor.u32 %v3453, %v3454
        %vm3456 = vcmp.lt.s32.totalorder %v3437, 1
        %vm3457 = vcmp.lt.s32.totalorder %v3437, 2
        %vm3458 = vcmp.lt.s32.totalorder %v3437, 3
        %vm3459 = vcmp.lt.s32.totalorder %v3437, 4
        %v3460 = vsel %vm3456, %v3440, %v3443
        %v3461 = vsel %vm3459, %v3449, 2102212464
        %v3462 = vsel %vm3458, %v3446, %v3461
        %v3463 = vsel %vm3457, %v3460, %v3462
        %v3464 = vsel %vm3456, %v3443, %v3446
        %v3465 = vsel %vm3459, %v3452, 920167782
        %v3466 = vsel %vm3458, %v3449, %v3465
        %v3467 = vsel %vm3457, %v3464, %v3466
        %v3468 = vsel %vm3456, %v3446, %v3449
        %v3469 = vsel %vm3459, %v3455, 1326507024
        %v3470 = vsel %vm3458, %v3452, %v3469
        %v3471 = vsel %vm3457, %v3468, %v3470
        %v3472 = vshll.u32 %v3432, 8
        %v3473 = vmul.u32.u64.compose %v3472, %v3471
        %v3474 = vextract.low.u32 %v3473
        %v3475 = vextract.high.u32 %v3473
        %v3476 = vmul.u32.u64.compose %v3472, %v3467
        %v3477 = vextract.low.u32 %v3476
        %v3478 = vextract.high.u32 %v3476
        %v3479 = vmul.u32 %v3472, %v3463
        %v3480 = vadd.s32 %v3475, %v3477
        %vm3481 = vc.u32 %v3475, %v3477
        %v3482 = vadd.s32 %v3478, 1
        %v3483 = vsel %vm3481, %v3482, %v3478
        %v3484 = vadd.s32 %v3479, %v3483
        %v3485 = vadd.s32 %v3484, 536870912
        %v3486 = vshrl.u32 %v3485, 30
        %v3487 = vshll.u32 %v3486, 30
        %v3488 = vsub.s32 %v3484, %v3487
        %vm3489 = vcmp.lt.s32.totalorder %v3488, 0
        %v3490 = vsub.s32 0, %v3488
        %v3491 = vsel %vm3489, %v3490, %v3488
        %v3492 = vclz %v3491
        %v3493 = vsub.s32 %v3492, 2
        %vm3494 = vcmp.gt.s32.totalorder 0, %v3493
        %v3495 = vsel %vm3494, 0, %v3493
        %v3496 = vsub.s32 32, %v3495
        %v3497 = vshll.u32 %v3488, %v3495
        %v3498 = vshrl.u32 %v3480, %v3496
        %v3499 = vor.u32 %v3497, %v3498
        %v3500 = vsub.s32 4294967266, %v3495
        %v3501 = vadd.s32 %v3500, 127
        %v3502 = vshll.u32 %v3501, 23
        %v3503 = vor.u32 4788187, %v3502
        %v3504 = vand.u32 2147483647, %v3503
        %v3506 = vcvt.s32.f32 %v3499
        %v3507 = vmul.f32 %v3506, %v3504
        %v3508 = vxor.u32 %v3507, 2147483648
        %v3509 = vsel %vm3426, %v3508, %v3507
        %v3510 = vsub.s32 4, %v3486
        %v3511 = vsel %vm3426, %v3510, %v3486
        %v3512 = vsel %vm3425, %v3423, %v3509
        %v3513 = vsel %vm3425, 0, %v3511
        %v3514 = vcosq.f32.pop %v3512
        %v3515 = vsinq.f32.pop %v3512
        %vm3516 = vweird.f32 %v3423
        %v3517 = vadd.s32 %v3513, 3
        %v3518 = vand.u32 %v3517, 3
        %vm3519 = vcmp.lt.s32.totalorder %v3518, 2
        %vm3520 = vcmp.eq.s32.totalorder %v3518, 0
        %v3521 = vxor.u32 %v3515, 2147483648
        %v3522 = vsel %vm3520, %v3514, %v3521
        %vm3523 = vcmp.eq.s32.totalorder %v3518, 2
        %v3524 = vxor.u32 %v3514, 2147483648
        %v3525 = vsel %vm3523, %v3524, %v3515
        %v3526 = vsel %vm3519, %v3522, %v3525
        %v3527 = vsel %vm3516, nan, %v3526
        %s3528 = scalar_lea.vmem %s313, 184 [#allocation4]
        %3529 = vst.msk [vmem:[%s3528] sm:$0xff] %vm1924, %v3527
        %v3530 = vmul.f32 %v1818, 0.01
        %v3531 = vmul.f32 %v1819, 0.01
        %v3532 = vand.u32 2147483647, %v3530
        %vm3533 = vcmp.le.f32.partialorder %v3532, 0.7853982
        %vm3534 = vcmp.lt.s32.totalorder %v3530, 0
        %v3535 = vand.u32 %v3530, 2139095040
        %v3536 = vshrl.u32 %v3535, 23
        %v3537 = vsub.s32 %v3536, 127
        %v3538 = vand.u32 2147483647, %v3530
        %v3539 = vand.u32 %v3538, 8388607
        %v3540 = vor.u32 %v3539, 8388608
        %v3541 = vsub.s32 0, %v3540
        %v3542 = vadd.s32 %v3537, 1
        %vm3543 = vcmp.gt.s32.totalorder %v3542, 0
        %v3544 = vsel %vm3543, %v3542, 0
        %v3545 = vshrl.u32 %v3544, 5
        %v3546 = vand.u32 %v3544, 31
        %v3547 = vsub.s32 32, %v3546
        %v3548 = vshrl.u32 683565275, %v3547
        %v3549 = vshll.u32 683565275, %v3546
        %v3550 = vshrl.u32 2475754826, %v3547
        %v3551 = vor.u32 %v3549, %v3550
        %v3552 = vshll.u32 2475754826, %v3546
        %v3553 = vshrl.u32 2131351028, %v3547
        %v3554 = vor.u32 %v3552, %v3553
        %v3555 = vshll.u32 2131351028, %v3546
        %v3556 = vshrl.u32 2102212464, %v3547
        %v3557 = vor.u32 %v3555, %v3556
        %v3558 = vshll.u32 2102212464, %v3546
        %v3559 = vshrl.u32 920167782, %v3547
        %v3560 = vor.u32 %v3558, %v3559
        %v3561 = vshll.u32 920167782, %v3546
        %v3562 = vshrl.u32 1326507024, %v3547
        %v3563 = vor.u32 %v3561, %v3562
        %vm3564 = vcmp.lt.s32.totalorder %v3545, 1
        %vm3565 = vcmp.lt.s32.totalorder %v3545, 2
        %vm3566 = vcmp.lt.s32.totalorder %v3545, 3
        %vm3567 = vcmp.lt.s32.totalorder %v3545, 4
        %v3568 = vsel %vm3564, %v3548, %v3551
        %v3569 = vsel %vm3567, %v3557, 2102212464
        %v3570 = vsel %vm3566, %v3554, %v3569
        %v3571 = vsel %vm3565, %v3568, %v3570
        %v3572 = vsel %vm3564, %v3551, %v3554
        %v3573 = vsel %vm3567, %v3560, 920167782
        %v3574 = vsel %vm3566, %v3557, %v3573
        %v3575 = vsel %vm3565, %v3572, %v3574
        %v3576 = vsel %vm3564, %v3554, %v3557
        %v3577 = vsel %vm3567, %v3563, 1326507024
        %v3578 = vsel %vm3566, %v3560, %v3577
        %v3579 = vsel %vm3565, %v3576, %v3578
        %v3580 = vshll.u32 %v3540, 8
        %v3581 = vmul.u32.u64.compose %v3580, %v3579
        %v3582 = vextract.low.u32 %v3581
        %v3583 = vextract.high.u32 %v3581
        %v3584 = vmul.u32.u64.compose %v3580, %v3575
        %v3585 = vextract.low.u32 %v3584
        %v3586 = vextract.high.u32 %v3584
        %v3587 = vmul.u32 %v3580, %v3571
        %v3588 = vadd.s32 %v3583, %v3585
        %vm3589 = vc.u32 %v3583, %v3585
        %v3590 = vadd.s32 %v3586, 1
        %v3591 = vsel %vm3589, %v3590, %v3586
        %v3592 = vadd.s32 %v3587, %v3591
        %v3593 = vadd.s32 %v3592, 536870912
        %v3594 = vshrl.u32 %v3593, 30
        %v3595 = vshll.u32 %v3594, 30
        %v3596 = vsub.s32 %v3592, %v3595
        %vm3597 = vcmp.lt.s32.totalorder %v3596, 0
        %v3598 = vsub.s32 0, %v3596
        %v3599 = vsel %vm3597, %v3598, %v3596
        %v3600 = vclz %v3599
        %v3601 = vsub.s32 %v3600, 2
        %vm3602 = vcmp.gt.s32.totalorder 0, %v3601
        %v3603 = vsel %vm3602, 0, %v3601
        %v3604 = vsub.s32 32, %v3603
        %v3605 = vshll.u32 %v3596, %v3603
        %v3606 = vshrl.u32 %v3588, %v3604
        %v3607 = vor.u32 %v3605, %v3606
        %v3608 = vsub.s32 4294967266, %v3603
        %v3609 = vadd.s32 %v3608, 127
        %v3610 = vshll.u32 %v3609, 23
        %v3611 = vor.u32 4788187, %v3610
        %v3612 = vand.u32 2147483647, %v3611
        %v3614 = vcvt.s32.f32 %v3607
        %v3615 = vmul.f32 %v3614, %v3612
        %v3616 = vxor.u32 %v3615, 2147483648
        %v3617 = vsel %vm3534, %v3616, %v3615
        %v3618 = vsub.s32 4, %v3594
        %v3619 = vsel %vm3534, %v3618, %v3594
        %v3620 = vsel %vm3533, %v3530, %v3617
        %v3621 = vsel %vm3533, 0, %v3619
        %v3622 = vcosq.f32.pop %v3620
        %v3623 = vsinq.f32.pop %v3620
        %vm3624 = vweird.f32 %v3530
        %v3625 = vadd.s32 %v3621, 3
        %v3626 = vand.u32 %v3625, 3
        %vm3627 = vcmp.lt.s32.totalorder %v3626, 2
        %vm3628 = vcmp.eq.s32.totalorder %v3626, 0
        %v3629 = vxor.u32 %v3623, 2147483648
        %v3630 = vsel %vm3628, %v3622, %v3629
        %vm3631 = vcmp.eq.s32.totalorder %v3626, 2
        %v3632 = vxor.u32 %v3622, 2147483648
        %v3633 = vsel %vm3631, %v3632, %v3623
        %v3634 = vsel %vm3627, %v3630, %v3633
        %v3635 = vsel %vm3624, nan, %v3634
        %s3636 = scalar_lea.vmem %s313, 64 [#allocation4]
        %3637 = vst.msk [vmem:[%s3636] sm:$0xff] %vm1924, %v3635
        %v3638 = vand.u32 2147483647, %v3531
        %vm3639 = vcmp.le.f32.partialorder %v3638, 0.7853982
        %vm3640 = vcmp.lt.s32.totalorder %v3531, 0
        %v3641 = vand.u32 %v3531, 2139095040
        %v3642 = vshrl.u32 %v3641, 23
        %v3643 = vsub.s32 %v3642, 127
        %v3644 = vand.u32 2147483647, %v3531
        %v3645 = vand.u32 %v3644, 8388607
        %v3646 = vor.u32 %v3645, 8388608
        %v3647 = vsub.s32 0, %v3646
        %v3648 = vadd.s32 %v3643, 1
        %vm3649 = vcmp.gt.s32.totalorder %v3648, 0
        %v3650 = vsel %vm3649, %v3648, 0
        %v3651 = vshrl.u32 %v3650, 5
        %v3652 = vand.u32 %v3650, 31
        %v3653 = vsub.s32 32, %v3652
        %v3654 = vshrl.u32 683565275, %v3653
        %v3655 = vshll.u32 683565275, %v3652
        %v3656 = vshrl.u32 2475754826, %v3653
        %v3657 = vor.u32 %v3655, %v3656
        %v3658 = vshll.u32 2475754826, %v3652
        %v3659 = vshrl.u32 2131351028, %v3653
        %v3660 = vor.u32 %v3658, %v3659
        %v3661 = vshll.u32 2131351028, %v3652
        %v3662 = vshrl.u32 2102212464, %v3653
        %v3663 = vor.u32 %v3661, %v3662
        %v3664 = vshll.u32 2102212464, %v3652
        %v3665 = vshrl.u32 920167782, %v3653
        %v3666 = vor.u32 %v3664, %v3665
        %v3667 = vshll.u32 920167782, %v3652
        %v3668 = vshrl.u32 1326507024, %v3653
        %v3669 = vor.u32 %v3667, %v3668
        %vm3670 = vcmp.lt.s32.totalorder %v3651, 1
        %vm3671 = vcmp.lt.s32.totalorder %v3651, 2
        %vm3672 = vcmp.lt.s32.totalorder %v3651, 3
        %vm3673 = vcmp.lt.s32.totalorder %v3651, 4
        %v3674 = vsel %vm3670, %v3654, %v3657
        %v3675 = vsel %vm3673, %v3663, 2102212464
        %v3676 = vsel %vm3672, %v3660, %v3675
        %v3677 = vsel %vm3671, %v3674, %v3676
        %v3678 = vsel %vm3670, %v3657, %v3660
        %v3679 = vsel %vm3673, %v3666, 920167782
        %v3680 = vsel %vm3672, %v3663, %v3679
        %v3681 = vsel %vm3671, %v3678, %v3680
        %v3682 = vsel %vm3670, %v3660, %v3663
        %v3683 = vsel %vm3673, %v3669, 1326507024
        %v3684 = vsel %vm3672, %v3666, %v3683
        %v3685 = vsel %vm3671, %v3682, %v3684
        %v3686 = vshll.u32 %v3646, 8
        %v3687 = vmul.u32.u64.compose %v3686, %v3685
        %v3688 = vextract.low.u32 %v3687
        %v3689 = vextract.high.u32 %v3687
        %v3690 = vmul.u32.u64.compose %v3686, %v3681
        %v3691 = vextract.low.u32 %v3690
        %v3692 = vextract.high.u32 %v3690
        %v3693 = vmul.u32 %v3686, %v3677
        %v3694 = vadd.s32 %v3689, %v3691
        %vm3695 = vc.u32 %v3689, %v3691
        %v3696 = vadd.s32 %v3692, 1
        %v3697 = vsel %vm3695, %v3696, %v3692
        %v3698 = vadd.s32 %v3693, %v3697
        %v3699 = vadd.s32 %v3698, 536870912
        %v3700 = vshrl.u32 %v3699, 30
        %v3701 = vshll.u32 %v3700, 30
        %v3702 = vsub.s32 %v3698, %v3701
        %vm3703 = vcmp.lt.s32.totalorder %v3702, 0
        %v3704 = vsub.s32 0, %v3702
        %v3705 = vsel %vm3703, %v3704, %v3702
        %v3706 = vclz %v3705
        %v3707 = vsub.s32 %v3706, 2
        %vm3708 = vcmp.gt.s32.totalorder 0, %v3707
        %v3709 = vsel %vm3708, 0, %v3707
        %v3710 = vsub.s32 32, %v3709
        %v3711 = vshll.u32 %v3702, %v3709
        %v3712 = vshrl.u32 %v3694, %v3710
        %v3713 = vor.u32 %v3711, %v3712
        %v3714 = vsub.s32 4294967266, %v3709
        %v3715 = vadd.s32 %v3714, 127
        %v3716 = vshll.u32 %v3715, 23
        %v3717 = vor.u32 4788187, %v3716
        %v3718 = vand.u32 2147483647, %v3717
        %v3720 = vcvt.s32.f32 %v3713
        %v3721 = vmul.f32 %v3720, %v3718
        %v3722 = vxor.u32 %v3721, 2147483648
        %v3723 = vsel %vm3640, %v3722, %v3721
        %v3724 = vsub.s32 4, %v3700
        %v3725 = vsel %vm3640, %v3724, %v3700
        %v3726 = vsel %vm3639, %v3531, %v3723
        %v3727 = vsel %vm3639, 0, %v3725
        %v3728 = vcosq.f32.pop %v3726
        %v3729 = vsinq.f32.pop %v3726
        %vm3730 = vweird.f32 %v3531
        %v3731 = vadd.s32 %v3727, 3
        %v3732 = vand.u32 %v3731, 3
        %vm3733 = vcmp.lt.s32.totalorder %v3732, 2
        %vm3734 = vcmp.eq.s32.totalorder %v3732, 0
        %v3735 = vxor.u32 %v3729, 2147483648
        %v3736 = vsel %vm3734, %v3728, %v3735
        %vm3737 = vcmp.eq.s32.totalorder %v3732, 2
        %v3738 = vxor.u32 %v3728, 2147483648
        %v3739 = vsel %vm3737, %v3738, %v3729
        %v3740 = vsel %vm3733, %v3736, %v3739
        %v3741 = vsel %vm3730, nan, %v3740
        %s3742 = scalar_lea.vmem %s313, 192 [#allocation4]
        %3743 = vst.msk [vmem:[%s3742] sm:$0xff] %vm1924, %v3741
        %v3744 = vadd.f32 %v3530, 1.5707964
        %v3745 = vand.u32 2147483647, %v3744
        %vm3746 = vcmp.le.f32.partialorder %v3745, 0.7853982
        %vm3747 = vcmp.lt.s32.totalorder %v3744, 0
        %v3748 = vand.u32 %v3744, 2139095040
        %v3749 = vshrl.u32 %v3748, 23
        %v3750 = vsub.s32 %v3749, 127
        %v3751 = vand.u32 2147483647, %v3744
        %v3752 = vand.u32 %v3751, 8388607
        %v3753 = vor.u32 %v3752, 8388608
        %v3754 = vsub.s32 0, %v3753
        %v3755 = vadd.s32 %v3750, 1
        %vm3756 = vcmp.gt.s32.totalorder %v3755, 0
        %v3757 = vsel %vm3756, %v3755, 0
        %v3758 = vshrl.u32 %v3757, 5
        %v3759 = vand.u32 %v3757, 31
        %v3760 = vsub.s32 32, %v3759
        %v3761 = vshrl.u32 683565275, %v3760
        %v3762 = vshll.u32 683565275, %v3759
        %v3763 = vshrl.u32 2475754826, %v3760
        %v3764 = vor.u32 %v3762, %v3763
        %v3765 = vshll.u32 2475754826, %v3759
        %v3766 = vshrl.u32 2131351028, %v3760
        %v3767 = vor.u32 %v3765, %v3766
        %v3768 = vshll.u32 2131351028, %v3759
        %v3769 = vshrl.u32 2102212464, %v3760
        %v3770 = vor.u32 %v3768, %v3769
        %v3771 = vshll.u32 2102212464, %v3759
        %v3772 = vshrl.u32 920167782, %v3760
        %v3773 = vor.u32 %v3771, %v3772
        %v3774 = vshll.u32 920167782, %v3759
        %v3775 = vshrl.u32 1326507024, %v3760
        %v3776 = vor.u32 %v3774, %v3775
        %vm3777 = vcmp.lt.s32.totalorder %v3758, 1
        %vm3778 = vcmp.lt.s32.totalorder %v3758, 2
        %vm3779 = vcmp.lt.s32.totalorder %v3758, 3
        %vm3780 = vcmp.lt.s32.totalorder %v3758, 4
        %v3781 = vsel %vm3777, %v3761, %v3764
        %v3782 = vsel %vm3780, %v3770, 2102212464
        %v3783 = vsel %vm3779, %v3767, %v3782
        %v3784 = vsel %vm3778, %v3781, %v3783
        %v3785 = vsel %vm3777, %v3764, %v3767
        %v3786 = vsel %vm3780, %v3773, 920167782
        %v3787 = vsel %vm3779, %v3770, %v3786
        %v3788 = vsel %vm3778, %v3785, %v3787
        %v3789 = vsel %vm3777, %v3767, %v3770
        %v3790 = vsel %vm3780, %v3776, 1326507024
        %v3791 = vsel %vm3779, %v3773, %v3790
        %v3792 = vsel %vm3778, %v3789, %v3791
        %v3793 = vshll.u32 %v3753, 8
        %v3794 = vmul.u32.u64.compose %v3793, %v3792
        %v3795 = vextract.low.u32 %v3794
        %v3796 = vextract.high.u32 %v3794
        %v3797 = vmul.u32.u64.compose %v3793, %v3788
        %v3798 = vextract.low.u32 %v3797
        %v3799 = vextract.high.u32 %v3797
        %v3800 = vmul.u32 %v3793, %v3784
        %v3801 = vadd.s32 %v3796, %v3798
        %vm3802 = vc.u32 %v3796, %v3798
        %v3803 = vadd.s32 %v3799, 1
        %v3804 = vsel %vm3802, %v3803, %v3799
        %v3805 = vadd.s32 %v3800, %v3804
        %v3806 = vadd.s32 %v3805, 536870912
        %v3807 = vshrl.u32 %v3806, 30
        %v3808 = vshll.u32 %v3807, 30
        %v3809 = vsub.s32 %v3805, %v3808
        %vm3810 = vcmp.lt.s32.totalorder %v3809, 0
        %v3811 = vsub.s32 0, %v3809
        %v3812 = vsel %vm3810, %v3811, %v3809
        %v3813 = vclz %v3812
        %v3814 = vsub.s32 %v3813, 2
        %vm3815 = vcmp.gt.s32.totalorder 0, %v3814
        %v3816 = vsel %vm3815, 0, %v3814
        %v3817 = vsub.s32 32, %v3816
        %v3818 = vshll.u32 %v3809, %v3816
        %v3819 = vshrl.u32 %v3801, %v3817
        %v3820 = vor.u32 %v3818, %v3819
        %v3821 = vsub.s32 4294967266, %v3816
        %v3822 = vadd.s32 %v3821, 127
        %v3823 = vshll.u32 %v3822, 23
        %v3824 = vor.u32 4788187, %v3823
        %v3825 = vand.u32 2147483647, %v3824
        %v3827 = vcvt.s32.f32 %v3820
        %v3828 = vmul.f32 %v3827, %v3825
        %v3829 = vxor.u32 %v3828, 2147483648
        %v3830 = vsel %vm3747, %v3829, %v3828
        %v3831 = vsub.s32 4, %v3807
        %v3832 = vsel %vm3747, %v3831, %v3807
        %v3833 = vsel %vm3746, %v3744, %v3830
        %v3834 = vsel %vm3746, 0, %v3832
        %v3835 = vcosq.f32.pop %v3833
        %v3836 = vsinq.f32.pop %v3833
        %vm3837 = vweird.f32 %v3744
        %v3838 = vadd.s32 %v3834, 3
        %v3839 = vand.u32 %v3838, 3
        %vm3840 = vcmp.lt.s32.totalorder %v3839, 2
        %vm3841 = vcmp.eq.s32.totalorder %v3839, 0
        %v3842 = vxor.u32 %v3836, 2147483648
        %v3843 = vsel %vm3841, %v3835, %v3842
        %vm3844 = vcmp.eq.s32.totalorder %v3839, 2
        %v3845 = vxor.u32 %v3835, 2147483648
        %v3846 = vsel %vm3844, %v3845, %v3836
        %v3847 = vsel %vm3840, %v3843, %v3846
        %v3848 = vsel %vm3837, nan, %v3847
        %s3849 = scalar_lea.vmem %s313, 72 [#allocation4]
        %3850 = vst.msk [vmem:[%s3849] sm:$0xff] %vm1924, %v3848
        %v3851 = vadd.f32 %v3531, 1.5707964
        %v3852 = vand.u32 2147483647, %v3851
        %vm3853 = vcmp.le.f32.partialorder %v3852, 0.7853982
        %vm3854 = vcmp.lt.s32.totalorder %v3851, 0
        %v3855 = vand.u32 %v3851, 2139095040
        %v3856 = vshrl.u32 %v3855, 23
        %v3857 = vsub.s32 %v3856, 127
        %v3858 = vand.u32 2147483647, %v3851
        %v3859 = vand.u32 %v3858, 8388607
        %v3860 = vor.u32 %v3859, 8388608
        %v3861 = vsub.s32 0, %v3860
        %v3862 = vadd.s32 %v3857, 1
        %vm3863 = vcmp.gt.s32.totalorder %v3862, 0
        %v3864 = vsel %vm3863, %v3862, 0
        %v3865 = vshrl.u32 %v3864, 5
        %v3866 = vand.u32 %v3864, 31
        %v3867 = vsub.s32 32, %v3866
        %v3868 = vshrl.u32 683565275, %v3867
        %v3869 = vshll.u32 683565275, %v3866
        %v3870 = vshrl.u32 2475754826, %v3867
        %v3871 = vor.u32 %v3869, %v3870
        %v3872 = vshll.u32 2475754826, %v3866
        %v3873 = vshrl.u32 2131351028, %v3867
        %v3874 = vor.u32 %v3872, %v3873
        %v3875 = vshll.u32 2131351028, %v3866
        %v3876 = vshrl.u32 2102212464, %v3867
        %v3877 = vor.u32 %v3875, %v3876
        %v3878 = vshll.u32 2102212464, %v3866
        %v3879 = vshrl.u32 920167782, %v3867
        %v3880 = vor.u32 %v3878, %v3879
        %v3881 = vshll.u32 920167782, %v3866
        %v3882 = vshrl.u32 1326507024, %v3867
        %v3883 = vor.u32 %v3881, %v3882
        %vm3884 = vcmp.lt.s32.totalorder %v3865, 1
        %vm3885 = vcmp.lt.s32.totalorder %v3865, 2
        %vm3886 = vcmp.lt.s32.totalorder %v3865, 3
        %vm3887 = vcmp.lt.s32.totalorder %v3865, 4
        %v3888 = vsel %vm3884, %v3868, %v3871
        %v3889 = vsel %vm3887, %v3877, 2102212464
        %v3890 = vsel %vm3886, %v3874, %v3889
        %v3891 = vsel %vm3885, %v3888, %v3890
        %v3892 = vsel %vm3884, %v3871, %v3874
        %v3893 = vsel %vm3887, %v3880, 920167782
        %v3894 = vsel %vm3886, %v3877, %v3893
        %v3895 = vsel %vm3885, %v3892, %v3894
        %v3896 = vsel %vm3884, %v3874, %v3877
        %v3897 = vsel %vm3887, %v3883, 1326507024
        %v3898 = vsel %vm3886, %v3880, %v3897
        %v3899 = vsel %vm3885, %v3896, %v3898
        %v3900 = vshll.u32 %v3860, 8
        %v3901 = vmul.u32.u64.compose %v3900, %v3899
        %v3902 = vextract.low.u32 %v3901
        %v3903 = vextract.high.u32 %v3901
        %v3904 = vmul.u32.u64.compose %v3900, %v3895
        %v3905 = vextract.low.u32 %v3904
        %v3906 = vextract.high.u32 %v3904
        %v3907 = vmul.u32 %v3900, %v3891
        %v3908 = vadd.s32 %v3903, %v3905
        %vm3909 = vc.u32 %v3903, %v3905
        %v3910 = vadd.s32 %v3906, 1
        %v3911 = vsel %vm3909, %v3910, %v3906
        %v3912 = vadd.s32 %v3907, %v3911
        %v3913 = vadd.s32 %v3912, 536870912
        %v3914 = vshrl.u32 %v3913, 30
        %v3915 = vshll.u32 %v3914, 30
        %v3916 = vsub.s32 %v3912, %v3915
        %vm3917 = vcmp.lt.s32.totalorder %v3916, 0
        %v3918 = vsub.s32 0, %v3916
        %v3919 = vsel %vm3917, %v3918, %v3916
        %v3920 = vclz %v3919
        %v3921 = vsub.s32 %v3920, 2
        %vm3922 = vcmp.gt.s32.totalorder 0, %v3921
        %v3923 = vsel %vm3922, 0, %v3921
        %v3924 = vsub.s32 32, %v3923
        %v3925 = vshll.u32 %v3916, %v3923
        %v3926 = vshrl.u32 %v3908, %v3924
        %v3927 = vor.u32 %v3925, %v3926
        %v3928 = vsub.s32 4294967266, %v3923
        %v3929 = vadd.s32 %v3928, 127
        %v3930 = vshll.u32 %v3929, 23
        %v3931 = vor.u32 4788187, %v3930
        %v3932 = vand.u32 2147483647, %v3931
        %v3934 = vcvt.s32.f32 %v3927
        %v3935 = vmul.f32 %v3934, %v3932
        %v3936 = vxor.u32 %v3935, 2147483648
        %v3937 = vsel %vm3854, %v3936, %v3935
        %v3938 = vsub.s32 4, %v3914
        %v3939 = vsel %vm3854, %v3938, %v3914
        %v3940 = vsel %vm3853, %v3851, %v3937
        %v3941 = vsel %vm3853, 0, %v3939
        %v3942 = vcosq.f32.pop %v3940
        %v3943 = vsinq.f32.pop %v3940
        %vm3944 = vweird.f32 %v3851
        %v3945 = vadd.s32 %v3941, 3
        %v3946 = vand.u32 %v3945, 3
        %vm3947 = vcmp.lt.s32.totalorder %v3946, 2
        %vm3948 = vcmp.eq.s32.totalorder %v3946, 0
        %v3949 = vxor.u32 %v3943, 2147483648
        %v3950 = vsel %vm3948, %v3942, %v3949
        %vm3951 = vcmp.eq.s32.totalorder %v3946, 2
        %v3952 = vxor.u32 %v3942, 2147483648
        %v3953 = vsel %vm3951, %v3952, %v3943
        %v3954 = vsel %vm3947, %v3950, %v3953
        %v3955 = vsel %vm3944, nan, %v3954
        %s3956 = scalar_lea.vmem %s313, 200 [#allocation4]
        %3957 = vst.msk [vmem:[%s3956] sm:$0xff] %vm1924, %v3955
        %v3958 = vmul.f32 %v1818, 0.0031622776
        %v3959 = vmul.f32 %v1819, 0.0031622776
        %v3960 = vand.u32 2147483647, %v3958
        %vm3961 = vcmp.le.f32.partialorder %v3960, 0.7853982
        %vm3962 = vcmp.lt.s32.totalorder %v3958, 0
        %v3963 = vand.u32 %v3958, 2139095040
        %v3964 = vshrl.u32 %v3963, 23
        %v3965 = vsub.s32 %v3964, 127
        %v3966 = vand.u32 2147483647, %v3958
        %v3967 = vand.u32 %v3966, 8388607
        %v3968 = vor.u32 %v3967, 8388608
        %v3969 = vsub.s32 0, %v3968
        %v3970 = vadd.s32 %v3965, 1
        %vm3971 = vcmp.gt.s32.totalorder %v3970, 0
        %v3972 = vsel %vm3971, %v3970, 0
        %v3973 = vshrl.u32 %v3972, 5
        %v3974 = vand.u32 %v3972, 31
        %v3975 = vsub.s32 32, %v3974
        %v3976 = vshrl.u32 683565275, %v3975
        %v3977 = vshll.u32 683565275, %v3974
        %v3978 = vshrl.u32 2475754826, %v3975
        %v3979 = vor.u32 %v3977, %v3978
        %v3980 = vshll.u32 2475754826, %v3974
        %v3981 = vshrl.u32 2131351028, %v3975
        %v3982 = vor.u32 %v3980, %v3981
        %v3983 = vshll.u32 2131351028, %v3974
        %v3984 = vshrl.u32 2102212464, %v3975
        %v3985 = vor.u32 %v3983, %v3984
        %v3986 = vshll.u32 2102212464, %v3974
        %v3987 = vshrl.u32 920167782, %v3975
        %v3988 = vor.u32 %v3986, %v3987
        %v3989 = vshll.u32 920167782, %v3974
        %v3990 = vshrl.u32 1326507024, %v3975
        %v3991 = vor.u32 %v3989, %v3990
        %vm3992 = vcmp.lt.s32.totalorder %v3973, 1
        %vm3993 = vcmp.lt.s32.totalorder %v3973, 2
        %vm3994 = vcmp.lt.s32.totalorder %v3973, 3
        %vm3995 = vcmp.lt.s32.totalorder %v3973, 4
        %v3996 = vsel %vm3992, %v3976, %v3979
        %v3997 = vsel %vm3995, %v3985, 2102212464
        %v3998 = vsel %vm3994, %v3982, %v3997
        %v3999 = vsel %vm3993, %v3996, %v3998
        %v4000 = vsel %vm3992, %v3979, %v3982
        %v4001 = vsel %vm3995, %v3988, 920167782
        %v4002 = vsel %vm3994, %v3985, %v4001
        %v4003 = vsel %vm3993, %v4000, %v4002
        %v4004 = vsel %vm3992, %v3982, %v3985
        %v4005 = vsel %vm3995, %v3991, 1326507024
        %v4006 = vsel %vm3994, %v3988, %v4005
        %v4007 = vsel %vm3993, %v4004, %v4006
        %v4008 = vshll.u32 %v3968, 8
        %v4009 = vmul.u32.u64.compose %v4008, %v4007
        %v4010 = vextract.low.u32 %v4009
        %v4011 = vextract.high.u32 %v4009
        %v4012 = vmul.u32.u64.compose %v4008, %v4003
        %v4013 = vextract.low.u32 %v4012
        %v4014 = vextract.high.u32 %v4012
        %v4015 = vmul.u32 %v4008, %v3999
        %v4016 = vadd.s32 %v4011, %v4013
        %vm4017 = vc.u32 %v4011, %v4013
        %v4018 = vadd.s32 %v4014, 1
        %v4019 = vsel %vm4017, %v4018, %v4014
        %v4020 = vadd.s32 %v4015, %v4019
        %v4021 = vadd.s32 %v4020, 536870912
        %v4022 = vshrl.u32 %v4021, 30
        %v4023 = vshll.u32 %v4022, 30
        %v4024 = vsub.s32 %v4020, %v4023
        %vm4025 = vcmp.lt.s32.totalorder %v4024, 0
        %v4026 = vsub.s32 0, %v4024
        %v4027 = vsel %vm4025, %v4026, %v4024
        %v4028 = vclz %v4027
        %v4029 = vsub.s32 %v4028, 2
        %vm4030 = vcmp.gt.s32.totalorder 0, %v4029
        %v4031 = vsel %vm4030, 0, %v4029
        %v4032 = vsub.s32 32, %v4031
        %v4033 = vshll.u32 %v4024, %v4031
        %v4034 = vshrl.u32 %v4016, %v4032
        %v4035 = vor.u32 %v4033, %v4034
        %v4036 = vsub.s32 4294967266, %v4031
        %v4037 = vadd.s32 %v4036, 127
        %v4038 = vshll.u32 %v4037, 23
        %v4039 = vor.u32 4788187, %v4038
        %v4040 = vand.u32 2147483647, %v4039
        %v4042 = vcvt.s32.f32 %v4035
        %v4043 = vmul.f32 %v4042, %v4040
        %v4044 = vxor.u32 %v4043, 2147483648
        %v4045 = vsel %vm3962, %v4044, %v4043
        %v4046 = vsub.s32 4, %v4022
        %v4047 = vsel %vm3962, %v4046, %v4022
        %v4048 = vsel %vm3961, %v3958, %v4045
        %v4049 = vsel %vm3961, 0, %v4047
        %v4050 = vcosq.f32.pop %v4048
        %v4051 = vsinq.f32.pop %v4048
        %vm4052 = vweird.f32 %v3958
        %v4053 = vadd.s32 %v4049, 3
        %v4054 = vand.u32 %v4053, 3
        %vm4055 = vcmp.lt.s32.totalorder %v4054, 2
        %vm4056 = vcmp.eq.s32.totalorder %v4054, 0
        %v4057 = vxor.u32 %v4051, 2147483648
        %v4058 = vsel %vm4056, %v4050, %v4057
        %vm4059 = vcmp.eq.s32.totalorder %v4054, 2
        %v4060 = vxor.u32 %v4050, 2147483648
        %v4061 = vsel %vm4059, %v4060, %v4051
        %v4062 = vsel %vm4055, %v4058, %v4061
        %v4063 = vsel %vm4052, nan, %v4062
        %s4064 = scalar_lea.vmem %s313, 80 [#allocation4]
        %4065 = vst.msk [vmem:[%s4064] sm:$0xff] %vm1924, %v4063
        %v4066 = vand.u32 2147483647, %v3959
        %vm4067 = vcmp.le.f32.partialorder %v4066, 0.7853982
        %vm4068 = vcmp.lt.s32.totalorder %v3959, 0
        %v4069 = vand.u32 %v3959, 2139095040
        %v4070 = vshrl.u32 %v4069, 23
        %v4071 = vsub.s32 %v4070, 127
        %v4072 = vand.u32 2147483647, %v3959
        %v4073 = vand.u32 %v4072, 8388607
        %v4074 = vor.u32 %v4073, 8388608
        %v4075 = vsub.s32 0, %v4074
        %v4076 = vadd.s32 %v4071, 1
        %vm4077 = vcmp.gt.s32.totalorder %v4076, 0
        %v4078 = vsel %vm4077, %v4076, 0
        %v4079 = vshrl.u32 %v4078, 5
        %v4080 = vand.u32 %v4078, 31
        %v4081 = vsub.s32 32, %v4080
        %v4082 = vshrl.u32 683565275, %v4081
        %v4083 = vshll.u32 683565275, %v4080
        %v4084 = vshrl.u32 2475754826, %v4081
        %v4085 = vor.u32 %v4083, %v4084
        %v4086 = vshll.u32 2475754826, %v4080
        %v4087 = vshrl.u32 2131351028, %v4081
        %v4088 = vor.u32 %v4086, %v4087
        %v4089 = vshll.u32 2131351028, %v4080
        %v4090 = vshrl.u32 2102212464, %v4081
        %v4091 = vor.u32 %v4089, %v4090
        %v4092 = vshll.u32 2102212464, %v4080
        %v4093 = vshrl.u32 920167782, %v4081
        %v4094 = vor.u32 %v4092, %v4093
        %v4095 = vshll.u32 920167782, %v4080
        %v4096 = vshrl.u32 1326507024, %v4081
        %v4097 = vor.u32 %v4095, %v4096
        %vm4098 = vcmp.lt.s32.totalorder %v4079, 1
        %vm4099 = vcmp.lt.s32.totalorder %v4079, 2
        %vm4100 = vcmp.lt.s32.totalorder %v4079, 3
        %vm4101 = vcmp.lt.s32.totalorder %v4079, 4
        %v4102 = vsel %vm4098, %v4082, %v4085
        %v4103 = vsel %vm4101, %v4091, 2102212464
        %v4104 = vsel %vm4100, %v4088, %v4103
        %v4105 = vsel %vm4099, %v4102, %v4104
        %v4106 = vsel %vm4098, %v4085, %v4088
        %v4107 = vsel %vm4101, %v4094, 920167782
        %v4108 = vsel %vm4100, %v4091, %v4107
        %v4109 = vsel %vm4099, %v4106, %v4108
        %v4110 = vsel %vm4098, %v4088, %v4091
        %v4111 = vsel %vm4101, %v4097, 1326507024
        %v4112 = vsel %vm4100, %v4094, %v4111
        %v4113 = vsel %vm4099, %v4110, %v4112
        %v4114 = vshll.u32 %v4074, 8
        %v4115 = vmul.u32.u64.compose %v4114, %v4113
        %v4116 = vextract.low.u32 %v4115
        %v4117 = vextract.high.u32 %v4115
        %v4118 = vmul.u32.u64.compose %v4114, %v4109
        %v4119 = vextract.low.u32 %v4118
        %v4120 = vextract.high.u32 %v4118
        %v4121 = vmul.u32 %v4114, %v4105
        %v4122 = vadd.s32 %v4117, %v4119
        %vm4123 = vc.u32 %v4117, %v4119
        %v4124 = vadd.s32 %v4120, 1
        %v4125 = vsel %vm4123, %v4124, %v4120
        %v4126 = vadd.s32 %v4121, %v4125
        %v4127 = vadd.s32 %v4126, 536870912
        %v4128 = vshrl.u32 %v4127, 30
        %v4129 = vshll.u32 %v4128, 30
        %v4130 = vsub.s32 %v4126, %v4129
        %vm4131 = vcmp.lt.s32.totalorder %v4130, 0
        %v4132 = vsub.s32 0, %v4130
        %v4133 = vsel %vm4131, %v4132, %v4130
        %v4134 = vclz %v4133
        %v4135 = vsub.s32 %v4134, 2
        %vm4136 = vcmp.gt.s32.totalorder 0, %v4135
        %v4137 = vsel %vm4136, 0, %v4135
        %v4138 = vsub.s32 32, %v4137
        %v4139 = vshll.u32 %v4130, %v4137
        %v4140 = vshrl.u32 %v4122, %v4138
        %v4141 = vor.u32 %v4139, %v4140
        %v4142 = vsub.s32 4294967266, %v4137
        %v4143 = vadd.s32 %v4142, 127
        %v4144 = vshll.u32 %v4143, 23
        %v4145 = vor.u32 4788187, %v4144
        %v4146 = vand.u32 2147483647, %v4145
        %v4148 = vcvt.s32.f32 %v4141
        %v4149 = vmul.f32 %v4148, %v4146
        %v4150 = vxor.u32 %v4149, 2147483648
        %v4151 = vsel %vm4068, %v4150, %v4149
        %v4152 = vsub.s32 4, %v4128
        %v4153 = vsel %vm4068, %v4152, %v4128
        %v4154 = vsel %vm4067, %v3959, %v4151
        %v4155 = vsel %vm4067, 0, %v4153
        %v4156 = vcosq.f32.pop %v4154
        %v4157 = vsinq.f32.pop %v4154
        %vm4158 = vweird.f32 %v3959
        %v4159 = vadd.s32 %v4155, 3
        %v4160 = vand.u32 %v4159, 3
        %vm4161 = vcmp.lt.s32.totalorder %v4160, 2
        %vm4162 = vcmp.eq.s32.totalorder %v4160, 0
        %v4163 = vxor.u32 %v4157, 2147483648
        %v4164 = vsel %vm4162, %v4156, %v4163
        %vm4165 = vcmp.eq.s32.totalorder %v4160, 2
        %v4166 = vxor.u32 %v4156, 2147483648
        %v4167 = vsel %vm4165, %v4166, %v4157
        %v4168 = vsel %vm4161, %v4164, %v4167
        %v4169 = vsel %vm4158, nan, %v4168
        %s4170 = scalar_lea.vmem %s313, 208 [#allocation4]
        %4171 = vst.msk [vmem:[%s4170] sm:$0xff] %vm1924, %v4169
        %v4172 = vadd.f32 %v3958, 1.5707964
        %v4173 = vand.u32 2147483647, %v4172
        %vm4174 = vcmp.le.f32.partialorder %v4173, 0.7853982
        %vm4175 = vcmp.lt.s32.totalorder %v4172, 0
        %v4176 = vand.u32 %v4172, 2139095040
        %v4177 = vshrl.u32 %v4176, 23
        %v4178 = vsub.s32 %v4177, 127
        %v4179 = vand.u32 2147483647, %v4172
        %v4180 = vand.u32 %v4179, 8388607
        %v4181 = vor.u32 %v4180, 8388608
        %v4182 = vsub.s32 0, %v4181
        %v4183 = vadd.s32 %v4178, 1
        %vm4184 = vcmp.gt.s32.totalorder %v4183, 0
        %v4185 = vsel %vm4184, %v4183, 0
        %v4186 = vshrl.u32 %v4185, 5
        %v4187 = vand.u32 %v4185, 31
        %v4188 = vsub.s32 32, %v4187
        %v4189 = vshrl.u32 683565275, %v4188
        %v4190 = vshll.u32 683565275, %v4187
        %v4191 = vshrl.u32 2475754826, %v4188
        %v4192 = vor.u32 %v4190, %v4191
        %v4193 = vshll.u32 2475754826, %v4187
        %v4194 = vshrl.u32 2131351028, %v4188
        %v4195 = vor.u32 %v4193, %v4194
        %v4196 = vshll.u32 2131351028, %v4187
        %v4197 = vshrl.u32 2102212464, %v4188
        %v4198 = vor.u32 %v4196, %v4197
        %v4199 = vshll.u32 2102212464, %v4187
        %v4200 = vshrl.u32 920167782, %v4188
        %v4201 = vor.u32 %v4199, %v4200
        %v4202 = vshll.u32 920167782, %v4187
        %v4203 = vshrl.u32 1326507024, %v4188
        %v4204 = vor.u32 %v4202, %v4203
        %vm4205 = vcmp.lt.s32.totalorder %v4186, 1
        %vm4206 = vcmp.lt.s32.totalorder %v4186, 2
        %vm4207 = vcmp.lt.s32.totalorder %v4186, 3
        %vm4208 = vcmp.lt.s32.totalorder %v4186, 4
        %v4209 = vsel %vm4205, %v4189, %v4192
        %v4210 = vsel %vm4208, %v4198, 2102212464
        %v4211 = vsel %vm4207, %v4195, %v4210
        %v4212 = vsel %vm4206, %v4209, %v4211
        %v4213 = vsel %vm4205, %v4192, %v4195
        %v4214 = vsel %vm4208, %v4201, 920167782
        %v4215 = vsel %vm4207, %v4198, %v4214
        %v4216 = vsel %vm4206, %v4213, %v4215
        %v4217 = vsel %vm4205, %v4195, %v4198
        %v4218 = vsel %vm4208, %v4204, 1326507024
        %v4219 = vsel %vm4207, %v4201, %v4218
        %v4220 = vsel %vm4206, %v4217, %v4219
        %v4221 = vshll.u32 %v4181, 8
        %v4222 = vmul.u32.u64.compose %v4221, %v4220
        %v4223 = vextract.low.u32 %v4222
        %v4224 = vextract.high.u32 %v4222
        %v4225 = vmul.u32.u64.compose %v4221, %v4216
        %v4226 = vextract.low.u32 %v4225
        %v4227 = vextract.high.u32 %v4225
        %v4228 = vmul.u32 %v4221, %v4212
        %v4229 = vadd.s32 %v4224, %v4226
        %vm4230 = vc.u32 %v4224, %v4226
        %v4231 = vadd.s32 %v4227, 1
        %v4232 = vsel %vm4230, %v4231, %v4227
        %v4233 = vadd.s32 %v4228, %v4232
        %v4234 = vadd.s32 %v4233, 536870912
        %v4235 = vshrl.u32 %v4234, 30
        %v4236 = vshll.u32 %v4235, 30
        %v4237 = vsub.s32 %v4233, %v4236
        %vm4238 = vcmp.lt.s32.totalorder %v4237, 0
        %v4239 = vsub.s32 0, %v4237
        %v4240 = vsel %vm4238, %v4239, %v4237
        %v4241 = vclz %v4240
        %v4242 = vsub.s32 %v4241, 2
        %vm4243 = vcmp.gt.s32.totalorder 0, %v4242
        %v4244 = vsel %vm4243, 0, %v4242
        %v4245 = vsub.s32 32, %v4244
        %v4246 = vshll.u32 %v4237, %v4244
        %v4247 = vshrl.u32 %v4229, %v4245
        %v4248 = vor.u32 %v4246, %v4247
        %v4249 = vsub.s32 4294967266, %v4244
        %v4250 = vadd.s32 %v4249, 127
        %v4251 = vshll.u32 %v4250, 23
        %v4252 = vor.u32 4788187, %v4251
        %v4253 = vand.u32 2147483647, %v4252
        %v4255 = vcvt.s32.f32 %v4248
        %v4256 = vmul.f32 %v4255, %v4253
        %v4257 = vxor.u32 %v4256, 2147483648
        %v4258 = vsel %vm4175, %v4257, %v4256
        %v4259 = vsub.s32 4, %v4235
        %v4260 = vsel %vm4175, %v4259, %v4235
        %v4261 = vsel %vm4174, %v4172, %v4258
        %v4262 = vsel %vm4174, 0, %v4260
        %v4263 = vcosq.f32.pop %v4261
        %v4264 = vsinq.f32.pop %v4261
        %vm4265 = vweird.f32 %v4172
        %v4266 = vadd.s32 %v4262, 3
        %v4267 = vand.u32 %v4266, 3
        %vm4268 = vcmp.lt.s32.totalorder %v4267, 2
        %vm4269 = vcmp.eq.s32.totalorder %v4267, 0
        %v4270 = vxor.u32 %v4264, 2147483648
        %v4271 = vsel %vm4269, %v4263, %v4270
        %vm4272 = vcmp.eq.s32.totalorder %v4267, 2
        %v4273 = vxor.u32 %v4263, 2147483648
        %v4274 = vsel %vm4272, %v4273, %v4264
        %v4275 = vsel %vm4268, %v4271, %v4274
        %v4276 = vsel %vm4265, nan, %v4275
        %s4277 = scalar_lea.vmem %s313, 88 [#allocation4]
        %4278 = vst.msk [vmem:[%s4277] sm:$0xff] %vm1924, %v4276
        %v4279 = vadd.f32 %v3959, 1.5707964
        %v4280 = vand.u32 2147483647, %v4279
        %vm4281 = vcmp.le.f32.partialorder %v4280, 0.7853982
        %vm4282 = vcmp.lt.s32.totalorder %v4279, 0
        %v4283 = vand.u32 %v4279, 2139095040
        %v4284 = vshrl.u32 %v4283, 23
        %v4285 = vsub.s32 %v4284, 127
        %v4286 = vand.u32 2147483647, %v4279
        %v4287 = vand.u32 %v4286, 8388607
        %v4288 = vor.u32 %v4287, 8388608
        %v4289 = vsub.s32 0, %v4288
        %v4290 = vadd.s32 %v4285, 1
        %vm4291 = vcmp.gt.s32.totalorder %v4290, 0
        %v4292 = vsel %vm4291, %v4290, 0
        %v4293 = vshrl.u32 %v4292, 5
        %v4294 = vand.u32 %v4292, 31
        %v4295 = vsub.s32 32, %v4294
        %v4296 = vshrl.u32 683565275, %v4295
        %v4297 = vshll.u32 683565275, %v4294
        %v4298 = vshrl.u32 2475754826, %v4295
        %v4299 = vor.u32 %v4297, %v4298
        %v4300 = vshll.u32 2475754826, %v4294
        %v4301 = vshrl.u32 2131351028, %v4295
        %v4302 = vor.u32 %v4300, %v4301
        %v4303 = vshll.u32 2131351028, %v4294
        %v4304 = vshrl.u32 2102212464, %v4295
        %v4305 = vor.u32 %v4303, %v4304
        %v4306 = vshll.u32 2102212464, %v4294
        %v4307 = vshrl.u32 920167782, %v4295
        %v4308 = vor.u32 %v4306, %v4307
        %v4309 = vshll.u32 920167782, %v4294
        %v4310 = vshrl.u32 1326507024, %v4295
        %v4311 = vor.u32 %v4309, %v4310
        %vm4312 = vcmp.lt.s32.totalorder %v4293, 1
        %vm4313 = vcmp.lt.s32.totalorder %v4293, 2
        %vm4314 = vcmp.lt.s32.totalorder %v4293, 3
        %vm4315 = vcmp.lt.s32.totalorder %v4293, 4
        %v4316 = vsel %vm4312, %v4296, %v4299
        %v4317 = vsel %vm4315, %v4305, 2102212464
        %v4318 = vsel %vm4314, %v4302, %v4317
        %v4319 = vsel %vm4313, %v4316, %v4318
        %v4320 = vsel %vm4312, %v4299, %v4302
        %v4321 = vsel %vm4315, %v4308, 920167782
        %v4322 = vsel %vm4314, %v4305, %v4321
        %v4323 = vsel %vm4313, %v4320, %v4322
        %v4324 = vsel %vm4312, %v4302, %v4305
        %v4325 = vsel %vm4315, %v4311, 1326507024
        %v4326 = vsel %vm4314, %v4308, %v4325
        %v4327 = vsel %vm4313, %v4324, %v4326
        %v4328 = vshll.u32 %v4288, 8
        %v4329 = vmul.u32.u64.compose %v4328, %v4327
        %v4330 = vextract.low.u32 %v4329
        %v4331 = vextract.high.u32 %v4329
        %v4332 = vmul.u32.u64.compose %v4328, %v4323
        %v4333 = vextract.low.u32 %v4332
        %v4334 = vextract.high.u32 %v4332
        %v4335 = vmul.u32 %v4328, %v4319
        %v4336 = vadd.s32 %v4331, %v4333
        %vm4337 = vc.u32 %v4331, %v4333
        %v4338 = vadd.s32 %v4334, 1
        %v4339 = vsel %vm4337, %v4338, %v4334
        %v4340 = vadd.s32 %v4335, %v4339
        %v4341 = vadd.s32 %v4340, 536870912
        %v4342 = vshrl.u32 %v4341, 30
        %v4343 = vshll.u32 %v4342, 30
        %v4344 = vsub.s32 %v4340, %v4343
        %vm4345 = vcmp.lt.s32.totalorder %v4344, 0
        %v4346 = vsub.s32 0, %v4344
        %v4347 = vsel %vm4345, %v4346, %v4344
        %v4348 = vclz %v4347
        %v4349 = vsub.s32 %v4348, 2
        %vm4350 = vcmp.gt.s32.totalorder 0, %v4349
        %v4351 = vsel %vm4350, 0, %v4349
        %v4352 = vsub.s32 32, %v4351
        %v4353 = vshll.u32 %v4344, %v4351
        %v4354 = vshrl.u32 %v4336, %v4352
        %v4355 = vor.u32 %v4353, %v4354
        %v4356 = vsub.s32 4294967266, %v4351
        %v4357 = vadd.s32 %v4356, 127
        %v4358 = vshll.u32 %v4357, 23
        %v4359 = vor.u32 4788187, %v4358
        %v4360 = vand.u32 2147483647, %v4359
        %v4362 = vcvt.s32.f32 %v4355
        %v4363 = vmul.f32 %v4362, %v4360
        %v4364 = vxor.u32 %v4363, 2147483648
        %v4365 = vsel %vm4282, %v4364, %v4363
        %v4366 = vsub.s32 4, %v4342
        %v4367 = vsel %vm4282, %v4366, %v4342
        %v4368 = vsel %vm4281, %v4279, %v4365
        %v4369 = vsel %vm4281, 0, %v4367
        %v4370 = vcosq.f32.pop %v4368
        %v4371 = vsinq.f32.pop %v4368
        %vm4372 = vweird.f32 %v4279
        %v4373 = vadd.s32 %v4369, 3
        %v4374 = vand.u32 %v4373, 3
        %vm4375 = vcmp.lt.s32.totalorder %v4374, 2
        %vm4376 = vcmp.eq.s32.totalorder %v4374, 0
        %v4377 = vxor.u32 %v4371, 2147483648
        %v4378 = vsel %vm4376, %v4370, %v4377
        %vm4379 = vcmp.eq.s32.totalorder %v4374, 2
        %v4380 = vxor.u32 %v4370, 2147483648
        %v4381 = vsel %vm4379, %v4380, %v4371
        %v4382 = vsel %vm4375, %v4378, %v4381
        %v4383 = vsel %vm4372, nan, %v4382
        %s4384 = scalar_lea.vmem %s313, 216 [#allocation4]
        %4385 = vst.msk [vmem:[%s4384] sm:$0xff] %vm1924, %v4383
        %v4386 = vmul.f32 %v1818, 0.001
        %v4387 = vmul.f32 %v1819, 0.001
        %v4388 = vand.u32 2147483647, %v4386
        %vm4389 = vcmp.le.f32.partialorder %v4388, 0.7853982
        %vm4390 = vcmp.lt.s32.totalorder %v4386, 0
        %v4391 = vand.u32 %v4386, 2139095040
        %v4392 = vshrl.u32 %v4391, 23
        %v4393 = vsub.s32 %v4392, 127
        %v4394 = vand.u32 2147483647, %v4386
        %v4395 = vand.u32 %v4394, 8388607
        %v4396 = vor.u32 %v4395, 8388608
        %v4397 = vsub.s32 0, %v4396
        %v4398 = vadd.s32 %v4393, 1
        %vm4399 = vcmp.gt.s32.totalorder %v4398, 0
        %v4400 = vsel %vm4399, %v4398, 0
        %v4401 = vshrl.u32 %v4400, 5
        %v4402 = vand.u32 %v4400, 31
        %v4403 = vsub.s32 32, %v4402
        %v4404 = vshrl.u32 683565275, %v4403
        %v4405 = vshll.u32 683565275, %v4402
        %v4406 = vshrl.u32 2475754826, %v4403
        %v4407 = vor.u32 %v4405, %v4406
        %v4408 = vshll.u32 2475754826, %v4402
        %v4409 = vshrl.u32 2131351028, %v4403
        %v4410 = vor.u32 %v4408, %v4409
        %v4411 = vshll.u32 2131351028, %v4402
        %v4412 = vshrl.u32 2102212464, %v4403
        %v4413 = vor.u32 %v4411, %v4412
        %v4414 = vshll.u32 2102212464, %v4402
        %v4415 = vshrl.u32 920167782, %v4403
        %v4416 = vor.u32 %v4414, %v4415
        %v4417 = vshll.u32 920167782, %v4402
        %v4418 = vshrl.u32 1326507024, %v4403
        %v4419 = vor.u32 %v4417, %v4418
        %vm4420 = vcmp.lt.s32.totalorder %v4401, 1
        %vm4421 = vcmp.lt.s32.totalorder %v4401, 2
        %vm4422 = vcmp.lt.s32.totalorder %v4401, 3
        %vm4423 = vcmp.lt.s32.totalorder %v4401, 4
        %v4424 = vsel %vm4420, %v4404, %v4407
        %v4425 = vsel %vm4423, %v4413, 2102212464
        %v4426 = vsel %vm4422, %v4410, %v4425
        %v4427 = vsel %vm4421, %v4424, %v4426
        %v4428 = vsel %vm4420, %v4407, %v4410
        %v4429 = vsel %vm4423, %v4416, 920167782
        %v4430 = vsel %vm4422, %v4413, %v4429
        %v4431 = vsel %vm4421, %v4428, %v4430
        %v4432 = vsel %vm4420, %v4410, %v4413
        %v4433 = vsel %vm4423, %v4419, 1326507024
        %v4434 = vsel %vm4422, %v4416, %v4433
        %v4435 = vsel %vm4421, %v4432, %v4434
        %v4436 = vshll.u32 %v4396, 8
        %v4437 = vmul.u32.u64.compose %v4436, %v4435
        %v4438 = vextract.low.u32 %v4437
        %v4439 = vextract.high.u32 %v4437
        %v4440 = vmul.u32.u64.compose %v4436, %v4431
        %v4441 = vextract.low.u32 %v4440
        %v4442 = vextract.high.u32 %v4440
        %v4443 = vmul.u32 %v4436, %v4427
        %v4444 = vadd.s32 %v4439, %v4441
        %vm4445 = vc.u32 %v4439, %v4441
        %v4446 = vadd.s32 %v4442, 1
        %v4447 = vsel %vm4445, %v4446, %v4442
        %v4448 = vadd.s32 %v4443, %v4447
        %v4449 = vadd.s32 %v4448, 536870912
        %v4450 = vshrl.u32 %v4449, 30
        %v4451 = vshll.u32 %v4450, 30
        %v4452 = vsub.s32 %v4448, %v4451
        %vm4453 = vcmp.lt.s32.totalorder %v4452, 0
        %v4454 = vsub.s32 0, %v4452
        %v4455 = vsel %vm4453, %v4454, %v4452
        %v4456 = vclz %v4455
        %v4457 = vsub.s32 %v4456, 2
        %vm4458 = vcmp.gt.s32.totalorder 0, %v4457
        %v4459 = vsel %vm4458, 0, %v4457
        %v4460 = vsub.s32 32, %v4459
        %v4461 = vshll.u32 %v4452, %v4459
        %v4462 = vshrl.u32 %v4444, %v4460
        %v4463 = vor.u32 %v4461, %v4462
        %v4464 = vsub.s32 4294967266, %v4459
        %v4465 = vadd.s32 %v4464, 127
        %v4466 = vshll.u32 %v4465, 23
        %v4467 = vor.u32 4788187, %v4466
        %v4468 = vand.u32 2147483647, %v4467
        %v4470 = vcvt.s32.f32 %v4463
        %v4471 = vmul.f32 %v4470, %v4468
        %v4472 = vxor.u32 %v4471, 2147483648
        %v4473 = vsel %vm4390, %v4472, %v4471
        %v4474 = vsub.s32 4, %v4450
        %v4475 = vsel %vm4390, %v4474, %v4450
        %v4476 = vsel %vm4389, %v4386, %v4473
        %v4477 = vsel %vm4389, 0, %v4475
        %v4478 = vcosq.f32.pop %v4476
        %v4479 = vsinq.f32.pop %v4476
        %vm4480 = vweird.f32 %v4386
        %v4481 = vadd.s32 %v4477, 3
        %v4482 = vand.u32 %v4481, 3
        %vm4483 = vcmp.lt.s32.totalorder %v4482, 2
        %vm4484 = vcmp.eq.s32.totalorder %v4482, 0
        %v4485 = vxor.u32 %v4479, 2147483648
        %v4486 = vsel %vm4484, %v4478, %v4485
        %vm4487 = vcmp.eq.s32.totalorder %v4482, 2
        %v4488 = vxor.u32 %v4478, 2147483648
        %v4489 = vsel %vm4487, %v4488, %v4479
        %v4490 = vsel %vm4483, %v4486, %v4489
        %v4491 = vsel %vm4480, nan, %v4490
        %s4492 = scalar_lea.vmem %s313, 96 [#allocation4]
        %4493 = vst.msk [vmem:[%s4492] sm:$0xff] %vm1924, %v4491
        %v4494 = vand.u32 2147483647, %v4387
        %vm4495 = vcmp.le.f32.partialorder %v4494, 0.7853982
        %vm4496 = vcmp.lt.s32.totalorder %v4387, 0
        %v4497 = vand.u32 %v4387, 2139095040
        %v4498 = vshrl.u32 %v4497, 23
        %v4499 = vsub.s32 %v4498, 127
        %v4500 = vand.u32 2147483647, %v4387
        %v4501 = vand.u32 %v4500, 8388607
        %v4502 = vor.u32 %v4501, 8388608
        %v4503 = vsub.s32 0, %v4502
        %v4504 = vadd.s32 %v4499, 1
        %vm4505 = vcmp.gt.s32.totalorder %v4504, 0
        %v4506 = vsel %vm4505, %v4504, 0
        %v4507 = vshrl.u32 %v4506, 5
        %v4508 = vand.u32 %v4506, 31
        %v4509 = vsub.s32 32, %v4508
        %v4510 = vshrl.u32 683565275, %v4509
        %v4511 = vshll.u32 683565275, %v4508
        %v4512 = vshrl.u32 2475754826, %v4509
        %v4513 = vor.u32 %v4511, %v4512
        %v4514 = vshll.u32 2475754826, %v4508
        %v4515 = vshrl.u32 2131351028, %v4509
        %v4516 = vor.u32 %v4514, %v4515
        %v4517 = vshll.u32 2131351028, %v4508
        %v4518 = vshrl.u32 2102212464, %v4509
        %v4519 = vor.u32 %v4517, %v4518
        %v4520 = vshll.u32 2102212464, %v4508
        %v4521 = vshrl.u32 920167782, %v4509
        %v4522 = vor.u32 %v4520, %v4521
        %v4523 = vshll.u32 920167782, %v4508
        %v4524 = vshrl.u32 1326507024, %v4509
        %v4525 = vor.u32 %v4523, %v4524
        %vm4526 = vcmp.lt.s32.totalorder %v4507, 1
        %vm4527 = vcmp.lt.s32.totalorder %v4507, 2
        %vm4528 = vcmp.lt.s32.totalorder %v4507, 3
        %vm4529 = vcmp.lt.s32.totalorder %v4507, 4
        %v4530 = vsel %vm4526, %v4510, %v4513
        %v4531 = vsel %vm4529, %v4519, 2102212464
        %v4532 = vsel %vm4528, %v4516, %v4531
        %v4533 = vsel %vm4527, %v4530, %v4532
        %v4534 = vsel %vm4526, %v4513, %v4516
        %v4535 = vsel %vm4529, %v4522, 920167782
        %v4536 = vsel %vm4528, %v4519, %v4535
        %v4537 = vsel %vm4527, %v4534, %v4536
        %v4538 = vsel %vm4526, %v4516, %v4519
        %v4539 = vsel %vm4529, %v4525, 1326507024
        %v4540 = vsel %vm4528, %v4522, %v4539
        %v4541 = vsel %vm4527, %v4538, %v4540
        %v4542 = vshll.u32 %v4502, 8
        %v4543 = vmul.u32.u64.compose %v4542, %v4541
        %v4544 = vextract.low.u32 %v4543
        %v4545 = vextract.high.u32 %v4543
        %v4546 = vmul.u32.u64.compose %v4542, %v4537
        %v4547 = vextract.low.u32 %v4546
        %v4548 = vextract.high.u32 %v4546
        %v4549 = vmul.u32 %v4542, %v4533
        %v4550 = vadd.s32 %v4545, %v4547
        %vm4551 = vc.u32 %v4545, %v4547
        %v4552 = vadd.s32 %v4548, 1
        %v4553 = vsel %vm4551, %v4552, %v4548
        %v4554 = vadd.s32 %v4549, %v4553
        %v4555 = vadd.s32 %v4554, 536870912
        %v4556 = vshrl.u32 %v4555, 30
        %v4557 = vshll.u32 %v4556, 30
        %v4558 = vsub.s32 %v4554, %v4557
        %vm4559 = vcmp.lt.s32.totalorder %v4558, 0
        %v4560 = vsub.s32 0, %v4558
        %v4561 = vsel %vm4559, %v4560, %v4558
        %v4562 = vclz %v4561
        %v4563 = vsub.s32 %v4562, 2
        %vm4564 = vcmp.gt.s32.totalorder 0, %v4563
        %v4565 = vsel %vm4564, 0, %v4563
        %v4566 = vsub.s32 32, %v4565
        %v4567 = vshll.u32 %v4558, %v4565
        %v4568 = vshrl.u32 %v4550, %v4566
        %v4569 = vor.u32 %v4567, %v4568
        %v4570 = vsub.s32 4294967266, %v4565
        %v4571 = vadd.s32 %v4570, 127
        %v4572 = vshll.u32 %v4571, 23
        %v4573 = vor.u32 4788187, %v4572
        %v4574 = vand.u32 2147483647, %v4573
        %v4576 = vcvt.s32.f32 %v4569
        %v4577 = vmul.f32 %v4576, %v4574
        %v4578 = vxor.u32 %v4577, 2147483648
        %v4579 = vsel %vm4496, %v4578, %v4577
        %v4580 = vsub.s32 4, %v4556
        %v4581 = vsel %vm4496, %v4580, %v4556
        %v4582 = vsel %vm4495, %v4387, %v4579
        %v4583 = vsel %vm4495, 0, %v4581
        %v4584 = vcosq.f32.pop %v4582
        %v4585 = vsinq.f32.pop %v4582
        %vm4586 = vweird.f32 %v4387
        %v4587 = vadd.s32 %v4583, 3
        %v4588 = vand.u32 %v4587, 3
        %vm4589 = vcmp.lt.s32.totalorder %v4588, 2
        %vm4590 = vcmp.eq.s32.totalorder %v4588, 0
        %v4591 = vxor.u32 %v4585, 2147483648
        %v4592 = vsel %vm4590, %v4584, %v4591
        %vm4593 = vcmp.eq.s32.totalorder %v4588, 2
        %v4594 = vxor.u32 %v4584, 2147483648
        %v4595 = vsel %vm4593, %v4594, %v4585
        %v4596 = vsel %vm4589, %v4592, %v4595
        %v4597 = vsel %vm4586, nan, %v4596
        %s4598 = scalar_lea.vmem %s313, 224 [#allocation4]
        %4599 = vst.msk [vmem:[%s4598] sm:$0xff] %vm1924, %v4597
        %v4600 = vadd.f32 %v4386, 1.5707964
        %v4601 = vand.u32 2147483647, %v4600
        %vm4602 = vcmp.le.f32.partialorder %v4601, 0.7853982
        %vm4603 = vcmp.lt.s32.totalorder %v4600, 0
        %v4604 = vand.u32 %v4600, 2139095040
        %v4605 = vshrl.u32 %v4604, 23
        %v4606 = vsub.s32 %v4605, 127
        %v4607 = vand.u32 2147483647, %v4600
        %v4608 = vand.u32 %v4607, 8388607
        %v4609 = vor.u32 %v4608, 8388608
        %v4610 = vsub.s32 0, %v4609
        %v4611 = vadd.s32 %v4606, 1
        %vm4612 = vcmp.gt.s32.totalorder %v4611, 0
        %v4613 = vsel %vm4612, %v4611, 0
        %v4614 = vshrl.u32 %v4613, 5
        %v4615 = vand.u32 %v4613, 31
        %v4616 = vsub.s32 32, %v4615
        %v4617 = vshrl.u32 683565275, %v4616
        %v4618 = vshll.u32 683565275, %v4615
        %v4619 = vshrl.u32 2475754826, %v4616
        %v4620 = vor.u32 %v4618, %v4619
        %v4621 = vshll.u32 2475754826, %v4615
        %v4622 = vshrl.u32 2131351028, %v4616
        %v4623 = vor.u32 %v4621, %v4622
        %v4624 = vshll.u32 2131351028, %v4615
        %v4625 = vshrl.u32 2102212464, %v4616
        %v4626 = vor.u32 %v4624, %v4625
        %v4627 = vshll.u32 2102212464, %v4615
        %v4628 = vshrl.u32 920167782, %v4616
        %v4629 = vor.u32 %v4627, %v4628
        %v4630 = vshll.u32 920167782, %v4615
        %v4631 = vshrl.u32 1326507024, %v4616
        %v4632 = vor.u32 %v4630, %v4631
        %vm4633 = vcmp.lt.s32.totalorder %v4614, 1
        %vm4634 = vcmp.lt.s32.totalorder %v4614, 2
        %vm4635 = vcmp.lt.s32.totalorder %v4614, 3
        %vm4636 = vcmp.lt.s32.totalorder %v4614, 4
        %v4637 = vsel %vm4633, %v4617, %v4620
        %v4638 = vsel %vm4636, %v4626, 2102212464
        %v4639 = vsel %vm4635, %v4623, %v4638
        %v4640 = vsel %vm4634, %v4637, %v4639
        %v4641 = vsel %vm4633, %v4620, %v4623
        %v4642 = vsel %vm4636, %v4629, 920167782
        %v4643 = vsel %vm4635, %v4626, %v4642
        %v4644 = vsel %vm4634, %v4641, %v4643
        %v4645 = vsel %vm4633, %v4623, %v4626
        %v4646 = vsel %vm4636, %v4632, 1326507024
        %v4647 = vsel %vm4635, %v4629, %v4646
        %v4648 = vsel %vm4634, %v4645, %v4647
        %v4649 = vshll.u32 %v4609, 8
        %v4650 = vmul.u32.u64.compose %v4649, %v4648
        %v4651 = vextract.low.u32 %v4650
        %v4652 = vextract.high.u32 %v4650
        %v4653 = vmul.u32.u64.compose %v4649, %v4644
        %v4654 = vextract.low.u32 %v4653
        %v4655 = vextract.high.u32 %v4653
        %v4656 = vmul.u32 %v4649, %v4640
        %v4657 = vadd.s32 %v4652, %v4654
        %vm4658 = vc.u32 %v4652, %v4654
        %v4659 = vadd.s32 %v4655, 1
        %v4660 = vsel %vm4658, %v4659, %v4655
        %v4661 = vadd.s32 %v4656, %v4660
        %v4662 = vadd.s32 %v4661, 536870912
        %v4663 = vshrl.u32 %v4662, 30
        %v4664 = vshll.u32 %v4663, 30
        %v4665 = vsub.s32 %v4661, %v4664
        %vm4666 = vcmp.lt.s32.totalorder %v4665, 0
        %v4667 = vsub.s32 0, %v4665
        %v4668 = vsel %vm4666, %v4667, %v4665
        %v4669 = vclz %v4668
        %v4670 = vsub.s32 %v4669, 2
        %vm4671 = vcmp.gt.s32.totalorder 0, %v4670
        %v4672 = vsel %vm4671, 0, %v4670
        %v4673 = vsub.s32 32, %v4672
        %v4674 = vshll.u32 %v4665, %v4672
        %v4675 = vshrl.u32 %v4657, %v4673
        %v4676 = vor.u32 %v4674, %v4675
        %v4677 = vsub.s32 4294967266, %v4672
        %v4678 = vadd.s32 %v4677, 127
        %v4679 = vshll.u32 %v4678, 23
        %v4680 = vor.u32 4788187, %v4679
        %v4681 = vand.u32 2147483647, %v4680
        %v4683 = vcvt.s32.f32 %v4676
        %v4684 = vmul.f32 %v4683, %v4681
        %v4685 = vxor.u32 %v4684, 2147483648
        %v4686 = vsel %vm4603, %v4685, %v4684
        %v4687 = vsub.s32 4, %v4663
        %v4688 = vsel %vm4603, %v4687, %v4663
        %v4689 = vsel %vm4602, %v4600, %v4686
        %v4690 = vsel %vm4602, 0, %v4688
        %v4691 = vcosq.f32.pop %v4689
        %v4692 = vsinq.f32.pop %v4689
        %vm4693 = vweird.f32 %v4600
        %v4694 = vadd.s32 %v4690, 3
        %v4695 = vand.u32 %v4694, 3
        %vm4696 = vcmp.lt.s32.totalorder %v4695, 2
        %vm4697 = vcmp.eq.s32.totalorder %v4695, 0
        %v4698 = vxor.u32 %v4692, 2147483648
        %v4699 = vsel %vm4697, %v4691, %v4698
        %vm4700 = vcmp.eq.s32.totalorder %v4695, 2
        %v4701 = vxor.u32 %v4691, 2147483648
        %v4702 = vsel %vm4700, %v4701, %v4692
        %v4703 = vsel %vm4696, %v4699, %v4702
        %v4704 = vsel %vm4693, nan, %v4703
        %s4705 = scalar_lea.vmem %s313, 104 [#allocation4]
        %4706 = vst.msk [vmem:[%s4705] sm:$0xff] %vm1924, %v4704
        %v4707 = vadd.f32 %v4387, 1.5707964
        %v4708 = vand.u32 2147483647, %v4707
        %vm4709 = vcmp.le.f32.partialorder %v4708, 0.7853982
        %vm4710 = vcmp.lt.s32.totalorder %v4707, 0
        %v4711 = vand.u32 %v4707, 2139095040
        %v4712 = vshrl.u32 %v4711, 23
        %v4713 = vsub.s32 %v4712, 127
        %v4714 = vand.u32 2147483647, %v4707
        %v4715 = vand.u32 %v4714, 8388607
        %v4716 = vor.u32 %v4715, 8388608
        %v4717 = vsub.s32 0, %v4716
        %v4718 = vadd.s32 %v4713, 1
        %vm4719 = vcmp.gt.s32.totalorder %v4718, 0
        %v4720 = vsel %vm4719, %v4718, 0
        %v4721 = vshrl.u32 %v4720, 5
        %v4722 = vand.u32 %v4720, 31
        %v4723 = vsub.s32 32, %v4722
        %v4724 = vshrl.u32 683565275, %v4723
        %v4725 = vshll.u32 683565275, %v4722
        %v4726 = vshrl.u32 2475754826, %v4723
        %v4727 = vor.u32 %v4725, %v4726
        %v4728 = vshll.u32 2475754826, %v4722
        %v4729 = vshrl.u32 2131351028, %v4723
        %v4730 = vor.u32 %v4728, %v4729
        %v4731 = vshll.u32 2131351028, %v4722
        %v4732 = vshrl.u32 2102212464, %v4723
        %v4733 = vor.u32 %v4731, %v4732
        %v4734 = vshll.u32 2102212464, %v4722
        %v4735 = vshrl.u32 920167782, %v4723
        %v4736 = vor.u32 %v4734, %v4735
        %v4737 = vshll.u32 920167782, %v4722
        %v4738 = vshrl.u32 1326507024, %v4723
        %v4739 = vor.u32 %v4737, %v4738
        %vm4740 = vcmp.lt.s32.totalorder %v4721, 1
        %vm4741 = vcmp.lt.s32.totalorder %v4721, 2
        %vm4742 = vcmp.lt.s32.totalorder %v4721, 3
        %vm4743 = vcmp.lt.s32.totalorder %v4721, 4
        %v4744 = vsel %vm4740, %v4724, %v4727
        %v4745 = vsel %vm4743, %v4733, 2102212464
        %v4746 = vsel %vm4742, %v4730, %v4745
        %v4747 = vsel %vm4741, %v4744, %v4746
        %v4748 = vsel %vm4740, %v4727, %v4730
        %v4749 = vsel %vm4743, %v4736, 920167782
        %v4750 = vsel %vm4742, %v4733, %v4749
        %v4751 = vsel %vm4741, %v4748, %v4750
        %v4752 = vsel %vm4740, %v4730, %v4733
        %v4753 = vsel %vm4743, %v4739, 1326507024
        %v4754 = vsel %vm4742, %v4736, %v4753
        %v4755 = vsel %vm4741, %v4752, %v4754
        %v4756 = vshll.u32 %v4716, 8
        %v4757 = vmul.u32.u64.compose %v4756, %v4755
        %v4758 = vextract.low.u32 %v4757
        %v4759 = vextract.high.u32 %v4757
        %v4760 = vmul.u32.u64.compose %v4756, %v4751
        %v4761 = vextract.low.u32 %v4760
        %v4762 = vextract.high.u32 %v4760
        %v4763 = vmul.u32 %v4756, %v4747
        %v4764 = vadd.s32 %v4759, %v4761
        %vm4765 = vc.u32 %v4759, %v4761
        %v4766 = vadd.s32 %v4762, 1
        %v4767 = vsel %vm4765, %v4766, %v4762
        %v4768 = vadd.s32 %v4763, %v4767
        %v4769 = vadd.s32 %v4768, 536870912
        %v4770 = vshrl.u32 %v4769, 30
        %v4771 = vshll.u32 %v4770, 30
        %v4772 = vsub.s32 %v4768, %v4771
        %vm4773 = vcmp.lt.s32.totalorder %v4772, 0
        %v4774 = vsub.s32 0, %v4772
        %v4775 = vsel %vm4773, %v4774, %v4772
        %v4776 = vclz %v4775
        %v4777 = vsub.s32 %v4776, 2
        %vm4778 = vcmp.gt.s32.totalorder 0, %v4777
        %v4779 = vsel %vm4778, 0, %v4777
        %v4780 = vsub.s32 32, %v4779
        %v4781 = vshll.u32 %v4772, %v4779
        %v4782 = vshrl.u32 %v4764, %v4780
        %v4783 = vor.u32 %v4781, %v4782
        %v4784 = vsub.s32 4294967266, %v4779
        %v4785 = vadd.s32 %v4784, 127
        %v4786 = vshll.u32 %v4785, 23
        %v4787 = vor.u32 4788187, %v4786
        %v4788 = vand.u32 2147483647, %v4787
        %v4790 = vcvt.s32.f32 %v4783
        %v4791 = vmul.f32 %v4790, %v4788
        %v4792 = vxor.u32 %v4791, 2147483648
        %v4793 = vsel %vm4710, %v4792, %v4791
        %v4794 = vsub.s32 4, %v4770
        %v4795 = vsel %vm4710, %v4794, %v4770
        %v4796 = vsel %vm4709, %v4707, %v4793
        %v4797 = vsel %vm4709, 0, %v4795
        %v4798 = vcosq.f32.pop %v4796
        %v4799 = vsinq.f32.pop %v4796
        %vm4800 = vweird.f32 %v4707
        %v4801 = vadd.s32 %v4797, 3
        %v4802 = vand.u32 %v4801, 3
        %vm4803 = vcmp.lt.s32.totalorder %v4802, 2
        %vm4804 = vcmp.eq.s32.totalorder %v4802, 0
        %v4805 = vxor.u32 %v4799, 2147483648
        %v4806 = vsel %vm4804, %v4798, %v4805
        %vm4807 = vcmp.eq.s32.totalorder %v4802, 2
        %v4808 = vxor.u32 %v4798, 2147483648
        %v4809 = vsel %vm4807, %v4808, %v4799
        %v4810 = vsel %vm4803, %v4806, %v4809
        %v4811 = vsel %vm4800, nan, %v4810
        %s4812 = scalar_lea.vmem %s313, 232 [#allocation4]
        %4813 = vst.msk [vmem:[%s4812] sm:$0xff] %vm1924, %v4811
        %v4814 = vmul.f32 %v1818, 0.00031622776
        %v4815 = vmul.f32 %v1819, 0.00031622776
        %v4816 = vand.u32 2147483647, %v4814
        %vm4817 = vcmp.le.f32.partialorder %v4816, 0.7853982
        %vm4818 = vcmp.lt.s32.totalorder %v4814, 0
        %v4819 = vand.u32 %v4814, 2139095040
        %v4820 = vshrl.u32 %v4819, 23
        %v4821 = vsub.s32 %v4820, 127
        %v4822 = vand.u32 2147483647, %v4814
        %v4823 = vand.u32 %v4822, 8388607
        %v4824 = vor.u32 %v4823, 8388608
        %v4825 = vsub.s32 0, %v4824
        %v4826 = vadd.s32 %v4821, 1
        %vm4827 = vcmp.gt.s32.totalorder %v4826, 0
        %v4828 = vsel %vm4827, %v4826, 0
        %v4829 = vshrl.u32 %v4828, 5
        %v4830 = vand.u32 %v4828, 31
        %v4831 = vsub.s32 32, %v4830
        %v4832 = vshrl.u32 683565275, %v4831
        %v4833 = vshll.u32 683565275, %v4830
        %v4834 = vshrl.u32 2475754826, %v4831
        %v4835 = vor.u32 %v4833, %v4834
        %v4836 = vshll.u32 2475754826, %v4830
        %v4837 = vshrl.u32 2131351028, %v4831
        %v4838 = vor.u32 %v4836, %v4837
        %v4839 = vshll.u32 2131351028, %v4830
        %v4840 = vshrl.u32 2102212464, %v4831
        %v4841 = vor.u32 %v4839, %v4840
        %v4842 = vshll.u32 2102212464, %v4830
        %v4843 = vshrl.u32 920167782, %v4831
        %v4844 = vor.u32 %v4842, %v4843
        %v4845 = vshll.u32 920167782, %v4830
        %v4846 = vshrl.u32 1326507024, %v4831
        %v4847 = vor.u32 %v4845, %v4846
        %vm4848 = vcmp.lt.s32.totalorder %v4829, 1
        %vm4849 = vcmp.lt.s32.totalorder %v4829, 2
        %vm4850 = vcmp.lt.s32.totalorder %v4829, 3
        %vm4851 = vcmp.lt.s32.totalorder %v4829, 4
        %v4852 = vsel %vm4848, %v4832, %v4835
        %v4853 = vsel %vm4851, %v4841, 2102212464
        %v4854 = vsel %vm4850, %v4838, %v4853
        %v4855 = vsel %vm4849, %v4852, %v4854
        %v4856 = vsel %vm4848, %v4835, %v4838
        %v4857 = vsel %vm4851, %v4844, 920167782
        %v4858 = vsel %vm4850, %v4841, %v4857
        %v4859 = vsel %vm4849, %v4856, %v4858
        %v4860 = vsel %vm4848, %v4838, %v4841
        %v4861 = vsel %vm4851, %v4847, 1326507024
        %v4862 = vsel %vm4850, %v4844, %v4861
        %v4863 = vsel %vm4849, %v4860, %v4862
        %v4864 = vshll.u32 %v4824, 8
        %v4865 = vmul.u32.u64.compose %v4864, %v4863
        %v4866 = vextract.low.u32 %v4865
        %v4867 = vextract.high.u32 %v4865
        %v4868 = vmul.u32.u64.compose %v4864, %v4859
        %v4869 = vextract.low.u32 %v4868
        %v4870 = vextract.high.u32 %v4868
        %v4871 = vmul.u32 %v4864, %v4855
        %v4872 = vadd.s32 %v4867, %v4869
        %vm4873 = vc.u32 %v4867, %v4869
        %v4874 = vadd.s32 %v4870, 1
        %v4875 = vsel %vm4873, %v4874, %v4870
        %v4876 = vadd.s32 %v4871, %v4875
        %v4877 = vadd.s32 %v4876, 536870912
        %v4878 = vshrl.u32 %v4877, 30
        %v4879 = vshll.u32 %v4878, 30
        %v4880 = vsub.s32 %v4876, %v4879
        %vm4881 = vcmp.lt.s32.totalorder %v4880, 0
        %v4882 = vsub.s32 0, %v4880
        %v4883 = vsel %vm4881, %v4882, %v4880
        %v4884 = vclz %v4883
        %v4885 = vsub.s32 %v4884, 2
        %vm4886 = vcmp.gt.s32.totalorder 0, %v4885
        %v4887 = vsel %vm4886, 0, %v4885
        %v4888 = vsub.s32 32, %v4887
        %v4889 = vshll.u32 %v4880, %v4887
        %v4890 = vshrl.u32 %v4872, %v4888
        %v4891 = vor.u32 %v4889, %v4890
        %v4892 = vsub.s32 4294967266, %v4887
        %v4893 = vadd.s32 %v4892, 127
        %v4894 = vshll.u32 %v4893, 23
        %v4895 = vor.u32 4788187, %v4894
        %v4896 = vand.u32 2147483647, %v4895
        %v4898 = vcvt.s32.f32 %v4891
        %v4899 = vmul.f32 %v4898, %v4896
        %v4900 = vxor.u32 %v4899, 2147483648
        %v4901 = vsel %vm4818, %v4900, %v4899
        %v4902 = vsub.s32 4, %v4878
        %v4903 = vsel %vm4818, %v4902, %v4878
        %v4904 = vsel %vm4817, %v4814, %v4901
        %v4905 = vsel %vm4817, 0, %v4903
        %v4906 = vcosq.f32.pop %v4904
        %v4907 = vsinq.f32.pop %v4904
        %vm4908 = vweird.f32 %v4814
        %v4909 = vadd.s32 %v4905, 3
        %v4910 = vand.u32 %v4909, 3
        %vm4911 = vcmp.lt.s32.totalorder %v4910, 2
        %vm4912 = vcmp.eq.s32.totalorder %v4910, 0
        %v4913 = vxor.u32 %v4907, 2147483648
        %v4914 = vsel %vm4912, %v4906, %v4913
        %vm4915 = vcmp.eq.s32.totalorder %v4910, 2
        %v4916 = vxor.u32 %v4906, 2147483648
        %v4917 = vsel %vm4915, %v4916, %v4907
        %v4918 = vsel %vm4911, %v4914, %v4917
        %v4919 = vsel %vm4908, nan, %v4918
        %s4920 = scalar_lea.vmem %s313, 112 [#allocation4]
        %4921 = vst.msk [vmem:[%s4920] sm:$0xff] %vm1924, %v4919
        %v4922 = vand.u32 2147483647, %v4815
        %vm4923 = vcmp.le.f32.partialorder %v4922, 0.7853982
        %vm4924 = vcmp.lt.s32.totalorder %v4815, 0
        %v4925 = vand.u32 %v4815, 2139095040
        %v4926 = vshrl.u32 %v4925, 23
        %v4927 = vsub.s32 %v4926, 127
        %v4928 = vand.u32 2147483647, %v4815
        %v4929 = vand.u32 %v4928, 8388607
        %v4930 = vor.u32 %v4929, 8388608
        %v4931 = vsub.s32 0, %v4930
        %v4932 = vadd.s32 %v4927, 1
        %vm4933 = vcmp.gt.s32.totalorder %v4932, 0
        %v4934 = vsel %vm4933, %v4932, 0
        %v4935 = vshrl.u32 %v4934, 5
        %v4936 = vand.u32 %v4934, 31
        %v4937 = vsub.s32 32, %v4936
        %v4938 = vshrl.u32 683565275, %v4937
        %v4939 = vshll.u32 683565275, %v4936
        %v4940 = vshrl.u32 2475754826, %v4937
        %v4941 = vor.u32 %v4939, %v4940
        %v4942 = vshll.u32 2475754826, %v4936
        %v4943 = vshrl.u32 2131351028, %v4937
        %v4944 = vor.u32 %v4942, %v4943
        %v4945 = vshll.u32 2131351028, %v4936
        %v4946 = vshrl.u32 2102212464, %v4937
        %v4947 = vor.u32 %v4945, %v4946
        %v4948 = vshll.u32 2102212464, %v4936
        %v4949 = vshrl.u32 920167782, %v4937
        %v4950 = vor.u32 %v4948, %v4949
        %v4951 = vshll.u32 920167782, %v4936
        %v4952 = vshrl.u32 1326507024, %v4937
        %v4953 = vor.u32 %v4951, %v4952
        %vm4954 = vcmp.lt.s32.totalorder %v4935, 1
        %vm4955 = vcmp.lt.s32.totalorder %v4935, 2
        %vm4956 = vcmp.lt.s32.totalorder %v4935, 3
        %vm4957 = vcmp.lt.s32.totalorder %v4935, 4
        %v4958 = vsel %vm4954, %v4938, %v4941
        %v4959 = vsel %vm4957, %v4947, 2102212464
        %v4960 = vsel %vm4956, %v4944, %v4959
        %v4961 = vsel %vm4955, %v4958, %v4960
        %v4962 = vsel %vm4954, %v4941, %v4944
        %v4963 = vsel %vm4957, %v4950, 920167782
        %v4964 = vsel %vm4956, %v4947, %v4963
        %v4965 = vsel %vm4955, %v4962, %v4964
        %v4966 = vsel %vm4954, %v4944, %v4947
        %v4967 = vsel %vm4957, %v4953, 1326507024
        %v4968 = vsel %vm4956, %v4950, %v4967
        %v4969 = vsel %vm4955, %v4966, %v4968
        %v4970 = vshll.u32 %v4930, 8
        %v4971 = vmul.u32.u64.compose %v4970, %v4969
        %v4972 = vextract.low.u32 %v4971
        %v4973 = vextract.high.u32 %v4971
        %v4974 = vmul.u32.u64.compose %v4970, %v4965
        %v4975 = vextract.low.u32 %v4974
        %v4976 = vextract.high.u32 %v4974
        %v4977 = vmul.u32 %v4970, %v4961
        %v4978 = vadd.s32 %v4973, %v4975
        %vm4979 = vc.u32 %v4973, %v4975
        %v4980 = vadd.s32 %v4976, 1
        %v4981 = vsel %vm4979, %v4980, %v4976
        %v4982 = vadd.s32 %v4977, %v4981
        %v4983 = vadd.s32 %v4982, 536870912
        %v4984 = vshrl.u32 %v4983, 30
        %v4985 = vshll.u32 %v4984, 30
        %v4986 = vsub.s32 %v4982, %v4985
        %vm4987 = vcmp.lt.s32.totalorder %v4986, 0
        %v4988 = vsub.s32 0, %v4986
        %v4989 = vsel %vm4987, %v4988, %v4986
        %v4990 = vclz %v4989
        %v4991 = vsub.s32 %v4990, 2
        %vm4992 = vcmp.gt.s32.totalorder 0, %v4991
        %v4993 = vsel %vm4992, 0, %v4991
        %v4994 = vsub.s32 32, %v4993
        %v4995 = vshll.u32 %v4986, %v4993
        %v4996 = vshrl.u32 %v4978, %v4994
        %v4997 = vor.u32 %v4995, %v4996
        %v4998 = vsub.s32 4294967266, %v4993
        %v4999 = vadd.s32 %v4998, 127
        %v5000 = vshll.u32 %v4999, 23
        %v5001 = vor.u32 4788187, %v5000
        %v5002 = vand.u32 2147483647, %v5001
        %v5004 = vcvt.s32.f32 %v4997
        %v5005 = vmul.f32 %v5004, %v5002
        %v5006 = vxor.u32 %v5005, 2147483648
        %v5007 = vsel %vm4924, %v5006, %v5005
        %v5008 = vsub.s32 4, %v4984
        %v5009 = vsel %vm4924, %v5008, %v4984
        %v5010 = vsel %vm4923, %v4815, %v5007
        %v5011 = vsel %vm4923, 0, %v5009
        %v5012 = vcosq.f32.pop %v5010
        %v5013 = vsinq.f32.pop %v5010
        %vm5014 = vweird.f32 %v4815
        %v5015 = vadd.s32 %v5011, 3
        %v5016 = vand.u32 %v5015, 3
        %vm5017 = vcmp.lt.s32.totalorder %v5016, 2
        %vm5018 = vcmp.eq.s32.totalorder %v5016, 0
        %v5019 = vxor.u32 %v5013, 2147483648
        %v5020 = vsel %vm5018, %v5012, %v5019
        %vm5021 = vcmp.eq.s32.totalorder %v5016, 2
        %v5022 = vxor.u32 %v5012, 2147483648
        %v5023 = vsel %vm5021, %v5022, %v5013
        %v5024 = vsel %vm5017, %v5020, %v5023
        %v5025 = vsel %vm5014, nan, %v5024
        %s5026 = scalar_lea.vmem %s313, 240 [#allocation4]
        %5027 = vst.msk [vmem:[%s5026] sm:$0xff] %vm1924, %v5025
        %v5028 = vadd.f32 %v4814, 1.5707964
        %v5029 = vand.u32 2147483647, %v5028
        %vm5030 = vcmp.le.f32.partialorder %v5029, 0.7853982
        %vm5031 = vcmp.lt.s32.totalorder %v5028, 0
        %v5032 = vand.u32 %v5028, 2139095040
        %v5033 = vshrl.u32 %v5032, 23
        %v5034 = vsub.s32 %v5033, 127
        %v5035 = vand.u32 2147483647, %v5028
        %v5036 = vand.u32 %v5035, 8388607
        %v5037 = vor.u32 %v5036, 8388608
        %v5038 = vsub.s32 0, %v5037
        %v5039 = vadd.s32 %v5034, 1
        %vm5040 = vcmp.gt.s32.totalorder %v5039, 0
        %v5041 = vsel %vm5040, %v5039, 0
        %v5042 = vshrl.u32 %v5041, 5
        %v5043 = vand.u32 %v5041, 31
        %v5044 = vsub.s32 32, %v5043
        %v5045 = vshrl.u32 683565275, %v5044
        %v5046 = vshll.u32 683565275, %v5043
        %v5047 = vshrl.u32 2475754826, %v5044
        %v5048 = vor.u32 %v5046, %v5047
        %v5049 = vshll.u32 2475754826, %v5043
        %v5050 = vshrl.u32 2131351028, %v5044
        %v5051 = vor.u32 %v5049, %v5050
        %v5052 = vshll.u32 2131351028, %v5043
        %v5053 = vshrl.u32 2102212464, %v5044
        %v5054 = vor.u32 %v5052, %v5053
        %v5055 = vshll.u32 2102212464, %v5043
        %v5056 = vshrl.u32 920167782, %v5044
        %v5057 = vor.u32 %v5055, %v5056
        %v5058 = vshll.u32 920167782, %v5043
        %v5059 = vshrl.u32 1326507024, %v5044
        %v5060 = vor.u32 %v5058, %v5059
        %vm5061 = vcmp.lt.s32.totalorder %v5042, 1
        %vm5062 = vcmp.lt.s32.totalorder %v5042, 2
        %vm5063 = vcmp.lt.s32.totalorder %v5042, 3
        %vm5064 = vcmp.lt.s32.totalorder %v5042, 4
        %v5065 = vsel %vm5061, %v5045, %v5048
        %v5066 = vsel %vm5064, %v5054, 2102212464
        %v5067 = vsel %vm5063, %v5051, %v5066
        %v5068 = vsel %vm5062, %v5065, %v5067
        %v5069 = vsel %vm5061, %v5048, %v5051
        %v5070 = vsel %vm5064, %v5057, 920167782
        %v5071 = vsel %vm5063, %v5054, %v5070
        %v5072 = vsel %vm5062, %v5069, %v5071
        %v5073 = vsel %vm5061, %v5051, %v5054
        %v5074 = vsel %vm5064, %v5060, 1326507024
        %v5075 = vsel %vm5063, %v5057, %v5074
        %v5076 = vsel %vm5062, %v5073, %v5075
        %v5077 = vshll.u32 %v5037, 8
        %v5078 = vmul.u32.u64.compose %v5077, %v5076
        %v5079 = vextract.low.u32 %v5078
        %v5080 = vextract.high.u32 %v5078
        %v5081 = vmul.u32.u64.compose %v5077, %v5072
        %v5082 = vextract.low.u32 %v5081
        %v5083 = vextract.high.u32 %v5081
        %v5084 = vmul.u32 %v5077, %v5068
        %v5085 = vadd.s32 %v5080, %v5082
        %vm5086 = vc.u32 %v5080, %v5082
        %v5087 = vadd.s32 %v5083, 1
        %v5088 = vsel %vm5086, %v5087, %v5083
        %v5089 = vadd.s32 %v5084, %v5088
        %v5090 = vadd.s32 %v5089, 536870912
        %v5091 = vshrl.u32 %v5090, 30
        %v5092 = vshll.u32 %v5091, 30
        %v5093 = vsub.s32 %v5089, %v5092
        %vm5094 = vcmp.lt.s32.totalorder %v5093, 0
        %v5095 = vsub.s32 0, %v5093
        %v5096 = vsel %vm5094, %v5095, %v5093
        %v5097 = vclz %v5096
        %v5098 = vsub.s32 %v5097, 2
        %vm5099 = vcmp.gt.s32.totalorder 0, %v5098
        %v5100 = vsel %vm5099, 0, %v5098
        %v5101 = vsub.s32 32, %v5100
        %v5102 = vshll.u32 %v5093, %v5100
        %v5103 = vshrl.u32 %v5085, %v5101
        %v5104 = vor.u32 %v5102, %v5103
        %v5105 = vsub.s32 4294967266, %v5100
        %v5106 = vadd.s32 %v5105, 127
        %v5107 = vshll.u32 %v5106, 23
        %v5108 = vor.u32 4788187, %v5107
        %v5109 = vand.u32 2147483647, %v5108
        %v5111 = vcvt.s32.f32 %v5104
        %v5112 = vmul.f32 %v5111, %v5109
        %v5113 = vxor.u32 %v5112, 2147483648
        %v5114 = vsel %vm5031, %v5113, %v5112
        %v5115 = vsub.s32 4, %v5091
        %v5116 = vsel %vm5031, %v5115, %v5091
        %v5117 = vsel %vm5030, %v5028, %v5114
        %v5118 = vsel %vm5030, 0, %v5116
        %v5119 = vcosq.f32.pop %v5117
        %v5120 = vsinq.f32.pop %v5117
        %vm5121 = vweird.f32 %v5028
        %v5122 = vadd.s32 %v5118, 3
        %v5123 = vand.u32 %v5122, 3
        %vm5124 = vcmp.lt.s32.totalorder %v5123, 2
        %vm5125 = vcmp.eq.s32.totalorder %v5123, 0
        %v5126 = vxor.u32 %v5120, 2147483648
        %v5127 = vsel %vm5125, %v5119, %v5126
        %vm5128 = vcmp.eq.s32.totalorder %v5123, 2
        %v5129 = vxor.u32 %v5119, 2147483648
        %v5130 = vsel %vm5128, %v5129, %v5120
        %v5131 = vsel %vm5124, %v5127, %v5130
        %v5132 = vsel %vm5121, nan, %v5131
        %s5133 = scalar_lea.vmem %s313, 120 [#allocation4]
        %5134 = vst.msk [vmem:[%s5133] sm:$0xff] %vm1924, %v5132
        %v5135 = vadd.f32 %v4815, 1.5707964
        %v5136 = vand.u32 2147483647, %v5135
        %vm5137 = vcmp.le.f32.partialorder %v5136, 0.7853982
        %vm5138 = vcmp.lt.s32.totalorder %v5135, 0
        %v5139 = vand.u32 %v5135, 2139095040
        %v5140 = vshrl.u32 %v5139, 23
        %v5141 = vsub.s32 %v5140, 127
        %v5142 = vand.u32 2147483647, %v5135
        %v5143 = vand.u32 %v5142, 8388607
        %v5144 = vor.u32 %v5143, 8388608
        %v5145 = vsub.s32 0, %v5144
        %v5146 = vadd.s32 %v5141, 1
        %vm5147 = vcmp.gt.s32.totalorder %v5146, 0
        %v5148 = vsel %vm5147, %v5146, 0
        %v5149 = vshrl.u32 %v5148, 5
        %v5150 = vand.u32 %v5148, 31
        %v5151 = vsub.s32 32, %v5150
        %v5152 = vshrl.u32 683565275, %v5151
        %v5153 = vshll.u32 683565275, %v5150
        %v5154 = vshrl.u32 2475754826, %v5151
        %v5155 = vor.u32 %v5153, %v5154
        %v5156 = vshll.u32 2475754826, %v5150
        %v5157 = vshrl.u32 2131351028, %v5151
        %v5158 = vor.u32 %v5156, %v5157
        %v5159 = vshll.u32 2131351028, %v5150
        %v5160 = vshrl.u32 2102212464, %v5151
        %v5161 = vor.u32 %v5159, %v5160
        %v5162 = vshll.u32 2102212464, %v5150
        %v5163 = vshrl.u32 920167782, %v5151
        %v5164 = vor.u32 %v5162, %v5163
        %v5165 = vshll.u32 920167782, %v5150
        %v5166 = vshrl.u32 1326507024, %v5151
        %v5167 = vor.u32 %v5165, %v5166
        %vm5168 = vcmp.lt.s32.totalorder %v5149, 1
        %vm5169 = vcmp.lt.s32.totalorder %v5149, 2
        %vm5170 = vcmp.lt.s32.totalorder %v5149, 3
        %vm5171 = vcmp.lt.s32.totalorder %v5149, 4
        %v5172 = vsel %vm5168, %v5152, %v5155
        %v5173 = vsel %vm5171, %v5161, 2102212464
        %v5174 = vsel %vm5170, %v5158, %v5173
        %v5175 = vsel %vm5169, %v5172, %v5174
        %v5176 = vsel %vm5168, %v5155, %v5158
        %v5177 = vsel %vm5171, %v5164, 920167782
        %v5178 = vsel %vm5170, %v5161, %v5177
        %v5179 = vsel %vm5169, %v5176, %v5178
        %v5180 = vsel %vm5168, %v5158, %v5161
        %v5181 = vsel %vm5171, %v5167, 1326507024
        %v5182 = vsel %vm5170, %v5164, %v5181
        %v5183 = vsel %vm5169, %v5180, %v5182
        %v5184 = vshll.u32 %v5144, 8
        %v5185 = vmul.u32.u64.compose %v5184, %v5183
        %v5186 = vextract.low.u32 %v5185
        %v5187 = vextract.high.u32 %v5185
        %v5188 = vmul.u32.u64.compose %v5184, %v5179
        %v5189 = vextract.low.u32 %v5188
        %v5190 = vextract.high.u32 %v5188
        %v5191 = vmul.u32 %v5184, %v5175
        %v5192 = vadd.s32 %v5187, %v5189
        %vm5193 = vc.u32 %v5187, %v5189
        %v5194 = vadd.s32 %v5190, 1
        %v5195 = vsel %vm5193, %v5194, %v5190
        %v5196 = vadd.s32 %v5191, %v5195
        %v5197 = vadd.s32 %v5196, 536870912
        %v5198 = vshrl.u32 %v5197, 30
        %v5199 = vshll.u32 %v5198, 30
        %v5200 = vsub.s32 %v5196, %v5199
        %vm5201 = vcmp.lt.s32.totalorder %v5200, 0
        %v5202 = vsub.s32 0, %v5200
        %v5203 = vsel %vm5201, %v5202, %v5200
        %v5204 = vclz %v5203
        %v5205 = vsub.s32 %v5204, 2
        %vm5206 = vcmp.gt.s32.totalorder 0, %v5205
        %v5207 = vsel %vm5206, 0, %v5205
        %v5208 = vsub.s32 32, %v5207
        %v5209 = vshll.u32 %v5200, %v5207
        %v5210 = vshrl.u32 %v5192, %v5208
        %v5211 = vor.u32 %v5209, %v5210
        %v5212 = vsub.s32 4294967266, %v5207
        %v5213 = vadd.s32 %v5212, 127
        %v5214 = vshll.u32 %v5213, 23
        %v5215 = vor.u32 4788187, %v5214
        %v5216 = vand.u32 2147483647, %v5215
        %v5218 = vcvt.s32.f32 %v5211
        %v5219 = vmul.f32 %v5218, %v5216
        %v5220 = vxor.u32 %v5219, 2147483648
        %v5221 = vsel %vm5138, %v5220, %v5219
        %v5222 = vsub.s32 4, %v5198
        %v5223 = vsel %vm5138, %v5222, %v5198
        %v5224 = vsel %vm5137, %v5135, %v5221
        %v5225 = vsel %vm5137, 0, %v5223
        %v5226 = vcosq.f32.pop %v5224
        %v5227 = vsinq.f32.pop %v5224
        %vm5228 = vweird.f32 %v5135
        %v5229 = vadd.s32 %v5225, 3
        %v5230 = vand.u32 %v5229, 3
        %vm5231 = vcmp.lt.s32.totalorder %v5230, 2
        %vm5232 = vcmp.eq.s32.totalorder %v5230, 0
        %v5233 = vxor.u32 %v5227, 2147483648
        %v5234 = vsel %vm5232, %v5226, %v5233
        %vm5235 = vcmp.eq.s32.totalorder %v5230, 2
        %v5236 = vxor.u32 %v5226, 2147483648
        %v5237 = vsel %vm5235, %v5236, %v5227
        %v5238 = vsel %vm5231, %v5234, %v5237
        %v5239 = vsel %vm5228, nan, %v5238
        %s5240 = scalar_lea.vmem %s313, 248 [#allocation4]
        %5241 = vst.msk [vmem:[%s5240] sm:$0xff] %vm1924, %v5239
        %s5242 = sand.u32 %s167, 1
        %s5243 = scalar_lea.sflag [#allocation3], %s5242
        %s5244 = sand.u32 %s167, 1
        %s5245 = smul.addr %s5244, 16
        %s5246 = scalar_lea.vmem [#allocation2], %s5245
        %s5247 = sand.u32 %s195, 1
        %s5248 = sand.u32 %s195, 1
        %s5249 = smul.addr %s5248, 256
        %s5250 = scalar_lea.vmem [#allocation4], %s5249
        // Predicated region
        $region41: #{tpu_custom_call.1} parent=39 // pred_check
          %p5251 = pneg %p177
        $region42: #{tpu_custom_call.1} parent=39 // pred_check_branch
          %5253 = sbr.rel (%p5251) target = $region44
        $region43: #{tpu_custom_call.1} parent=39 // pred_region
          %s5255 = ssub.s32 256, 256
          %5256 = vsyncadd %s5243, %s5255
          %s5257 = smul.addr %s26, 2
          %s5258 = smul.addr %s25, 4
          %s5259 = sadd.s32 %s5257, %s5258
          %s5260 = smul.addr %s5259, 128
          %s5261 = scalar_lea.hbm %s5, %s5260
          %s5263 = sshll.u32 %s5246, 4
          %s5264 = int_to_ptr.vmem [resolvable:$true] %s5263
          %5266 = dma.vmem_to_hbm [thread:$0]  %s5264, 256, %s5261, %s5243
        $region44: #{tpu_custom_call.1} parent=39 // pred_fallthru
          _
        // Predicated region
        $region45: #{tpu_custom_call.1} parent=39 // pred_check
          %p5267 = pneg %p205
        $region46: #{tpu_custom_call.1} parent=39 // pred_check_branch
          %5269 = sbr.rel (%p5267) target = $region48
        $region47: #{tpu_custom_call.1} parent=39 // pred_region
          %s5270 = smul.addr %s25, 64
          %s5271 = sadd.s32 %s26, %s5270
          %s5272 = smul.addr %s5271, 8
          %s5273 = scalar_lea.vmem %s6, %s5272
          // Predicated region
          $region49: #{tpu_custom_call.1} parent=47 // pred_check
            _
          $region50: #{tpu_custom_call.1} parent=47 // pred_check_branch
            %5275 = sbr.rel (0) target = $region52
          $region51: #{tpu_custom_call.1} parent=47 // pred_region
            // Predicated region
            $region53: #{tpu_custom_call.1} parent=51 // pred_check
              _
            $region54: #{tpu_custom_call.1} parent=51 // pred_check_branch
              %5277 = sbr.rel (0) target = $region56
            $region55: #{tpu_custom_call.1} parent=51 // pred_region
              // Predicated region
              $region68: #{tpu_custom_call.1} parent=55 // pred_check
                _
              $region69: #{tpu_custom_call.1} parent=55 // pred_check_branch
                %5354 = sbr.rel (0) target = $region71
              $region70: #{tpu_custom_call.1} parent=55 // pred_region
                loop: start=0, step=1, limit=1
                $region72: #{tpu_custom_call.1} parent=70 // loop_pre_header
                  _
                $region73: #{tpu_custom_call.1} parent=70 // loop_header
                  %s5356 = sphi 0, %s5360
                  %p5357 = scmp.ge.s32.totalorder %s5356, 1
                  %s5361 = sphi %s5250, %s5250
                  %s5362 = sphi %s5273, %s5273
                $region74: #{tpu_custom_call.1} parent=70 // loop_header_branch
                  %5359 = sbr.rel (%p5357) target = $region78
                $region75: #{tpu_custom_call.1} parent=70 // loop_body
                  %v5363 = vld [vmem:[%s5361] sm:$0xff]
                  %5364 = vst [vmem:[%s5362] sm:$0xff] %v5363
                  %v5365 = vld [vmem:[%s5361 + $0x8] sm:$0xff]
                  %5366 = vst [vmem:[%s5362 + $0x10] sm:$0xff] %v5365
                  %v5367 = vld [vmem:[%s5361 + $0x10] sm:$0xff]
                  %5368 = vst [vmem:[%s5362 + $0x20] sm:$0xff] %v5367
                  %v5369 = vld [vmem:[%s5361 + $0x18] sm:$0xff]
                  %5370 = vst [vmem:[%s5362 + $0x30] sm:$0xff] %v5369
                  %v5371 = vld [vmem:[%s5361 + $0x20] sm:$0xff]
                  %5372 = vst [vmem:[%s5362 + $0x40] sm:$0xff] %v5371
                  %v5373 = vld [vmem:[%s5361 + $0x28] sm:$0xff]
                  %5374 = vst [vmem:[%s5362 + $0x50] sm:$0xff] %v5373
                  %v5375 = vld [vmem:[%s5361 + $0x30] sm:$0xff]
                  %5376 = vst [vmem:[%s5362 + $0x60] sm:$0xff] %v5375
                  %v5377 = vld [vmem:[%s5361 + $0x38] sm:$0xff]
                  %5378 = vst [vmem:[%s5362 + $0x70] sm:$0xff] %v5377
                  %v5379 = vld [vmem:[%s5361 + $0x40] sm:$0xff]
                  %5380 = vst [vmem:[%s5362 + $0x80] sm:$0xff] %v5379
                  %v5381 = vld [vmem:[%s5361 + $0x48] sm:$0xff]
                  %5382 = vst [vmem:[%s5362 + $0x90] sm:$0xff] %v5381
                  %v5383 = vld [vmem:[%s5361 + $0x50] sm:$0xff]
                  %5384 = vst [vmem:[%s5362 + $0xa0] sm:$0xff] %v5383
                  %v5385 = vld [vmem:[%s5361 + $0x58] sm:$0xff]
                  %5386 = vst [vmem:[%s5362 + $0xb0] sm:$0xff] %v5385
                  %v5387 = vld [vmem:[%s5361 + $0x60] sm:$0xff]
                  %5388 = vst [vmem:[%s5362 + $0xc0] sm:$0xff] %v5387
                  %v5389 = vld [vmem:[%s5361 + $0x68] sm:$0xff]
                  %5390 = vst [vmem:[%s5362 + $0xd0] sm:$0xff] %v5389
                  %v5391 = vld [vmem:[%s5361 + $0x70] sm:$0xff]
                  %5392 = vst [vmem:[%s5362 + $0xe0] sm:$0xff] %v5391
                  %v5393 = vld [vmem:[%s5361 + $0x78] sm:$0xff]
                  %5394 = vst [vmem:[%s5362 + $0xf0] sm:$0xff] %v5393
                  %v5395 = vld [vmem:[%s5361 + $0x80] sm:$0xff]
                  %5396 = vst [vmem:[%s5362 + $0x100] sm:$0xff] %v5395
                  %v5397 = vld [vmem:[%s5361 + $0x88] sm:$0xff]
                  %5398 = vst [vmem:[%s5362 + $0x110] sm:$0xff] %v5397
                  %v5399 = vld [vmem:[%s5361 + $0x90] sm:$0xff]
                  %5400 = vst [vmem:[%s5362 + $0x120] sm:$0xff] %v5399
                  %v5401 = vld [vmem:[%s5361 + $0x98] sm:$0xff]
                  %5402 = vst [vmem:[%s5362 + $0x130] sm:$0xff] %v5401
                  %v5403 = vld [vmem:[%s5361 + $0xa0] sm:$0xff]
                  %5404 = vst [vmem:[%s5362 + $0x140] sm:$0xff] %v5403
                  %v5405 = vld [vmem:[%s5361 + $0xa8] sm:$0xff]
                  %5406 = vst [vmem:[%s5362 + $0x150] sm:$0xff] %v5405
                  %v5407 = vld [vmem:[%s5361 + $0xb0] sm:$0xff]
                  %5408 = vst [vmem:[%s5362 + $0x160] sm:$0xff] %v5407
                  %v5409 = vld [vmem:[%s5361 + $0xb8] sm:$0xff]
                  %5410 = vst [vmem:[%s5362 + $0x170] sm:$0xff] %v5409
                  %v5411 = vld [vmem:[%s5361 + $0xc0] sm:$0xff]
                  %5412 = vst [vmem:[%s5362 + $0x180] sm:$0xff] %v5411
                  %v5413 = vld [vmem:[%s5361 + $0xc8] sm:$0xff]
                  %5414 = vst [vmem:[%s5362 + $0x190] sm:$0xff] %v5413
                  %v5415 = vld [vmem:[%s5361 + $0xd0] sm:$0xff]
                  %5416 = vst [vmem:[%s5362 + $0x1a0] sm:$0xff] %v5415
                  %v5417 = vld [vmem:[%s5361 + $0xd8] sm:$0xff]
                  %5418 = vst [vmem:[%s5362 + $0x1b0] sm:$0xff] %v5417
                  %v5419 = vld [vmem:[%s5361 + $0xe0] sm:$0xff]
                  %5420 = vst [vmem:[%s5362 + $0x1c0] sm:$0xff] %v5419
                  %v5421 = vld [vmem:[%s5361 + $0xe8] sm:$0xff]
                  %5422 = vst [vmem:[%s5362 + $0x1d0] sm:$0xff] %v5421
                  %v5423 = vld [vmem:[%s5361 + $0xf0] sm:$0xff]
                  %5424 = vst [vmem:[%s5362 + $0x1e0] sm:$0xff] %v5423
                  %v5425 = vld [vmem:[%s5361 + $0xf8] sm:$0xff]
                  %5426 = vst [vmem:[%s5362 + $0x1f0] sm:$0xff] %v5425
                $region76: #{tpu_custom_call.1} parent=70 // loop_footer
                  %s5360 = sadd.s32 1, %s5356
                $region77: #{tpu_custom_call.1} parent=70 // loop_footer_branch
                  %5355 = sbr.rel target = $region73
                $region78: #{tpu_custom_call.1} parent=70 // loop_exit
                  _
              $region71: #{tpu_custom_call.1} parent=55 // pred_fallthru
                _
              // Predicated region
              $region79: #{tpu_custom_call.1} parent=55 // pred_check
                _
              $region80: #{tpu_custom_call.1} parent=55 // pred_check_branch
                %5428 = sbr.rel target = $region82
              $region81: #{tpu_custom_call.1} parent=55 // pred_region
                _
              $region82: #{tpu_custom_call.1} parent=55 // pred_fallthru
                _
            $region56: #{tpu_custom_call.1} parent=51 // pred_fallthru
              _
            // Predicated region
            $region57: #{tpu_custom_call.1} parent=51 // pred_check
              _
            $region58: #{tpu_custom_call.1} parent=51 // pred_check_branch
              %5279 = sbr.rel target = $region60
            $region59: #{tpu_custom_call.1} parent=51 // pred_region
              loop: start=0, step=1, limit=1
              $region61: #{tpu_custom_call.1} parent=59 // loop_pre_header
                _
              $region62: #{tpu_custom_call.1} parent=59 // loop_header
                %s5282 = sphi 0, %s5286
                %p5283 = scmp.ge.s32.totalorder %s5282, 1
                %s5287 = sphi %s5250, %s5250
                %s5288 = sphi %s5273, %s5273
              $region63: #{tpu_custom_call.1} parent=59 // loop_header_branch
                %5285 = sbr.rel (%p5283) target = $region67
              $region64: #{tpu_custom_call.1} parent=59 // loop_body
                %v5289 = vld [vmem:[%s5287] sm:$0xff]
                %5290 = vst [vmem:[%s5288] sm:$0xff] %v5289
                %v5291 = vld [vmem:[%s5287 + $0x8] sm:$0xff]
                %5292 = vst [vmem:[%s5288 + $0x10] sm:$0xff] %v5291
                %v5293 = vld [vmem:[%s5287 + $0x10] sm:$0xff]
                %5294 = vst [vmem:[%s5288 + $0x20] sm:$0xff] %v5293
                %v5295 = vld [vmem:[%s5287 + $0x18] sm:$0xff]
                %5296 = vst [vmem:[%s5288 + $0x30] sm:$0xff] %v5295
                %v5297 = vld [vmem:[%s5287 + $0x20] sm:$0xff]
                %5298 = vst [vmem:[%s5288 + $0x40] sm:$0xff] %v5297
                %v5299 = vld [vmem:[%s5287 + $0x28] sm:$0xff]
                %5300 = vst [vmem:[%s5288 + $0x50] sm:$0xff] %v5299
                %v5301 = vld [vmem:[%s5287 + $0x30] sm:$0xff]
                %5302 = vst [vmem:[%s5288 + $0x60] sm:$0xff] %v5301
                %v5303 = vld [vmem:[%s5287 + $0x38] sm:$0xff]
                %5304 = vst [vmem:[%s5288 + $0x70] sm:$0xff] %v5303
                %v5305 = vld [vmem:[%s5287 + $0x40] sm:$0xff]
                %5306 = vst [vmem:[%s5288 + $0x80] sm:$0xff] %v5305
                %v5307 = vld [vmem:[%s5287 + $0x48] sm:$0xff]
                %5308 = vst [vmem:[%s5288 + $0x90] sm:$0xff] %v5307
                %v5309 = vld [vmem:[%s5287 + $0x50] sm:$0xff]
                %5310 = vst [vmem:[%s5288 + $0xa0] sm:$0xff] %v5309
                %v5311 = vld [vmem:[%s5287 + $0x58] sm:$0xff]
                %5312 = vst [vmem:[%s5288 + $0xb0] sm:$0xff] %v5311
                %v5313 = vld [vmem:[%s5287 + $0x60] sm:$0xff]
                %5314 = vst [vmem:[%s5288 + $0xc0] sm:$0xff] %v5313
                %v5315 = vld [vmem:[%s5287 + $0x68] sm:$0xff]
                %5316 = vst [vmem:[%s5288 + $0xd0] sm:$0xff] %v5315
                %v5317 = vld [vmem:[%s5287 + $0x70] sm:$0xff]
                %5318 = vst [vmem:[%s5288 + $0xe0] sm:$0xff] %v5317
                %v5319 = vld [vmem:[%s5287 + $0x78] sm:$0xff]
                %5320 = vst [vmem:[%s5288 + $0xf0] sm:$0xff] %v5319
                %v5321 = vld [vmem:[%s5287 + $0x80] sm:$0xff]
                %5322 = vst [vmem:[%s5288 + $0x100] sm:$0xff] %v5321
                %v5323 = vld [vmem:[%s5287 + $0x88] sm:$0xff]
                %5324 = vst [vmem:[%s5288 + $0x110] sm:$0xff] %v5323
                %v5325 = vld [vmem:[%s5287 + $0x90] sm:$0xff]
                %5326 = vst [vmem:[%s5288 + $0x120] sm:$0xff] %v5325
                %v5327 = vld [vmem:[%s5287 + $0x98] sm:$0xff]
                %5328 = vst [vmem:[%s5288 + $0x130] sm:$0xff] %v5327
                %v5329 = vld [vmem:[%s5287 + $0xa0] sm:$0xff]
                %5330 = vst [vmem:[%s5288 + $0x140] sm:$0xff] %v5329
                %v5331 = vld [vmem:[%s5287 + $0xa8] sm:$0xff]
                %5332 = vst [vmem:[%s5288 + $0x150] sm:$0xff] %v5331
                %v5333 = vld [vmem:[%s5287 + $0xb0] sm:$0xff]
                %5334 = vst [vmem:[%s5288 + $0x160] sm:$0xff] %v5333
                %v5335 = vld [vmem:[%s5287 + $0xb8] sm:$0xff]
                %5336 = vst [vmem:[%s5288 + $0x170] sm:$0xff] %v5335
                %v5337 = vld [vmem:[%s5287 + $0xc0] sm:$0xff]
                %5338 = vst [vmem:[%s5288 + $0x180] sm:$0xff] %v5337
                %v5339 = vld [vmem:[%s5287 + $0xc8] sm:$0xff]
                %5340 = vst [vmem:[%s5288 + $0x190] sm:$0xff] %v5339
                %v5341 = vld [vmem:[%s5287 + $0xd0] sm:$0xff]
                %5342 = vst [vmem:[%s5288 + $0x1a0] sm:$0xff] %v5341
                %v5343 = vld [vmem:[%s5287 + $0xd8] sm:$0xff]
                %5344 = vst [vmem:[%s5288 + $0x1b0] sm:$0xff] %v5343
                %v5345 = vld [vmem:[%s5287 + $0xe0] sm:$0xff]
                %5346 = vst [vmem:[%s5288 + $0x1c0] sm:$0xff] %v5345
                %v5347 = vld [vmem:[%s5287 + $0xe8] sm:$0xff]
                %5348 = vst [vmem:[%s5288 + $0x1d0] sm:$0xff] %v5347
                %v5349 = vld [vmem:[%s5287 + $0xf0] sm:$0xff]
                %5350 = vst [vmem:[%s5288 + $0x1e0] sm:$0xff] %v5349
                %v5351 = vld [vmem:[%s5287 + $0xf8] sm:$0xff]
                %5352 = vst [vmem:[%s5288 + $0x1f0] sm:$0xff] %v5351
              $region65: #{tpu_custom_call.1} parent=59 // loop_footer
                %s5286 = sadd.s32 1, %s5282
              $region66: #{tpu_custom_call.1} parent=59 // loop_footer_branch
                %5281 = sbr.rel target = $region62
              $region67: #{tpu_custom_call.1} parent=59 // loop_exit
                _
            $region60: #{tpu_custom_call.1} parent=51 // pred_fallthru
              _
          $region52: #{tpu_custom_call.1} parent=47 // pred_fallthru
            _
          %5429 = vnop
        $region48: #{tpu_custom_call.1} parent=39 // pred_fallthru
          _
      $region40: #{tpu_custom_call.1} parent=5 // pred_fallthru
        _
      %p5430 = scmp.le.s32.totalorder 2, %s16
      // Predicated region
      $region83: #{tpu_custom_call.1} parent=5 // pred_check
        %p5431 = pneg %p5430
      $region84: #{tpu_custom_call.1} parent=5 // pred_check_branch
        %5433 = sbr.rel (%p5431) target = $region86
      $region85: #{tpu_custom_call.1} parent=5 // pred_region
        %s5434 = ssub.s32 %s16, 2
        // Predicated region
        $region87: #{tpu_custom_call.1} parent=85 // pred_check
          %p5435 = pneg %p183
        $region88: #{tpu_custom_call.1} parent=85 // pred_check_branch
          %5437 = sbr.rel (%p5435) target = $region90
        $region89: #{tpu_custom_call.1} parent=85 // pred_region
          %s5438 = sand.u32 %s168, 1
          %s5439 = scalar_lea.sflag [#allocation3], %s5438
          %s5440 = sand.u32 %s168, 1
          %s5441 = smul.addr %s5440, 16
          %s5442 = scalar_lea.vmem [#allocation2], %s5441
          %5443 = dma.done %s5439, 256
        $region90: #{tpu_custom_call.1} parent=85 // pred_fallthru
          _
        // Predicated region
        $region91: #{tpu_custom_call.1} parent=85 // pred_check
          %p5444 = pneg %p211
        $region92: #{tpu_custom_call.1} parent=85 // pred_check_branch
          %5446 = sbr.rel (%p5444) target = $region94
        $region93: #{tpu_custom_call.1} parent=85 // pred_region
          %s5447 = sand.u32 %s196, 1
          %s5448 = sand.u32 %s196, 1
          %s5449 = smul.addr %s5448, 256
          %s5450 = scalar_lea.vmem [#allocation4], %s5449
        $region94: #{tpu_custom_call.1} parent=85 // pred_fallthru
          _
      $region86: #{tpu_custom_call.1} parent=5 // pred_fallthru
        _
    $region6: #{tpu_custom_call.1} parent=1 // loop_footer
      %s20 = sadd.s32 1, %s16
    $region7: #{tpu_custom_call.1} parent=1 // loop_footer_branch
      %15 = sbr.rel target = $region3
    $region8: #{tpu_custom_call.1} parent=1 // loop_exit
      _
    %5451 = vsyncpa [#allocation3], 1
    %s5452 = scalar_lea.sflag [#allocation3], 1
    %5453 = vsyncpa %s5452, 1

</llo_original>
